<compile_context>
chip_gen: v7x
topology: tpu7x:2x2x1
jax: 0.10.0
libtpu: 0.0.40
codegen_flags: <defaults>
</compile_context>

<pallas_src>
import jax
import jax.numpy as jnp
from jax import lax
from jax.experimental import pallas as pl
from jax.experimental.pallas import tpu as pltpu

# ---- small synthetic hyper-parameters (DeBERTa-v3-style encoder) ------------
VOCAB = 128
NUM_LAYERS = 2
NUM_HEADS = 4
HIDDEN = 128                      # lane-dense (128 lanes)
HEAD_DIM = HIDDEN // NUM_HEADS    # 32
FFN = 256
LN_EPS = 1e-7

NUM_CATEGORIES = 5
NUM_SUBCATEGORIES = 7
NUM_ASSIGNMENT_GROUPS = 3
NUM_TOTAL = NUM_CATEGORIES + NUM_SUBCATEGORIES + NUM_ASSIGNMENT_GROUPS
HEAD_PAD = 128                    # pad fused-head output dim to a full lane width


# ---------------------------- kernel helpers ---------------------------------
def _layer_norm(x, g, b):
    # One-pass form: E[x] and E[x^2] are independent reductions -> both XLU
    # reduces can overlap (vs. the serialized mean -> (x-mu)^2 -> mean chain).
    mu = jnp.mean(x, axis=-1, keepdims=True)
    ms = jnp.mean(x * x, axis=-1, keepdims=True)
    var = ms - mu * mu
    return (x - mu) * lax.rsqrt(var + LN_EPS) * g + b


# ------------------------------ fused kernel ---------------------------------
def fused_forward_kernel(ids_ref, mask_ref, emb_ref, eg_ref, eb_ref,
                         wq_ref, bq_ref, wk_ref, bk_ref, wv_ref, bv_ref,
                         wo_ref, bo_ref, g1_ref, be1_ref,
                         w1_ref, b1_ref, w2_ref, b2_ref, g2_ref, be2_ref,
                         wh_ref, bh_ref, out_ref):
    S = ids_ref.shape[-1]
    H = emb_ref.shape[-1]

    ids = ids_ref[...].reshape(S)                       # (S,)  int32
    m = mask_ref[...].reshape(S)                        # (S,)  f32

    # In-kernel embedding lookup as a one-hot matmul (keeps the whole forward
    # inside one pallas_call; no gather lowering, no extra HBM round trip).
    one_hot = (lax.broadcasted_iota(jnp.int32, (S, VOCAB), 1)
               == ids[:, None]).astype(jnp.float32)
    x0 = jnp.dot(one_hot, emb_ref[...], preferred_element_type=jnp.float32)

    # Embedding LayerNorm + HF-style mask multiply (f32).
    x = _layer_norm(x0, eg_ref[...], eb_ref[...]) * m[:, None]

    # Additive key mask, built ONCE; broadcasts over (NUM_HEADS, S, S).
    neg = ((1.0 - m) * (-1e9)).reshape(1, 1, S)

    def layer(l, x):
        xb = x.astype(jnp.bfloat16)
        wql, wkl, wvl = wq_ref[l], wk_ref[l], wv_ref[l]   # (NH, H, hd) bf16
        bql, bkl, bvl = bq_ref[l], bk_ref[l], bv_ref[l]   # (NH, 1, hd) f32
        wol = wo_ref[l]                                    # (NH, hd, H) bf16

        # Per-head projections stacked on the MAJOR axis: no 32-lane slices,
        # no lane concat, no minor-dim reshape/transpose.
        qs, ks, vs = [], [], []
        for n in range(NUM_HEADS):
            qs.append((jnp.dot(xb, wql[n], preferred_element_type=jnp.float32)
                       + bql[n])[None])
            ks.append((jnp.dot(xb, wkl[n], preferred_element_type=jnp.float32)
                       + bkl[n])[None])
            vs.append((jnp.dot(xb, wvl[n], preferred_element_type=jnp.float32)
                       + bvl[n])[None])
        qh = jnp.concatenate(qs, axis=0).astype(jnp.bfloat16)   # (NH, S, hd)
        kh = jnp.concatenate(ks, axis=0).astype(jnp.bfloat16)
        vh = jnp.concatenate(vs, axis=0).astype(jnp.bfloat16)

        # 1/sqrt(hd) is baked into wq/bq at init -> no (NH,S,S) scale multiply.
        s = jnp.einsum('hqd,hkd->hqk', qh, kh,
                       preferred_element_type=jnp.float32) + neg
        mx = jnp.max(s, axis=-1, keepdims=True)
        e = jnp.exp(s - mx)
        p = e * pl.reciprocal(jnp.sum(e, axis=-1, keepdims=True), approx=True)
        ctx = jnp.einsum('hqk,hkd->hqd', p.astype(jnp.bfloat16), vh,
                         preferred_element_type=jnp.float32)     # (NH, S, hd)

        # Output projection as a per-head sum (major-axis slices only).
        attn = bo_ref[l]                                          # (1, H)
        for n in range(NUM_HEADS):
            attn = attn + jnp.dot(ctx[n].astype(jnp.bfloat16), wol[n],
                                  preferred_element_type=jnp.float32)
        h1 = _layer_norm(x + attn, g1_ref[l], be1_ref[l])

        ff = jnp.dot(h1.astype(jnp.bfloat16), w1_ref[l],
                     preferred_element_type=jnp.float32) + b1_ref[l]
        # TODO(synk): HF DeBERTa uses exact (erf) GELU; tanh approximation here.
        ff = jax.nn.gelu(ff, approximate=True)
        ff = jnp.dot(ff.astype(jnp.bfloat16), w2_ref[l],
                     preferred_element_type=jnp.float32) + b2_ref[l]
        return _layer_norm(h1 + ff, g2_ref[l], be2_ref[l])

    # TODO(synk): convert to a layer grid axis with streamed per-layer weight
    #             BlockSpecs when scaling to real DeBERTa sizes (VMEM budget).
    x = lax.fori_loop(0, NUM_LAYERS, layer, x, unroll=True)

    # CLS pooling + fused lane-dense classification heads.
    pooled = x[0:1, :]                                            # (1, H)
    out_ref[0] = jnp.dot(pooled.astype(jnp.bfloat16), wh_ref[...],
                         preferred_element_type=jnp.float32) + bh_ref[...]


# ------------------------------ wrapper ---------------------------------------
def fused_forward(ids3, mask3, p):
    B, _, S = ids3.shape
    weight_args = (p['emb'], p['emb_ln_g'], p['emb_ln_b'],
                   p['wq'], p['bq'], p['wk'], p['bk'], p['wv'], p['bv'],
                   p['wo'], p['bo'], p['ln1_g'], p['ln1_b'],
                   p['w1'], p['b1'], p['w2'], p['b2'], p['ln2_g'], p['ln2_b'],
                   p['wh'], p['bh'])
    args = (ids3, mask3) + weight_args

    def resident(a):   # whole array VMEM-resident; block index constant -> 1 DMA
        nd = a.ndim
        return pl.BlockSpec(a.shape, lambda b, nd=nd: (0,) * nd)

    def per_batch(a):  # (B, 1, X) blocked along batch
        return pl.BlockSpec((1,) + a.shape[1:], lambda b: (b, 0, 0))

    in_specs = ([per_batch(ids3), per_batch(mask3)]
                + [resident(a) for a in weight_args])

    H, F, L, NH, hd = HIDDEN, FFN, NUM_LAYERS, NUM_HEADS, HEAD_DIM
    flops_layer = (2 * S * H * H * 3            # QKV projections
                   + 2 * NH * S * S * hd * 2    # scores + context
                   + 2 * S * H * H              # output projection
                   + 2 * S * H * F * 2)         # FFN
    flops = B * (L * flops_layer + 2 * S * VOCAB * H + 2 * H * HEAD_PAD)
    transcendentals = B * L * (NH * S * S + S * F)
    bytes_accessed = (sum(int(a.size) * a.dtype.itemsize for a in args)
                      + B * HEAD_PAD * 4)

    return pl.pallas_call(
        fused_forward_kernel,
        out_shape=jax.ShapeDtypeStruct((B, 1, HEAD_PAD), jnp.float32),
        grid_spec=pltpu.PrefetchScalarGridSpec(
            num_scalar_prefetch=0,
            grid=(B,),
            in_specs=in_specs,
            out_specs=pl.BlockSpec((1, 1, HEAD_PAD), lambda b: (b, 0, 0)),
        ),
        compiler_params=pltpu.CompilerParams(
            dimension_semantics=("parallel",),
            vmem_limit_bytes=64 * 1024 * 1024),
        cost_estimate=pl.CostEstimate(flops=flops,
                                      transcendentals=transcendentals,
                                      bytes_accessed=bytes_accessed),
    )(*args)


@jax.jit
def deberta_multitask_forward(params, input_ids, attention_mask):
    B, S = input_ids.shape
    ids3 = input_ids.astype(jnp.int32).reshape(B, 1, S)
    mask3 = attention_mask.astype(jnp.float32).reshape(B, 1, S)
    logits = fused_forward(ids3, mask3, params)[:, 0, :]      # (B, HEAD_PAD)
    c0, c1 = NUM_CATEGORIES, NUM_CATEGORIES + NUM_SUBCATEGORIES
    return (logits[:, :c0],
            logits[:, c0:c1],
            logits[:, c1:NUM_TOTAL])


# --------------------------- deterministic init --------------------------------
def init_params(key):
    keys = iter(jax.random.split(key, 16))

    def w(shape, scale=0.02):
        return scale * jax.random.normal(next(keys), shape, jnp.float32)

    L, H, F, NH, hd = NUM_LAYERS, HIDDEN, FFN, NUM_HEADS, HEAD_DIM
    qk_scale = hd ** -0.5     # softmax 1/sqrt(hd) baked into q-projection weights

    # fused, lane-padded classification heads: y = pooled @ wh + bh
    wc = w((H, NUM_CATEGORIES))
    ws = w((H, NUM_SUBCATEGORIES))
    wa = w((H, NUM_ASSIGNMENT_GROUPS))
    wh = jnp.zeros((H, HEAD_PAD), jnp.float32)
    wh = wh.at[:, :NUM_CATEGORIES].set(wc)
    wh = wh.at[:, NUM_CATEGORIES:NUM_CATEGORIES + NUM_SUBCATEGORIES].set(ws)
    wh = wh.at[:, NUM_CATEGORIES + NUM_SUBCATEGORIES:NUM_TOTAL].set(wa)

    params = {
        'emb': w((VOCAB, H)),
        'emb_ln_g': jnp.ones((1, H), jnp.float32),
        'emb_ln_b': jnp.zeros((1, H), jnp.float32),
        # Q/K/V/O stored per-head (heads on a major axis) so the kernel never
        # lane-slices; matmul weights bf16, biases / LN params f32.
        'wq': (w((L, NH, H, hd)) * qk_scale).astype(jnp.bfloat16),
        'bq': jnp.zeros((L, NH, 1, hd), jnp.float32),   # scale baked (zeros anyway)
        'wk': w((L, NH, H, hd)).astype(jnp.bfloat16),
        'bk': jnp.zeros((L, NH, 1, hd), jnp.float32),
        'wv': w((L, NH, H, hd)).astype(jnp.bfloat16),
        'bv': jnp.zeros((L, NH, 1, hd), jnp.float32),
        'wo': w((L, NH, hd, H)).astype(jnp.bfloat16),
        'bo': jnp.zeros((L, 1, H), jnp.float32),
        'ln1_g': jnp.ones((L, 1, H), jnp.float32),
        'ln1_b': jnp.zeros((L, 1, H), jnp.float32),
        'w1': w((L, H, F)).astype(jnp.bfloat16),
        'b1': jnp.zeros((L, 1, F), jnp.float32),
        'w2': w((L, F, H)).astype(jnp.bfloat16),
        'b2': jnp.zeros((L, 1, H), jnp.float32),
        'ln2_g': jnp.ones((L, 1, H), jnp.float32),
        'ln2_b': jnp.zeros((L, 1, H), jnp.float32),
        'wh': wh.astype(jnp.bfloat16),
        'bh': jnp.zeros((1, HEAD_PAD), jnp.float32),
    }
    return params


# ---------------------------------- main ---------------------------------------
if __name__ == "__main__":
    key = jax.random.PRNGKey(0)
    pkey, dkey = jax.random.split(key)
    params = init_params(pkey)

    B, S = 2, 8
    input_ids = jax.random.randint(dkey, (B, S), 0, VOCAB, dtype=jnp.int32)
    attention_mask = jnp.ones((B, S), jnp.int32).at[1, 6:].set(0)  # pad tail of row 1

    logits_cat, logits_sub, logits_ag = deberta_multitask_forward(
        params, input_ids, attention_mask)
    jax.block_until_ready((logits_cat, logits_sub, logits_ag))

    assert logits_cat.shape == (B, NUM_CATEGORIES)
    assert logits_sub.shape == (B, NUM_SUBCATEGORIES)
    assert logits_ag.shape == (B, NUM_ASSIGNMENT_GROUPS)
    assert bool(jnp.all(jnp.isfinite(logits_cat)))
    assert bool(jnp.all(jnp.isfinite(logits_sub)))
    assert bool(jnp.all(jnp.isfinite(logits_ag)))
    print("KERNEL_OK")
</pallas_src>

<mosaic_0001>
module attributes {stable_mosaic.version = 11 : i64} {
  func.func @fused_forward_kernel(%arg0: i32, %arg1: memref<1x1x8xi32, #tpu.memory_space<vmem>>, %arg2: memref<1x1x8xf32, #tpu.memory_space<vmem>>, %arg3: memref<128x128xf32, #tpu.memory_space<vmem>>, %arg4: memref<1x128xf32, #tpu.memory_space<vmem>>, %arg5: memref<1x128xf32, #tpu.memory_space<vmem>>, %arg6: memref<2x4x128x32xbf16, #tpu.memory_space<vmem>>, %arg7: memref<2x4x1x32xf32, #tpu.memory_space<vmem>>, %arg8: memref<2x4x128x32xbf16, #tpu.memory_space<vmem>>, %arg9: memref<2x4x1x32xf32, #tpu.memory_space<vmem>>, %arg10: memref<2x4x128x32xbf16, #tpu.memory_space<vmem>>, %arg11: memref<2x4x1x32xf32, #tpu.memory_space<vmem>>, %arg12: memref<2x4x32x128xbf16, #tpu.memory_space<vmem>>, %arg13: memref<2x1x128xf32, #tpu.memory_space<vmem>>, %arg14: memref<2x1x128xf32, #tpu.memory_space<vmem>>, %arg15: memref<2x1x128xf32, #tpu.memory_space<vmem>>, %arg16: memref<2x128x256xbf16, #tpu.memory_space<vmem>>, %arg17: memref<2x1x256xf32, #tpu.memory_space<vmem>>, %arg18: memref<2x256x128xbf16, #tpu.memory_space<vmem>>, %arg19: memref<2x1x128xf32, #tpu.memory_space<vmem>>, %arg20: memref<2x1x128xf32, #tpu.memory_space<vmem>>, %arg21: memref<2x1x128xf32, #tpu.memory_space<vmem>>, %arg22: memref<128x128xbf16, #tpu.memory_space<vmem>>, %arg23: memref<1x128xf32, #tpu.memory_space<vmem>>, %arg24: memref<1x1x128xf32, #tpu.memory_space<vmem>>) attributes {dimension_semantics = [#tpu.dimension_semantics<parallel>], iteration_bounds = array<i64: 2>, scalar_prefetch = 0 : i64, scratch_operands = 0 : i64, tpu.core_type = #tpu.core_type<tc>, window_params = [{transform_indices = @transform_0, window_bounds = array<i64: 1, 1, 8>}, {transform_indices = @transform_1, window_bounds = array<i64: 1, 1, 8>}, {pipeline_mode = #tpu.pipeline_mode<synchronous>, transform_indices = @transform_2, window_bounds = array<i64: 128, 128>}, {pipeline_mode = #tpu.pipeline_mode<synchronous>, transform_indices = @transform_3, window_bounds = array<i64: 1, 128>}, {pipeline_mode = #tpu.pipeline_mode<synchronous>, transform_indices = @transform_4, window_bounds = array<i64: 1, 128>}, {pipeline_mode = #tpu.pipeline_mode<synchronous>, transform_indices = @transform_5, window_bounds = array<i64: 2, 4, 128, 32>}, {pipeline_mode = #tpu.pipeline_mode<synchronous>, transform_indices = @transform_6, window_bounds = array<i64: 2, 4, 1, 32>}, {pipeline_mode = #tpu.pipeline_mode<synchronous>, transform_indices = @transform_7, window_bounds = array<i64: 2, 4, 128, 32>}, {pipeline_mode = #tpu.pipeline_mode<synchronous>, transform_indices = @transform_8, window_bounds = array<i64: 2, 4, 1, 32>}, {pipeline_mode = #tpu.pipeline_mode<synchronous>, transform_indices = @transform_9, window_bounds = array<i64: 2, 4, 128, 32>}, {pipeline_mode = #tpu.pipeline_mode<synchronous>, transform_indices = @transform_10, window_bounds = array<i64: 2, 4, 1, 32>}, {pipeline_mode = #tpu.pipeline_mode<synchronous>, transform_indices = @transform_11, window_bounds = array<i64: 2, 4, 32, 128>}, {pipeline_mode = #tpu.pipeline_mode<synchronous>, transform_indices = @transform_12, window_bounds = array<i64: 2, 1, 128>}, {pipeline_mode = #tpu.pipeline_mode<synchronous>, transform_indices = @transform_13, window_bounds = array<i64: 2, 1, 128>}, {pipeline_mode = #tpu.pipeline_mode<synchronous>, transform_indices = @transform_14, window_bounds = array<i64: 2, 1, 128>}, {pipeline_mode = #tpu.pipeline_mode<synchronous>, transform_indices = @transform_15, window_bounds = array<i64: 2, 128, 256>}, {pipeline_mode = #tpu.pipeline_mode<synchronous>, transform_indices = @transform_16, window_bounds = array<i64: 2, 1, 256>}, {pipeline_mode = #tpu.pipeline_mode<synchronous>, transform_indices = @transform_17, window_bounds = array<i64: 2, 256, 128>}, {pipeline_mode = #tpu.pipeline_mode<synchronous>, transform_indices = @transform_18, window_bounds = array<i64: 2, 1, 128>}, {pipeline_mode = #tpu.pipeline_mode<synchronous>, transform_indices = @transform_19, window_bounds = array<i64: 2, 1, 128>}, {pipeline_mode = #tpu.pipeline_mode<synchronous>, transform_indices = @transform_20, window_bounds = array<i64: 2, 1, 128>}, {pipeline_mode = #tpu.pipeline_mode<synchronous>, transform_indices = @transform_21, window_bounds = array<i64: 128, 128>}, {pipeline_mode = #tpu.pipeline_mode<synchronous>, transform_indices = @transform_22, window_bounds = array<i64: 1, 128>}, {transform_indices = @transform_23, window_bounds = array<i64: 1, 1, 128>}]} {
    %c0 = arith.constant 0 : index
    %c0_0 = arith.constant 0 : index
    %c0_1 = arith.constant 0 : index
    %0 = vector.load %arg1[%c0, %c0_0, %c0_1] : memref<1x1x8xi32, #tpu.memory_space<vmem>>, vector<1x1x8xi32>
    %1 = vector.shape_cast %0 : vector<1x1x8xi32> to vector<8xi32>
    %c0_2 = arith.constant 0 : index
    %c0_3 = arith.constant 0 : index
    %c0_4 = arith.constant 0 : index
    %2 = vector.load %arg2[%c0_2, %c0_3, %c0_4] : memref<1x1x8xf32, #tpu.memory_space<vmem>>, vector<1x1x8xf32>
    %3 = vector.shape_cast %2 : vector<1x1x8xf32> to vector<8xf32>
    %4 = tpu.iota {dimensions = array<i32: 1>} : vector<8x128xi32>
    %5 = vector.shape_cast %1 : vector<8xi32> to vector<8x1xi32>
    %6 = vector.broadcast %5 : vector<8x1xi32> to vector<8x128xi32>
    %7 = arith.cmpi eq, %4, %6 : vector<8x128xi32>
    %8 = arith.extui %7 : vector<8x128xi1> to vector<8x128xi32>
    %9 = arith.sitofp %8 : vector<8x128xi32> to vector<8x128xf32>
    %c0_5 = arith.constant 0 : index
    %c0_6 = arith.constant 0 : index
    %10 = vector.load %arg3[%c0_5, %c0_6] : memref<128x128xf32, #tpu.memory_space<vmem>>, vector<128x128xf32>
    %cst = arith.constant dense<0.000000e+00> : vector<8x128xf32>
    %11 = tpu.matmul %9, %10, %cst {dimension_numbers = #tpu.dot_dimension_numbers<[1], [0], [0], [1], [0, 0, 1, 1], [], []>} : vector<8x128xf32>, vector<128x128xf32>, vector<8x128xf32> -> vector<8x128xf32>
    %c0_7 = arith.constant 0 : index
    %c0_8 = arith.constant 0 : index
    %12 = vector.load %arg4[%c0_7, %c0_8] : memref<1x128xf32, #tpu.memory_space<vmem>>, vector<1x128xf32>
    %c0_9 = arith.constant 0 : index
    %c0_10 = arith.constant 0 : index
    %13 = vector.load %arg5[%c0_9, %c0_10] : memref<1x128xf32, #tpu.memory_space<vmem>>, vector<1x128xf32>
    %cst_11 = arith.constant dense<0.000000e+00> : vector<8xf32>
    %14 = vector.multi_reduction <add>, %11, %cst_11 [1] : vector<8x128xf32> to vector<8xf32>
    %15 = vector.shape_cast %14 : vector<8xf32> to vector<8x1xf32>
    %cst_12 = arith.constant 1.280000e+02 : f32
    %16 = vector.broadcast %cst_12 : f32 to vector<8x1xf32>
    %17 = arith.divf %15, %16 : vector<8x1xf32>
    %18 = arith.mulf %11, %11 : vector<8x128xf32>
    %cst_13 = arith.constant dense<0.000000e+00> : vector<8xf32>
    %19 = vector.multi_reduction <add>, %18, %cst_13 [1] : vector<8x128xf32> to vector<8xf32>
    %20 = vector.shape_cast %19 : vector<8xf32> to vector<8x1xf32>
    %cst_14 = arith.constant 1.280000e+02 : f32
    %21 = vector.broadcast %cst_14 : f32 to vector<8x1xf32>
    %22 = arith.divf %20, %21 : vector<8x1xf32>
    %23 = arith.mulf %17, %17 : vector<8x1xf32>
    %24 = arith.subf %22, %23 : vector<8x1xf32>
    %25 = vector.broadcast %17 : vector<8x1xf32> to vector<8x128xf32>
    %26 = arith.subf %11, %25 : vector<8x128xf32>
    %cst_15 = arith.constant 1.000000e-07 : f32
    %27 = vector.broadcast %cst_15 : f32 to vector<8x1xf32>
    %28 = arith.addf %24, %27 : vector<8x1xf32>
    %29 = math.rsqrt %28 : vector<8x1xf32>
    %30 = vector.broadcast %29 : vector<8x1xf32> to vector<8x128xf32>
    %31 = arith.mulf %26, %30 : vector<8x128xf32>
    %32 = vector.broadcast %12 : vector<1x128xf32> to vector<8x128xf32>
    %33 = arith.mulf %31, %32 : vector<8x128xf32>
    %34 = vector.broadcast %13 : vector<1x128xf32> to vector<8x128xf32>
    %35 = arith.addf %33, %34 : vector<8x128xf32>
    %36 = vector.shape_cast %3 : vector<8xf32> to vector<8x1xf32>
    %37 = vector.broadcast %36 : vector<8x1xf32> to vector<8x128xf32>
    %38 = arith.mulf %35, %37 : vector<8x128xf32>
    %cst_16 = arith.constant 1.000000e+00 : f32
    %39 = vector.broadcast %cst_16 : f32 to vector<8xf32>
    %40 = arith.subf %39, %3 : vector<8xf32>
    %cst_17 = arith.constant -1.000000e+09 : f32
    %41 = vector.broadcast %cst_17 : f32 to vector<8xf32>
    %42 = arith.mulf %40, %41 : vector<8xf32>
    %43 = vector.shape_cast %42 : vector<8xf32> to vector<1x1x8xf32>
    %c0_i32 = arith.constant 0 : i32
    %44 = arith.truncf %38 : vector<8x128xf32> to vector<8x128xbf16>
    %45 = arith.index_cast %c0_i32 : i32 to index
    %c0_18 = arith.constant 0 : index
    %c0_19 = arith.constant 0 : index
    %c0_20 = arith.constant 0 : index
    %46 = vector.load %arg6[%45, %c0_18, %c0_19, %c0_20] : memref<2x4x128x32xbf16, #tpu.memory_space<vmem>>, vector<1x4x128x32xbf16>
    %47 = vector.shape_cast %46 : vector<1x4x128x32xbf16> to vector<4x128x32xbf16>
    %48 = arith.index_cast %c0_i32 : i32 to index
    %c0_21 = arith.constant 0 : index
    %c0_22 = arith.constant 0 : index
    %c0_23 = arith.constant 0 : index
    %49 = vector.load %arg8[%48, %c0_21, %c0_22, %c0_23] : memref<2x4x128x32xbf16, #tpu.memory_space<vmem>>, vector<1x4x128x32xbf16>
    %50 = vector.shape_cast %49 : vector<1x4x128x32xbf16> to vector<4x128x32xbf16>
    %51 = arith.index_cast %c0_i32 : i32 to index
    %c0_24 = arith.constant 0 : index
    %c0_25 = arith.constant 0 : index
    %c0_26 = arith.constant 0 : index
    %52 = vector.load %arg10[%51, %c0_24, %c0_25, %c0_26] : memref<2x4x128x32xbf16, #tpu.memory_space<vmem>>, vector<1x4x128x32xbf16>
    %53 = vector.shape_cast %52 : vector<1x4x128x32xbf16> to vector<4x128x32xbf16>
    %54 = arith.index_cast %c0_i32 : i32 to index
    %c0_27 = arith.constant 0 : index
    %c0_28 = arith.constant 0 : index
    %c0_29 = arith.constant 0 : index
    %55 = vector.load %arg7[%54, %c0_27, %c0_28, %c0_29] : memref<2x4x1x32xf32, #tpu.memory_space<vmem>>, vector<1x4x1x32xf32>
    %56 = vector.shape_cast %55 : vector<1x4x1x32xf32> to vector<4x1x32xf32>
    %57 = arith.index_cast %c0_i32 : i32 to index
    %c0_30 = arith.constant 0 : index
    %c0_31 = arith.constant 0 : index
    %c0_32 = arith.constant 0 : index
    %58 = vector.load %arg9[%57, %c0_30, %c0_31, %c0_32] : memref<2x4x1x32xf32, #tpu.memory_space<vmem>>, vector<1x4x1x32xf32>
    %59 = vector.shape_cast %58 : vector<1x4x1x32xf32> to vector<4x1x32xf32>
    %60 = arith.index_cast %c0_i32 : i32 to index
    %c0_33 = arith.constant 0 : index
    %c0_34 = arith.constant 0 : index
    %c0_35 = arith.constant 0 : index
    %61 = vector.load %arg11[%60, %c0_33, %c0_34, %c0_35] : memref<2x4x1x32xf32, #tpu.memory_space<vmem>>, vector<1x4x1x32xf32>
    %62 = vector.shape_cast %61 : vector<1x4x1x32xf32> to vector<4x1x32xf32>
    %63 = arith.index_cast %c0_i32 : i32 to index
    %c0_36 = arith.constant 0 : index
    %c0_37 = arith.constant 0 : index
    %c0_38 = arith.constant 0 : index
    %64 = vector.load %arg12[%63, %c0_36, %c0_37, %c0_38] : memref<2x4x32x128xbf16, #tpu.memory_space<vmem>>, vector<1x4x32x128xbf16>
    %65 = vector.shape_cast %64 : vector<1x4x32x128xbf16> to vector<4x32x128xbf16>
    %66 = vector.extract_strided_slice %47 {offsets = [0, 0, 0], sizes = [1, 128, 32], strides = [1, 1, 1]} : vector<4x128x32xbf16> to vector<1x128x32xbf16>
    %67 = vector.shape_cast %66 : vector<1x128x32xbf16> to vector<128x32xbf16>
    %cst_39 = arith.constant dense<0.000000e+00> : vector<8x32xf32>
    %68 = tpu.matmul %44, %67, %cst_39 {dimension_numbers = #tpu.dot_dimension_numbers<[1], [0], [0], [1], [0, 0, 1, 1], [], []>} : vector<8x128xbf16>, vector<128x32xbf16>, vector<8x32xf32> -> vector<8x32xf32>
    %69 = vector.extract_strided_slice %56 {offsets = [0, 0, 0], sizes = [1, 1, 32], strides = [1, 1, 1]} : vector<4x1x32xf32> to vector<1x1x32xf32>
    %70 = vector.shape_cast %69 : vector<1x1x32xf32> to vector<1x32xf32>
    %71 = vector.broadcast %70 : vector<1x32xf32> to vector<8x32xf32>
    %72 = arith.addf %68, %71 : vector<8x32xf32>
    %73 = vector.shape_cast %72 : vector<8x32xf32> to vector<1x8x32xf32>
    %74 = vector.extract_strided_slice %50 {offsets = [0, 0, 0], sizes = [1, 128, 32], strides = [1, 1, 1]} : vector<4x128x32xbf16> to vector<1x128x32xbf16>
    %75 = vector.shape_cast %74 : vector<1x128x32xbf16> to vector<128x32xbf16>
    %cst_40 = arith.constant dense<0.000000e+00> : vector<8x32xf32>
    %76 = tpu.matmul %44, %75, %cst_40 {dimension_numbers = #tpu.dot_dimension_numbers<[1], [0], [0], [1], [0, 0, 1, 1], [], []>} : vector<8x128xbf16>, vector<128x32xbf16>, vector<8x32xf32> -> vector<8x32xf32>
    %77 = vector.extract_strided_slice %59 {offsets = [0, 0, 0], sizes = [1, 1, 32], strides = [1, 1, 1]} : vector<4x1x32xf32> to vector<1x1x32xf32>
    %78 = vector.shape_cast %77 : vector<1x1x32xf32> to vector<1x32xf32>
    %79 = vector.broadcast %78 : vector<1x32xf32> to vector<8x32xf32>
    %80 = arith.addf %76, %79 : vector<8x32xf32>
    %81 = vector.shape_cast %80 : vector<8x32xf32> to vector<1x8x32xf32>
    %82 = vector.extract_strided_slice %53 {offsets = [0, 0, 0], sizes = [1, 128, 32], strides = [1, 1, 1]} : vector<4x128x32xbf16> to vector<1x128x32xbf16>
    %83 = vector.shape_cast %82 : vector<1x128x32xbf16> to vector<128x32xbf16>
    %cst_41 = arith.constant dense<0.000000e+00> : vector<8x32xf32>
    %84 = tpu.matmul %44, %83, %cst_41 {dimension_numbers = #tpu.dot_dimension_numbers<[1], [0], [0], [1], [0, 0, 1, 1], [], []>} : vector<8x128xbf16>, vector<128x32xbf16>, vector<8x32xf32> -> vector<8x32xf32>
    %85 = vector.extract_strided_slice %62 {offsets = [0, 0, 0], sizes = [1, 1, 32], strides = [1, 1, 1]} : vector<4x1x32xf32> to vector<1x1x32xf32>
    %86 = vector.shape_cast %85 : vector<1x1x32xf32> to vector<1x32xf32>
    %87 = vector.broadcast %86 : vector<1x32xf32> to vector<8x32xf32>
    %88 = arith.addf %84, %87 : vector<8x32xf32>
    %89 = vector.shape_cast %88 : vector<8x32xf32> to vector<1x8x32xf32>
    %90 = vector.extract_strided_slice %47 {offsets = [1, 0, 0], sizes = [1, 128, 32], strides = [1, 1, 1]} : vector<4x128x32xbf16> to vector<1x128x32xbf16>
    %91 = vector.shape_cast %90 : vector<1x128x32xbf16> to vector<128x32xbf16>
    %cst_42 = arith.constant dense<0.000000e+00> : vector<8x32xf32>
    %92 = tpu.matmul %44, %91, %cst_42 {dimension_numbers = #tpu.dot_dimension_numbers<[1], [0], [0], [1], [0, 0, 1, 1], [], []>} : vector<8x128xbf16>, vector<128x32xbf16>, vector<8x32xf32> -> vector<8x32xf32>
    %93 = vector.extract_strided_slice %56 {offsets = [1, 0, 0], sizes = [1, 1, 32], strides = [1, 1, 1]} : vector<4x1x32xf32> to vector<1x1x32xf32>
    %94 = vector.shape_cast %93 : vector<1x1x32xf32> to vector<1x32xf32>
    %95 = vector.broadcast %94 : vector<1x32xf32> to vector<8x32xf32>
    %96 = arith.addf %92, %95 : vector<8x32xf32>
    %97 = vector.shape_cast %96 : vector<8x32xf32> to vector<1x8x32xf32>
    %98 = vector.extract_strided_slice %50 {offsets = [1, 0, 0], sizes = [1, 128, 32], strides = [1, 1, 1]} : vector<4x128x32xbf16> to vector<1x128x32xbf16>
    %99 = vector.shape_cast %98 : vector<1x128x32xbf16> to vector<128x32xbf16>
    %cst_43 = arith.constant dense<0.000000e+00> : vector<8x32xf32>
    %100 = tpu.matmul %44, %99, %cst_43 {dimension_numbers = #tpu.dot_dimension_numbers<[1], [0], [0], [1], [0, 0, 1, 1], [], []>} : vector<8x128xbf16>, vector<128x32xbf16>, vector<8x32xf32> -> vector<8x32xf32>
    %101 = vector.extract_strided_slice %59 {offsets = [1, 0, 0], sizes = [1, 1, 32], strides = [1, 1, 1]} : vector<4x1x32xf32> to vector<1x1x32xf32>
    %102 = vector.shape_cast %101 : vector<1x1x32xf32> to vector<1x32xf32>
    %103 = vector.broadcast %102 : vector<1x32xf32> to vector<8x32xf32>
    %104 = arith.addf %100, %103 : vector<8x32xf32>
    %105 = vector.shape_cast %104 : vector<8x32xf32> to vector<1x8x32xf32>
    %106 = vector.extract_strided_slice %53 {offsets = [1, 0, 0], sizes = [1, 128, 32], strides = [1, 1, 1]} : vector<4x128x32xbf16> to vector<1x128x32xbf16>
    %107 = vector.shape_cast %106 : vector<1x128x32xbf16> to vector<128x32xbf16>
    %cst_44 = arith.constant dense<0.000000e+00> : vector<8x32xf32>
    %108 = tpu.matmul %44, %107, %cst_44 {dimension_numbers = #tpu.dot_dimension_numbers<[1], [0], [0], [1], [0, 0, 1, 1], [], []>} : vector<8x128xbf16>, vector<128x32xbf16>, vector<8x32xf32> -> vector<8x32xf32>
    %109 = vector.extract_strided_slice %62 {offsets = [1, 0, 0], sizes = [1, 1, 32], strides = [1, 1, 1]} : vector<4x1x32xf32> to vector<1x1x32xf32>
    %110 = vector.shape_cast %109 : vector<1x1x32xf32> to vector<1x32xf32>
    %111 = vector.broadcast %110 : vector<1x32xf32> to vector<8x32xf32>
    %112 = arith.addf %108, %111 : vector<8x32xf32>
    %113 = vector.shape_cast %112 : vector<8x32xf32> to vector<1x8x32xf32>
    %114 = vector.extract_strided_slice %47 {offsets = [2, 0, 0], sizes = [1, 128, 32], strides = [1, 1, 1]} : vector<4x128x32xbf16> to vector<1x128x32xbf16>
    %115 = vector.shape_cast %114 : vector<1x128x32xbf16> to vector<128x32xbf16>
    %cst_45 = arith.constant dense<0.000000e+00> : vector<8x32xf32>
    %116 = tpu.matmul %44, %115, %cst_45 {dimension_numbers = #tpu.dot_dimension_numbers<[1], [0], [0], [1], [0, 0, 1, 1], [], []>} : vector<8x128xbf16>, vector<128x32xbf16>, vector<8x32xf32> -> vector<8x32xf32>
    %117 = vector.extract_strided_slice %56 {offsets = [2, 0, 0], sizes = [1, 1, 32], strides = [1, 1, 1]} : vector<4x1x32xf32> to vector<1x1x32xf32>
    %118 = vector.shape_cast %117 : vector<1x1x32xf32> to vector<1x32xf32>
    %119 = vector.broadcast %118 : vector<1x32xf32> to vector<8x32xf32>
    %120 = arith.addf %116, %119 : vector<8x32xf32>
    %121 = vector.shape_cast %120 : vector<8x32xf32> to vector<1x8x32xf32>
    %122 = vector.extract_strided_slice %50 {offsets = [2, 0, 0], sizes = [1, 128, 32], strides = [1, 1, 1]} : vector<4x128x32xbf16> to vector<1x128x32xbf16>
    %123 = vector.shape_cast %122 : vector<1x128x32xbf16> to vector<128x32xbf16>
    %cst_46 = arith.constant dense<0.000000e+00> : vector<8x32xf32>
    %124 = tpu.matmul %44, %123, %cst_46 {dimension_numbers = #tpu.dot_dimension_numbers<[1], [0], [0], [1], [0, 0, 1, 1], [], []>} : vector<8x128xbf16>, vector<128x32xbf16>, vector<8x32xf32> -> vector<8x32xf32>
    %125 = vector.extract_strided_slice %59 {offsets = [2, 0, 0], sizes = [1, 1, 32], strides = [1, 1, 1]} : vector<4x1x32xf32> to vector<1x1x32xf32>
    %126 = vector.shape_cast %125 : vector<1x1x32xf32> to vector<1x32xf32>
    %127 = vector.broadcast %126 : vector<1x32xf32> to vector<8x32xf32>
    %128 = arith.addf %124, %127 : vector<8x32xf32>
    %129 = vector.shape_cast %128 : vector<8x32xf32> to vector<1x8x32xf32>
    %130 = vector.extract_strided_slice %53 {offsets = [2, 0, 0], sizes = [1, 128, 32], strides = [1, 1, 1]} : vector<4x128x32xbf16> to vector<1x128x32xbf16>
    %131 = vector.shape_cast %130 : vector<1x128x32xbf16> to vector<128x32xbf16>
    %cst_47 = arith.constant dense<0.000000e+00> : vector<8x32xf32>
    %132 = tpu.matmul %44, %131, %cst_47 {dimension_numbers = #tpu.dot_dimension_numbers<[1], [0], [0], [1], [0, 0, 1, 1], [], []>} : vector<8x128xbf16>, vector<128x32xbf16>, vector<8x32xf32> -> vector<8x32xf32>
    %133 = vector.extract_strided_slice %62 {offsets = [2, 0, 0], sizes = [1, 1, 32], strides = [1, 1, 1]} : vector<4x1x32xf32> to vector<1x1x32xf32>
    %134 = vector.shape_cast %133 : vector<1x1x32xf32> to vector<1x32xf32>
    %135 = vector.broadcast %134 : vector<1x32xf32> to vector<8x32xf32>
    %136 = arith.addf %132, %135 : vector<8x32xf32>
    %137 = vector.shape_cast %136 : vector<8x32xf32> to vector<1x8x32xf32>
    %138 = vector.extract_strided_slice %47 {offsets = [3, 0, 0], sizes = [1, 128, 32], strides = [1, 1, 1]} : vector<4x128x32xbf16> to vector<1x128x32xbf16>
    %139 = vector.shape_cast %138 : vector<1x128x32xbf16> to vector<128x32xbf16>
    %cst_48 = arith.constant dense<0.000000e+00> : vector<8x32xf32>
    %140 = tpu.matmul %44, %139, %cst_48 {dimension_numbers = #tpu.dot_dimension_numbers<[1], [0], [0], [1], [0, 0, 1, 1], [], []>} : vector<8x128xbf16>, vector<128x32xbf16>, vector<8x32xf32> -> vector<8x32xf32>
    %141 = vector.extract_strided_slice %56 {offsets = [3, 0, 0], sizes = [1, 1, 32], strides = [1, 1, 1]} : vector<4x1x32xf32> to vector<1x1x32xf32>
    %142 = vector.shape_cast %141 : vector<1x1x32xf32> to vector<1x32xf32>
    %143 = vector.broadcast %142 : vector<1x32xf32> to vector<8x32xf32>
    %144 = arith.addf %140, %143 : vector<8x32xf32>
    %145 = vector.shape_cast %144 : vector<8x32xf32> to vector<1x8x32xf32>
    %146 = vector.extract_strided_slice %50 {offsets = [3, 0, 0], sizes = [1, 128, 32], strides = [1, 1, 1]} : vector<4x128x32xbf16> to vector<1x128x32xbf16>
    %147 = vector.shape_cast %146 : vector<1x128x32xbf16> to vector<128x32xbf16>
    %cst_49 = arith.constant dense<0.000000e+00> : vector<8x32xf32>
    %148 = tpu.matmul %44, %147, %cst_49 {dimension_numbers = #tpu.dot_dimension_numbers<[1], [0], [0], [1], [0, 0, 1, 1], [], []>} : vector<8x128xbf16>, vector<128x32xbf16>, vector<8x32xf32> -> vector<8x32xf32>
    %149 = vector.extract_strided_slice %59 {offsets = [3, 0, 0], sizes = [1, 1, 32], strides = [1, 1, 1]} : vector<4x1x32xf32> to vector<1x1x32xf32>
    %150 = vector.shape_cast %149 : vector<1x1x32xf32> to vector<1x32xf32>
    %151 = vector.broadcast %150 : vector<1x32xf32> to vector<8x32xf32>
    %152 = arith.addf %148, %151 : vector<8x32xf32>
    %153 = vector.shape_cast %152 : vector<8x32xf32> to vector<1x8x32xf32>
    %154 = vector.extract_strided_slice %53 {offsets = [3, 0, 0], sizes = [1, 128, 32], strides = [1, 1, 1]} : vector<4x128x32xbf16> to vector<1x128x32xbf16>
    %155 = vector.shape_cast %154 : vector<1x128x32xbf16> to vector<128x32xbf16>
    %cst_50 = arith.constant dense<0.000000e+00> : vector<8x32xf32>
    %156 = tpu.matmul %44, %155, %cst_50 {dimension_numbers = #tpu.dot_dimension_numbers<[1], [0], [0], [1], [0, 0, 1, 1], [], []>} : vector<8x128xbf16>, vector<128x32xbf16>, vector<8x32xf32> -> vector<8x32xf32>
    %157 = vector.extract_strided_slice %62 {offsets = [3, 0, 0], sizes = [1, 1, 32], strides = [1, 1, 1]} : vector<4x1x32xf32> to vector<1x1x32xf32>
    %158 = vector.shape_cast %157 : vector<1x1x32xf32> to vector<1x32xf32>
    %159 = vector.broadcast %158 : vector<1x32xf32> to vector<8x32xf32>
    %160 = arith.addf %156, %159 : vector<8x32xf32>
    %161 = vector.shape_cast %160 : vector<8x32xf32> to vector<1x8x32xf32>
    %162 = tpu.concatenate %73, %97, %121, %145 in 0 : vector<1x8x32xf32>, vector<1x8x32xf32>, vector<1x8x32xf32>, vector<1x8x32xf32> -> vector<4x8x32xf32>
    %163 = arith.truncf %162 : vector<4x8x32xf32> to vector<4x8x32xbf16>
    %164 = tpu.concatenate %81, %105, %129, %153 in 0 : vector<1x8x32xf32>, vector<1x8x32xf32>, vector<1x8x32xf32>, vector<1x8x32xf32> -> vector<4x8x32xf32>
    %165 = arith.truncf %164 : vector<4x8x32xf32> to vector<4x8x32xbf16>
    %166 = tpu.concatenate %89, %113, %137, %161 in 0 : vector<1x8x32xf32>, vector<1x8x32xf32>, vector<1x8x32xf32>, vector<1x8x32xf32> -> vector<4x8x32xf32>
    %167 = arith.truncf %166 : vector<4x8x32xf32> to vector<4x8x32xbf16>
    "tpu.trace_start"() <{level = 10 : i32, message = "hqd,hkd->hqk"}> : () -> ()
    %cst_51 = arith.constant dense<0.000000e+00> : vector<4x8x8xf32>
    %168 = tpu.matmul %163, %165, %cst_51 {dimension_numbers = #tpu.dot_dimension_numbers<[2], [2], [1], [1], [0, 0, 0, 1, 1, 1], [0], [0]>} : vector<4x8x32xbf16>, vector<4x8x32xbf16>, vector<4x8x8xf32> -> vector<4x8x8xf32>
    "tpu.trace_stop"() : () -> ()
    %169 = vector.broadcast %43 : vector<1x1x8xf32> to vector<4x8x8xf32>
    %170 = arith.addf %168, %169 : vector<4x8x8xf32>
    %cst_52 = arith.constant dense<0xFF800000> : vector<4x8xf32>
    %171 = vector.multi_reduction <maximumf>, %170, %cst_52 [2] : vector<4x8x8xf32> to vector<4x8xf32>
    %172 = vector.shape_cast %171 : vector<4x8xf32> to vector<4x8x1xf32>
    %173 = vector.broadcast %172 : vector<4x8x1xf32> to vector<4x8x8xf32>
    %174 = arith.subf %170, %173 : vector<4x8x8xf32>
    %175 = math.exp %174 : vector<4x8x8xf32>
    %cst_53 = arith.constant dense<0.000000e+00> : vector<4x8xf32>
    %176 = vector.multi_reduction <add>, %175, %cst_53 [2] : vector<4x8x8xf32> to vector<4x8xf32>
    %177 = vector.shape_cast %176 : vector<4x8xf32> to vector<4x8x1xf32>
    %178 = tpu.reciprocal %177 {approx = true} : vector<4x8x1xf32> -> vector<4x8x1xf32>
    %179 = vector.broadcast %178 : vector<4x8x1xf32> to vector<4x8x8xf32>
    %180 = arith.mulf %175, %179 : vector<4x8x8xf32>
    %181 = arith.truncf %180 : vector<4x8x8xf32> to vector<4x8x8xbf16>
    "tpu.trace_start"() <{level = 10 : i32, message = "hqk,hkd->hqd"}> : () -> ()
    %cst_54 = arith.constant dense<0.000000e+00> : vector<4x8x32xf32>
    %182 = tpu.matmul %181, %167, %cst_54 {dimension_numbers = #tpu.dot_dimension_numbers<[2], [1], [1], [2], [0, 0, 0, 1, 1, 2], [0], [0]>} : vector<4x8x8xbf16>, vector<4x8x32xbf16>, vector<4x8x32xf32> -> vector<4x8x32xf32>
    "tpu.trace_stop"() : () -> ()
    %183 = arith.index_cast %c0_i32 : i32 to index
    %c0_55 = arith.constant 0 : index
    %c0_56 = arith.constant 0 : index
    %184 = vector.load %arg13[%183, %c0_55, %c0_56] : memref<2x1x128xf32, #tpu.memory_space<vmem>>, vector<1x1x128xf32>
    %185 = vector.shape_cast %184 : vector<1x1x128xf32> to vector<1x128xf32>
    %186 = vector.extract_strided_slice %182 {offsets = [0, 0, 0], sizes = [1, 8, 32], strides = [1, 1, 1]} : vector<4x8x32xf32> to vector<1x8x32xf32>
    %187 = vector.shape_cast %186 : vector<1x8x32xf32> to vector<8x32xf32>
    %188 = arith.truncf %187 : vector<8x32xf32> to vector<8x32xbf16>
    %189 = vector.extract_strided_slice %65 {offsets = [0, 0, 0], sizes = [1, 32, 128], strides = [1, 1, 1]} : vector<4x32x128xbf16> to vector<1x32x128xbf16>
    %190 = vector.shape_cast %189 : vector<1x32x128xbf16> to vector<32x128xbf16>
    %cst_57 = arith.constant dense<0.000000e+00> : vector<8x128xf32>
    %191 = tpu.matmul %188, %190, %cst_57 {dimension_numbers = #tpu.dot_dimension_numbers<[1], [0], [0], [1], [0, 0, 1, 1], [], []>} : vector<8x32xbf16>, vector<32x128xbf16>, vector<8x128xf32> -> vector<8x128xf32>
    %192 = vector.broadcast %185 : vector<1x128xf32> to vector<8x128xf32>
    %193 = arith.addf %192, %191 : vector<8x128xf32>
    %194 = vector.extract_strided_slice %182 {offsets = [1, 0, 0], sizes = [1, 8, 32], strides = [1, 1, 1]} : vector<4x8x32xf32> to vector<1x8x32xf32>
    %195 = vector.shape_cast %194 : vector<1x8x32xf32> to vector<8x32xf32>
    %196 = arith.truncf %195 : vector<8x32xf32> to vector<8x32xbf16>
    %197 = vector.extract_strided_slice %65 {offsets = [1, 0, 0], sizes = [1, 32, 128], strides = [1, 1, 1]} : vector<4x32x128xbf16> to vector<1x32x128xbf16>
    %198 = vector.shape_cast %197 : vector<1x32x128xbf16> to vector<32x128xbf16>
    %cst_58 = arith.constant dense<0.000000e+00> : vector<8x128xf32>
    %199 = tpu.matmul %196, %198, %cst_58 {dimension_numbers = #tpu.dot_dimension_numbers<[1], [0], [0], [1], [0, 0, 1, 1], [], []>} : vector<8x32xbf16>, vector<32x128xbf16>, vector<8x128xf32> -> vector<8x128xf32>
    %200 = arith.addf %193, %199 : vector<8x128xf32>
    %201 = vector.extract_strided_slice %182 {offsets = [2, 0, 0], sizes = [1, 8, 32], strides = [1, 1, 1]} : vector<4x8x32xf32> to vector<1x8x32xf32>
    %202 = vector.shape_cast %201 : vector<1x8x32xf32> to vector<8x32xf32>
    %203 = arith.truncf %202 : vector<8x32xf32> to vector<8x32xbf16>
    %204 = vector.extract_strided_slice %65 {offsets = [2, 0, 0], sizes = [1, 32, 128], strides = [1, 1, 1]} : vector<4x32x128xbf16> to vector<1x32x128xbf16>
    %205 = vector.shape_cast %204 : vector<1x32x128xbf16> to vector<32x128xbf16>
    %cst_59 = arith.constant dense<0.000000e+00> : vector<8x128xf32>
    %206 = tpu.matmul %203, %205, %cst_59 {dimension_numbers = #tpu.dot_dimension_numbers<[1], [0], [0], [1], [0, 0, 1, 1], [], []>} : vector<8x32xbf16>, vector<32x128xbf16>, vector<8x128xf32> -> vector<8x128xf32>
    %207 = arith.addf %200, %206 : vector<8x128xf32>
    %208 = vector.extract_strided_slice %182 {offsets = [3, 0, 0], sizes = [1, 8, 32], strides = [1, 1, 1]} : vector<4x8x32xf32> to vector<1x8x32xf32>
    %209 = vector.shape_cast %208 : vector<1x8x32xf32> to vector<8x32xf32>
    %210 = arith.truncf %209 : vector<8x32xf32> to vector<8x32xbf16>
    %211 = vector.extract_strided_slice %65 {offsets = [3, 0, 0], sizes = [1, 32, 128], strides = [1, 1, 1]} : vector<4x32x128xbf16> to vector<1x32x128xbf16>
    %212 = vector.shape_cast %211 : vector<1x32x128xbf16> to vector<32x128xbf16>
    %cst_60 = arith.constant dense<0.000000e+00> : vector<8x128xf32>
    %213 = tpu.matmul %210, %212, %cst_60 {dimension_numbers = #tpu.dot_dimension_numbers<[1], [0], [0], [1], [0, 0, 1, 1], [], []>} : vector<8x32xbf16>, vector<32x128xbf16>, vector<8x128xf32> -> vector<8x128xf32>
    %214 = arith.addf %207, %213 : vector<8x128xf32>
    %215 = arith.addf %38, %214 : vector<8x128xf32>
    %216 = arith.index_cast %c0_i32 : i32 to index
    %c0_61 = arith.constant 0 : index
    %c0_62 = arith.constant 0 : index
    %217 = vector.load %arg14[%216, %c0_61, %c0_62] : memref<2x1x128xf32, #tpu.memory_space<vmem>>, vector<1x1x128xf32>
    %218 = vector.shape_cast %217 : vector<1x1x128xf32> to vector<1x128xf32>
    %219 = arith.index_cast %c0_i32 : i32 to index
    %c0_63 = arith.constant 0 : index
    %c0_64 = arith.constant 0 : index
    %220 = vector.load %arg15[%219, %c0_63, %c0_64] : memref<2x1x128xf32, #tpu.memory_space<vmem>>, vector<1x1x128xf32>
    %221 = vector.shape_cast %220 : vector<1x1x128xf32> to vector<1x128xf32>
    %cst_65 = arith.constant dense<0.000000e+00> : vector<8xf32>
    %222 = vector.multi_reduction <add>, %215, %cst_65 [1] : vector<8x128xf32> to vector<8xf32>
    %223 = vector.shape_cast %222 : vector<8xf32> to vector<8x1xf32>
    %cst_66 = arith.constant 1.280000e+02 : f32
    %224 = vector.broadcast %cst_66 : f32 to vector<8x1xf32>
    %225 = arith.divf %223, %224 : vector<8x1xf32>
    %226 = arith.mulf %215, %215 : vector<8x128xf32>
    %cst_67 = arith.constant dense<0.000000e+00> : vector<8xf32>
    %227 = vector.multi_reduction <add>, %226, %cst_67 [1] : vector<8x128xf32> to vector<8xf32>
    %228 = vector.shape_cast %227 : vector<8xf32> to vector<8x1xf32>
    %cst_68 = arith.constant 1.280000e+02 : f32
    %229 = vector.broadcast %cst_68 : f32 to vector<8x1xf32>
    %230 = arith.divf %228, %229 : vector<8x1xf32>
    %231 = arith.mulf %225, %225 : vector<8x1xf32>
    %232 = arith.subf %230, %231 : vector<8x1xf32>
    %233 = vector.broadcast %225 : vector<8x1xf32> to vector<8x128xf32>
    %234 = arith.subf %215, %233 : vector<8x128xf32>
    %cst_69 = arith.constant 1.000000e-07 : f32
    %235 = vector.broadcast %cst_69 : f32 to vector<8x1xf32>
    %236 = arith.addf %232, %235 : vector<8x1xf32>
    %237 = math.rsqrt %236 : vector<8x1xf32>
    %238 = vector.broadcast %237 : vector<8x1xf32> to vector<8x128xf32>
    %239 = arith.mulf %234, %238 : vector<8x128xf32>
    %240 = vector.broadcast %218 : vector<1x128xf32> to vector<8x128xf32>
    %241 = arith.mulf %239, %240 : vector<8x128xf32>
    %242 = vector.broadcast %221 : vector<1x128xf32> to vector<8x128xf32>
    %243 = arith.addf %241, %242 : vector<8x128xf32>
    %244 = arith.truncf %243 : vector<8x128xf32> to vector<8x128xbf16>
    %245 = arith.index_cast %c0_i32 : i32 to index
    %c0_70 = arith.constant 0 : index
    %c0_71 = arith.constant 0 : index
    %246 = vector.load %arg16[%245, %c0_70, %c0_71] : memref<2x128x256xbf16, #tpu.memory_space<vmem>>, vector<1x128x256xbf16>
    %247 = vector.shape_cast %246 : vector<1x128x256xbf16> to vector<128x256xbf16>
    %cst_72 = arith.constant dense<0.000000e+00> : vector<8x256xf32>
    %248 = tpu.matmul %244, %247, %cst_72 {dimension_numbers = #tpu.dot_dimension_numbers<[1], [0], [0], [1], [0, 0, 1, 1], [], []>} : vector<8x128xbf16>, vector<128x256xbf16>, vector<8x256xf32> -> vector<8x256xf32>
    %249 = arith.index_cast %c0_i32 : i32 to index
    %c0_73 = arith.constant 0 : index
    %c0_74 = arith.constant 0 : index
    %250 = vector.load %arg17[%249, %c0_73, %c0_74] : memref<2x1x256xf32, #tpu.memory_space<vmem>>, vector<1x1x256xf32>
    %251 = vector.shape_cast %250 : vector<1x1x256xf32> to vector<1x256xf32>
    %252 = vector.broadcast %251 : vector<1x256xf32> to vector<8x256xf32>
    %253 = arith.addf %248, %252 : vector<8x256xf32>
    %254 = arith.mulf %253, %253 : vector<8x256xf32>
    %255 = arith.mulf %253, %254 : vector<8x256xf32>
    %cst_75 = arith.constant 4.471500e-02 : f32
    %256 = vector.broadcast %cst_75 : f32 to vector<8x256xf32>
    %257 = arith.mulf %256, %255 : vector<8x256xf32>
    %258 = arith.addf %253, %257 : vector<8x256xf32>
    %cst_76 = arith.constant 0.797884583 : f32
    %259 = vector.broadcast %cst_76 : f32 to vector<8x256xf32>
    %260 = arith.mulf %259, %258 : vector<8x256xf32>
    %261 = math.tanh %260 : vector<8x256xf32>
    %cst_77 = arith.constant 1.000000e+00 : f32
    %262 = vector.broadcast %cst_77 : f32 to vector<8x256xf32>
    %263 = arith.addf %262, %261 : vector<8x256xf32>
    %cst_78 = arith.constant 5.000000e-01 : f32
    %264 = vector.broadcast %cst_78 : f32 to vector<8x256xf32>
    %265 = arith.mulf %264, %263 : vector<8x256xf32>
    %266 = arith.mulf %253, %265 : vector<8x256xf32>
    %267 = arith.truncf %266 : vector<8x256xf32> to vector<8x256xbf16>
    %268 = arith.index_cast %c0_i32 : i32 to index
    %c0_79 = arith.constant 0 : index
    %c0_80 = arith.constant 0 : index
    %269 = vector.load %arg18[%268, %c0_79, %c0_80] : memref<2x256x128xbf16, #tpu.memory_space<vmem>>, vector<1x256x128xbf16>
    %270 = vector.shape_cast %269 : vector<1x256x128xbf16> to vector<256x128xbf16>
    %cst_81 = arith.constant dense<0.000000e+00> : vector<8x128xf32>
    %271 = tpu.matmul %267, %270, %cst_81 {dimension_numbers = #tpu.dot_dimension_numbers<[1], [0], [0], [1], [0, 0, 1, 1], [], []>} : vector<8x256xbf16>, vector<256x128xbf16>, vector<8x128xf32> -> vector<8x128xf32>
    %272 = arith.index_cast %c0_i32 : i32 to index
    %c0_82 = arith.constant 0 : index
    %c0_83 = arith.constant 0 : index
    %273 = vector.load %arg19[%272, %c0_82, %c0_83] : memref<2x1x128xf32, #tpu.memory_space<vmem>>, vector<1x1x128xf32>
    %274 = vector.shape_cast %273 : vector<1x1x128xf32> to vector<1x128xf32>
    %275 = vector.broadcast %274 : vector<1x128xf32> to vector<8x128xf32>
    %276 = arith.addf %271, %275 : vector<8x128xf32>
    %277 = arith.addf %243, %276 : vector<8x128xf32>
    %278 = arith.index_cast %c0_i32 : i32 to index
    %c0_84 = arith.constant 0 : index
    %c0_85 = arith.constant 0 : index
    %279 = vector.load %arg20[%278, %c0_84, %c0_85] : memref<2x1x128xf32, #tpu.memory_space<vmem>>, vector<1x1x128xf32>
    %280 = vector.shape_cast %279 : vector<1x1x128xf32> to vector<1x128xf32>
    %281 = arith.index_cast %c0_i32 : i32 to index
    %c0_86 = arith.constant 0 : index
    %c0_87 = arith.constant 0 : index
    %282 = vector.load %arg21[%281, %c0_86, %c0_87] : memref<2x1x128xf32, #tpu.memory_space<vmem>>, vector<1x1x128xf32>
    %283 = vector.shape_cast %282 : vector<1x1x128xf32> to vector<1x128xf32>
    %cst_88 = arith.constant dense<0.000000e+00> : vector<8xf32>
    %284 = vector.multi_reduction <add>, %277, %cst_88 [1] : vector<8x128xf32> to vector<8xf32>
    %285 = vector.shape_cast %284 : vector<8xf32> to vector<8x1xf32>
    %cst_89 = arith.constant 1.280000e+02 : f32
    %286 = vector.broadcast %cst_89 : f32 to vector<8x1xf32>
    %287 = arith.divf %285, %286 : vector<8x1xf32>
    %288 = arith.mulf %277, %277 : vector<8x128xf32>
    %cst_90 = arith.constant dense<0.000000e+00> : vector<8xf32>
    %289 = vector.multi_reduction <add>, %288, %cst_90 [1] : vector<8x128xf32> to vector<8xf32>
    %290 = vector.shape_cast %289 : vector<8xf32> to vector<8x1xf32>
    %cst_91 = arith.constant 1.280000e+02 : f32
    %291 = vector.broadcast %cst_91 : f32 to vector<8x1xf32>
    %292 = arith.divf %290, %291 : vector<8x1xf32>
    %293 = arith.mulf %287, %287 : vector<8x1xf32>
    %294 = arith.subf %292, %293 : vector<8x1xf32>
    %295 = vector.broadcast %287 : vector<8x1xf32> to vector<8x128xf32>
    %296 = arith.subf %277, %295 : vector<8x128xf32>
    %cst_92 = arith.constant 1.000000e-07 : f32
    %297 = vector.broadcast %cst_92 : f32 to vector<8x1xf32>
    %298 = arith.addf %294, %297 : vector<8x1xf32>
    %299 = math.rsqrt %298 : vector<8x1xf32>
    %300 = vector.broadcast %299 : vector<8x1xf32> to vector<8x128xf32>
    %301 = arith.mulf %296, %300 : vector<8x128xf32>
    %302 = vector.broadcast %280 : vector<1x128xf32> to vector<8x128xf32>
    %303 = arith.mulf %301, %302 : vector<8x128xf32>
    %304 = vector.broadcast %283 : vector<1x128xf32> to vector<8x128xf32>
    %305 = arith.addf %303, %304 : vector<8x128xf32>
    %c1_i32 = arith.constant 1 : i32
    %306 = arith.truncf %305 : vector<8x128xf32> to vector<8x128xbf16>
    %307 = arith.index_cast %c1_i32 : i32 to index
    %c0_93 = arith.constant 0 : index
    %c0_94 = arith.constant 0 : index
    %c0_95 = arith.constant 0 : index
    %308 = vector.load %arg6[%307, %c0_93, %c0_94, %c0_95] : memref<2x4x128x32xbf16, #tpu.memory_space<vmem>>, vector<1x4x128x32xbf16>
    %309 = vector.shape_cast %308 : vector<1x4x128x32xbf16> to vector<4x128x32xbf16>
    %310 = arith.index_cast %c1_i32 : i32 to index
    %c0_96 = arith.constant 0 : index
    %c0_97 = arith.constant 0 : index
    %c0_98 = arith.constant 0 : index
    %311 = vector.load %arg8[%310, %c0_96, %c0_97, %c0_98] : memref<2x4x128x32xbf16, #tpu.memory_space<vmem>>, vector<1x4x128x32xbf16>
    %312 = vector.shape_cast %311 : vector<1x4x128x32xbf16> to vector<4x128x32xbf16>
    %313 = arith.index_cast %c1_i32 : i32 to index
    %c0_99 = arith.constant 0 : index
    %c0_100 = arith.constant 0 : index
    %c0_101 = arith.constant 0 : index
    %314 = vector.load %arg10[%313, %c0_99, %c0_100, %c0_101] : memref<2x4x128x32xbf16, #tpu.memory_space<vmem>>, vector<1x4x128x32xbf16>
    %315 = vector.shape_cast %314 : vector<1x4x128x32xbf16> to vector<4x128x32xbf16>
    %316 = arith.index_cast %c1_i32 : i32 to index
    %c0_102 = arith.constant 0 : index
    %c0_103 = arith.constant 0 : index
    %c0_104 = arith.constant 0 : index
    %317 = vector.load %arg7[%316, %c0_102, %c0_103, %c0_104] : memref<2x4x1x32xf32, #tpu.memory_space<vmem>>, vector<1x4x1x32xf32>
    %318 = vector.shape_cast %317 : vector<1x4x1x32xf32> to vector<4x1x32xf32>
    %319 = arith.index_cast %c1_i32 : i32 to index
    %c0_105 = arith.constant 0 : index
    %c0_106 = arith.constant 0 : index
    %c0_107 = arith.constant 0 : index
    %320 = vector.load %arg9[%319, %c0_105, %c0_106, %c0_107] : memref<2x4x1x32xf32, #tpu.memory_space<vmem>>, vector<1x4x1x32xf32>
    %321 = vector.shape_cast %320 : vector<1x4x1x32xf32> to vector<4x1x32xf32>
    %322 = arith.index_cast %c1_i32 : i32 to index
    %c0_108 = arith.constant 0 : index
    %c0_109 = arith.constant 0 : index
    %c0_110 = arith.constant 0 : index
    %323 = vector.load %arg11[%322, %c0_108, %c0_109, %c0_110] : memref<2x4x1x32xf32, #tpu.memory_space<vmem>>, vector<1x4x1x32xf32>
    %324 = vector.shape_cast %323 : vector<1x4x1x32xf32> to vector<4x1x32xf32>
    %325 = arith.index_cast %c1_i32 : i32 to index
    %c0_111 = arith.constant 0 : index
    %c0_112 = arith.constant 0 : index
    %c0_113 = arith.constant 0 : index
    %326 = vector.load %arg12[%325, %c0_111, %c0_112, %c0_113] : memref<2x4x32x128xbf16, #tpu.memory_space<vmem>>, vector<1x4x32x128xbf16>
    %327 = vector.shape_cast %326 : vector<1x4x32x128xbf16> to vector<4x32x128xbf16>
    %328 = vector.extract_strided_slice %309 {offsets = [0, 0, 0], sizes = [1, 128, 32], strides = [1, 1, 1]} : vector<4x128x32xbf16> to vector<1x128x32xbf16>
    %329 = vector.shape_cast %328 : vector<1x128x32xbf16> to vector<128x32xbf16>
    %cst_114 = arith.constant dense<0.000000e+00> : vector<8x32xf32>
    %330 = tpu.matmul %306, %329, %cst_114 {dimension_numbers = #tpu.dot_dimension_numbers<[1], [0], [0], [1], [0, 0, 1, 1], [], []>} : vector<8x128xbf16>, vector<128x32xbf16>, vector<8x32xf32> -> vector<8x32xf32>
    %331 = vector.extract_strided_slice %318 {offsets = [0, 0, 0], sizes = [1, 1, 32], strides = [1, 1, 1]} : vector<4x1x32xf32> to vector<1x1x32xf32>
    %332 = vector.shape_cast %331 : vector<1x1x32xf32> to vector<1x32xf32>
    %333 = vector.broadcast %332 : vector<1x32xf32> to vector<8x32xf32>
    %334 = arith.addf %330, %333 : vector<8x32xf32>
    %335 = vector.shape_cast %334 : vector<8x32xf32> to vector<1x8x32xf32>
    %336 = vector.extract_strided_slice %312 {offsets = [0, 0, 0], sizes = [1, 128, 32], strides = [1, 1, 1]} : vector<4x128x32xbf16> to vector<1x128x32xbf16>
    %337 = vector.shape_cast %336 : vector<1x128x32xbf16> to vector<128x32xbf16>
    %cst_115 = arith.constant dense<0.000000e+00> : vector<8x32xf32>
    %338 = tpu.matmul %306, %337, %cst_115 {dimension_numbers = #tpu.dot_dimension_numbers<[1], [0], [0], [1], [0, 0, 1, 1], [], []>} : vector<8x128xbf16>, vector<128x32xbf16>, vector<8x32xf32> -> vector<8x32xf32>
    %339 = vector.extract_strided_slice %321 {offsets = [0, 0, 0], sizes = [1, 1, 32], strides = [1, 1, 1]} : vector<4x1x32xf32> to vector<1x1x32xf32>
    %340 = vector.shape_cast %339 : vector<1x1x32xf32> to vector<1x32xf32>
    %341 = vector.broadcast %340 : vector<1x32xf32> to vector<8x32xf32>
    %342 = arith.addf %338, %341 : vector<8x32xf32>
    %343 = vector.shape_cast %342 : vector<8x32xf32> to vector<1x8x32xf32>
    %344 = vector.extract_strided_slice %315 {offsets = [0, 0, 0], sizes = [1, 128, 32], strides = [1, 1, 1]} : vector<4x128x32xbf16> to vector<1x128x32xbf16>
    %345 = vector.shape_cast %344 : vector<1x128x32xbf16> to vector<128x32xbf16>
    %cst_116 = arith.constant dense<0.000000e+00> : vector<8x32xf32>
    %346 = tpu.matmul %306, %345, %cst_116 {dimension_numbers = #tpu.dot_dimension_numbers<[1], [0], [0], [1], [0, 0, 1, 1], [], []>} : vector<8x128xbf16>, vector<128x32xbf16>, vector<8x32xf32> -> vector<8x32xf32>
    %347 = vector.extract_strided_slice %324 {offsets = [0, 0, 0], sizes = [1, 1, 32], strides = [1, 1, 1]} : vector<4x1x32xf32> to vector<1x1x32xf32>
    %348 = vector.shape_cast %347 : vector<1x1x32xf32> to vector<1x32xf32>
    %349 = vector.broadcast %348 : vector<1x32xf32> to vector<8x32xf32>
    %350 = arith.addf %346, %349 : vector<8x32xf32>
    %351 = vector.shape_cast %350 : vector<8x32xf32> to vector<1x8x32xf32>
    %352 = vector.extract_strided_slice %309 {offsets = [1, 0, 0], sizes = [1, 128, 32], strides = [1, 1, 1]} : vector<4x128x32xbf16> to vector<1x128x32xbf16>
    %353 = vector.shape_cast %352 : vector<1x128x32xbf16> to vector<128x32xbf16>
    %cst_117 = arith.constant dense<0.000000e+00> : vector<8x32xf32>
    %354 = tpu.matmul %306, %353, %cst_117 {dimension_numbers = #tpu.dot_dimension_numbers<[1], [0], [0], [1], [0, 0, 1, 1], [], []>} : vector<8x128xbf16>, vector<128x32xbf16>, vector<8x32xf32> -> vector<8x32xf32>
    %355 = vector.extract_strided_slice %318 {offsets = [1, 0, 0], sizes = [1, 1, 32], strides = [1, 1, 1]} : vector<4x1x32xf32> to vector<1x1x32xf32>
    %356 = vector.shape_cast %355 : vector<1x1x32xf32> to vector<1x32xf32>
    %357 = vector.broadcast %356 : vector<1x32xf32> to vector<8x32xf32>
    %358 = arith.addf %354, %357 : vector<8x32xf32>
    %359 = vector.shape_cast %358 : vector<8x32xf32> to vector<1x8x32xf32>
    %360 = vector.extract_strided_slice %312 {offsets = [1, 0, 0], sizes = [1, 128, 32], strides = [1, 1, 1]} : vector<4x128x32xbf16> to vector<1x128x32xbf16>
    %361 = vector.shape_cast %360 : vector<1x128x32xbf16> to vector<128x32xbf16>
    %cst_118 = arith.constant dense<0.000000e+00> : vector<8x32xf32>
    %362 = tpu.matmul %306, %361, %cst_118 {dimension_numbers = #tpu.dot_dimension_numbers<[1], [0], [0], [1], [0, 0, 1, 1], [], []>} : vector<8x128xbf16>, vector<128x32xbf16>, vector<8x32xf32> -> vector<8x32xf32>
    %363 = vector.extract_strided_slice %321 {offsets = [1, 0, 0], sizes = [1, 1, 32], strides = [1, 1, 1]} : vector<4x1x32xf32> to vector<1x1x32xf32>
    %364 = vector.shape_cast %363 : vector<1x1x32xf32> to vector<1x32xf32>
    %365 = vector.broadcast %364 : vector<1x32xf32> to vector<8x32xf32>
    %366 = arith.addf %362, %365 : vector<8x32xf32>
    %367 = vector.shape_cast %366 : vector<8x32xf32> to vector<1x8x32xf32>
    %368 = vector.extract_strided_slice %315 {offsets = [1, 0, 0], sizes = [1, 128, 32], strides = [1, 1, 1]} : vector<4x128x32xbf16> to vector<1x128x32xbf16>
    %369 = vector.shape_cast %368 : vector<1x128x32xbf16> to vector<128x32xbf16>
    %cst_119 = arith.constant dense<0.000000e+00> : vector<8x32xf32>
    %370 = tpu.matmul %306, %369, %cst_119 {dimension_numbers = #tpu.dot_dimension_numbers<[1], [0], [0], [1], [0, 0, 1, 1], [], []>} : vector<8x128xbf16>, vector<128x32xbf16>, vector<8x32xf32> -> vector<8x32xf32>
    %371 = vector.extract_strided_slice %324 {offsets = [1, 0, 0], sizes = [1, 1, 32], strides = [1, 1, 1]} : vector<4x1x32xf32> to vector<1x1x32xf32>
    %372 = vector.shape_cast %371 : vector<1x1x32xf32> to vector<1x32xf32>
    %373 = vector.broadcast %372 : vector<1x32xf32> to vector<8x32xf32>
    %374 = arith.addf %370, %373 : vector<8x32xf32>
    %375 = vector.shape_cast %374 : vector<8x32xf32> to vector<1x8x32xf32>
    %376 = vector.extract_strided_slice %309 {offsets = [2, 0, 0], sizes = [1, 128, 32], strides = [1, 1, 1]} : vector<4x128x32xbf16> to vector<1x128x32xbf16>
    %377 = vector.shape_cast %376 : vector<1x128x32xbf16> to vector<128x32xbf16>
    %cst_120 = arith.constant dense<0.000000e+00> : vector<8x32xf32>
    %378 = tpu.matmul %306, %377, %cst_120 {dimension_numbers = #tpu.dot_dimension_numbers<[1], [0], [0], [1], [0, 0, 1, 1], [], []>} : vector<8x128xbf16>, vector<128x32xbf16>, vector<8x32xf32> -> vector<8x32xf32>
    %379 = vector.extract_strided_slice %318 {offsets = [2, 0, 0], sizes = [1, 1, 32], strides = [1, 1, 1]} : vector<4x1x32xf32> to vector<1x1x32xf32>
    %380 = vector.shape_cast %379 : vector<1x1x32xf32> to vector<1x32xf32>
    %381 = vector.broadcast %380 : vector<1x32xf32> to vector<8x32xf32>
    %382 = arith.addf %378, %381 : vector<8x32xf32>
    %383 = vector.shape_cast %382 : vector<8x32xf32> to vector<1x8x32xf32>
    %384 = vector.extract_strided_slice %312 {offsets = [2, 0, 0], sizes = [1, 128, 32], strides = [1, 1, 1]} : vector<4x128x32xbf16> to vector<1x128x32xbf16>
    %385 = vector.shape_cast %384 : vector<1x128x32xbf16> to vector<128x32xbf16>
    %cst_121 = arith.constant dense<0.000000e+00> : vector<8x32xf32>
    %386 = tpu.matmul %306, %385, %cst_121 {dimension_numbers = #tpu.dot_dimension_numbers<[1], [0], [0], [1], [0, 0, 1, 1], [], []>} : vector<8x128xbf16>, vector<128x32xbf16>, vector<8x32xf32> -> vector<8x32xf32>
    %387 = vector.extract_strided_slice %321 {offsets = [2, 0, 0], sizes = [1, 1, 32], strides = [1, 1, 1]} : vector<4x1x32xf32> to vector<1x1x32xf32>
    %388 = vector.shape_cast %387 : vector<1x1x32xf32> to vector<1x32xf32>
    %389 = vector.broadcast %388 : vector<1x32xf32> to vector<8x32xf32>
    %390 = arith.addf %386, %389 : vector<8x32xf32>
    %391 = vector.shape_cast %390 : vector<8x32xf32> to vector<1x8x32xf32>
    %392 = vector.extract_strided_slice %315 {offsets = [2, 0, 0], sizes = [1, 128, 32], strides = [1, 1, 1]} : vector<4x128x32xbf16> to vector<1x128x32xbf16>
    %393 = vector.shape_cast %392 : vector<1x128x32xbf16> to vector<128x32xbf16>
    %cst_122 = arith.constant dense<0.000000e+00> : vector<8x32xf32>
    %394 = tpu.matmul %306, %393, %cst_122 {dimension_numbers = #tpu.dot_dimension_numbers<[1], [0], [0], [1], [0, 0, 1, 1], [], []>} : vector<8x128xbf16>, vector<128x32xbf16>, vector<8x32xf32> -> vector<8x32xf32>
    %395 = vector.extract_strided_slice %324 {offsets = [2, 0, 0], sizes = [1, 1, 32], strides = [1, 1, 1]} : vector<4x1x32xf32> to vector<1x1x32xf32>
    %396 = vector.shape_cast %395 : vector<1x1x32xf32> to vector<1x32xf32>
    %397 = vector.broadcast %396 : vector<1x32xf32> to vector<8x32xf32>
    %398 = arith.addf %394, %397 : vector<8x32xf32>
    %399 = vector.shape_cast %398 : vector<8x32xf32> to vector<1x8x32xf32>
    %400 = vector.extract_strided_slice %309 {offsets = [3, 0, 0], sizes = [1, 128, 32], strides = [1, 1, 1]} : vector<4x128x32xbf16> to vector<1x128x32xbf16>
    %401 = vector.shape_cast %400 : vector<1x128x32xbf16> to vector<128x32xbf16>
    %cst_123 = arith.constant dense<0.000000e+00> : vector<8x32xf32>
    %402 = tpu.matmul %306, %401, %cst_123 {dimension_numbers = #tpu.dot_dimension_numbers<[1], [0], [0], [1], [0, 0, 1, 1], [], []>} : vector<8x128xbf16>, vector<128x32xbf16>, vector<8x32xf32> -> vector<8x32xf32>
    %403 = vector.extract_strided_slice %318 {offsets = [3, 0, 0], sizes = [1, 1, 32], strides = [1, 1, 1]} : vector<4x1x32xf32> to vector<1x1x32xf32>
    %404 = vector.shape_cast %403 : vector<1x1x32xf32> to vector<1x32xf32>
    %405 = vector.broadcast %404 : vector<1x32xf32> to vector<8x32xf32>
    %406 = arith.addf %402, %405 : vector<8x32xf32>
    %407 = vector.shape_cast %406 : vector<8x32xf32> to vector<1x8x32xf32>
    %408 = vector.extract_strided_slice %312 {offsets = [3, 0, 0], sizes = [1, 128, 32], strides = [1, 1, 1]} : vector<4x128x32xbf16> to vector<1x128x32xbf16>
    %409 = vector.shape_cast %408 : vector<1x128x32xbf16> to vector<128x32xbf16>
    %cst_124 = arith.constant dense<0.000000e+00> : vector<8x32xf32>
    %410 = tpu.matmul %306, %409, %cst_124 {dimension_numbers = #tpu.dot_dimension_numbers<[1], [0], [0], [1], [0, 0, 1, 1], [], []>} : vector<8x128xbf16>, vector<128x32xbf16>, vector<8x32xf32> -> vector<8x32xf32>
    %411 = vector.extract_strided_slice %321 {offsets = [3, 0, 0], sizes = [1, 1, 32], strides = [1, 1, 1]} : vector<4x1x32xf32> to vector<1x1x32xf32>
    %412 = vector.shape_cast %411 : vector<1x1x32xf32> to vector<1x32xf32>
    %413 = vector.broadcast %412 : vector<1x32xf32> to vector<8x32xf32>
    %414 = arith.addf %410, %413 : vector<8x32xf32>
    %415 = vector.shape_cast %414 : vector<8x32xf32> to vector<1x8x32xf32>
    %416 = vector.extract_strided_slice %315 {offsets = [3, 0, 0], sizes = [1, 128, 32], strides = [1, 1, 1]} : vector<4x128x32xbf16> to vector<1x128x32xbf16>
    %417 = vector.shape_cast %416 : vector<1x128x32xbf16> to vector<128x32xbf16>
    %cst_125 = arith.constant dense<0.000000e+00> : vector<8x32xf32>
    %418 = tpu.matmul %306, %417, %cst_125 {dimension_numbers = #tpu.dot_dimension_numbers<[1], [0], [0], [1], [0, 0, 1, 1], [], []>} : vector<8x128xbf16>, vector<128x32xbf16>, vector<8x32xf32> -> vector<8x32xf32>
    %419 = vector.extract_strided_slice %324 {offsets = [3, 0, 0], sizes = [1, 1, 32], strides = [1, 1, 1]} : vector<4x1x32xf32> to vector<1x1x32xf32>
    %420 = vector.shape_cast %419 : vector<1x1x32xf32> to vector<1x32xf32>
    %421 = vector.broadcast %420 : vector<1x32xf32> to vector<8x32xf32>
    %422 = arith.addf %418, %421 : vector<8x32xf32>
    %423 = vector.shape_cast %422 : vector<8x32xf32> to vector<1x8x32xf32>
    %424 = tpu.concatenate %335, %359, %383, %407 in 0 : vector<1x8x32xf32>, vector<1x8x32xf32>, vector<1x8x32xf32>, vector<1x8x32xf32> -> vector<4x8x32xf32>
    %425 = arith.truncf %424 : vector<4x8x32xf32> to vector<4x8x32xbf16>
    %426 = tpu.concatenate %343, %367, %391, %415 in 0 : vector<1x8x32xf32>, vector<1x8x32xf32>, vector<1x8x32xf32>, vector<1x8x32xf32> -> vector<4x8x32xf32>
    %427 = arith.truncf %426 : vector<4x8x32xf32> to vector<4x8x32xbf16>
    %428 = tpu.concatenate %351, %375, %399, %423 in 0 : vector<1x8x32xf32>, vector<1x8x32xf32>, vector<1x8x32xf32>, vector<1x8x32xf32> -> vector<4x8x32xf32>
    %429 = arith.truncf %428 : vector<4x8x32xf32> to vector<4x8x32xbf16>
    "tpu.trace_start"() <{level = 10 : i32, message = "hqd,hkd->hqk"}> : () -> ()
    %cst_126 = arith.constant dense<0.000000e+00> : vector<4x8x8xf32>
    %430 = tpu.matmul %425, %427, %cst_126 {dimension_numbers = #tpu.dot_dimension_numbers<[2], [2], [1], [1], [0, 0, 0, 1, 1, 1], [0], [0]>} : vector<4x8x32xbf16>, vector<4x8x32xbf16>, vector<4x8x8xf32> -> vector<4x8x8xf32>
    "tpu.trace_stop"() : () -> ()
    %431 = vector.broadcast %43 : vector<1x1x8xf32> to vector<4x8x8xf32>
    %432 = arith.addf %430, %431 : vector<4x8x8xf32>
    %cst_127 = arith.constant dense<0xFF800000> : vector<4x8xf32>
    %433 = vector.multi_reduction <maximumf>, %432, %cst_127 [2] : vector<4x8x8xf32> to vector<4x8xf32>
    %434 = vector.shape_cast %433 : vector<4x8xf32> to vector<4x8x1xf32>
    %435 = vector.broadcast %434 : vector<4x8x1xf32> to vector<4x8x8xf32>
    %436 = arith.subf %432, %435 : vector<4x8x8xf32>
    %437 = math.exp %436 : vector<4x8x8xf32>
    %cst_128 = arith.constant dense<0.000000e+00> : vector<4x8xf32>
    %438 = vector.multi_reduction <add>, %437, %cst_128 [2] : vector<4x8x8xf32> to vector<4x8xf32>
    %439 = vector.shape_cast %438 : vector<4x8xf32> to vector<4x8x1xf32>
    %440 = tpu.reciprocal %439 {approx = true} : vector<4x8x1xf32> -> vector<4x8x1xf32>
    %441 = vector.broadcast %440 : vector<4x8x1xf32> to vector<4x8x8xf32>
    %442 = arith.mulf %437, %441 : vector<4x8x8xf32>
    %443 = arith.truncf %442 : vector<4x8x8xf32> to vector<4x8x8xbf16>
    "tpu.trace_start"() <{level = 10 : i32, message = "hqk,hkd->hqd"}> : () -> ()
    %cst_129 = arith.constant dense<0.000000e+00> : vector<4x8x32xf32>
    %444 = tpu.matmul %443, %429, %cst_129 {dimension_numbers = #tpu.dot_dimension_numbers<[2], [1], [1], [2], [0, 0, 0, 1, 1, 2], [0], [0]>} : vector<4x8x8xbf16>, vector<4x8x32xbf16>, vector<4x8x32xf32> -> vector<4x8x32xf32>
    "tpu.trace_stop"() : () -> ()
    %445 = arith.index_cast %c1_i32 : i32 to index
    %c0_130 = arith.constant 0 : index
    %c0_131 = arith.constant 0 : index
    %446 = vector.load %arg13[%445, %c0_130, %c0_131] : memref<2x1x128xf32, #tpu.memory_space<vmem>>, vector<1x1x128xf32>
    %447 = vector.shape_cast %446 : vector<1x1x128xf32> to vector<1x128xf32>
    %448 = vector.extract_strided_slice %444 {offsets = [0, 0, 0], sizes = [1, 8, 32], strides = [1, 1, 1]} : vector<4x8x32xf32> to vector<1x8x32xf32>
    %449 = vector.shape_cast %448 : vector<1x8x32xf32> to vector<8x32xf32>
    %450 = arith.truncf %449 : vector<8x32xf32> to vector<8x32xbf16>
    %451 = vector.extract_strided_slice %327 {offsets = [0, 0, 0], sizes = [1, 32, 128], strides = [1, 1, 1]} : vector<4x32x128xbf16> to vector<1x32x128xbf16>
    %452 = vector.shape_cast %451 : vector<1x32x128xbf16> to vector<32x128xbf16>
    %cst_132 = arith.constant dense<0.000000e+00> : vector<8x128xf32>
    %453 = tpu.matmul %450, %452, %cst_132 {dimension_numbers = #tpu.dot_dimension_numbers<[1], [0], [0], [1], [0, 0, 1, 1], [], []>} : vector<8x32xbf16>, vector<32x128xbf16>, vector<8x128xf32> -> vector<8x128xf32>
    %454 = vector.broadcast %447 : vector<1x128xf32> to vector<8x128xf32>
    %455 = arith.addf %454, %453 : vector<8x128xf32>
    %456 = vector.extract_strided_slice %444 {offsets = [1, 0, 0], sizes = [1, 8, 32], strides = [1, 1, 1]} : vector<4x8x32xf32> to vector<1x8x32xf32>
    %457 = vector.shape_cast %456 : vector<1x8x32xf32> to vector<8x32xf32>
    %458 = arith.truncf %457 : vector<8x32xf32> to vector<8x32xbf16>
    %459 = vector.extract_strided_slice %327 {offsets = [1, 0, 0], sizes = [1, 32, 128], strides = [1, 1, 1]} : vector<4x32x128xbf16> to vector<1x32x128xbf16>
    %460 = vector.shape_cast %459 : vector<1x32x128xbf16> to vector<32x128xbf16>
    %cst_133 = arith.constant dense<0.000000e+00> : vector<8x128xf32>
    %461 = tpu.matmul %458, %460, %cst_133 {dimension_numbers = #tpu.dot_dimension_numbers<[1], [0], [0], [1], [0, 0, 1, 1], [], []>} : vector<8x32xbf16>, vector<32x128xbf16>, vector<8x128xf32> -> vector<8x128xf32>
    %462 = arith.addf %455, %461 : vector<8x128xf32>
    %463 = vector.extract_strided_slice %444 {offsets = [2, 0, 0], sizes = [1, 8, 32], strides = [1, 1, 1]} : vector<4x8x32xf32> to vector<1x8x32xf32>
    %464 = vector.shape_cast %463 : vector<1x8x32xf32> to vector<8x32xf32>
    %465 = arith.truncf %464 : vector<8x32xf32> to vector<8x32xbf16>
    %466 = vector.extract_strided_slice %327 {offsets = [2, 0, 0], sizes = [1, 32, 128], strides = [1, 1, 1]} : vector<4x32x128xbf16> to vector<1x32x128xbf16>
    %467 = vector.shape_cast %466 : vector<1x32x128xbf16> to vector<32x128xbf16>
    %cst_134 = arith.constant dense<0.000000e+00> : vector<8x128xf32>
    %468 = tpu.matmul %465, %467, %cst_134 {dimension_numbers = #tpu.dot_dimension_numbers<[1], [0], [0], [1], [0, 0, 1, 1], [], []>} : vector<8x32xbf16>, vector<32x128xbf16>, vector<8x128xf32> -> vector<8x128xf32>
    %469 = arith.addf %462, %468 : vector<8x128xf32>
    %470 = vector.extract_strided_slice %444 {offsets = [3, 0, 0], sizes = [1, 8, 32], strides = [1, 1, 1]} : vector<4x8x32xf32> to vector<1x8x32xf32>
    %471 = vector.shape_cast %470 : vector<1x8x32xf32> to vector<8x32xf32>
    %472 = arith.truncf %471 : vector<8x32xf32> to vector<8x32xbf16>
    %473 = vector.extract_strided_slice %327 {offsets = [3, 0, 0], sizes = [1, 32, 128], strides = [1, 1, 1]} : vector<4x32x128xbf16> to vector<1x32x128xbf16>
    %474 = vector.shape_cast %473 : vector<1x32x128xbf16> to vector<32x128xbf16>
    %cst_135 = arith.constant dense<0.000000e+00> : vector<8x128xf32>
    %475 = tpu.matmul %472, %474, %cst_135 {dimension_numbers = #tpu.dot_dimension_numbers<[1], [0], [0], [1], [0, 0, 1, 1], [], []>} : vector<8x32xbf16>, vector<32x128xbf16>, vector<8x128xf32> -> vector<8x128xf32>
    %476 = arith.addf %469, %475 : vector<8x128xf32>
    %477 = arith.addf %305, %476 : vector<8x128xf32>
    %478 = arith.index_cast %c1_i32 : i32 to index
    %c0_136 = arith.constant 0 : index
    %c0_137 = arith.constant 0 : index
    %479 = vector.load %arg14[%478, %c0_136, %c0_137] : memref<2x1x128xf32, #tpu.memory_space<vmem>>, vector<1x1x128xf32>
    %480 = vector.shape_cast %479 : vector<1x1x128xf32> to vector<1x128xf32>
    %481 = arith.index_cast %c1_i32 : i32 to index
    %c0_138 = arith.constant 0 : index
    %c0_139 = arith.constant 0 : index
    %482 = vector.load %arg15[%481, %c0_138, %c0_139] : memref<2x1x128xf32, #tpu.memory_space<vmem>>, vector<1x1x128xf32>
    %483 = vector.shape_cast %482 : vector<1x1x128xf32> to vector<1x128xf32>
    %cst_140 = arith.constant dense<0.000000e+00> : vector<8xf32>
    %484 = vector.multi_reduction <add>, %477, %cst_140 [1] : vector<8x128xf32> to vector<8xf32>
    %485 = vector.shape_cast %484 : vector<8xf32> to vector<8x1xf32>
    %cst_141 = arith.constant 1.280000e+02 : f32
    %486 = vector.broadcast %cst_141 : f32 to vector<8x1xf32>
    %487 = arith.divf %485, %486 : vector<8x1xf32>
    %488 = arith.mulf %477, %477 : vector<8x128xf32>
    %cst_142 = arith.constant dense<0.000000e+00> : vector<8xf32>
    %489 = vector.multi_reduction <add>, %488, %cst_142 [1] : vector<8x128xf32> to vector<8xf32>
    %490 = vector.shape_cast %489 : vector<8xf32> to vector<8x1xf32>
    %cst_143 = arith.constant 1.280000e+02 : f32
    %491 = vector.broadcast %cst_143 : f32 to vector<8x1xf32>
    %492 = arith.divf %490, %491 : vector<8x1xf32>
    %493 = arith.mulf %487, %487 : vector<8x1xf32>
    %494 = arith.subf %492, %493 : vector<8x1xf32>
    %495 = vector.broadcast %487 : vector<8x1xf32> to vector<8x128xf32>
    %496 = arith.subf %477, %495 : vector<8x128xf32>
    %cst_144 = arith.constant 1.000000e-07 : f32
    %497 = vector.broadcast %cst_144 : f32 to vector<8x1xf32>
    %498 = arith.addf %494, %497 : vector<8x1xf32>
    %499 = math.rsqrt %498 : vector<8x1xf32>
    %500 = vector.broadcast %499 : vector<8x1xf32> to vector<8x128xf32>
    %501 = arith.mulf %496, %500 : vector<8x128xf32>
    %502 = vector.broadcast %480 : vector<1x128xf32> to vector<8x128xf32>
    %503 = arith.mulf %501, %502 : vector<8x128xf32>
    %504 = vector.broadcast %483 : vector<1x128xf32> to vector<8x128xf32>
    %505 = arith.addf %503, %504 : vector<8x128xf32>
    %506 = arith.truncf %505 : vector<8x128xf32> to vector<8x128xbf16>
    %507 = arith.index_cast %c1_i32 : i32 to index
    %c0_145 = arith.constant 0 : index
    %c0_146 = arith.constant 0 : index
    %508 = vector.load %arg16[%507, %c0_145, %c0_146] : memref<2x128x256xbf16, #tpu.memory_space<vmem>>, vector<1x128x256xbf16>
    %509 = vector.shape_cast %508 : vector<1x128x256xbf16> to vector<128x256xbf16>
    %cst_147 = arith.constant dense<0.000000e+00> : vector<8x256xf32>
    %510 = tpu.matmul %506, %509, %cst_147 {dimension_numbers = #tpu.dot_dimension_numbers<[1], [0], [0], [1], [0, 0, 1, 1], [], []>} : vector<8x128xbf16>, vector<128x256xbf16>, vector<8x256xf32> -> vector<8x256xf32>
    %511 = arith.index_cast %c1_i32 : i32 to index
    %c0_148 = arith.constant 0 : index
    %c0_149 = arith.constant 0 : index
    %512 = vector.load %arg17[%511, %c0_148, %c0_149] : memref<2x1x256xf32, #tpu.memory_space<vmem>>, vector<1x1x256xf32>
    %513 = vector.shape_cast %512 : vector<1x1x256xf32> to vector<1x256xf32>
    %514 = vector.broadcast %513 : vector<1x256xf32> to vector<8x256xf32>
    %515 = arith.addf %510, %514 : vector<8x256xf32>
    %516 = arith.mulf %515, %515 : vector<8x256xf32>
    %517 = arith.mulf %515, %516 : vector<8x256xf32>
    %cst_150 = arith.constant 4.471500e-02 : f32
    %518 = vector.broadcast %cst_150 : f32 to vector<8x256xf32>
    %519 = arith.mulf %518, %517 : vector<8x256xf32>
    %520 = arith.addf %515, %519 : vector<8x256xf32>
    %cst_151 = arith.constant 0.797884583 : f32
    %521 = vector.broadcast %cst_151 : f32 to vector<8x256xf32>
    %522 = arith.mulf %521, %520 : vector<8x256xf32>
    %523 = math.tanh %522 : vector<8x256xf32>
    %cst_152 = arith.constant 1.000000e+00 : f32
    %524 = vector.broadcast %cst_152 : f32 to vector<8x256xf32>
    %525 = arith.addf %524, %523 : vector<8x256xf32>
    %cst_153 = arith.constant 5.000000e-01 : f32
    %526 = vector.broadcast %cst_153 : f32 to vector<8x256xf32>
    %527 = arith.mulf %526, %525 : vector<8x256xf32>
    %528 = arith.mulf %515, %527 : vector<8x256xf32>
    %529 = arith.truncf %528 : vector<8x256xf32> to vector<8x256xbf16>
    %530 = arith.index_cast %c1_i32 : i32 to index
    %c0_154 = arith.constant 0 : index
    %c0_155 = arith.constant 0 : index
    %531 = vector.load %arg18[%530, %c0_154, %c0_155] : memref<2x256x128xbf16, #tpu.memory_space<vmem>>, vector<1x256x128xbf16>
    %532 = vector.shape_cast %531 : vector<1x256x128xbf16> to vector<256x128xbf16>
    %cst_156 = arith.constant dense<0.000000e+00> : vector<8x128xf32>
    %533 = tpu.matmul %529, %532, %cst_156 {dimension_numbers = #tpu.dot_dimension_numbers<[1], [0], [0], [1], [0, 0, 1, 1], [], []>} : vector<8x256xbf16>, vector<256x128xbf16>, vector<8x128xf32> -> vector<8x128xf32>
    %534 = arith.index_cast %c1_i32 : i32 to index
    %c0_157 = arith.constant 0 : index
    %c0_158 = arith.constant 0 : index
    %535 = vector.load %arg19[%534, %c0_157, %c0_158] : memref<2x1x128xf32, #tpu.memory_space<vmem>>, vector<1x1x128xf32>
    %536 = vector.shape_cast %535 : vector<1x1x128xf32> to vector<1x128xf32>
    %537 = vector.broadcast %536 : vector<1x128xf32> to vector<8x128xf32>
    %538 = arith.addf %533, %537 : vector<8x128xf32>
    %539 = arith.addf %505, %538 : vector<8x128xf32>
    %540 = arith.index_cast %c1_i32 : i32 to index
    %c0_159 = arith.constant 0 : index
    %c0_160 = arith.constant 0 : index
    %541 = vector.load %arg20[%540, %c0_159, %c0_160] : memref<2x1x128xf32, #tpu.memory_space<vmem>>, vector<1x1x128xf32>
    %542 = vector.shape_cast %541 : vector<1x1x128xf32> to vector<1x128xf32>
    %543 = arith.index_cast %c1_i32 : i32 to index
    %c0_161 = arith.constant 0 : index
    %c0_162 = arith.constant 0 : index
    %544 = vector.load %arg21[%543, %c0_161, %c0_162] : memref<2x1x128xf32, #tpu.memory_space<vmem>>, vector<1x1x128xf32>
    %545 = vector.shape_cast %544 : vector<1x1x128xf32> to vector<1x128xf32>
    %cst_163 = arith.constant dense<0.000000e+00> : vector<8xf32>
    %546 = vector.multi_reduction <add>, %539, %cst_163 [1] : vector<8x128xf32> to vector<8xf32>
    %547 = vector.shape_cast %546 : vector<8xf32> to vector<8x1xf32>
    %cst_164 = arith.constant 1.280000e+02 : f32
    %548 = vector.broadcast %cst_164 : f32 to vector<8x1xf32>
    %549 = arith.divf %547, %548 : vector<8x1xf32>
    %550 = arith.mulf %539, %539 : vector<8x128xf32>
    %cst_165 = arith.constant dense<0.000000e+00> : vector<8xf32>
    %551 = vector.multi_reduction <add>, %550, %cst_165 [1] : vector<8x128xf32> to vector<8xf32>
    %552 = vector.shape_cast %551 : vector<8xf32> to vector<8x1xf32>
    %cst_166 = arith.constant 1.280000e+02 : f32
    %553 = vector.broadcast %cst_166 : f32 to vector<8x1xf32>
    %554 = arith.divf %552, %553 : vector<8x1xf32>
    %555 = arith.mulf %549, %549 : vector<8x1xf32>
    %556 = arith.subf %554, %555 : vector<8x1xf32>
    %557 = vector.broadcast %549 : vector<8x1xf32> to vector<8x128xf32>
    %558 = arith.subf %539, %557 : vector<8x128xf32>
    %cst_167 = arith.constant 1.000000e-07 : f32
    %559 = vector.broadcast %cst_167 : f32 to vector<8x1xf32>
    %560 = arith.addf %556, %559 : vector<8x1xf32>
    %561 = math.rsqrt %560 : vector<8x1xf32>
    %562 = vector.broadcast %561 : vector<8x1xf32> to vector<8x128xf32>
    %563 = arith.mulf %558, %562 : vector<8x128xf32>
    %564 = vector.broadcast %542 : vector<1x128xf32> to vector<8x128xf32>
    %565 = arith.mulf %563, %564 : vector<8x128xf32>
    %566 = vector.broadcast %545 : vector<1x128xf32> to vector<8x128xf32>
    %567 = arith.addf %565, %566 : vector<8x128xf32>
    %c2_i32 = arith.constant 2 : i32
    %568 = vector.extract_strided_slice %567 {offsets = [0, 0], sizes = [1, 128], strides = [1, 1]} : vector<8x128xf32> to vector<1x128xf32>
    %569 = arith.truncf %568 : vector<1x128xf32> to vector<1x128xbf16>
    %c0_168 = arith.constant 0 : index
    %c0_169 = arith.constant 0 : index
    %570 = vector.load %arg22[%c0_168, %c0_169] : memref<128x128xbf16, #tpu.memory_space<vmem>>, vector<128x128xbf16>
    %cst_170 = arith.constant dense<0.000000e+00> : vector<1x128xf32>
    %571 = tpu.matmul %569, %570, %cst_170 {dimension_numbers = #tpu.dot_dimension_numbers<[1], [0], [0], [1], [0, 0, 1, 1], [], []>} : vector<1x128xbf16>, vector<128x128xbf16>, vector<1x128xf32> -> vector<1x128xf32>
    %c0_171 = arith.constant 0 : index
    %c0_172 = arith.constant 0 : index
    %572 = vector.load %arg23[%c0_171, %c0_172] : memref<1x128xf32, #tpu.memory_space<vmem>>, vector<1x128xf32>
    %573 = arith.addf %571, %572 : vector<1x128xf32>
    %c0_173 = arith.constant 0 : index
    %c0_174 = arith.constant 0 : index
    %c0_175 = arith.constant 0 : index
    %574 = vector.load %arg24[%c0_173, %c0_174, %c0_175] : memref<1x1x128xf32, #tpu.memory_space<vmem>>, vector<1x1x128xf32>
    %575 = vector.shape_cast %574 : vector<1x1x128xf32> to vector<1x128xf32>
    %576 = vector.shape_cast %573 : vector<1x128xf32> to vector<1x1x128xf32>
    tpu.vector_store %arg24[%c0_173, %c0_174, %c0_175], %576 {strides = array<i32>} : memref<1x1x128xf32, #tpu.memory_space<vmem>>, vector<1x1x128xf32>,
    return
  }
  func.func @transform_0(%arg0: i32) -> (i32, i32, i32) {
    %c0_i32 = arith.constant 0 : i32
    %c0_i32_0 = arith.constant 0 : i32
    %c0_i32_1 = arith.constant 0 : i32
    return %arg0, %c0_i32, %c0_i32_0 : i32, i32, i32
  }
  func.func @transform_1(%arg0: i32) -> (i32, i32, i32) {
    %c0_i32 = arith.constant 0 : i32
    %c0_i32_0 = arith.constant 0 : i32
    %c0_i32_1 = arith.constant 0 : i32
    return %arg0, %c0_i32, %c0_i32_0 : i32, i32, i32
  }
  func.func @transform_2(%arg0: i32) -> (i32, i32) {
    %c0_i32 = arith.constant 0 : i32
    %c0_i32_0 = arith.constant 0 : i32
    %c0_i32_1 = arith.constant 0 : i32
    return %c0_i32, %c0_i32_0 : i32, i32
  }
  func.func @transform_3(%arg0: i32) -> (i32, i32) {
    %c0_i32 = arith.constant 0 : i32
    %c0_i32_0 = arith.constant 0 : i32
    %c0_i32_1 = arith.constant 0 : i32
    return %c0_i32, %c0_i32_0 : i32, i32
  }
  func.func @transform_4(%arg0: i32) -> (i32, i32) {
    %c0_i32 = arith.constant 0 : i32
    %c0_i32_0 = arith.constant 0 : i32
    %c0_i32_1 = arith.constant 0 : i32
    return %c0_i32, %c0_i32_0 : i32, i32
  }
  func.func @transform_5(%arg0: i32) -> (i32, i32, i32, i32) {
    %c0_i32 = arith.constant 0 : i32
    %c0_i32_0 = arith.constant 0 : i32
    %c0_i32_1 = arith.constant 0 : i32
    %c0_i32_2 = arith.constant 0 : i32
    %c0_i32_3 = arith.constant 0 : i32
    return %c0_i32, %c0_i32_0, %c0_i32_1, %c0_i32_2 : i32, i32, i32, i32
  }
  func.func @transform_6(%arg0: i32) -> (i32, i32, i32, i32) {
    %c0_i32 = arith.constant 0 : i32
    %c0_i32_0 = arith.constant 0 : i32
    %c0_i32_1 = arith.constant 0 : i32
    %c0_i32_2 = arith.constant 0 : i32
    %c0_i32_3 = arith.constant 0 : i32
    return %c0_i32, %c0_i32_0, %c0_i32_1, %c0_i32_2 : i32, i32, i32, i32
  }
  func.func @transform_7(%arg0: i32) -> (i32, i32, i32, i32) {
    %c0_i32 = arith.constant 0 : i32
    %c0_i32_0 = arith.constant 0 : i32
    %c0_i32_1 = arith.constant 0 : i32
    %c0_i32_2 = arith.constant 0 : i32
    %c0_i32_3 = arith.constant 0 : i32
    return %c0_i32, %c0_i32_0, %c0_i32_1, %c0_i32_2 : i32, i32, i32, i32
  }
  func.func @transform_8(%arg0: i32) -> (i32, i32, i32, i32) {
    %c0_i32 = arith.constant 0 : i32
    %c0_i32_0 = arith.constant 0 : i32
    %c0_i32_1 = arith.constant 0 : i32
    %c0_i32_2 = arith.constant 0 : i32
    %c0_i32_3 = arith.constant 0 : i32
    return %c0_i32, %c0_i32_0, %c0_i32_1, %c0_i32_2 : i32, i32, i32, i32
  }
  func.func @transform_9(%arg0: i32) -> (i32, i32, i32, i32) {
    %c0_i32 = arith.constant 0 : i32
    %c0_i32_0 = arith.constant 0 : i32
    %c0_i32_1 = arith.constant 0 : i32
    %c0_i32_2 = arith.constant 0 : i32
    %c0_i32_3 = arith.constant 0 : i32
    return %c0_i32, %c0_i32_0, %c0_i32_1, %c0_i32_2 : i32, i32, i32, i32
  }
  func.func @transform_10(%arg0: i32) -> (i32, i32, i32, i32) {
    %c0_i32 = arith.constant 0 : i32
    %c0_i32_0 = arith.constant 0 : i32
    %c0_i32_1 = arith.constant 0 : i32
    %c0_i32_2 = arith.constant 0 : i32
    %c0_i32_3 = arith.constant 0 : i32
    return %c0_i32, %c0_i32_0, %c0_i32_1, %c0_i32_2 : i32, i32, i32, i32
  }
  func.func @transform_11(%arg0: i32) -> (i32, i32, i32, i32) {
    %c0_i32 = arith.constant 0 : i32
    %c0_i32_0 = arith.constant 0 : i32
    %c0_i32_1 = arith.constant 0 : i32
    %c0_i32_2 = arith.constant 0 : i32
    %c0_i32_3 = arith.constant 0 : i32
    return %c0_i32, %c0_i32_0, %c0_i32_1, %c0_i32_2 : i32, i32, i32, i32
  }
  func.func @transform_12(%arg0: i32) -> (i32, i32, i32) {
    %c0_i32 = arith.constant 0 : i32
    %c0_i32_0 = arith.constant 0 : i32
    %c0_i32_1 = arith.constant 0 : i32
    %c0_i32_2 = arith.constant 0 : i32
    return %c0_i32, %c0_i32_0, %c0_i32_1 : i32, i32, i32
  }
  func.func @transform_13(%arg0: i32) -> (i32, i32, i32) {
    %c0_i32 = arith.constant 0 : i32
    %c0_i32_0 = arith.constant 0 : i32
    %c0_i32_1 = arith.constant 0 : i32
    %c0_i32_2 = arith.constant 0 : i32
    return %c0_i32, %c0_i32_0, %c0_i32_1 : i32, i32, i32
  }
  func.func @transform_14(%arg0: i32) -> (i32, i32, i32) {
    %c0_i32 = arith.constant 0 : i32
    %c0_i32_0 = arith.constant 0 : i32
    %c0_i32_1 = arith.constant 0 : i32
    %c0_i32_2 = arith.constant 0 : i32
    return %c0_i32, %c0_i32_0, %c0_i32_1 : i32, i32, i32
  }
  func.func @transform_15(%arg0: i32) -> (i32, i32, i32) {
    %c0_i32 = arith.constant 0 : i32
    %c0_i32_0 = arith.constant 0 : i32
    %c0_i32_1 = arith.constant 0 : i32
    %c0_i32_2 = arith.constant 0 : i32
    return %c0_i32, %c0_i32_0, %c0_i32_1 : i32, i32, i32
  }
  func.func @transform_16(%arg0: i32) -> (i32, i32, i32) {
    %c0_i32 = arith.constant 0 : i32
    %c0_i32_0 = arith.constant 0 : i32
    %c0_i32_1 = arith.constant 0 : i32
    %c0_i32_2 = arith.constant 0 : i32
    return %c0_i32, %c0_i32_0, %c0_i32_1 : i32, i32, i32
  }
  func.func @transform_17(%arg0: i32) -> (i32, i32, i32) {
    %c0_i32 = arith.constant 0 : i32
    %c0_i32_0 = arith.constant 0 : i32
    %c0_i32_1 = arith.constant 0 : i32
    %c0_i32_2 = arith.constant 0 : i32
    return %c0_i32, %c0_i32_0, %c0_i32_1 : i32, i32, i32
  }
  func.func @transform_18(%arg0: i32) -> (i32, i32, i32) {
    %c0_i32 = arith.constant 0 : i32
    %c0_i32_0 = arith.constant 0 : i32
    %c0_i32_1 = arith.constant 0 : i32
    %c0_i32_2 = arith.constant 0 : i32
    return %c0_i32, %c0_i32_0, %c0_i32_1 : i32, i32, i32
  }
  func.func @transform_19(%arg0: i32) -> (i32, i32, i32) {
    %c0_i32 = arith.constant 0 : i32
    %c0_i32_0 = arith.constant 0 : i32
    %c0_i32_1 = arith.constant 0 : i32
    %c0_i32_2 = arith.constant 0 : i32
    return %c0_i32, %c0_i32_0, %c0_i32_1 : i32, i32, i32
  }
  func.func @transform_20(%arg0: i32) -> (i32, i32, i32) {
    %c0_i32 = arith.constant 0 : i32
    %c0_i32_0 = arith.constant 0 : i32
    %c0_i32_1 = arith.constant 0 : i32
    %c0_i32_2 = arith.constant 0 : i32
    return %c0_i32, %c0_i32_0, %c0_i32_1 : i32, i32, i32
  }
  func.func @transform_21(%arg0: i32) -> (i32, i32) {
    %c0_i32 = arith.constant 0 : i32
    %c0_i32_0 = arith.constant 0 : i32
    %c0_i32_1 = arith.constant 0 : i32
    return %c0_i32, %c0_i32_0 : i32, i32
  }
  func.func @transform_22(%arg0: i32) -> (i32, i32) {
    %c0_i32 = arith.constant 0 : i32
    %c0_i32_0 = arith.constant 0 : i32
    %c0_i32_1 = arith.constant 0 : i32
    return %c0_i32, %c0_i32_0 : i32, i32
  }
  func.func @transform_23(%arg0: i32) -> (i32, i32, i32) {
    %c0_i32 = arith.constant 0 : i32
    %c0_i32_0 = arith.constant 0 : i32
    %c0_i32_1 = arith.constant 0 : i32
    return %arg0, %c0_i32, %c0_i32_0 : i32, i32, i32
  }
}

</mosaic_0001>

<llo_original>
// kernel: deberta_multitask_forward.1
$region0: #{deberta_multitask_forward.1}
  #allocation0 [shape = 'u32[]', space=smem, size = 0x4, offset = 0x4, fixed_abs, tag = 'smem constant byte address 0x4 - core index']
  #allocation1 [shape = 'u32[144,128]{1,0:T(1,128)}', space=vmem, size = 0x12000, scoped, tag = 'internal scratch']
  %s0 = inlined_call_operand.hbm [shape: s32[2,1,8], index: 0, kind: input, shape index: {}]
  %s1 = inlined_call_operand.hbm [shape: f32[2,1,8], index: 1, kind: input, shape index: {}]
  %s2 = inlined_call_operand.hbm [shape: f32[128,128], index: 2, kind: input, shape index: {}]
  %s3 = inlined_call_operand.hbm [shape: f32[1,128], index: 3, kind: input, shape index: {}]
  %s4 = inlined_call_operand.hbm [shape: f32[1,128], index: 4, kind: input, shape index: {}]
  %s5 = inlined_call_operand.hbm [shape: bf16[2,4,128,32], index: 5, kind: input, shape index: {}]
  %s6 = inlined_call_operand.hbm [shape: f32[2,4,1,32], index: 6, kind: input, shape index: {}]
  %s7 = inlined_call_operand.hbm [shape: bf16[2,4,128,32], index: 7, kind: input, shape index: {}]
  %s8 = inlined_call_operand.hbm [shape: f32[2,4,1,32], index: 8, kind: input, shape index: {}]
  %s9 = inlined_call_operand.hbm [shape: bf16[2,4,128,32], index: 9, kind: input, shape index: {}]
  %s10 = inlined_call_operand.hbm [shape: f32[2,4,1,32], index: 10, kind: input, shape index: {}]
  %s11 = inlined_call_operand.hbm [shape: bf16[2,4,32,128], index: 11, kind: input, shape index: {}]
  %s12 = inlined_call_operand.hbm [shape: f32[2,1,128], index: 12, kind: input, shape index: {}]
  %s13 = inlined_call_operand.hbm [shape: f32[2,1,128], index: 13, kind: input, shape index: {}]
  %s14 = inlined_call_operand.hbm [shape: f32[2,1,128], index: 14, kind: input, shape index: {}]
  %s15 = inlined_call_operand.hbm [shape: bf16[2,128,256], index: 15, kind: input, shape index: {}]
  %s16 = inlined_call_operand.hbm [shape: f32[2,1,256], index: 16, kind: input, shape index: {}]
  %s17 = inlined_call_operand.hbm [shape: bf16[2,256,128], index: 17, kind: input, shape index: {}]
  %s18 = inlined_call_operand.hbm [shape: f32[2,1,128], index: 18, kind: input, shape index: {}]
  %s19 = inlined_call_operand.hbm [shape: f32[2,1,128], index: 19, kind: input, shape index: {}]
  %s20 = inlined_call_operand.hbm [shape: f32[2,1,128], index: 20, kind: input, shape index: {}]
  %s21 = inlined_call_operand.hbm [shape: bf16[128,128], index: 21, kind: input, shape index: {}]
  %s22 = inlined_call_operand.hbm [shape: f32[1,128], index: 22, kind: input, shape index: {}]
  %s23 = inlined_call_operand.hbm [shape: f32[2,1,128], index: 23, kind: output, shape index: {}]
  %s24 = sld [smem:[#allocation0]]
  $region217: #{deberta_multitask_forward.1} parent=0
    _
  %s26 = ssub.s32 1, %s24
  %s27 = scalar_select 0, %s26, %s24
  $region1: #{deberta_multitask_forward.1} parent=0
    #allocation2 [shape = 'u8[1024]{0}', space=vmem, size = 0x400, scoped, tag = 'input window, operand 0']
    #allocation3 [shape = 's32[2]{0}', space=sflag, size = 0x8, scoped, tag = 'scoped memory for deberta_multitask_forward.1']
    #allocation4 [shape = 's32[2]{0}', space=sflag, size = 0x8, scoped, tag = 'scoped memory for deberta_multitask_forward.1']
    #allocation5 [shape = 'u8[1024]{0}', space=vmem, size = 0x400, scoped, tag = 'input window, operand 1']
    #allocation6 [shape = 's32[2]{0}', space=sflag, size = 0x8, scoped, tag = 'scoped memory for deberta_multitask_forward.1']
    #allocation7 [shape = 'u8[65536]{0}', space=vmem, size = 0x10000, scoped, tag = 'input window, operand 2, single buffered']
    #allocation8 [shape = 'u8[512]{0}', space=vmem, size = 0x400, scoped, tag = 'input window, operand 3, single buffered']
    #allocation9 [shape = 's32[1]{0}', space=sflag, size = 0x4, scoped, tag = 'scoped memory for deberta_multitask_forward.1']
    #allocation10 [shape = 'u8[512]{0}', space=vmem, size = 0x400, scoped, tag = 'input window, operand 4, single buffered']
    #allocation11 [shape = 'u8[262144]{0}', space=vmem, size = 0x40000, scoped, tag = 'input window, operand 5, single buffered']
    #allocation12 [shape = 's32[1]{0}', space=sflag, size = 0x4, scoped, tag = 'scoped memory for deberta_multitask_forward.1']
    #allocation13 [shape = 'u8[4096]{0}', space=vmem, size = 0x1000, scoped, tag = 'input window, operand 6, single buffered']
    #allocation14 [shape = 'u8[262144]{0}', space=vmem, size = 0x40000, scoped, tag = 'input window, operand 7, single buffered']
    #allocation15 [shape = 's32[1]{0}', space=sflag, size = 0x4, scoped, tag = 'scoped memory for deberta_multitask_forward.1']
    #allocation16 [shape = 'u8[4096]{0}', space=vmem, size = 0x1000, scoped, tag = 'input window, operand 8, single buffered']
    #allocation17 [shape = 'u8[262144]{0}', space=vmem, size = 0x40000, scoped, tag = 'input window, operand 9, single buffered']
    #allocation18 [shape = 's32[1]{0}', space=sflag, size = 0x4, scoped, tag = 'scoped memory for deberta_multitask_forward.1']
    #allocation19 [shape = 'u8[4096]{0}', space=vmem, size = 0x1000, scoped, tag = 'input window, operand 10, single buffered']
    #allocation20 [shape = 'u8[65536]{0}', space=vmem, size = 0x10000, scoped, tag = 'input window, operand 11, single buffered']
    #allocation21 [shape = 's32[1]{0}', space=sflag, size = 0x4, scoped, tag = 'scoped memory for deberta_multitask_forward.1']
    #allocation22 [shape = 'u8[1024]{0}', space=vmem, size = 0x400, scoped, tag = 'input window, operand 12, single buffered']
    #allocation23 [shape = 'u8[1024]{0}', space=vmem, size = 0x400, scoped, tag = 'input window, operand 13, single buffered']
    #allocation24 [shape = 's32[1]{0}', space=sflag, size = 0x4, scoped, tag = 'scoped memory for deberta_multitask_forward.1']
    #allocation25 [shape = 'u8[1024]{0}', space=vmem, size = 0x400, scoped, tag = 'input window, operand 14, single buffered']
    #allocation26 [shape = 'u8[131072]{0}', space=vmem, size = 0x20000, scoped, tag = 'input window, operand 15, single buffered']
    #allocation27 [shape = 's32[1]{0}', space=sflag, size = 0x4, scoped, tag = 'scoped memory for deberta_multitask_forward.1']
    #allocation28 [shape = 'u8[2048]{0}', space=vmem, size = 0x800, scoped, tag = 'input window, operand 16, single buffered']
    #allocation29 [shape = 'u8[131072]{0}', space=vmem, size = 0x20000, scoped, tag = 'input window, operand 17, single buffered']
    #allocation30 [shape = 's32[1]{0}', space=sflag, size = 0x4, scoped, tag = 'scoped memory for deberta_multitask_forward.1']
    #allocation31 [shape = 'u8[1024]{0}', space=vmem, size = 0x400, scoped, tag = 'input window, operand 18, single buffered']
    #allocation32 [shape = 'u8[1024]{0}', space=vmem, size = 0x400, scoped, tag = 'input window, operand 19, single buffered']
    #allocation33 [shape = 's32[1]{0}', space=sflag, size = 0x4, scoped, tag = 'scoped memory for deberta_multitask_forward.1']
    #allocation34 [shape = 'u8[1024]{0}', space=vmem, size = 0x400, scoped, tag = 'input window, operand 20, single buffered']
    #allocation35 [shape = 'u8[32768]{0}', space=vmem, size = 0x8000, scoped, tag = 'input window, operand 21, single buffered']
    #allocation36 [shape = 's32[1]{0}', space=sflag, size = 0x4, scoped, tag = 'scoped memory for deberta_multitask_forward.1']
    #allocation37 [shape = 'u8[512]{0}', space=vmem, size = 0x400, scoped, tag = 'input window, operand 22, single buffered']
    #allocation38 [shape = 'u8[1024]{0}', space=vmem, size = 0x400, scoped, tag = 'output window, operand 0']
    %28 = vsyncpa [#allocation3], 0
    %s29 = scalar_lea.sflag [#allocation3], 1
    %30 = vsyncpa %s29, 0
    %31 = vsyncpa [#allocation6], 0
    %s32 = scalar_lea.sflag [#allocation6], 1
    %33 = vsyncpa %s32, 0
    %34 = vsyncpa [#allocation9], 0
    %35 = vsyncpa [#allocation12], 0
    %36 = vsyncpa [#allocation15], 0
    %37 = vsyncpa [#allocation18], 0
    %38 = vsyncpa [#allocation21], 0
    %39 = vsyncpa [#allocation24], 0
    %40 = vsyncpa [#allocation27], 0
    %41 = vsyncpa [#allocation30], 0
    %42 = vsyncpa [#allocation33], 0
    %43 = vsyncpa [#allocation36], 0
    %44 = vsyncpa [#allocation4], 0
    %s45 = scalar_lea.sflag [#allocation4], 1
    %46 = vsyncpa %s45, 0
    loop: start=0, step=1, limit=4
    $region2: #{deberta_multitask_forward.1} parent=1 // loop_pre_header
      _
    $region3: #{deberta_multitask_forward.1} parent=1 // loop_header
      %s48 = sphi 0, %s52
      %p49 = scmp.ge.s32.totalorder %s48, 4
      %s58 = sphi 0, %s60
      %s61 = sphi 0, %s58
      %s62 = sphi 0, %s61
      %s78 = sphi 0, %s62
      %s84 = sphi 0, %s86
      %s87 = sphi 0, %s84
      %s88 = sphi 0, %s87
      %s104 = sphi 0, %s88
      %s108 = sphi 0, %s108
      %s110 = sphi 0, %s108
      %s111 = sphi 0, %s110
      %s125 = sphi 0, %s111
      %s129 = sphi 0, %s129
      %s131 = sphi 0, %s129
      %s132 = sphi 0, %s131
      %s146 = sphi 0, %s132
      %s150 = sphi 0, %s150
      %s152 = sphi 0, %s150
      %s153 = sphi 0, %s152
      %s167 = sphi 0, %s153
      %s171 = sphi 0, %s171
      %s173 = sphi 0, %s171
      %s174 = sphi 0, %s173
      %s188 = sphi 0, %s174
      %s192 = sphi 0, %s192
      %s194 = sphi 0, %s192
      %s195 = sphi 0, %s194
      %s209 = sphi 0, %s195
      %s213 = sphi 0, %s213
      %s215 = sphi 0, %s213
      %s216 = sphi 0, %s215
      %s230 = sphi 0, %s216
      %s234 = sphi 0, %s234
      %s236 = sphi 0, %s234
      %s237 = sphi 0, %s236
      %s251 = sphi 0, %s237
      %s255 = sphi 0, %s255
      %s257 = sphi 0, %s255
      %s258 = sphi 0, %s257
      %s272 = sphi 0, %s258
      %s276 = sphi 0, %s276
      %s278 = sphi 0, %s276
      %s279 = sphi 0, %s278
      %s293 = sphi 0, %s279
      %s297 = sphi 0, %s297
      %s299 = sphi 0, %s297
      %s300 = sphi 0, %s299
      %s314 = sphi 0, %s300
      %s318 = sphi 0, %s318
      %s320 = sphi 0, %s318
      %s321 = sphi 0, %s320
      %s335 = sphi 0, %s321
      %s339 = sphi 0, %s339
      %s341 = sphi 0, %s339
      %s342 = sphi 0, %s341
      %s356 = sphi 0, %s342
      %s360 = sphi 0, %s360
      %s362 = sphi 0, %s360
      %s363 = sphi 0, %s362
      %s377 = sphi 0, %s363
      %s381 = sphi 0, %s381
      %s383 = sphi 0, %s381
      %s384 = sphi 0, %s383
      %s398 = sphi 0, %s384
      %s402 = sphi 0, %s402
      %s404 = sphi 0, %s402
      %s405 = sphi 0, %s404
      %s419 = sphi 0, %s405
      %s423 = sphi 0, %s423
      %s425 = sphi 0, %s423
      %s426 = sphi 0, %s425
      %s440 = sphi 0, %s426
      %s444 = sphi 0, %s444
      %s446 = sphi 0, %s444
      %s447 = sphi 0, %s446
      %s461 = sphi 0, %s447
      %s465 = sphi 0, %s465
      %s467 = sphi 0, %s465
      %s468 = sphi 0, %s467
      %s482 = sphi 0, %s468
      %s486 = sphi 0, %s486
      %s488 = sphi 0, %s486
      %s489 = sphi 0, %s488
      %s503 = sphi 0, %s489
      %s507 = sphi 0, %s507
      %s509 = sphi 0, %s507
      %s510 = sphi 0, %s509
      %s524 = sphi 0, %s510
      %s528 = sphi 0, %s528
      %s530 = sphi 0, %s528
      %s531 = sphi 0, %s530
      %s545 = sphi 0, %s531
      %s551 = sphi 0, %s553
      %s554 = sphi 0, %s551
      %s555 = sphi 0, %s554
      %s571 = sphi 0, %s555
    $region4: #{deberta_multitask_forward.1} parent=1 // loop_header_branch
      %51 = sbr.rel (%p49) target = $region8
    $region5: #{deberta_multitask_forward.1} parent=1 // loop_body
      %s53 = ssub.s32 %s48, 1
      %s54 = ssub.s32 %s48, 2
      %s55 = sadd.s32 %s48, 1
      %s56 = ssub.s32 %s48, %s55
      %p57 = scmp.eq.s32.totalorder %s56, 0
      %s59 = sadd.s32 %s58, 1
      %s60 = scalar_select %p57, %s58, %s59
      %p63 = pneg %p57
      %p64 = scmp.eq.s32.totalorder %s48, 1
      %p65 = por %p63, %p64
      %p66 = scmp.ne.s32.totalorder %s58, %s61
      %p67 = scmp.eq.s32.totalorder %s48, 0
      %p68 = por %p66, %p67
      %p69 = scmp.ne.s32.totalorder %s58, %s61
      %p70 = scmp.eq.s32.totalorder %s53, 1
      %p71 = por %p69, %p70
      %p72 = scmp.ne.s32.totalorder %s61, %s62
      %p73 = scmp.eq.s32.totalorder %s53, 0
      %p74 = por %p72, %p73
      %p75 = scmp.ne.s32.totalorder %s61, %s62
      %p76 = scmp.eq.s32.totalorder %s54, 1
      %p77 = por %p75, %p76
      %p79 = scmp.ne.s32.totalorder %s62, %s78
      %p80 = scmp.eq.s32.totalorder %s54, 0
      %p81 = por %p79, %p80
      %s82 = ssub.s32 %s48, %s55
      %p83 = scmp.eq.s32.totalorder %s82, 0
      %s85 = sadd.s32 %s84, 1
      %s86 = scalar_select %p83, %s84, %s85
      %p89 = pneg %p83
      %p90 = scmp.eq.s32.totalorder %s48, 1
      %p91 = por %p89, %p90
      %p92 = scmp.ne.s32.totalorder %s84, %s87
      %p93 = scmp.eq.s32.totalorder %s48, 0
      %p94 = por %p92, %p93
      %p95 = scmp.ne.s32.totalorder %s84, %s87
      %p96 = scmp.eq.s32.totalorder %s53, 1
      %p97 = por %p95, %p96
      %p98 = scmp.ne.s32.totalorder %s87, %s88
      %p99 = scmp.eq.s32.totalorder %s53, 0
      %p100 = por %p98, %p99
      %p101 = scmp.ne.s32.totalorder %s87, %s88
      %p102 = scmp.eq.s32.totalorder %s54, 1
      %p103 = por %p101, %p102
      %p105 = scmp.ne.s32.totalorder %s88, %s104
      %p106 = scmp.eq.s32.totalorder %s54, 0
      %p107 = por %p105, %p106
      %s109 = sadd.s32 %s108, 1
      %p112 = scmp.eq.s32.totalorder %s48, 1
      %p113 = scmp.ne.s32.totalorder %s108, %s110
      %p114 = scmp.eq.s32.totalorder %s48, 0
      %p115 = por %p113, %p114
      %p116 = scmp.ne.s32.totalorder %s108, %s110
      %p117 = scmp.eq.s32.totalorder %s53, 1
      %p118 = por %p116, %p117
      %p119 = scmp.ne.s32.totalorder %s110, %s111
      %p120 = scmp.eq.s32.totalorder %s53, 0
      %p121 = por %p119, %p120
      %p122 = scmp.ne.s32.totalorder %s110, %s111
      %p123 = scmp.eq.s32.totalorder %s54, 1
      %p124 = por %p122, %p123
      %p126 = scmp.ne.s32.totalorder %s111, %s125
      %p127 = scmp.eq.s32.totalorder %s54, 0
      %p128 = por %p126, %p127
      %s130 = sadd.s32 %s129, 1
      %p133 = scmp.eq.s32.totalorder %s48, 1
      %p134 = scmp.ne.s32.totalorder %s129, %s131
      %p135 = scmp.eq.s32.totalorder %s48, 0
      %p136 = por %p134, %p135
      %p137 = scmp.ne.s32.totalorder %s129, %s131
      %p138 = scmp.eq.s32.totalorder %s53, 1
      %p139 = por %p137, %p138
      %p140 = scmp.ne.s32.totalorder %s131, %s132
      %p141 = scmp.eq.s32.totalorder %s53, 0
      %p142 = por %p140, %p141
      %p143 = scmp.ne.s32.totalorder %s131, %s132
      %p144 = scmp.eq.s32.totalorder %s54, 1
      %p145 = por %p143, %p144
      %p147 = scmp.ne.s32.totalorder %s132, %s146
      %p148 = scmp.eq.s32.totalorder %s54, 0
      %p149 = por %p147, %p148
      %s151 = sadd.s32 %s150, 1
      %p154 = scmp.eq.s32.totalorder %s48, 1
      %p155 = scmp.ne.s32.totalorder %s150, %s152
      %p156 = scmp.eq.s32.totalorder %s48, 0
      %p157 = por %p155, %p156
      %p158 = scmp.ne.s32.totalorder %s150, %s152
      %p159 = scmp.eq.s32.totalorder %s53, 1
      %p160 = por %p158, %p159
      %p161 = scmp.ne.s32.totalorder %s152, %s153
      %p162 = scmp.eq.s32.totalorder %s53, 0
      %p163 = por %p161, %p162
      %p164 = scmp.ne.s32.totalorder %s152, %s153
      %p165 = scmp.eq.s32.totalorder %s54, 1
      %p166 = por %p164, %p165
      %p168 = scmp.ne.s32.totalorder %s153, %s167
      %p169 = scmp.eq.s32.totalorder %s54, 0
      %p170 = por %p168, %p169
      %s172 = sadd.s32 %s171, 1
      %p175 = scmp.eq.s32.totalorder %s48, 1
      %p176 = scmp.ne.s32.totalorder %s171, %s173
      %p177 = scmp.eq.s32.totalorder %s48, 0
      %p178 = por %p176, %p177
      %p179 = scmp.ne.s32.totalorder %s171, %s173
      %p180 = scmp.eq.s32.totalorder %s53, 1
      %p181 = por %p179, %p180
      %p182 = scmp.ne.s32.totalorder %s173, %s174
      %p183 = scmp.eq.s32.totalorder %s53, 0
      %p184 = por %p182, %p183
      %p185 = scmp.ne.s32.totalorder %s173, %s174
      %p186 = scmp.eq.s32.totalorder %s54, 1
      %p187 = por %p185, %p186
      %p189 = scmp.ne.s32.totalorder %s174, %s188
      %p190 = scmp.eq.s32.totalorder %s54, 0
      %p191 = por %p189, %p190
      %s193 = sadd.s32 %s192, 1
      %p196 = scmp.eq.s32.totalorder %s48, 1
      %p197 = scmp.ne.s32.totalorder %s192, %s194
      %p198 = scmp.eq.s32.totalorder %s48, 0
      %p199 = por %p197, %p198
      %p200 = scmp.ne.s32.totalorder %s192, %s194
      %p201 = scmp.eq.s32.totalorder %s53, 1
      %p202 = por %p200, %p201
      %p203 = scmp.ne.s32.totalorder %s194, %s195
      %p204 = scmp.eq.s32.totalorder %s53, 0
      %p205 = por %p203, %p204
      %p206 = scmp.ne.s32.totalorder %s194, %s195
      %p207 = scmp.eq.s32.totalorder %s54, 1
      %p208 = por %p206, %p207
      %p210 = scmp.ne.s32.totalorder %s195, %s209
      %p211 = scmp.eq.s32.totalorder %s54, 0
      %p212 = por %p210, %p211
      %s214 = sadd.s32 %s213, 1
      %p217 = scmp.eq.s32.totalorder %s48, 1
      %p218 = scmp.ne.s32.totalorder %s213, %s215
      %p219 = scmp.eq.s32.totalorder %s48, 0
      %p220 = por %p218, %p219
      %p221 = scmp.ne.s32.totalorder %s213, %s215
      %p222 = scmp.eq.s32.totalorder %s53, 1
      %p223 = por %p221, %p222
      %p224 = scmp.ne.s32.totalorder %s215, %s216
      %p225 = scmp.eq.s32.totalorder %s53, 0
      %p226 = por %p224, %p225
      %p227 = scmp.ne.s32.totalorder %s215, %s216
      %p228 = scmp.eq.s32.totalorder %s54, 1
      %p229 = por %p227, %p228
      %p231 = scmp.ne.s32.totalorder %s216, %s230
      %p232 = scmp.eq.s32.totalorder %s54, 0
      %p233 = por %p231, %p232
      %s235 = sadd.s32 %s234, 1
      %p238 = scmp.eq.s32.totalorder %s48, 1
      %p239 = scmp.ne.s32.totalorder %s234, %s236
      %p240 = scmp.eq.s32.totalorder %s48, 0
      %p241 = por %p239, %p240
      %p242 = scmp.ne.s32.totalorder %s234, %s236
      %p243 = scmp.eq.s32.totalorder %s53, 1
      %p244 = por %p242, %p243
      %p245 = scmp.ne.s32.totalorder %s236, %s237
      %p246 = scmp.eq.s32.totalorder %s53, 0
      %p247 = por %p245, %p246
      %p248 = scmp.ne.s32.totalorder %s236, %s237
      %p249 = scmp.eq.s32.totalorder %s54, 1
      %p250 = por %p248, %p249
      %p252 = scmp.ne.s32.totalorder %s237, %s251
      %p253 = scmp.eq.s32.totalorder %s54, 0
      %p254 = por %p252, %p253
      %s256 = sadd.s32 %s255, 1
      %p259 = scmp.eq.s32.totalorder %s48, 1
      %p260 = scmp.ne.s32.totalorder %s255, %s257
      %p261 = scmp.eq.s32.totalorder %s48, 0
      %p262 = por %p260, %p261
      %p263 = scmp.ne.s32.totalorder %s255, %s257
      %p264 = scmp.eq.s32.totalorder %s53, 1
      %p265 = por %p263, %p264
      %p266 = scmp.ne.s32.totalorder %s257, %s258
      %p267 = scmp.eq.s32.totalorder %s53, 0
      %p268 = por %p266, %p267
      %p269 = scmp.ne.s32.totalorder %s257, %s258
      %p270 = scmp.eq.s32.totalorder %s54, 1
      %p271 = por %p269, %p270
      %p273 = scmp.ne.s32.totalorder %s258, %s272
      %p274 = scmp.eq.s32.totalorder %s54, 0
      %p275 = por %p273, %p274
      %s277 = sadd.s32 %s276, 1
      %p280 = scmp.eq.s32.totalorder %s48, 1
      %p281 = scmp.ne.s32.totalorder %s276, %s278
      %p282 = scmp.eq.s32.totalorder %s48, 0
      %p283 = por %p281, %p282
      %p284 = scmp.ne.s32.totalorder %s276, %s278
      %p285 = scmp.eq.s32.totalorder %s53, 1
      %p286 = por %p284, %p285
      %p287 = scmp.ne.s32.totalorder %s278, %s279
      %p288 = scmp.eq.s32.totalorder %s53, 0
      %p289 = por %p287, %p288
      %p290 = scmp.ne.s32.totalorder %s278, %s279
      %p291 = scmp.eq.s32.totalorder %s54, 1
      %p292 = por %p290, %p291
      %p294 = scmp.ne.s32.totalorder %s279, %s293
      %p295 = scmp.eq.s32.totalorder %s54, 0
      %p296 = por %p294, %p295
      %s298 = sadd.s32 %s297, 1
      %p301 = scmp.eq.s32.totalorder %s48, 1
      %p302 = scmp.ne.s32.totalorder %s297, %s299
      %p303 = scmp.eq.s32.totalorder %s48, 0
      %p304 = por %p302, %p303
      %p305 = scmp.ne.s32.totalorder %s297, %s299
      %p306 = scmp.eq.s32.totalorder %s53, 1
      %p307 = por %p305, %p306
      %p308 = scmp.ne.s32.totalorder %s299, %s300
      %p309 = scmp.eq.s32.totalorder %s53, 0
      %p310 = por %p308, %p309
      %p311 = scmp.ne.s32.totalorder %s299, %s300
      %p312 = scmp.eq.s32.totalorder %s54, 1
      %p313 = por %p311, %p312
      %p315 = scmp.ne.s32.totalorder %s300, %s314
      %p316 = scmp.eq.s32.totalorder %s54, 0
      %p317 = por %p315, %p316
      %s319 = sadd.s32 %s318, 1
      %p322 = scmp.eq.s32.totalorder %s48, 1
      %p323 = scmp.ne.s32.totalorder %s318, %s320
      %p324 = scmp.eq.s32.totalorder %s48, 0
      %p325 = por %p323, %p324
      %p326 = scmp.ne.s32.totalorder %s318, %s320
      %p327 = scmp.eq.s32.totalorder %s53, 1
      %p328 = por %p326, %p327
      %p329 = scmp.ne.s32.totalorder %s320, %s321
      %p330 = scmp.eq.s32.totalorder %s53, 0
      %p331 = por %p329, %p330
      %p332 = scmp.ne.s32.totalorder %s320, %s321
      %p333 = scmp.eq.s32.totalorder %s54, 1
      %p334 = por %p332, %p333
      %p336 = scmp.ne.s32.totalorder %s321, %s335
      %p337 = scmp.eq.s32.totalorder %s54, 0
      %p338 = por %p336, %p337
      %s340 = sadd.s32 %s339, 1
      %p343 = scmp.eq.s32.totalorder %s48, 1
      %p344 = scmp.ne.s32.totalorder %s339, %s341
      %p345 = scmp.eq.s32.totalorder %s48, 0
      %p346 = por %p344, %p345
      %p347 = scmp.ne.s32.totalorder %s339, %s341
      %p348 = scmp.eq.s32.totalorder %s53, 1
      %p349 = por %p347, %p348
      %p350 = scmp.ne.s32.totalorder %s341, %s342
      %p351 = scmp.eq.s32.totalorder %s53, 0
      %p352 = por %p350, %p351
      %p353 = scmp.ne.s32.totalorder %s341, %s342
      %p354 = scmp.eq.s32.totalorder %s54, 1
      %p355 = por %p353, %p354
      %p357 = scmp.ne.s32.totalorder %s342, %s356
      %p358 = scmp.eq.s32.totalorder %s54, 0
      %p359 = por %p357, %p358
      %s361 = sadd.s32 %s360, 1
      %p364 = scmp.eq.s32.totalorder %s48, 1
      %p365 = scmp.ne.s32.totalorder %s360, %s362
      %p366 = scmp.eq.s32.totalorder %s48, 0
      %p367 = por %p365, %p366
      %p368 = scmp.ne.s32.totalorder %s360, %s362
      %p369 = scmp.eq.s32.totalorder %s53, 1
      %p370 = por %p368, %p369
      %p371 = scmp.ne.s32.totalorder %s362, %s363
      %p372 = scmp.eq.s32.totalorder %s53, 0
      %p373 = por %p371, %p372
      %p374 = scmp.ne.s32.totalorder %s362, %s363
      %p375 = scmp.eq.s32.totalorder %s54, 1
      %p376 = por %p374, %p375
      %p378 = scmp.ne.s32.totalorder %s363, %s377
      %p379 = scmp.eq.s32.totalorder %s54, 0
      %p380 = por %p378, %p379
      %s382 = sadd.s32 %s381, 1
      %p385 = scmp.eq.s32.totalorder %s48, 1
      %p386 = scmp.ne.s32.totalorder %s381, %s383
      %p387 = scmp.eq.s32.totalorder %s48, 0
      %p388 = por %p386, %p387
      %p389 = scmp.ne.s32.totalorder %s381, %s383
      %p390 = scmp.eq.s32.totalorder %s53, 1
      %p391 = por %p389, %p390
      %p392 = scmp.ne.s32.totalorder %s383, %s384
      %p393 = scmp.eq.s32.totalorder %s53, 0
      %p394 = por %p392, %p393
      %p395 = scmp.ne.s32.totalorder %s383, %s384
      %p396 = scmp.eq.s32.totalorder %s54, 1
      %p397 = por %p395, %p396
      %p399 = scmp.ne.s32.totalorder %s384, %s398
      %p400 = scmp.eq.s32.totalorder %s54, 0
      %p401 = por %p399, %p400
      %s403 = sadd.s32 %s402, 1
      %p406 = scmp.eq.s32.totalorder %s48, 1
      %p407 = scmp.ne.s32.totalorder %s402, %s404
      %p408 = scmp.eq.s32.totalorder %s48, 0
      %p409 = por %p407, %p408
      %p410 = scmp.ne.s32.totalorder %s402, %s404
      %p411 = scmp.eq.s32.totalorder %s53, 1
      %p412 = por %p410, %p411
      %p413 = scmp.ne.s32.totalorder %s404, %s405
      %p414 = scmp.eq.s32.totalorder %s53, 0
      %p415 = por %p413, %p414
      %p416 = scmp.ne.s32.totalorder %s404, %s405
      %p417 = scmp.eq.s32.totalorder %s54, 1
      %p418 = por %p416, %p417
      %p420 = scmp.ne.s32.totalorder %s405, %s419
      %p421 = scmp.eq.s32.totalorder %s54, 0
      %p422 = por %p420, %p421
      %s424 = sadd.s32 %s423, 1
      %p427 = scmp.eq.s32.totalorder %s48, 1
      %p428 = scmp.ne.s32.totalorder %s423, %s425
      %p429 = scmp.eq.s32.totalorder %s48, 0
      %p430 = por %p428, %p429
      %p431 = scmp.ne.s32.totalorder %s423, %s425
      %p432 = scmp.eq.s32.totalorder %s53, 1
      %p433 = por %p431, %p432
      %p434 = scmp.ne.s32.totalorder %s425, %s426
      %p435 = scmp.eq.s32.totalorder %s53, 0
      %p436 = por %p434, %p435
      %p437 = scmp.ne.s32.totalorder %s425, %s426
      %p438 = scmp.eq.s32.totalorder %s54, 1
      %p439 = por %p437, %p438
      %p441 = scmp.ne.s32.totalorder %s426, %s440
      %p442 = scmp.eq.s32.totalorder %s54, 0
      %p443 = por %p441, %p442
      %s445 = sadd.s32 %s444, 1
      %p448 = scmp.eq.s32.totalorder %s48, 1
      %p449 = scmp.ne.s32.totalorder %s444, %s446
      %p450 = scmp.eq.s32.totalorder %s48, 0
      %p451 = por %p449, %p450
      %p452 = scmp.ne.s32.totalorder %s444, %s446
      %p453 = scmp.eq.s32.totalorder %s53, 1
      %p454 = por %p452, %p453
      %p455 = scmp.ne.s32.totalorder %s446, %s447
      %p456 = scmp.eq.s32.totalorder %s53, 0
      %p457 = por %p455, %p456
      %p458 = scmp.ne.s32.totalorder %s446, %s447
      %p459 = scmp.eq.s32.totalorder %s54, 1
      %p460 = por %p458, %p459
      %p462 = scmp.ne.s32.totalorder %s447, %s461
      %p463 = scmp.eq.s32.totalorder %s54, 0
      %p464 = por %p462, %p463
      %s466 = sadd.s32 %s465, 1
      %p469 = scmp.eq.s32.totalorder %s48, 1
      %p470 = scmp.ne.s32.totalorder %s465, %s467
      %p471 = scmp.eq.s32.totalorder %s48, 0
      %p472 = por %p470, %p471
      %p473 = scmp.ne.s32.totalorder %s465, %s467
      %p474 = scmp.eq.s32.totalorder %s53, 1
      %p475 = por %p473, %p474
      %p476 = scmp.ne.s32.totalorder %s467, %s468
      %p477 = scmp.eq.s32.totalorder %s53, 0
      %p478 = por %p476, %p477
      %p479 = scmp.ne.s32.totalorder %s467, %s468
      %p480 = scmp.eq.s32.totalorder %s54, 1
      %p481 = por %p479, %p480
      %p483 = scmp.ne.s32.totalorder %s468, %s482
      %p484 = scmp.eq.s32.totalorder %s54, 0
      %p485 = por %p483, %p484
      %s487 = sadd.s32 %s486, 1
      %p490 = scmp.eq.s32.totalorder %s48, 1
      %p491 = scmp.ne.s32.totalorder %s486, %s488
      %p492 = scmp.eq.s32.totalorder %s48, 0
      %p493 = por %p491, %p492
      %p494 = scmp.ne.s32.totalorder %s486, %s488
      %p495 = scmp.eq.s32.totalorder %s53, 1
      %p496 = por %p494, %p495
      %p497 = scmp.ne.s32.totalorder %s488, %s489
      %p498 = scmp.eq.s32.totalorder %s53, 0
      %p499 = por %p497, %p498
      %p500 = scmp.ne.s32.totalorder %s488, %s489
      %p501 = scmp.eq.s32.totalorder %s54, 1
      %p502 = por %p500, %p501
      %p504 = scmp.ne.s32.totalorder %s489, %s503
      %p505 = scmp.eq.s32.totalorder %s54, 0
      %p506 = por %p504, %p505
      %s508 = sadd.s32 %s507, 1
      %p511 = scmp.eq.s32.totalorder %s48, 1
      %p512 = scmp.ne.s32.totalorder %s507, %s509
      %p513 = scmp.eq.s32.totalorder %s48, 0
      %p514 = por %p512, %p513
      %p515 = scmp.ne.s32.totalorder %s507, %s509
      %p516 = scmp.eq.s32.totalorder %s53, 1
      %p517 = por %p515, %p516
      %p518 = scmp.ne.s32.totalorder %s509, %s510
      %p519 = scmp.eq.s32.totalorder %s53, 0
      %p520 = por %p518, %p519
      %p521 = scmp.ne.s32.totalorder %s509, %s510
      %p522 = scmp.eq.s32.totalorder %s54, 1
      %p523 = por %p521, %p522
      %p525 = scmp.ne.s32.totalorder %s510, %s524
      %p526 = scmp.eq.s32.totalorder %s54, 0
      %p527 = por %p525, %p526
      %s529 = sadd.s32 %s528, 1
      %p532 = scmp.eq.s32.totalorder %s48, 1
      %p533 = scmp.ne.s32.totalorder %s528, %s530
      %p534 = scmp.eq.s32.totalorder %s48, 0
      %p535 = por %p533, %p534
      %p536 = scmp.ne.s32.totalorder %s528, %s530
      %p537 = scmp.eq.s32.totalorder %s53, 1
      %p538 = por %p536, %p537
      %p539 = scmp.ne.s32.totalorder %s530, %s531
      %p540 = scmp.eq.s32.totalorder %s53, 0
      %p541 = por %p539, %p540
      %p542 = scmp.ne.s32.totalorder %s530, %s531
      %p543 = scmp.eq.s32.totalorder %s54, 1
      %p544 = por %p542, %p543
      %p546 = scmp.ne.s32.totalorder %s531, %s545
      %p547 = scmp.eq.s32.totalorder %s54, 0
      %p548 = por %p546, %p547
      %s549 = ssub.s32 %s48, %s55
      %p550 = scmp.eq.s32.totalorder %s549, 0
      %s552 = sadd.s32 %s551, 1
      %s553 = scalar_select %p550, %s551, %s552
      %p556 = pneg %p550
      %p557 = scmp.eq.s32.totalorder %s48, 1
      %p558 = por %p556, %p557
      %p559 = scmp.ne.s32.totalorder %s551, %s554
      %p560 = scmp.eq.s32.totalorder %s48, 0
      %p561 = por %p559, %p560
      %p562 = scmp.ne.s32.totalorder %s551, %s554
      %p563 = scmp.eq.s32.totalorder %s53, 1
      %p564 = por %p562, %p563
      %p565 = scmp.ne.s32.totalorder %s554, %s555
      %p566 = scmp.eq.s32.totalorder %s53, 0
      %p567 = por %p565, %p566
      %p568 = scmp.ne.s32.totalorder %s554, %s555
      %p569 = scmp.eq.s32.totalorder %s54, 1
      %p570 = por %p568, %p569
      %p572 = scmp.ne.s32.totalorder %s555, %s571
      %p573 = scmp.eq.s32.totalorder %s54, 0
      %p574 = por %p572, %p573
      %p575 = scmp.le.s32.totalorder 1, %s48
      %p576 = scmp.lt.s32.totalorder %s48, 3
      %p577 = pnand %p575, %p576
      %p578 = pneg %p577
      // Predicated region
      $region9: #{deberta_multitask_forward.1} parent=5 // pred_check
        _
      $region10: #{deberta_multitask_forward.1} parent=5 // pred_check_branch
        %580 = sbr.rel (%p577) target = $region12
      $region11: #{deberta_multitask_forward.1} parent=5 // pred_region
        %s581 = ssub.s32 %s48, 1
        // Predicated region
        $region13: #{deberta_multitask_forward.1} parent=11 // pred_check
          %p582 = pneg %p121
        $region14: #{deberta_multitask_forward.1} parent=11 // pred_check_branch
          %584 = sbr.rel (%p582) target = $region16
        $region15: #{deberta_multitask_forward.1} parent=11 // pred_region
          %s586 = ssub.s32 2048, 2048
          %587 = vsyncadd [#allocation6], %s586
          %s588 = sshll.u32 [#allocation7], 4
          %s589 = int_to_ptr.vmem [resolvable:$true] %s588
          %594 = dma.hbm_to_vmem [thread:$0]  %s2, 2048, %s589, [#allocation6], 128, 128, 8
        $region16: #{deberta_multitask_forward.1} parent=11 // pred_fallthru
          _
        // Predicated region
        $region17: #{deberta_multitask_forward.1} parent=11 // pred_check
          %p595 = pneg %p142
        $region18: #{deberta_multitask_forward.1} parent=11 // pred_check_branch
          %597 = sbr.rel (%p595) target = $region20
        $region19: #{deberta_multitask_forward.1} parent=11 // pred_region
          %s599 = ssub.s32 16, 16
          %600 = vsyncadd [#allocation9], %s599
          %s602 = sshll.u32 [#allocation8], 4
          %s603 = int_to_ptr.vmem [resolvable:$true] %s602
          %605 = dma.hbm_to_vmem [thread:$0]  %s3, 16, %s603, [#allocation9]
        $region20: #{deberta_multitask_forward.1} parent=11 // pred_fallthru
          _
        // Predicated region
        $region21: #{deberta_multitask_forward.1} parent=11 // pred_check
          %p606 = pneg %p163
        $region22: #{deberta_multitask_forward.1} parent=11 // pred_check_branch
          %608 = sbr.rel (%p606) target = $region24
        $region23: #{deberta_multitask_forward.1} parent=11 // pred_region
          %s610 = ssub.s32 16, 16
          %611 = vsyncadd [#allocation9], %s610
          %s613 = sshll.u32 [#allocation10], 4
          %s614 = int_to_ptr.vmem [resolvable:$true] %s613
          %616 = dma.hbm_to_vmem [thread:$0]  %s4, 16, %s614, [#allocation9]
        $region24: #{deberta_multitask_forward.1} parent=11 // pred_fallthru
          _
        // Predicated region
        $region25: #{deberta_multitask_forward.1} parent=11 // pred_check
          %p617 = pneg %p184
        $region26: #{deberta_multitask_forward.1} parent=11 // pred_check_branch
          %619 = sbr.rel (%p617) target = $region28
        $region27: #{deberta_multitask_forward.1} parent=11 // pred_region
          %s621 = ssub.s32 8192, 8192
          %622 = vsyncadd [#allocation12], %s621
          %s623 = sshll.u32 [#allocation11], 4
          %s624 = int_to_ptr.vmem [resolvable:$true] %s623
          %629 = dma.hbm_to_vmem [thread:$0]  %s5, 8192, %s624, [#allocation12], 64, 64, 4
        $region28: #{deberta_multitask_forward.1} parent=11 // pred_fallthru
          _
        // Predicated region
        $region29: #{deberta_multitask_forward.1} parent=11 // pred_check
          %p630 = pneg %p205
        $region30: #{deberta_multitask_forward.1} parent=11 // pred_check_branch
          %632 = sbr.rel (%p630) target = $region32
        $region31: #{deberta_multitask_forward.1} parent=11 // pred_region
          %s634 = ssub.s32 128, 128
          %635 = vsyncadd [#allocation12], %s634
          %s636 = sshll.u32 [#allocation13], 4
          %s637 = int_to_ptr.vmem [resolvable:$true] %s636
          %642 = dma.hbm_to_vmem [thread:$0]  %s6, 128, %s637, [#allocation12], 16, 16, 1
        $region32: #{deberta_multitask_forward.1} parent=11 // pred_fallthru
          _
        // Predicated region
        $region33: #{deberta_multitask_forward.1} parent=11 // pred_check
          %p643 = pneg %p226
        $region34: #{deberta_multitask_forward.1} parent=11 // pred_check_branch
          %645 = sbr.rel (%p643) target = $region36
        $region35: #{deberta_multitask_forward.1} parent=11 // pred_region
          %s647 = ssub.s32 8192, 8192
          %648 = vsyncadd [#allocation15], %s647
          %s649 = sshll.u32 [#allocation14], 4
          %s650 = int_to_ptr.vmem [resolvable:$true] %s649
          %655 = dma.hbm_to_vmem [thread:$0]  %s7, 8192, %s650, [#allocation15], 64, 64, 4
        $region36: #{deberta_multitask_forward.1} parent=11 // pred_fallthru
          _
        // Predicated region
        $region37: #{deberta_multitask_forward.1} parent=11 // pred_check
          %p656 = pneg %p247
        $region38: #{deberta_multitask_forward.1} parent=11 // pred_check_branch
          %658 = sbr.rel (%p656) target = $region40
        $region39: #{deberta_multitask_forward.1} parent=11 // pred_region
          %s660 = ssub.s32 128, 128
          %661 = vsyncadd [#allocation15], %s660
          %s662 = sshll.u32 [#allocation16], 4
          %s663 = int_to_ptr.vmem [resolvable:$true] %s662
          %668 = dma.hbm_to_vmem [thread:$0]  %s8, 128, %s663, [#allocation15], 16, 16, 1
        $region40: #{deberta_multitask_forward.1} parent=11 // pred_fallthru
          _
        // Predicated region
        $region41: #{deberta_multitask_forward.1} parent=11 // pred_check
          %p669 = pneg %p268
        $region42: #{deberta_multitask_forward.1} parent=11 // pred_check_branch
          %671 = sbr.rel (%p669) target = $region44
        $region43: #{deberta_multitask_forward.1} parent=11 // pred_region
          %s673 = ssub.s32 8192, 8192
          %674 = vsyncadd [#allocation18], %s673
          %s675 = sshll.u32 [#allocation17], 4
          %s676 = int_to_ptr.vmem [resolvable:$true] %s675
          %681 = dma.hbm_to_vmem [thread:$0]  %s9, 8192, %s676, [#allocation18], 64, 64, 4
        $region44: #{deberta_multitask_forward.1} parent=11 // pred_fallthru
          _
        // Predicated region
        $region45: #{deberta_multitask_forward.1} parent=11 // pred_check
          %p682 = pneg %p289
        $region46: #{deberta_multitask_forward.1} parent=11 // pred_check_branch
          %684 = sbr.rel (%p682) target = $region48
        $region47: #{deberta_multitask_forward.1} parent=11 // pred_region
          %s686 = ssub.s32 128, 128
          %687 = vsyncadd [#allocation18], %s686
          %s688 = sshll.u32 [#allocation19], 4
          %s689 = int_to_ptr.vmem [resolvable:$true] %s688
          %694 = dma.hbm_to_vmem [thread:$0]  %s10, 128, %s689, [#allocation18], 16, 16, 1
        $region48: #{deberta_multitask_forward.1} parent=11 // pred_fallthru
          _
        // Predicated region
        $region49: #{deberta_multitask_forward.1} parent=11 // pred_check
          %p695 = pneg %p310
        $region50: #{deberta_multitask_forward.1} parent=11 // pred_check_branch
          %697 = sbr.rel (%p695) target = $region52
        $region51: #{deberta_multitask_forward.1} parent=11 // pred_region
          %s699 = ssub.s32 2048, 2048
          %700 = vsyncadd [#allocation21], %s699
          %s701 = sshll.u32 [#allocation20], 4
          %s702 = int_to_ptr.vmem [resolvable:$true] %s701
          %707 = dma.hbm_to_vmem [thread:$0]  %s11, 2048, %s702, [#allocation21], 64, 64, 4
        $region52: #{deberta_multitask_forward.1} parent=11 // pred_fallthru
          _
        // Predicated region
        $region53: #{deberta_multitask_forward.1} parent=11 // pred_check
          %p708 = pneg %p331
        $region54: #{deberta_multitask_forward.1} parent=11 // pred_check_branch
          %710 = sbr.rel (%p708) target = $region56
        $region55: #{deberta_multitask_forward.1} parent=11 // pred_region
          %s712 = ssub.s32 32, 32
          %713 = vsyncadd [#allocation21], %s712
          %s714 = sshll.u32 [#allocation22], 4
          %s715 = int_to_ptr.vmem [resolvable:$true] %s714
          %720 = dma.hbm_to_vmem [thread:$0]  %s12, 32, %s715, [#allocation21], 16, 16, 1
        $region56: #{deberta_multitask_forward.1} parent=11 // pred_fallthru
          _
        // Predicated region
        $region57: #{deberta_multitask_forward.1} parent=11 // pred_check
          %p721 = pneg %p352
        $region58: #{deberta_multitask_forward.1} parent=11 // pred_check_branch
          %723 = sbr.rel (%p721) target = $region60
        $region59: #{deberta_multitask_forward.1} parent=11 // pred_region
          %s725 = ssub.s32 32, 32
          %726 = vsyncadd [#allocation24], %s725
          %s727 = sshll.u32 [#allocation23], 4
          %s728 = int_to_ptr.vmem [resolvable:$true] %s727
          %733 = dma.hbm_to_vmem [thread:$0]  %s13, 32, %s728, [#allocation24], 16, 16, 1
        $region60: #{deberta_multitask_forward.1} parent=11 // pred_fallthru
          _
        // Predicated region
        $region61: #{deberta_multitask_forward.1} parent=11 // pred_check
          %p734 = pneg %p373
        $region62: #{deberta_multitask_forward.1} parent=11 // pred_check_branch
          %736 = sbr.rel (%p734) target = $region64
        $region63: #{deberta_multitask_forward.1} parent=11 // pred_region
          %s738 = ssub.s32 32, 32
          %739 = vsyncadd [#allocation24], %s738
          %s740 = sshll.u32 [#allocation25], 4
          %s741 = int_to_ptr.vmem [resolvable:$true] %s740
          %746 = dma.hbm_to_vmem [thread:$0]  %s14, 32, %s741, [#allocation24], 16, 16, 1
        $region64: #{deberta_multitask_forward.1} parent=11 // pred_fallthru
          _
        // Predicated region
        $region65: #{deberta_multitask_forward.1} parent=11 // pred_check
          %p747 = pneg %p394
        $region66: #{deberta_multitask_forward.1} parent=11 // pred_check_branch
          %749 = sbr.rel (%p747) target = $region68
        $region67: #{deberta_multitask_forward.1} parent=11 // pred_region
          %s751 = ssub.s32 4096, 4096
          %752 = vsyncadd [#allocation27], %s751
          %s753 = sshll.u32 [#allocation26], 4
          %s754 = int_to_ptr.vmem [resolvable:$true] %s753
          %759 = dma.hbm_to_vmem [thread:$0]  %s15, 4096, %s754, [#allocation27], 128, 128, 8
        $region68: #{deberta_multitask_forward.1} parent=11 // pred_fallthru
          _
        // Predicated region
        $region69: #{deberta_multitask_forward.1} parent=11 // pred_check
          %p760 = pneg %p415
        $region70: #{deberta_multitask_forward.1} parent=11 // pred_check_branch
          %762 = sbr.rel (%p760) target = $region72
        $region71: #{deberta_multitask_forward.1} parent=11 // pred_region
          %s764 = ssub.s32 64, 64
          %765 = vsyncadd [#allocation27], %s764
          %s766 = sshll.u32 [#allocation28], 4
          %s767 = int_to_ptr.vmem [resolvable:$true] %s766
          %772 = dma.hbm_to_vmem [thread:$0]  %s16, 64, %s767, [#allocation27], 32, 32, 2
        $region72: #{deberta_multitask_forward.1} parent=11 // pred_fallthru
          _
        // Predicated region
        $region73: #{deberta_multitask_forward.1} parent=11 // pred_check
          %p773 = pneg %p436
        $region74: #{deberta_multitask_forward.1} parent=11 // pred_check_branch
          %775 = sbr.rel (%p773) target = $region76
        $region75: #{deberta_multitask_forward.1} parent=11 // pred_region
          %s777 = ssub.s32 4096, 4096
          %778 = vsyncadd [#allocation30], %s777
          %s779 = sshll.u32 [#allocation29], 4
          %s780 = int_to_ptr.vmem [resolvable:$true] %s779
          %785 = dma.hbm_to_vmem [thread:$0]  %s17, 4096, %s780, [#allocation30], 64, 64, 4
        $region76: #{deberta_multitask_forward.1} parent=11 // pred_fallthru
          _
        // Predicated region
        $region77: #{deberta_multitask_forward.1} parent=11 // pred_check
          %p786 = pneg %p457
        $region78: #{deberta_multitask_forward.1} parent=11 // pred_check_branch
          %788 = sbr.rel (%p786) target = $region80
        $region79: #{deberta_multitask_forward.1} parent=11 // pred_region
          %s790 = ssub.s32 32, 32
          %791 = vsyncadd [#allocation30], %s790
          %s792 = sshll.u32 [#allocation31], 4
          %s793 = int_to_ptr.vmem [resolvable:$true] %s792
          %798 = dma.hbm_to_vmem [thread:$0]  %s18, 32, %s793, [#allocation30], 16, 16, 1
        $region80: #{deberta_multitask_forward.1} parent=11 // pred_fallthru
          _
        // Predicated region
        $region81: #{deberta_multitask_forward.1} parent=11 // pred_check
          %p799 = pneg %p478
        $region82: #{deberta_multitask_forward.1} parent=11 // pred_check_branch
          %801 = sbr.rel (%p799) target = $region84
        $region83: #{deberta_multitask_forward.1} parent=11 // pred_region
          %s803 = ssub.s32 32, 32
          %804 = vsyncadd [#allocation33], %s803
          %s805 = sshll.u32 [#allocation32], 4
          %s806 = int_to_ptr.vmem [resolvable:$true] %s805
          %811 = dma.hbm_to_vmem [thread:$0]  %s19, 32, %s806, [#allocation33], 16, 16, 1
        $region84: #{deberta_multitask_forward.1} parent=11 // pred_fallthru
          _
        // Predicated region
        $region85: #{deberta_multitask_forward.1} parent=11 // pred_check
          %p812 = pneg %p499
        $region86: #{deberta_multitask_forward.1} parent=11 // pred_check_branch
          %814 = sbr.rel (%p812) target = $region88
        $region87: #{deberta_multitask_forward.1} parent=11 // pred_region
          %s816 = ssub.s32 32, 32
          %817 = vsyncadd [#allocation33], %s816
          %s818 = sshll.u32 [#allocation34], 4
          %s819 = int_to_ptr.vmem [resolvable:$true] %s818
          %824 = dma.hbm_to_vmem [thread:$0]  %s20, 32, %s819, [#allocation33], 16, 16, 1
        $region88: #{deberta_multitask_forward.1} parent=11 // pred_fallthru
          _
        // Predicated region
        $region89: #{deberta_multitask_forward.1} parent=11 // pred_check
          %p825 = pneg %p520
        $region90: #{deberta_multitask_forward.1} parent=11 // pred_check_branch
          %827 = sbr.rel (%p825) target = $region92
        $region91: #{deberta_multitask_forward.1} parent=11 // pred_region
          %s829 = ssub.s32 1024, 1024
          %830 = vsyncadd [#allocation36], %s829
          %s831 = sshll.u32 [#allocation35], 4
          %s832 = int_to_ptr.vmem [resolvable:$true] %s831
          %837 = dma.hbm_to_vmem [thread:$0]  %s21, 1024, %s832, [#allocation36], 64, 64, 4
        $region92: #{deberta_multitask_forward.1} parent=11 // pred_fallthru
          _
        // Predicated region
        $region93: #{deberta_multitask_forward.1} parent=11 // pred_check
          %p838 = pneg %p541
        $region94: #{deberta_multitask_forward.1} parent=11 // pred_check_branch
          %840 = sbr.rel (%p838) target = $region96
        $region95: #{deberta_multitask_forward.1} parent=11 // pred_region
          %s842 = ssub.s32 16, 16
          %843 = vsyncadd [#allocation36], %s842
          %s845 = sshll.u32 [#allocation37], 4
          %s846 = int_to_ptr.vmem [resolvable:$true] %s845
          %848 = dma.hbm_to_vmem [thread:$0]  %s22, 16, %s846, [#allocation36]
        $region96: #{deberta_multitask_forward.1} parent=11 // pred_fallthru
          _
      $region12: #{deberta_multitask_forward.1} parent=5 // pred_fallthru
        _
      %p849 = scmp.lt.s32.totalorder %s48, 2
      // Predicated region
      $region97: #{deberta_multitask_forward.1} parent=5 // pred_check
        %p850 = pneg %p849
      $region98: #{deberta_multitask_forward.1} parent=5 // pred_check_branch
        %852 = sbr.rel (%p850) target = $region100
      $region99: #{deberta_multitask_forward.1} parent=5 // pred_region
        // Predicated region
        $region101: #{deberta_multitask_forward.1} parent=99 // pred_check
          %p853 = pneg %p68
        $region102: #{deberta_multitask_forward.1} parent=99 // pred_check_branch
          %855 = sbr.rel (%p853) target = $region104
        $region103: #{deberta_multitask_forward.1} parent=99 // pred_region
          %s856 = sand.u32 %s58, 1
          %s857 = scalar_lea.sflag [#allocation3], %s856
          %s858 = sand.u32 %s58, 1
          %s859 = scalar_lea.vmem [#allocation2], %s858
          %s861 = ssub.s32 16, 16
          %862 = vsyncadd %s857, %s861
          %s863 = smul.addr %s48, 16
          %s864 = scalar_lea.hbm %s0, %s863
          %s866 = sshll.u32 %s859, 4
          %s867 = int_to_ptr.vmem [resolvable:$true] %s866
          %869 = dma.hbm_to_vmem [thread:$0]  %s864, 16, %s867, %s857
        $region104: #{deberta_multitask_forward.1} parent=99 // pred_fallthru
          _
        // Predicated region
        $region105: #{deberta_multitask_forward.1} parent=99 // pred_check
          %p870 = pneg %p94
        $region106: #{deberta_multitask_forward.1} parent=99 // pred_check_branch
          %872 = sbr.rel (%p870) target = $region108
        $region107: #{deberta_multitask_forward.1} parent=99 // pred_region
          %s873 = sand.u32 %s48, 1
          %s874 = scalar_lea.sflag [#allocation6], %s873
          %s875 = sand.u32 %s84, 1
          %s876 = scalar_lea.vmem [#allocation5], %s875
          %s878 = ssub.s32 16, 16
          %879 = vsyncadd %s874, %s878
          %s880 = smul.addr %s48, 16
          %s881 = scalar_lea.hbm %s1, %s880
          %s883 = sshll.u32 %s876, 4
          %s884 = int_to_ptr.vmem [resolvable:$true] %s883
          %886 = dma.hbm_to_vmem [thread:$0]  %s881, 16, %s884, %s874
        $region108: #{deberta_multitask_forward.1} parent=99 // pred_fallthru
          _
      $region100: #{deberta_multitask_forward.1} parent=5 // pred_fallthru
        _
      %p887 = scmp.le.s32.totalorder 1, %s48
      %p888 = scmp.lt.s32.totalorder %s48, 3
      %p889 = pnand %p887, %p888
      %p890 = pneg %p889
      // Predicated region
      $region109: #{deberta_multitask_forward.1} parent=5 // pred_check
        _
      $region110: #{deberta_multitask_forward.1} parent=5 // pred_check_branch
        %892 = sbr.rel (%p889) target = $region112
      $region111: #{deberta_multitask_forward.1} parent=5 // pred_region
        %s893 = ssub.s32 %s48, 1
        %s894 = sand.u32 %s61, 1
        %s895 = scalar_lea.sflag [#allocation3], %s894
        %s896 = sand.u32 %s61, 1
        %s897 = scalar_lea.vmem [#allocation2], %s896
        // Predicated region
        $region113: #{deberta_multitask_forward.1} parent=111 // pred_check
          %p898 = pneg %p74
        $region114: #{deberta_multitask_forward.1} parent=111 // pred_check_branch
          %900 = sbr.rel (%p898) target = $region116
        $region115: #{deberta_multitask_forward.1} parent=111 // pred_region
          %901 = dma.done %s895, 16
        $region116: #{deberta_multitask_forward.1} parent=111 // pred_fallthru
          _
        %s902 = sand.u32 %s53, 1
        %s903 = scalar_lea.sflag [#allocation6], %s902
        %s904 = sand.u32 %s87, 1
        %s905 = scalar_lea.vmem [#allocation5], %s904
        // Predicated region
        $region117: #{deberta_multitask_forward.1} parent=111 // pred_check
          %p906 = pneg %p100
        $region118: #{deberta_multitask_forward.1} parent=111 // pred_check_branch
          %908 = sbr.rel (%p906) target = $region120
        $region119: #{deberta_multitask_forward.1} parent=111 // pred_region
          %909 = dma.done %s903, 16
        $region120: #{deberta_multitask_forward.1} parent=111 // pred_fallthru
          _
        // Predicated region
        $region121: #{deberta_multitask_forward.1} parent=111 // pred_check
          %p910 = pneg %p121
        $region122: #{deberta_multitask_forward.1} parent=111 // pred_check_branch
          %912 = sbr.rel (%p910) target = $region124
        $region123: #{deberta_multitask_forward.1} parent=111 // pred_region
          %913 = dma.done [#allocation6], 2048
        $region124: #{deberta_multitask_forward.1} parent=111 // pred_fallthru
          _
        // Predicated region
        $region125: #{deberta_multitask_forward.1} parent=111 // pred_check
          %p914 = pneg %p142
        $region126: #{deberta_multitask_forward.1} parent=111 // pred_check_branch
          %916 = sbr.rel (%p914) target = $region128
        $region127: #{deberta_multitask_forward.1} parent=111 // pred_region
          %917 = dma.done [#allocation9], 16
        $region128: #{deberta_multitask_forward.1} parent=111 // pred_fallthru
          _
        // Predicated region
        $region129: #{deberta_multitask_forward.1} parent=111 // pred_check
          %p918 = pneg %p163
        $region130: #{deberta_multitask_forward.1} parent=111 // pred_check_branch
          %920 = sbr.rel (%p918) target = $region132
        $region131: #{deberta_multitask_forward.1} parent=111 // pred_region
          %921 = dma.done [#allocation9], 16
        $region132: #{deberta_multitask_forward.1} parent=111 // pred_fallthru
          _
        // Predicated region
        $region133: #{deberta_multitask_forward.1} parent=111 // pred_check
          %p922 = pneg %p184
        $region134: #{deberta_multitask_forward.1} parent=111 // pred_check_branch
          %924 = sbr.rel (%p922) target = $region136
        $region135: #{deberta_multitask_forward.1} parent=111 // pred_region
          %925 = dma.done [#allocation12], 8192
        $region136: #{deberta_multitask_forward.1} parent=111 // pred_fallthru
          _
        // Predicated region
        $region137: #{deberta_multitask_forward.1} parent=111 // pred_check
          %p926 = pneg %p205
        $region138: #{deberta_multitask_forward.1} parent=111 // pred_check_branch
          %928 = sbr.rel (%p926) target = $region140
        $region139: #{deberta_multitask_forward.1} parent=111 // pred_region
          %929 = dma.done [#allocation12], 128
        $region140: #{deberta_multitask_forward.1} parent=111 // pred_fallthru
          _
        // Predicated region
        $region141: #{deberta_multitask_forward.1} parent=111 // pred_check
          %p930 = pneg %p226
        $region142: #{deberta_multitask_forward.1} parent=111 // pred_check_branch
          %932 = sbr.rel (%p930) target = $region144
        $region143: #{deberta_multitask_forward.1} parent=111 // pred_region
          %933 = dma.done [#allocation15], 8192
        $region144: #{deberta_multitask_forward.1} parent=111 // pred_fallthru
          _
        // Predicated region
        $region145: #{deberta_multitask_forward.1} parent=111 // pred_check
          %p934 = pneg %p247
        $region146: #{deberta_multitask_forward.1} parent=111 // pred_check_branch
          %936 = sbr.rel (%p934) target = $region148
        $region147: #{deberta_multitask_forward.1} parent=111 // pred_region
          %937 = dma.done [#allocation15], 128
        $region148: #{deberta_multitask_forward.1} parent=111 // pred_fallthru
          _
        // Predicated region
        $region149: #{deberta_multitask_forward.1} parent=111 // pred_check
          %p938 = pneg %p268
        $region150: #{deberta_multitask_forward.1} parent=111 // pred_check_branch
          %940 = sbr.rel (%p938) target = $region152
        $region151: #{deberta_multitask_forward.1} parent=111 // pred_region
          %941 = dma.done [#allocation18], 8192
        $region152: #{deberta_multitask_forward.1} parent=111 // pred_fallthru
          _
        // Predicated region
        $region153: #{deberta_multitask_forward.1} parent=111 // pred_check
          %p942 = pneg %p289
        $region154: #{deberta_multitask_forward.1} parent=111 // pred_check_branch
          %944 = sbr.rel (%p942) target = $region156
        $region155: #{deberta_multitask_forward.1} parent=111 // pred_region
          %945 = dma.done [#allocation18], 128
        $region156: #{deberta_multitask_forward.1} parent=111 // pred_fallthru
          _
        // Predicated region
        $region157: #{deberta_multitask_forward.1} parent=111 // pred_check
          %p946 = pneg %p310
        $region158: #{deberta_multitask_forward.1} parent=111 // pred_check_branch
          %948 = sbr.rel (%p946) target = $region160
        $region159: #{deberta_multitask_forward.1} parent=111 // pred_region
          %949 = dma.done [#allocation21], 2048
        $region160: #{deberta_multitask_forward.1} parent=111 // pred_fallthru
          _
        // Predicated region
        $region161: #{deberta_multitask_forward.1} parent=111 // pred_check
          %p950 = pneg %p331
        $region162: #{deberta_multitask_forward.1} parent=111 // pred_check_branch
          %952 = sbr.rel (%p950) target = $region164
        $region163: #{deberta_multitask_forward.1} parent=111 // pred_region
          %953 = dma.done [#allocation21], 32
        $region164: #{deberta_multitask_forward.1} parent=111 // pred_fallthru
          _
        // Predicated region
        $region165: #{deberta_multitask_forward.1} parent=111 // pred_check
          %p954 = pneg %p352
        $region166: #{deberta_multitask_forward.1} parent=111 // pred_check_branch
          %956 = sbr.rel (%p954) target = $region168
        $region167: #{deberta_multitask_forward.1} parent=111 // pred_region
          %957 = dma.done [#allocation24], 32
        $region168: #{deberta_multitask_forward.1} parent=111 // pred_fallthru
          _
        // Predicated region
        $region169: #{deberta_multitask_forward.1} parent=111 // pred_check
          %p958 = pneg %p373
        $region170: #{deberta_multitask_forward.1} parent=111 // pred_check_branch
          %960 = sbr.rel (%p958) target = $region172
        $region171: #{deberta_multitask_forward.1} parent=111 // pred_region
          %961 = dma.done [#allocation24], 32
        $region172: #{deberta_multitask_forward.1} parent=111 // pred_fallthru
          _
        // Predicated region
        $region173: #{deberta_multitask_forward.1} parent=111 // pred_check
          %p962 = pneg %p394
        $region174: #{deberta_multitask_forward.1} parent=111 // pred_check_branch
          %964 = sbr.rel (%p962) target = $region176
        $region175: #{deberta_multitask_forward.1} parent=111 // pred_region
          %965 = dma.done [#allocation27], 4096
        $region176: #{deberta_multitask_forward.1} parent=111 // pred_fallthru
          _
        // Predicated region
        $region177: #{deberta_multitask_forward.1} parent=111 // pred_check
          %p966 = pneg %p415
        $region178: #{deberta_multitask_forward.1} parent=111 // pred_check_branch
          %968 = sbr.rel (%p966) target = $region180
        $region179: #{deberta_multitask_forward.1} parent=111 // pred_region
          %969 = dma.done [#allocation27], 64
        $region180: #{deberta_multitask_forward.1} parent=111 // pred_fallthru
          _
        // Predicated region
        $region181: #{deberta_multitask_forward.1} parent=111 // pred_check
          %p970 = pneg %p436
        $region182: #{deberta_multitask_forward.1} parent=111 // pred_check_branch
          %972 = sbr.rel (%p970) target = $region184
        $region183: #{deberta_multitask_forward.1} parent=111 // pred_region
          %973 = dma.done [#allocation30], 4096
        $region184: #{deberta_multitask_forward.1} parent=111 // pred_fallthru
          _
        // Predicated region
        $region185: #{deberta_multitask_forward.1} parent=111 // pred_check
          %p974 = pneg %p457
        $region186: #{deberta_multitask_forward.1} parent=111 // pred_check_branch
          %976 = sbr.rel (%p974) target = $region188
        $region187: #{deberta_multitask_forward.1} parent=111 // pred_region
          %977 = dma.done [#allocation30], 32
        $region188: #{deberta_multitask_forward.1} parent=111 // pred_fallthru
          _
        // Predicated region
        $region189: #{deberta_multitask_forward.1} parent=111 // pred_check
          %p978 = pneg %p478
        $region190: #{deberta_multitask_forward.1} parent=111 // pred_check_branch
          %980 = sbr.rel (%p978) target = $region192
        $region191: #{deberta_multitask_forward.1} parent=111 // pred_region
          %981 = dma.done [#allocation33], 32
        $region192: #{deberta_multitask_forward.1} parent=111 // pred_fallthru
          _
        // Predicated region
        $region193: #{deberta_multitask_forward.1} parent=111 // pred_check
          %p982 = pneg %p499
        $region194: #{deberta_multitask_forward.1} parent=111 // pred_check_branch
          %984 = sbr.rel (%p982) target = $region196
        $region195: #{deberta_multitask_forward.1} parent=111 // pred_region
          %985 = dma.done [#allocation33], 32
        $region196: #{deberta_multitask_forward.1} parent=111 // pred_fallthru
          _
        // Predicated region
        $region197: #{deberta_multitask_forward.1} parent=111 // pred_check
          %p986 = pneg %p520
        $region198: #{deberta_multitask_forward.1} parent=111 // pred_check_branch
          %988 = sbr.rel (%p986) target = $region200
        $region199: #{deberta_multitask_forward.1} parent=111 // pred_region
          %989 = dma.done [#allocation36], 1024
        $region200: #{deberta_multitask_forward.1} parent=111 // pred_fallthru
          _
        // Predicated region
        $region201: #{deberta_multitask_forward.1} parent=111 // pred_check
          %p990 = pneg %p541
        $region202: #{deberta_multitask_forward.1} parent=111 // pred_check_branch
          %992 = sbr.rel (%p990) target = $region204
        $region203: #{deberta_multitask_forward.1} parent=111 // pred_region
          %993 = dma.done [#allocation36], 16
        $region204: #{deberta_multitask_forward.1} parent=111 // pred_fallthru
          _
        %s994 = sand.u32 %s61, 1
        %s995 = scalar_lea.sflag [#allocation3], %s994
        %s996 = sand.u32 %s61, 1
        %s997 = scalar_lea.vmem [#allocation2], %s996
        %p998 = pneg %p74
        %p999 = pneg %p71
        %s1000 = sand.u32 %s53, 1
        %s1001 = scalar_lea.sflag [#allocation6], %s1000
        %s1002 = sand.u32 %s87, 1
        %s1003 = scalar_lea.vmem [#allocation5], %s1002
        %p1004 = pneg %p100
        %p1005 = pneg %p97
        %p1006 = pneg %p121
        %p1007 = pneg %p118
        %p1008 = pneg %p142
        %p1009 = pneg %p139
        %p1010 = pneg %p163
        %p1011 = pneg %p160
        %p1012 = pneg %p184
        %p1013 = pneg %p181
        %p1014 = pneg %p205
        %p1015 = pneg %p202
        %p1016 = pneg %p226
        %p1017 = pneg %p223
        %p1018 = pneg %p247
        %p1019 = pneg %p244
        %p1020 = pneg %p268
        %p1021 = pneg %p265
        %p1022 = pneg %p289
        %p1023 = pneg %p286
        %p1024 = pneg %p310
        %p1025 = pneg %p307
        %p1026 = pneg %p331
        %p1027 = pneg %p328
        %p1028 = pneg %p352
        %p1029 = pneg %p349
        %p1030 = pneg %p373
        %p1031 = pneg %p370
        %p1032 = pneg %p394
        %p1033 = pneg %p391
        %p1034 = pneg %p415
        %p1035 = pneg %p412
        %p1036 = pneg %p436
        %p1037 = pneg %p433
        %p1038 = pneg %p457
        %p1039 = pneg %p454
        %p1040 = pneg %p478
        %p1041 = pneg %p475
        %p1042 = pneg %p499
        %p1043 = pneg %p496
        %p1044 = pneg %p520
        %p1045 = pneg %p517
        %p1046 = pneg %p541
        %p1047 = pneg %p538
        %p1048 = pneg %p567
        %p1049 = pneg %p564
        %s1050 = sand.u32 %s554, 1
        %s1051 = scalar_lea.sflag [#allocation4], %s1050
        %s1052 = sand.u32 %s554, 1
        %s1053 = scalar_lea.vmem [#allocation38], %s1052
        %v1055 = vld [vmem:[%s897] sm:$0x1]
        %v1056 = vld [vmem:[%s905] sm:$0x1]
        %v1057 = vlaneseq
        %v1058 = vand.u32 %v1057, 127
        %v1059 = vlaneseq
        %v1060 = vshrl.u32 %v1059, 7
        %v1061 = vsub.s32 0, %v1060
        %v1062 = vrot.slane %v1055, %v1061
        %1064 = vbcast.lane.b32.xlu0 %v1062, 256
        %v1065 = vpop.permute.xlu0 %1064
        %vm1066 = vcmp.eq.s32.totalorder %v1058, %v1065
        %v1067 = vsel %vm1066, 1, 0
        %v1068 = vcvt.s32.f32 %v1067
        %v1069 = vld [vmem:[#allocation7] sm:$0xff]
        %v1070 = vld [vmem:[#allocation7 + $0x8] sm:$0xff]
        %v1071 = vld [vmem:[#allocation7 + $0x10] sm:$0xff]
        %v1072 = vld [vmem:[#allocation7 + $0x18] sm:$0xff]
        %v1073 = vld [vmem:[#allocation7 + $0x20] sm:$0xff]
        %v1074 = vld [vmem:[#allocation7 + $0x28] sm:$0xff]
        %v1075 = vld [vmem:[#allocation7 + $0x30] sm:$0xff]
        %v1076 = vld [vmem:[#allocation7 + $0x38] sm:$0xff]
        %v1077 = vld [vmem:[#allocation7 + $0x40] sm:$0xff]
        %v1078 = vld [vmem:[#allocation7 + $0x48] sm:$0xff]
        %v1079 = vld [vmem:[#allocation7 + $0x50] sm:$0xff]
        %v1080 = vld [vmem:[#allocation7 + $0x58] sm:$0xff]
        %v1081 = vld [vmem:[#allocation7 + $0x60] sm:$0xff]
        %v1082 = vld [vmem:[#allocation7 + $0x68] sm:$0xff]
        %v1083 = vld [vmem:[#allocation7 + $0x70] sm:$0xff]
        %v1084 = vld [vmem:[#allocation7 + $0x78] sm:$0xff]
        %1085 = vmatprep.subr.mxu0 0.0
        %1086 = vmatpush1.msra.mxu0 %v1069
        %1087 = vmatprep.subr.mxu0 0.0
        %1088 = vmatpush1.msra.mxu0 %v1070
        %1089 = vmatprep.subr.mxu0 0.0
        %1090 = vmatpush1.msra.mxu0 %v1071
        %1091 = vmatprep.subr.mxu0 0.0
        %1092 = vmatpush1.msra.mxu0 %v1072
        %1093 = vmatprep.subr.mxu0 0.0
        %1094 = vmatpush1.msra.mxu0 %v1073
        %1095 = vmatprep.subr.mxu0 0.0
        %1096 = vmatpush1.msra.mxu0 %v1074
        %1097 = vmatprep.subr.mxu0 0.0
        %1098 = vmatpush1.msra.mxu0 %v1075
        %1099 = vmatprep.subr.mxu0 0.0
        %1100 = vmatpush1.msra.mxu0 %v1076
        %1101 = vmatprep.subr.mxu0 0.0
        %1102 = vmatpush1.msra.mxu0 %v1077
        %1103 = vmatprep.subr.mxu0 0.0
        %1104 = vmatpush1.msra.mxu0 %v1078
        %1105 = vmatprep.subr.mxu0 0.0
        %1106 = vmatpush1.msra.mxu0 %v1079
        %1107 = vmatprep.subr.mxu0 0.0
        %1108 = vmatpush1.msra.mxu0 %v1080
        %1109 = vmatprep.subr.mxu0 0.0
        %1110 = vmatpush1.msra.mxu0 %v1081
        %1111 = vmatprep.subr.mxu0 0.0
        %1112 = vmatpush1.msra.mxu0 %v1082
        %1113 = vmatprep.subr.mxu0 0.0
        %1114 = vmatpush1.msra.mxu0 %v1083
        %1115 = vmatprep.subr.mxu0 0.0
        %1116 = vmatpush1.msra.mxu0 %v1084
        %1117 = vmatprep.subr.mxu0 0.0
        %1118 = vmatpush1.msra.mxu0 0.0
        %1119 = vmatprep.subr.mxu0 0.0
        %1120 = vmatpush1.msra.mxu0 0.0
        %1121 = vmatprep.subr.mxu0 0.0
        %1122 = vmatpush1.msra.mxu0 0.0
        %1123 = vmatprep.subr.mxu0 0.0
        %1124 = vmatpush1.msra.mxu0 0.0
        %1125 = vmatprep.subr.mxu0 0.0
        %1126 = vmatpush1.msra.mxu0 0.0
        %1127 = vmatprep.subr.mxu0 0.0
        %1128 = vmatpush1.msra.mxu0 0.0
        %1129 = vmatprep.subr.mxu0 0.0
        %1130 = vmatpush1.msra.mxu0 0.0
        %1131 = vmatprep.subr.mxu0 0.0
        %1132 = vmatpush1.msra.mxu0 0.0
        %1133 = vmatprep.subr.mxu0 0.0
        %1134 = vmatpush1.msra.mxu0 0.0
        %1135 = vmatprep.subr.mxu0 0.0
        %1136 = vmatpush1.msra.mxu0 0.0
        %1137 = vmatprep.subr.mxu0 0.0
        %1138 = vmatpush1.msra.mxu0 0.0
        %1139 = vmatprep.subr.mxu0 0.0
        %1140 = vmatpush1.msra.mxu0 0.0
        %1141 = vmatprep.subr.mxu0 0.0
        %1142 = vmatpush1.msra.mxu0 0.0
        %1143 = vmatprep.subr.mxu0 0.0
        %1144 = vmatpush1.msra.mxu0 0.0
        %1145 = vmatprep.subr.mxu0 0.0
        %1146 = vmatpush1.msra.mxu0 0.0
        %1147 = vmatprep.subr.mxu0 0.0
        %1148 = vmatpush1.msra.mxu0 0.0
        %1149 = vmatprep.mubr.f32.mxu0 0.0
        %1150 = vmatmul.mubr.f32.gmra.mrb[0].mxu0 %v1068
        %v1151 = vpop.f32.mrb[0].mxu0
        %v1152 = vadd.f32 0.0, %v1151
        %v1153 = vpop.f32.mrb[0].mxu0
        %1154 = vdwg.mxu0
        %v1155 = vld [vmem:[#allocation8] sm:$0x1]
        %v1156 = vld [vmem:[#allocation10] sm:$0x1]
        %1157 = vadd.xlane.f32.xlu0 %v1152
        %v1158 = vpop.xlane.xlu0 %1157
        %v1159 = vrcp.pop 128.0
        %v1160 = vmul.f32 %v1158, %v1159
        %v1161 = vmul.f32 %v1152, %v1152
        %1162 = vadd.xlane.f32.xlu0 %v1161
        %v1163 = vpop.xlane.xlu0 %1162
        %v1164 = vmul.f32 %v1163, %v1159
        %v1165 = vmul.f32 %v1160, %v1160
        %v1166 = vsub.f32 %v1164, %v1165
        %v1167 = vsub.f32 %v1152, %v1160
        %v1168 = vadd.f32 %v1166, 1e-07
        %v1169 = vrsqrt.pop %v1168
        %v1170 = vmul.f32 %v1167, %v1169
        %v1172 = vlaneseq
        %v1173 = vshrl.u32 %v1172, 7
        %v1174 = vsub.s32 0, %v1173
        %v1175 = vrot.slane %v1155, %v1174
        %v1177 = vmul.f32 %v1170, %v1175
        %v1179 = vlaneseq
        %v1180 = vshrl.u32 %v1179, 7
        %v1181 = vsub.s32 0, %v1180
        %v1182 = vrot.slane %v1156, %v1181
        %v1184 = vadd.f32 %v1177, %v1182
        %v1185 = vlaneseq
        %v1186 = vshrl.u32 %v1185, 7
        %v1187 = vsub.s32 0, %v1186
        %v1188 = vrot.slane %v1056, %v1187
        %1190 = vbcast.lane.b32.xlu0 %v1188, 256
        %v1191 = vpop.permute.xlu0 %1190
        %v1192 = vmul.f32 %v1184, %v1191
        %v1193 = vsub.f32 1.0, %v1056
        %v1194 = vmul.f32 %v1193, -1e+09
        %v1195 = vpack.c.bf16 %v1192, %v1192
        %v1196 = vld [vmem:[#allocation11] sm:$0xf]
        %v1197 = vld [vmem:[#allocation11 + $0x4] sm:$0xf]
        %v1198 = vld [vmem:[#allocation11 + $0x8] sm:$0xf]
        %v1199 = vld [vmem:[#allocation11 + $0xc] sm:$0xf]
        %v1200 = vld [vmem:[#allocation11 + $0x10] sm:$0xf]
        %v1201 = vld [vmem:[#allocation11 + $0x14] sm:$0xf]
        %v1202 = vld [vmem:[#allocation11 + $0x18] sm:$0xf]
        %v1203 = vld [vmem:[#allocation11 + $0x1c] sm:$0xf]
        %v1204 = vld [vmem:[#allocation11 + $0x20] sm:$0xf]
        %v1205 = vld [vmem:[#allocation11 + $0x24] sm:$0xf]
        %v1206 = vld [vmem:[#allocation11 + $0x28] sm:$0xf]
        %v1207 = vld [vmem:[#allocation11 + $0x2c] sm:$0xf]
        %v1208 = vld [vmem:[#allocation11 + $0x30] sm:$0xf]
        %v1209 = vld [vmem:[#allocation11 + $0x34] sm:$0xf]
        %v1210 = vld [vmem:[#allocation11 + $0x38] sm:$0xf]
        %v1211 = vld [vmem:[#allocation11 + $0x3c] sm:$0xf]
        %v1212 = vld [vmem:[#allocation11 + $0x40] sm:$0xf]
        %v1213 = vld [vmem:[#allocation11 + $0x44] sm:$0xf]
        %v1214 = vld [vmem:[#allocation11 + $0x48] sm:$0xf]
        %v1215 = vld [vmem:[#allocation11 + $0x4c] sm:$0xf]
        %v1216 = vld [vmem:[#allocation11 + $0x50] sm:$0xf]
        %v1217 = vld [vmem:[#allocation11 + $0x54] sm:$0xf]
        %v1218 = vld [vmem:[#allocation11 + $0x58] sm:$0xf]
        %v1219 = vld [vmem:[#allocation11 + $0x5c] sm:$0xf]
        %v1220 = vld [vmem:[#allocation11 + $0x60] sm:$0xf]
        %v1221 = vld [vmem:[#allocation11 + $0x64] sm:$0xf]
        %v1222 = vld [vmem:[#allocation11 + $0x68] sm:$0xf]
        %v1223 = vld [vmem:[#allocation11 + $0x6c] sm:$0xf]
        %v1224 = vld [vmem:[#allocation11 + $0x70] sm:$0xf]
        %v1225 = vld [vmem:[#allocation11 + $0x74] sm:$0xf]
        %v1226 = vld [vmem:[#allocation11 + $0x78] sm:$0xf]
        %v1227 = vld [vmem:[#allocation11 + $0x7c] sm:$0xf]
        %v1228 = vld [vmem:[#allocation11 + $0x80] sm:$0xf]
        %v1229 = vld [vmem:[#allocation11 + $0x84] sm:$0xf]
        %v1230 = vld [vmem:[#allocation11 + $0x88] sm:$0xf]
        %v1231 = vld [vmem:[#allocation11 + $0x8c] sm:$0xf]
        %v1232 = vld [vmem:[#allocation11 + $0x90] sm:$0xf]
        %v1233 = vld [vmem:[#allocation11 + $0x94] sm:$0xf]
        %v1234 = vld [vmem:[#allocation11 + $0x98] sm:$0xf]
        %v1235 = vld [vmem:[#allocation11 + $0x9c] sm:$0xf]
        %v1236 = vld [vmem:[#allocation11 + $0xa0] sm:$0xf]
        %v1237 = vld [vmem:[#allocation11 + $0xa4] sm:$0xf]
        %v1238 = vld [vmem:[#allocation11 + $0xa8] sm:$0xf]
        %v1239 = vld [vmem:[#allocation11 + $0xac] sm:$0xf]
        %v1240 = vld [vmem:[#allocation11 + $0xb0] sm:$0xf]
        %v1241 = vld [vmem:[#allocation11 + $0xb4] sm:$0xf]
        %v1242 = vld [vmem:[#allocation11 + $0xb8] sm:$0xf]
        %v1243 = vld [vmem:[#allocation11 + $0xbc] sm:$0xf]
        %v1244 = vld [vmem:[#allocation11 + $0xc0] sm:$0xf]
        %v1245 = vld [vmem:[#allocation11 + $0xc4] sm:$0xf]
        %v1246 = vld [vmem:[#allocation11 + $0xc8] sm:$0xf]
        %v1247 = vld [vmem:[#allocation11 + $0xcc] sm:$0xf]
        %v1248 = vld [vmem:[#allocation11 + $0xd0] sm:$0xf]
        %v1249 = vld [vmem:[#allocation11 + $0xd4] sm:$0xf]
        %v1250 = vld [vmem:[#allocation11 + $0xd8] sm:$0xf]
        %v1251 = vld [vmem:[#allocation11 + $0xdc] sm:$0xf]
        %v1252 = vld [vmem:[#allocation11 + $0xe0] sm:$0xf]
        %v1253 = vld [vmem:[#allocation11 + $0xe4] sm:$0xf]
        %v1254 = vld [vmem:[#allocation11 + $0xe8] sm:$0xf]
        %v1255 = vld [vmem:[#allocation11 + $0xec] sm:$0xf]
        %v1256 = vld [vmem:[#allocation11 + $0xf0] sm:$0xf]
        %v1257 = vld [vmem:[#allocation11 + $0xf4] sm:$0xf]
        %v1258 = vld [vmem:[#allocation11 + $0xf8] sm:$0xf]
        %v1259 = vld [vmem:[#allocation11 + $0xfc] sm:$0xf]
        %v1260 = vld [vmem:[#allocation14] sm:$0xf]
        %v1261 = vld [vmem:[#allocation14 + $0x4] sm:$0xf]
        %v1262 = vld [vmem:[#allocation14 + $0x8] sm:$0xf]
        %v1263 = vld [vmem:[#allocation14 + $0xc] sm:$0xf]
        %v1264 = vld [vmem:[#allocation14 + $0x10] sm:$0xf]
        %v1265 = vld [vmem:[#allocation14 + $0x14] sm:$0xf]
        %v1266 = vld [vmem:[#allocation14 + $0x18] sm:$0xf]
        %v1267 = vld [vmem:[#allocation14 + $0x1c] sm:$0xf]
        %v1268 = vld [vmem:[#allocation14 + $0x20] sm:$0xf]
        %v1269 = vld [vmem:[#allocation14 + $0x24] sm:$0xf]
        %v1270 = vld [vmem:[#allocation14 + $0x28] sm:$0xf]
        %v1271 = vld [vmem:[#allocation14 + $0x2c] sm:$0xf]
        %v1272 = vld [vmem:[#allocation14 + $0x30] sm:$0xf]
        %v1273 = vld [vmem:[#allocation14 + $0x34] sm:$0xf]
        %v1274 = vld [vmem:[#allocation14 + $0x38] sm:$0xf]
        %v1275 = vld [vmem:[#allocation14 + $0x3c] sm:$0xf]
        %v1276 = vld [vmem:[#allocation14 + $0x40] sm:$0xf]
        %v1277 = vld [vmem:[#allocation14 + $0x44] sm:$0xf]
        %v1278 = vld [vmem:[#allocation14 + $0x48] sm:$0xf]
        %v1279 = vld [vmem:[#allocation14 + $0x4c] sm:$0xf]
        %v1280 = vld [vmem:[#allocation14 + $0x50] sm:$0xf]
        %v1281 = vld [vmem:[#allocation14 + $0x54] sm:$0xf]
        %v1282 = vld [vmem:[#allocation14 + $0x58] sm:$0xf]
        %v1283 = vld [vmem:[#allocation14 + $0x5c] sm:$0xf]
        %v1284 = vld [vmem:[#allocation14 + $0x60] sm:$0xf]
        %v1285 = vld [vmem:[#allocation14 + $0x64] sm:$0xf]
        %v1286 = vld [vmem:[#allocation14 + $0x68] sm:$0xf]
        %v1287 = vld [vmem:[#allocation14 + $0x6c] sm:$0xf]
        %v1288 = vld [vmem:[#allocation14 + $0x70] sm:$0xf]
        %v1289 = vld [vmem:[#allocation14 + $0x74] sm:$0xf]
        %v1290 = vld [vmem:[#allocation14 + $0x78] sm:$0xf]
        %v1291 = vld [vmem:[#allocation14 + $0x7c] sm:$0xf]
        %v1292 = vld [vmem:[#allocation14 + $0x80] sm:$0xf]
        %v1293 = vld [vmem:[#allocation14 + $0x84] sm:$0xf]
        %v1294 = vld [vmem:[#allocation14 + $0x88] sm:$0xf]
        %v1295 = vld [vmem:[#allocation14 + $0x8c] sm:$0xf]
        %v1296 = vld [vmem:[#allocation14 + $0x90] sm:$0xf]
        %v1297 = vld [vmem:[#allocation14 + $0x94] sm:$0xf]
        %v1298 = vld [vmem:[#allocation14 + $0x98] sm:$0xf]
        %v1299 = vld [vmem:[#allocation14 + $0x9c] sm:$0xf]
        %v1300 = vld [vmem:[#allocation14 + $0xa0] sm:$0xf]
        %v1301 = vld [vmem:[#allocation14 + $0xa4] sm:$0xf]
        %v1302 = vld [vmem:[#allocation14 + $0xa8] sm:$0xf]
        %v1303 = vld [vmem:[#allocation14 + $0xac] sm:$0xf]
        %v1304 = vld [vmem:[#allocation14 + $0xb0] sm:$0xf]
        %v1305 = vld [vmem:[#allocation14 + $0xb4] sm:$0xf]
        %v1306 = vld [vmem:[#allocation14 + $0xb8] sm:$0xf]
        %v1307 = vld [vmem:[#allocation14 + $0xbc] sm:$0xf]
        %v1308 = vld [vmem:[#allocation14 + $0xc0] sm:$0xf]
        %v1309 = vld [vmem:[#allocation14 + $0xc4] sm:$0xf]
        %v1310 = vld [vmem:[#allocation14 + $0xc8] sm:$0xf]
        %v1311 = vld [vmem:[#allocation14 + $0xcc] sm:$0xf]
        %v1312 = vld [vmem:[#allocation14 + $0xd0] sm:$0xf]
        %v1313 = vld [vmem:[#allocation14 + $0xd4] sm:$0xf]
        %v1314 = vld [vmem:[#allocation14 + $0xd8] sm:$0xf]
        %v1315 = vld [vmem:[#allocation14 + $0xdc] sm:$0xf]
        %v1316 = vld [vmem:[#allocation14 + $0xe0] sm:$0xf]
        %v1317 = vld [vmem:[#allocation14 + $0xe4] sm:$0xf]
        %v1318 = vld [vmem:[#allocation14 + $0xe8] sm:$0xf]
        %v1319 = vld [vmem:[#allocation14 + $0xec] sm:$0xf]
        %v1320 = vld [vmem:[#allocation14 + $0xf0] sm:$0xf]
        %v1321 = vld [vmem:[#allocation14 + $0xf4] sm:$0xf]
        %v1322 = vld [vmem:[#allocation14 + $0xf8] sm:$0xf]
        %v1323 = vld [vmem:[#allocation14 + $0xfc] sm:$0xf]
        %v1324 = vld [vmem:[#allocation17] sm:$0xf]
        %v1325 = vld [vmem:[#allocation17 + $0x4] sm:$0xf]
        %v1326 = vld [vmem:[#allocation17 + $0x8] sm:$0xf]
        %v1327 = vld [vmem:[#allocation17 + $0xc] sm:$0xf]
        %v1328 = vld [vmem:[#allocation17 + $0x10] sm:$0xf]
        %v1329 = vld [vmem:[#allocation17 + $0x14] sm:$0xf]
        %v1330 = vld [vmem:[#allocation17 + $0x18] sm:$0xf]
        %v1331 = vld [vmem:[#allocation17 + $0x1c] sm:$0xf]
        %v1332 = vld [vmem:[#allocation17 + $0x20] sm:$0xf]
        %v1333 = vld [vmem:[#allocation17 + $0x24] sm:$0xf]
        %v1334 = vld [vmem:[#allocation17 + $0x28] sm:$0xf]
        %v1335 = vld [vmem:[#allocation17 + $0x2c] sm:$0xf]
        %v1336 = vld [vmem:[#allocation17 + $0x30] sm:$0xf]
        %v1337 = vld [vmem:[#allocation17 + $0x34] sm:$0xf]
        %v1338 = vld [vmem:[#allocation17 + $0x38] sm:$0xf]
        %v1339 = vld [vmem:[#allocation17 + $0x3c] sm:$0xf]
        %v1340 = vld [vmem:[#allocation17 + $0x40] sm:$0xf]
        %v1341 = vld [vmem:[#allocation17 + $0x44] sm:$0xf]
        %v1342 = vld [vmem:[#allocation17 + $0x48] sm:$0xf]
        %v1343 = vld [vmem:[#allocation17 + $0x4c] sm:$0xf]
        %v1344 = vld [vmem:[#allocation17 + $0x50] sm:$0xf]
        %v1345 = vld [vmem:[#allocation17 + $0x54] sm:$0xf]
        %v1346 = vld [vmem:[#allocation17 + $0x58] sm:$0xf]
        %v1347 = vld [vmem:[#allocation17 + $0x5c] sm:$0xf]
        %v1348 = vld [vmem:[#allocation17 + $0x60] sm:$0xf]
        %v1349 = vld [vmem:[#allocation17 + $0x64] sm:$0xf]
        %v1350 = vld [vmem:[#allocation17 + $0x68] sm:$0xf]
        %v1351 = vld [vmem:[#allocation17 + $0x6c] sm:$0xf]
        %v1352 = vld [vmem:[#allocation17 + $0x70] sm:$0xf]
        %v1353 = vld [vmem:[#allocation17 + $0x74] sm:$0xf]
        %v1354 = vld [vmem:[#allocation17 + $0x78] sm:$0xf]
        %v1355 = vld [vmem:[#allocation17 + $0x7c] sm:$0xf]
        %v1356 = vld [vmem:[#allocation17 + $0x80] sm:$0xf]
        %v1357 = vld [vmem:[#allocation17 + $0x84] sm:$0xf]
        %v1358 = vld [vmem:[#allocation17 + $0x88] sm:$0xf]
        %v1359 = vld [vmem:[#allocation17 + $0x8c] sm:$0xf]
        %v1360 = vld [vmem:[#allocation17 + $0x90] sm:$0xf]
        %v1361 = vld [vmem:[#allocation17 + $0x94] sm:$0xf]
        %v1362 = vld [vmem:[#allocation17 + $0x98] sm:$0xf]
        %v1363 = vld [vmem:[#allocation17 + $0x9c] sm:$0xf]
        %v1364 = vld [vmem:[#allocation17 + $0xa0] sm:$0xf]
        %v1365 = vld [vmem:[#allocation17 + $0xa4] sm:$0xf]
        %v1366 = vld [vmem:[#allocation17 + $0xa8] sm:$0xf]
        %v1367 = vld [vmem:[#allocation17 + $0xac] sm:$0xf]
        %v1368 = vld [vmem:[#allocation17 + $0xb0] sm:$0xf]
        %v1369 = vld [vmem:[#allocation17 + $0xb4] sm:$0xf]
        %v1370 = vld [vmem:[#allocation17 + $0xb8] sm:$0xf]
        %v1371 = vld [vmem:[#allocation17 + $0xbc] sm:$0xf]
        %v1372 = vld [vmem:[#allocation17 + $0xc0] sm:$0xf]
        %v1373 = vld [vmem:[#allocation17 + $0xc4] sm:$0xf]
        %v1374 = vld [vmem:[#allocation17 + $0xc8] sm:$0xf]
        %v1375 = vld [vmem:[#allocation17 + $0xcc] sm:$0xf]
        %v1376 = vld [vmem:[#allocation17 + $0xd0] sm:$0xf]
        %v1377 = vld [vmem:[#allocation17 + $0xd4] sm:$0xf]
        %v1378 = vld [vmem:[#allocation17 + $0xd8] sm:$0xf]
        %v1379 = vld [vmem:[#allocation17 + $0xdc] sm:$0xf]
        %v1380 = vld [vmem:[#allocation17 + $0xe0] sm:$0xf]
        %v1381 = vld [vmem:[#allocation17 + $0xe4] sm:$0xf]
        %v1382 = vld [vmem:[#allocation17 + $0xe8] sm:$0xf]
        %v1383 = vld [vmem:[#allocation17 + $0xec] sm:$0xf]
        %v1384 = vld [vmem:[#allocation17 + $0xf0] sm:$0xf]
        %v1385 = vld [vmem:[#allocation17 + $0xf4] sm:$0xf]
        %v1386 = vld [vmem:[#allocation17 + $0xf8] sm:$0xf]
        %v1387 = vld [vmem:[#allocation17 + $0xfc] sm:$0xf]
        %v1388 = vld [vmem:[#allocation13] sm:$0x1]
        %v1389 = vld [vmem:[#allocation13 + $0x1] sm:$0x1]
        %v1390 = vld [vmem:[#allocation13 + $0x2] sm:$0x1]
        %v1391 = vld [vmem:[#allocation13 + $0x3] sm:$0x1]
        %v1392 = vld [vmem:[#allocation16] sm:$0x1]
        %v1393 = vld [vmem:[#allocation16 + $0x1] sm:$0x1]
        %v1394 = vld [vmem:[#allocation16 + $0x2] sm:$0x1]
        %v1395 = vld [vmem:[#allocation16 + $0x3] sm:$0x1]
        %v1396 = vld [vmem:[#allocation19] sm:$0x1]
        %v1397 = vld [vmem:[#allocation19 + $0x1] sm:$0x1]
        %v1398 = vld [vmem:[#allocation19 + $0x2] sm:$0x1]
        %v1399 = vld [vmem:[#allocation19 + $0x3] sm:$0x1]
        %v1400 = vld [vmem:[#allocation20] sm:$0xf]
        %v1401 = vld [vmem:[#allocation20 + $0x4] sm:$0xf]
        %v1402 = vld [vmem:[#allocation20 + $0x8] sm:$0xf]
        %v1403 = vld [vmem:[#allocation20 + $0xc] sm:$0xf]
        %v1404 = vld [vmem:[#allocation20 + $0x10] sm:$0xf]
        %v1405 = vld [vmem:[#allocation20 + $0x14] sm:$0xf]
        %v1406 = vld [vmem:[#allocation20 + $0x18] sm:$0xf]
        %v1407 = vld [vmem:[#allocation20 + $0x1c] sm:$0xf]
        %v1408 = vld [vmem:[#allocation20 + $0x20] sm:$0xf]
        %v1409 = vld [vmem:[#allocation20 + $0x24] sm:$0xf]
        %v1410 = vld [vmem:[#allocation20 + $0x28] sm:$0xf]
        %v1411 = vld [vmem:[#allocation20 + $0x2c] sm:$0xf]
        %v1412 = vld [vmem:[#allocation20 + $0x30] sm:$0xf]
        %v1413 = vld [vmem:[#allocation20 + $0x34] sm:$0xf]
        %v1414 = vld [vmem:[#allocation20 + $0x38] sm:$0xf]
        %v1415 = vld [vmem:[#allocation20 + $0x3c] sm:$0xf]
        %v1417 = vlaneseq
        %v1418 = vshrl.u32 %v1417, 7
        %v1419 = vsub.s32 0, %v1418
        %v1420 = vrot.slane %v1388, %v1419
        %v1438 = vunpack.c.l.b16 %v1196
        %v1439 = vunpack.c.l.b16 %v1197
        %v1440 = vunpack.c.l.b16 %v1198
        %v1441 = vunpack.c.l.b16 %v1199
        %v1442 = vunpack.c.l.b16 %v1200
        %v1443 = vunpack.c.l.b16 %v1201
        %v1444 = vunpack.c.l.b16 %v1202
        %v1445 = vunpack.c.l.b16 %v1203
        %v1446 = vunpack.c.l.b16 %v1204
        %v1447 = vunpack.c.l.b16 %v1205
        %v1448 = vunpack.c.l.b16 %v1206
        %v1449 = vunpack.c.l.b16 %v1207
        %v1450 = vunpack.c.l.b16 %v1208
        %v1451 = vunpack.c.l.b16 %v1209
        %v1452 = vunpack.c.l.b16 %v1210
        %v1453 = vunpack.c.l.b16 %v1211
        %v1454 = vpack.c.b16 %v1439, %v1438
        %v1455 = vpack.c.b16 %v1441, %v1440
        %v1456 = vpack.c.b16 %v1443, %v1442
        %v1457 = vpack.c.b16 %v1445, %v1444
        %v1458 = vpack.c.b16 %v1447, %v1446
        %v1459 = vpack.c.b16 %v1449, %v1448
        %v1460 = vpack.c.b16 %v1451, %v1450
        %v1461 = vpack.c.b16 %v1453, %v1452
        %1470 = vmatprep.subr.bf16.mxu0 0
        %1471 = vmatpush1.bf16.msra.mxu0 %v1454
        %1472 = vmatprep.subr.bf16.mxu0 0
        %1473 = vmatpush1.bf16.msra.mxu0 %v1455
        %1474 = vmatprep.subr.bf16.mxu0 0
        %1475 = vmatpush1.bf16.msra.mxu0 %v1456
        %1476 = vmatprep.subr.bf16.mxu0 0
        %1477 = vmatpush1.bf16.msra.mxu0 %v1457
        %1478 = vmatprep.subr.bf16.mxu0 0
        %1479 = vmatpush1.bf16.msra.mxu0 %v1458
        %1480 = vmatprep.subr.bf16.mxu0 0
        %1481 = vmatpush1.bf16.msra.mxu0 %v1459
        %1482 = vmatprep.subr.bf16.mxu0 0
        %1483 = vmatpush1.bf16.msra.mxu0 %v1460
        %1484 = vmatprep.subr.bf16.mxu0 0
        %1485 = vmatpush1.bf16.msra.mxu0 %v1461
        %1486 = vmatprep.subr.bf16.mxu0 0
        %1487 = vmatpush1.bf16.msra.mxu0 0
        %1488 = vmatprep.subr.bf16.mxu0 0
        %1489 = vmatpush1.bf16.msra.mxu0 0
        %1490 = vmatprep.subr.bf16.mxu0 0
        %1491 = vmatpush1.bf16.msra.mxu0 0
        %1492 = vmatprep.subr.bf16.mxu0 0
        %1493 = vmatpush1.bf16.msra.mxu0 0
        %1494 = vmatprep.subr.bf16.mxu0 0
        %1495 = vmatpush1.bf16.msra.mxu0 0
        %1496 = vmatprep.subr.bf16.mxu0 0
        %1497 = vmatpush1.bf16.msra.mxu0 0
        %1498 = vmatprep.subr.bf16.mxu0 0
        %1499 = vmatpush1.bf16.msra.mxu0 0
        %1500 = vmatprep.subr.bf16.mxu0 0
        %1501 = vmatpush1.bf16.msra.mxu0 0
        %1502 = vmatprep.mubr.bf16.mxu0 0
        %1503 = vmatmul.mubr.bf16.gmra.mrb[0].mxu0 %v1195
        %v1504 = vpop.f32.mrb[0].mxu0
        %v1505 = vadd.f32 %v1420, %v1504
        %v1506 = vpop.f32.mrb[0].mxu0
        %v1507 = vpop.f32.mrb[0].mxu0
        %v1508 = vpop.f32.mrb[0].mxu0
        %1509 = vdwg.mxu0
        %v1511 = vlaneseq
        %v1512 = vshrl.u32 %v1511, 7
        %v1513 = vsub.s32 0, %v1512
        %v1514 = vrot.slane %v1392, %v1513
        %v1532 = vunpack.c.l.b16 %v1260
        %v1533 = vunpack.c.l.b16 %v1261
        %v1534 = vunpack.c.l.b16 %v1262
        %v1535 = vunpack.c.l.b16 %v1263
        %v1536 = vunpack.c.l.b16 %v1264
        %v1537 = vunpack.c.l.b16 %v1265
        %v1538 = vunpack.c.l.b16 %v1266
        %v1539 = vunpack.c.l.b16 %v1267
        %v1540 = vunpack.c.l.b16 %v1268
        %v1541 = vunpack.c.l.b16 %v1269
        %v1542 = vunpack.c.l.b16 %v1270
        %v1543 = vunpack.c.l.b16 %v1271
        %v1544 = vunpack.c.l.b16 %v1272
        %v1545 = vunpack.c.l.b16 %v1273
        %v1546 = vunpack.c.l.b16 %v1274
        %v1547 = vunpack.c.l.b16 %v1275
        %v1548 = vpack.c.b16 %v1533, %v1532
        %v1549 = vpack.c.b16 %v1535, %v1534
        %v1550 = vpack.c.b16 %v1537, %v1536
        %v1551 = vpack.c.b16 %v1539, %v1538
        %v1552 = vpack.c.b16 %v1541, %v1540
        %v1553 = vpack.c.b16 %v1543, %v1542
        %v1554 = vpack.c.b16 %v1545, %v1544
        %v1555 = vpack.c.b16 %v1547, %v1546
        %1564 = vmatprep.subr.bf16.mxu0 0
        %1565 = vmatpush1.bf16.msra.mxu0 %v1548
        %1566 = vmatprep.subr.bf16.mxu0 0
        %1567 = vmatpush1.bf16.msra.mxu0 %v1549
        %1568 = vmatprep.subr.bf16.mxu0 0
        %1569 = vmatpush1.bf16.msra.mxu0 %v1550
        %1570 = vmatprep.subr.bf16.mxu0 0
        %1571 = vmatpush1.bf16.msra.mxu0 %v1551
        %1572 = vmatprep.subr.bf16.mxu0 0
        %1573 = vmatpush1.bf16.msra.mxu0 %v1552
        %1574 = vmatprep.subr.bf16.mxu0 0
        %1575 = vmatpush1.bf16.msra.mxu0 %v1553
        %1576 = vmatprep.subr.bf16.mxu0 0
        %1577 = vmatpush1.bf16.msra.mxu0 %v1554
        %1578 = vmatprep.subr.bf16.mxu0 0
        %1579 = vmatpush1.bf16.msra.mxu0 %v1555
        %1580 = vmatprep.subr.bf16.mxu0 0
        %1581 = vmatpush1.bf16.msra.mxu0 0
        %1582 = vmatprep.subr.bf16.mxu0 0
        %1583 = vmatpush1.bf16.msra.mxu0 0
        %1584 = vmatprep.subr.bf16.mxu0 0
        %1585 = vmatpush1.bf16.msra.mxu0 0
        %1586 = vmatprep.subr.bf16.mxu0 0
        %1587 = vmatpush1.bf16.msra.mxu0 0
        %1588 = vmatprep.subr.bf16.mxu0 0
        %1589 = vmatpush1.bf16.msra.mxu0 0
        %1590 = vmatprep.subr.bf16.mxu0 0
        %1591 = vmatpush1.bf16.msra.mxu0 0
        %1592 = vmatprep.subr.bf16.mxu0 0
        %1593 = vmatpush1.bf16.msra.mxu0 0
        %1594 = vmatprep.subr.bf16.mxu0 0
        %1595 = vmatpush1.bf16.msra.mxu0 0
        %1596 = vmatprep.mubr.bf16.mxu0 0
        %1597 = vmatmul.mubr.bf16.gmra.mrb[0].mxu0 %v1195
        %v1598 = vpop.f32.mrb[0].mxu0
        %v1599 = vadd.f32 %v1514, %v1598
        %v1600 = vpop.f32.mrb[0].mxu0
        %v1601 = vpop.f32.mrb[0].mxu0
        %v1602 = vpop.f32.mrb[0].mxu0
        %1603 = vdwg.mxu0
        %v1605 = vlaneseq
        %v1606 = vshrl.u32 %v1605, 7
        %v1607 = vsub.s32 0, %v1606
        %v1608 = vrot.slane %v1396, %v1607
        %v1626 = vunpack.c.l.b16 %v1324
        %v1627 = vunpack.c.l.b16 %v1325
        %v1628 = vunpack.c.l.b16 %v1326
        %v1629 = vunpack.c.l.b16 %v1327
        %v1630 = vunpack.c.l.b16 %v1328
        %v1631 = vunpack.c.l.b16 %v1329
        %v1632 = vunpack.c.l.b16 %v1330
        %v1633 = vunpack.c.l.b16 %v1331
        %v1634 = vunpack.c.l.b16 %v1332
        %v1635 = vunpack.c.l.b16 %v1333
        %v1636 = vunpack.c.l.b16 %v1334
        %v1637 = vunpack.c.l.b16 %v1335
        %v1638 = vunpack.c.l.b16 %v1336
        %v1639 = vunpack.c.l.b16 %v1337
        %v1640 = vunpack.c.l.b16 %v1338
        %v1641 = vunpack.c.l.b16 %v1339
        %v1642 = vpack.c.b16 %v1627, %v1626
        %v1643 = vpack.c.b16 %v1629, %v1628
        %v1644 = vpack.c.b16 %v1631, %v1630
        %v1645 = vpack.c.b16 %v1633, %v1632
        %v1646 = vpack.c.b16 %v1635, %v1634
        %v1647 = vpack.c.b16 %v1637, %v1636
        %v1648 = vpack.c.b16 %v1639, %v1638
        %v1649 = vpack.c.b16 %v1641, %v1640
        %1658 = vmatprep.subr.bf16.mxu0 0
        %1659 = vmatpush1.bf16.msra.mxu0 %v1642
        %1660 = vmatprep.subr.bf16.mxu0 0
        %1661 = vmatpush1.bf16.msra.mxu0 %v1643
        %1662 = vmatprep.subr.bf16.mxu0 0
        %1663 = vmatpush1.bf16.msra.mxu0 %v1644
        %1664 = vmatprep.subr.bf16.mxu0 0
        %1665 = vmatpush1.bf16.msra.mxu0 %v1645
        %1666 = vmatprep.subr.bf16.mxu0 0
        %1667 = vmatpush1.bf16.msra.mxu0 %v1646
        %1668 = vmatprep.subr.bf16.mxu0 0
        %1669 = vmatpush1.bf16.msra.mxu0 %v1647
        %1670 = vmatprep.subr.bf16.mxu0 0
        %1671 = vmatpush1.bf16.msra.mxu0 %v1648
        %1672 = vmatprep.subr.bf16.mxu0 0
        %1673 = vmatpush1.bf16.msra.mxu0 %v1649
        %1674 = vmatprep.subr.bf16.mxu0 0
        %1675 = vmatpush1.bf16.msra.mxu0 0
        %1676 = vmatprep.subr.bf16.mxu0 0
        %1677 = vmatpush1.bf16.msra.mxu0 0
        %1678 = vmatprep.subr.bf16.mxu0 0
        %1679 = vmatpush1.bf16.msra.mxu0 0
        %1680 = vmatprep.subr.bf16.mxu0 0
        %1681 = vmatpush1.bf16.msra.mxu0 0
        %1682 = vmatprep.subr.bf16.mxu0 0
        %1683 = vmatpush1.bf16.msra.mxu0 0
        %1684 = vmatprep.subr.bf16.mxu0 0
        %1685 = vmatpush1.bf16.msra.mxu0 0
        %1686 = vmatprep.subr.bf16.mxu0 0
        %1687 = vmatpush1.bf16.msra.mxu0 0
        %1688 = vmatprep.subr.bf16.mxu0 0
        %1689 = vmatpush1.bf16.msra.mxu0 0
        %1690 = vmatprep.mubr.bf16.mxu0 0
        %1691 = vmatmul.mubr.bf16.gmra.mrb[0].mxu0 %v1195
        %v1692 = vpop.f32.mrb[0].mxu0
        %v1693 = vadd.f32 %v1608, %v1692
        %v1694 = vpop.f32.mrb[0].mxu0
        %v1695 = vpop.f32.mrb[0].mxu0
        %v1696 = vpop.f32.mrb[0].mxu0
        %1697 = vdwg.mxu0
        %v1699 = vlaneseq
        %v1700 = vshrl.u32 %v1699, 7
        %v1701 = vsub.s32 0, %v1700
        %v1702 = vrot.slane %v1389, %v1701
        %v1720 = vunpack.c.l.b16 %v1212
        %v1721 = vunpack.c.l.b16 %v1213
        %v1722 = vunpack.c.l.b16 %v1214
        %v1723 = vunpack.c.l.b16 %v1215
        %v1724 = vunpack.c.l.b16 %v1216
        %v1725 = vunpack.c.l.b16 %v1217
        %v1726 = vunpack.c.l.b16 %v1218
        %v1727 = vunpack.c.l.b16 %v1219
        %v1728 = vunpack.c.l.b16 %v1220
        %v1729 = vunpack.c.l.b16 %v1221
        %v1730 = vunpack.c.l.b16 %v1222
        %v1731 = vunpack.c.l.b16 %v1223
        %v1732 = vunpack.c.l.b16 %v1224
        %v1733 = vunpack.c.l.b16 %v1225
        %v1734 = vunpack.c.l.b16 %v1226
        %v1735 = vunpack.c.l.b16 %v1227
        %v1736 = vpack.c.b16 %v1721, %v1720
        %v1737 = vpack.c.b16 %v1723, %v1722
        %v1738 = vpack.c.b16 %v1725, %v1724
        %v1739 = vpack.c.b16 %v1727, %v1726
        %v1740 = vpack.c.b16 %v1729, %v1728
        %v1741 = vpack.c.b16 %v1731, %v1730
        %v1742 = vpack.c.b16 %v1733, %v1732
        %v1743 = vpack.c.b16 %v1735, %v1734
        %1752 = vmatprep.subr.bf16.mxu0 0
        %1753 = vmatpush1.bf16.msra.mxu0 %v1736
        %1754 = vmatprep.subr.bf16.mxu0 0
        %1755 = vmatpush1.bf16.msra.mxu0 %v1737
        %1756 = vmatprep.subr.bf16.mxu0 0
        %1757 = vmatpush1.bf16.msra.mxu0 %v1738
        %1758 = vmatprep.subr.bf16.mxu0 0
        %1759 = vmatpush1.bf16.msra.mxu0 %v1739
        %1760 = vmatprep.subr.bf16.mxu0 0
        %1761 = vmatpush1.bf16.msra.mxu0 %v1740
        %1762 = vmatprep.subr.bf16.mxu0 0
        %1763 = vmatpush1.bf16.msra.mxu0 %v1741
        %1764 = vmatprep.subr.bf16.mxu0 0
        %1765 = vmatpush1.bf16.msra.mxu0 %v1742
        %1766 = vmatprep.subr.bf16.mxu0 0
        %1767 = vmatpush1.bf16.msra.mxu0 %v1743
        %1768 = vmatprep.subr.bf16.mxu0 0
        %1769 = vmatpush1.bf16.msra.mxu0 0
        %1770 = vmatprep.subr.bf16.mxu0 0
        %1771 = vmatpush1.bf16.msra.mxu0 0
        %1772 = vmatprep.subr.bf16.mxu0 0
        %1773 = vmatpush1.bf16.msra.mxu0 0
        %1774 = vmatprep.subr.bf16.mxu0 0
        %1775 = vmatpush1.bf16.msra.mxu0 0
        %1776 = vmatprep.subr.bf16.mxu0 0
        %1777 = vmatpush1.bf16.msra.mxu0 0
        %1778 = vmatprep.subr.bf16.mxu0 0
        %1779 = vmatpush1.bf16.msra.mxu0 0
        %1780 = vmatprep.subr.bf16.mxu0 0
        %1781 = vmatpush1.bf16.msra.mxu0 0
        %1782 = vmatprep.subr.bf16.mxu0 0
        %1783 = vmatpush1.bf16.msra.mxu0 0
        %1784 = vmatprep.mubr.bf16.mxu0 0
        %1785 = vmatmul.mubr.bf16.gmra.mrb[0].mxu0 %v1195
        %v1786 = vpop.f32.mrb[0].mxu0
        %v1787 = vadd.f32 %v1702, %v1786
        %v1788 = vpop.f32.mrb[0].mxu0
        %v1789 = vpop.f32.mrb[0].mxu0
        %v1790 = vpop.f32.mrb[0].mxu0
        %1791 = vdwg.mxu0
        %v1793 = vlaneseq
        %v1794 = vshrl.u32 %v1793, 7
        %v1795 = vsub.s32 0, %v1794
        %v1796 = vrot.slane %v1393, %v1795
        %v1814 = vunpack.c.l.b16 %v1276
        %v1815 = vunpack.c.l.b16 %v1277
        %v1816 = vunpack.c.l.b16 %v1278
        %v1817 = vunpack.c.l.b16 %v1279
        %v1818 = vunpack.c.l.b16 %v1280
        %v1819 = vunpack.c.l.b16 %v1281
        %v1820 = vunpack.c.l.b16 %v1282
        %v1821 = vunpack.c.l.b16 %v1283
        %v1822 = vunpack.c.l.b16 %v1284
        %v1823 = vunpack.c.l.b16 %v1285
        %v1824 = vunpack.c.l.b16 %v1286
        %v1825 = vunpack.c.l.b16 %v1287
        %v1826 = vunpack.c.l.b16 %v1288
        %v1827 = vunpack.c.l.b16 %v1289
        %v1828 = vunpack.c.l.b16 %v1290
        %v1829 = vunpack.c.l.b16 %v1291
        %v1830 = vpack.c.b16 %v1815, %v1814
        %v1831 = vpack.c.b16 %v1817, %v1816
        %v1832 = vpack.c.b16 %v1819, %v1818
        %v1833 = vpack.c.b16 %v1821, %v1820
        %v1834 = vpack.c.b16 %v1823, %v1822
        %v1835 = vpack.c.b16 %v1825, %v1824
        %v1836 = vpack.c.b16 %v1827, %v1826
        %v1837 = vpack.c.b16 %v1829, %v1828
        %1846 = vmatprep.subr.bf16.mxu0 0
        %1847 = vmatpush1.bf16.msra.mxu0 %v1830
        %1848 = vmatprep.subr.bf16.mxu0 0
        %1849 = vmatpush1.bf16.msra.mxu0 %v1831
        %1850 = vmatprep.subr.bf16.mxu0 0
        %1851 = vmatpush1.bf16.msra.mxu0 %v1832
        %1852 = vmatprep.subr.bf16.mxu0 0
        %1853 = vmatpush1.bf16.msra.mxu0 %v1833
        %1854 = vmatprep.subr.bf16.mxu0 0
        %1855 = vmatpush1.bf16.msra.mxu0 %v1834
        %1856 = vmatprep.subr.bf16.mxu0 0
        %1857 = vmatpush1.bf16.msra.mxu0 %v1835
        %1858 = vmatprep.subr.bf16.mxu0 0
        %1859 = vmatpush1.bf16.msra.mxu0 %v1836
        %1860 = vmatprep.subr.bf16.mxu0 0
        %1861 = vmatpush1.bf16.msra.mxu0 %v1837
        %1862 = vmatprep.subr.bf16.mxu0 0
        %1863 = vmatpush1.bf16.msra.mxu0 0
        %1864 = vmatprep.subr.bf16.mxu0 0
        %1865 = vmatpush1.bf16.msra.mxu0 0
        %1866 = vmatprep.subr.bf16.mxu0 0
        %1867 = vmatpush1.bf16.msra.mxu0 0
        %1868 = vmatprep.subr.bf16.mxu0 0
        %1869 = vmatpush1.bf16.msra.mxu0 0
        %1870 = vmatprep.subr.bf16.mxu0 0
        %1871 = vmatpush1.bf16.msra.mxu0 0
        %1872 = vmatprep.subr.bf16.mxu0 0
        %1873 = vmatpush1.bf16.msra.mxu0 0
        %1874 = vmatprep.subr.bf16.mxu0 0
        %1875 = vmatpush1.bf16.msra.mxu0 0
        %1876 = vmatprep.subr.bf16.mxu0 0
        %1877 = vmatpush1.bf16.msra.mxu0 0
        %1878 = vmatprep.mubr.bf16.mxu0 0
        %1879 = vmatmul.mubr.bf16.gmra.mrb[0].mxu0 %v1195
        %v1880 = vpop.f32.mrb[0].mxu0
        %v1881 = vadd.f32 %v1796, %v1880
        %v1882 = vpop.f32.mrb[0].mxu0
        %v1883 = vpop.f32.mrb[0].mxu0
        %v1884 = vpop.f32.mrb[0].mxu0
        %1885 = vdwg.mxu0
        %v1887 = vlaneseq
        %v1888 = vshrl.u32 %v1887, 7
        %v1889 = vsub.s32 0, %v1888
        %v1890 = vrot.slane %v1397, %v1889
        %v1908 = vunpack.c.l.b16 %v1340
        %v1909 = vunpack.c.l.b16 %v1341
        %v1910 = vunpack.c.l.b16 %v1342
        %v1911 = vunpack.c.l.b16 %v1343
        %v1912 = vunpack.c.l.b16 %v1344
        %v1913 = vunpack.c.l.b16 %v1345
        %v1914 = vunpack.c.l.b16 %v1346
        %v1915 = vunpack.c.l.b16 %v1347
        %v1916 = vunpack.c.l.b16 %v1348
        %v1917 = vunpack.c.l.b16 %v1349
        %v1918 = vunpack.c.l.b16 %v1350
        %v1919 = vunpack.c.l.b16 %v1351
        %v1920 = vunpack.c.l.b16 %v1352
        %v1921 = vunpack.c.l.b16 %v1353
        %v1922 = vunpack.c.l.b16 %v1354
        %v1923 = vunpack.c.l.b16 %v1355
        %v1924 = vpack.c.b16 %v1909, %v1908
        %v1925 = vpack.c.b16 %v1911, %v1910
        %v1926 = vpack.c.b16 %v1913, %v1912
        %v1927 = vpack.c.b16 %v1915, %v1914
        %v1928 = vpack.c.b16 %v1917, %v1916
        %v1929 = vpack.c.b16 %v1919, %v1918
        %v1930 = vpack.c.b16 %v1921, %v1920
        %v1931 = vpack.c.b16 %v1923, %v1922
        %1940 = vmatprep.subr.bf16.mxu0 0
        %1941 = vmatpush1.bf16.msra.mxu0 %v1924
        %1942 = vmatprep.subr.bf16.mxu0 0
        %1943 = vmatpush1.bf16.msra.mxu0 %v1925
        %1944 = vmatprep.subr.bf16.mxu0 0
        %1945 = vmatpush1.bf16.msra.mxu0 %v1926
        %1946 = vmatprep.subr.bf16.mxu0 0
        %1947 = vmatpush1.bf16.msra.mxu0 %v1927
        %1948 = vmatprep.subr.bf16.mxu0 0
        %1949 = vmatpush1.bf16.msra.mxu0 %v1928
        %1950 = vmatprep.subr.bf16.mxu0 0
        %1951 = vmatpush1.bf16.msra.mxu0 %v1929
        %1952 = vmatprep.subr.bf16.mxu0 0
        %1953 = vmatpush1.bf16.msra.mxu0 %v1930
        %1954 = vmatprep.subr.bf16.mxu0 0
        %1955 = vmatpush1.bf16.msra.mxu0 %v1931
        %1956 = vmatprep.subr.bf16.mxu0 0
        %1957 = vmatpush1.bf16.msra.mxu0 0
        %1958 = vmatprep.subr.bf16.mxu0 0
        %1959 = vmatpush1.bf16.msra.mxu0 0
        %1960 = vmatprep.subr.bf16.mxu0 0
        %1961 = vmatpush1.bf16.msra.mxu0 0
        %1962 = vmatprep.subr.bf16.mxu0 0
        %1963 = vmatpush1.bf16.msra.mxu0 0
        %1964 = vmatprep.subr.bf16.mxu0 0
        %1965 = vmatpush1.bf16.msra.mxu0 0
        %1966 = vmatprep.subr.bf16.mxu0 0
        %1967 = vmatpush1.bf16.msra.mxu0 0
        %1968 = vmatprep.subr.bf16.mxu0 0
        %1969 = vmatpush1.bf16.msra.mxu0 0
        %1970 = vmatprep.subr.bf16.mxu0 0
        %1971 = vmatpush1.bf16.msra.mxu0 0
        %1972 = vmatprep.mubr.bf16.mxu0 0
        %1973 = vmatmul.mubr.bf16.gmra.mrb[0].mxu0 %v1195
        %v1974 = vpop.f32.mrb[0].mxu0
        %v1975 = vadd.f32 %v1890, %v1974
        %v1976 = vpop.f32.mrb[0].mxu0
        %v1977 = vpop.f32.mrb[0].mxu0
        %v1978 = vpop.f32.mrb[0].mxu0
        %1979 = vdwg.mxu0
        %v1981 = vlaneseq
        %v1982 = vshrl.u32 %v1981, 7
        %v1983 = vsub.s32 0, %v1982
        %v1984 = vrot.slane %v1390, %v1983
        %v2002 = vunpack.c.l.b16 %v1228
        %v2003 = vunpack.c.l.b16 %v1229
        %v2004 = vunpack.c.l.b16 %v1230
        %v2005 = vunpack.c.l.b16 %v1231
        %v2006 = vunpack.c.l.b16 %v1232
        %v2007 = vunpack.c.l.b16 %v1233
        %v2008 = vunpack.c.l.b16 %v1234
        %v2009 = vunpack.c.l.b16 %v1235
        %v2010 = vunpack.c.l.b16 %v1236
        %v2011 = vunpack.c.l.b16 %v1237
        %v2012 = vunpack.c.l.b16 %v1238
        %v2013 = vunpack.c.l.b16 %v1239
        %v2014 = vunpack.c.l.b16 %v1240
        %v2015 = vunpack.c.l.b16 %v1241
        %v2016 = vunpack.c.l.b16 %v1242
        %v2017 = vunpack.c.l.b16 %v1243
        %v2018 = vpack.c.b16 %v2003, %v2002
        %v2019 = vpack.c.b16 %v2005, %v2004
        %v2020 = vpack.c.b16 %v2007, %v2006
        %v2021 = vpack.c.b16 %v2009, %v2008
        %v2022 = vpack.c.b16 %v2011, %v2010
        %v2023 = vpack.c.b16 %v2013, %v2012
        %v2024 = vpack.c.b16 %v2015, %v2014
        %v2025 = vpack.c.b16 %v2017, %v2016
        %2034 = vmatprep.subr.bf16.mxu0 0
        %2035 = vmatpush1.bf16.msra.mxu0 %v2018
        %2036 = vmatprep.subr.bf16.mxu0 0
        %2037 = vmatpush1.bf16.msra.mxu0 %v2019
        %2038 = vmatprep.subr.bf16.mxu0 0
        %2039 = vmatpush1.bf16.msra.mxu0 %v2020
        %2040 = vmatprep.subr.bf16.mxu0 0
        %2041 = vmatpush1.bf16.msra.mxu0 %v2021
        %2042 = vmatprep.subr.bf16.mxu0 0
        %2043 = vmatpush1.bf16.msra.mxu0 %v2022
        %2044 = vmatprep.subr.bf16.mxu0 0
        %2045 = vmatpush1.bf16.msra.mxu0 %v2023
        %2046 = vmatprep.subr.bf16.mxu0 0
        %2047 = vmatpush1.bf16.msra.mxu0 %v2024
        %2048 = vmatprep.subr.bf16.mxu0 0
        %2049 = vmatpush1.bf16.msra.mxu0 %v2025
        %2050 = vmatprep.subr.bf16.mxu0 0
        %2051 = vmatpush1.bf16.msra.mxu0 0
        %2052 = vmatprep.subr.bf16.mxu0 0
        %2053 = vmatpush1.bf16.msra.mxu0 0
        %2054 = vmatprep.subr.bf16.mxu0 0
        %2055 = vmatpush1.bf16.msra.mxu0 0
        %2056 = vmatprep.subr.bf16.mxu0 0
        %2057 = vmatpush1.bf16.msra.mxu0 0
        %2058 = vmatprep.subr.bf16.mxu0 0
        %2059 = vmatpush1.bf16.msra.mxu0 0
        %2060 = vmatprep.subr.bf16.mxu0 0
        %2061 = vmatpush1.bf16.msra.mxu0 0
        %2062 = vmatprep.subr.bf16.mxu0 0
        %2063 = vmatpush1.bf16.msra.mxu0 0
        %2064 = vmatprep.subr.bf16.mxu0 0
        %2065 = vmatpush1.bf16.msra.mxu0 0
        %2066 = vmatprep.mubr.bf16.mxu0 0
        %2067 = vmatmul.mubr.bf16.gmra.mrb[0].mxu0 %v1195
        %v2068 = vpop.f32.mrb[0].mxu0
        %v2069 = vadd.f32 %v1984, %v2068
        %v2070 = vpop.f32.mrb[0].mxu0
        %v2071 = vpop.f32.mrb[0].mxu0
        %v2072 = vpop.f32.mrb[0].mxu0
        %2073 = vdwg.mxu0
        %v2075 = vlaneseq
        %v2076 = vshrl.u32 %v2075, 7
        %v2077 = vsub.s32 0, %v2076
        %v2078 = vrot.slane %v1394, %v2077
        %v2096 = vunpack.c.l.b16 %v1292
        %v2097 = vunpack.c.l.b16 %v1293
        %v2098 = vunpack.c.l.b16 %v1294
        %v2099 = vunpack.c.l.b16 %v1295
        %v2100 = vunpack.c.l.b16 %v1296
        %v2101 = vunpack.c.l.b16 %v1297
        %v2102 = vunpack.c.l.b16 %v1298
        %v2103 = vunpack.c.l.b16 %v1299
        %v2104 = vunpack.c.l.b16 %v1300
        %v2105 = vunpack.c.l.b16 %v1301
        %v2106 = vunpack.c.l.b16 %v1302
        %v2107 = vunpack.c.l.b16 %v1303
        %v2108 = vunpack.c.l.b16 %v1304
        %v2109 = vunpack.c.l.b16 %v1305
        %v2110 = vunpack.c.l.b16 %v1306
        %v2111 = vunpack.c.l.b16 %v1307
        %v2112 = vpack.c.b16 %v2097, %v2096
        %v2113 = vpack.c.b16 %v2099, %v2098
        %v2114 = vpack.c.b16 %v2101, %v2100
        %v2115 = vpack.c.b16 %v2103, %v2102
        %v2116 = vpack.c.b16 %v2105, %v2104
        %v2117 = vpack.c.b16 %v2107, %v2106
        %v2118 = vpack.c.b16 %v2109, %v2108
        %v2119 = vpack.c.b16 %v2111, %v2110
        %2128 = vmatprep.subr.bf16.mxu0 0
        %2129 = vmatpush1.bf16.msra.mxu0 %v2112
        %2130 = vmatprep.subr.bf16.mxu0 0
        %2131 = vmatpush1.bf16.msra.mxu0 %v2113
        %2132 = vmatprep.subr.bf16.mxu0 0
        %2133 = vmatpush1.bf16.msra.mxu0 %v2114
        %2134 = vmatprep.subr.bf16.mxu0 0
        %2135 = vmatpush1.bf16.msra.mxu0 %v2115
        %2136 = vmatprep.subr.bf16.mxu0 0
        %2137 = vmatpush1.bf16.msra.mxu0 %v2116
        %2138 = vmatprep.subr.bf16.mxu0 0
        %2139 = vmatpush1.bf16.msra.mxu0 %v2117
        %2140 = vmatprep.subr.bf16.mxu0 0
        %2141 = vmatpush1.bf16.msra.mxu0 %v2118
        %2142 = vmatprep.subr.bf16.mxu0 0
        %2143 = vmatpush1.bf16.msra.mxu0 %v2119
        %2144 = vmatprep.subr.bf16.mxu0 0
        %2145 = vmatpush1.bf16.msra.mxu0 0
        %2146 = vmatprep.subr.bf16.mxu0 0
        %2147 = vmatpush1.bf16.msra.mxu0 0
        %2148 = vmatprep.subr.bf16.mxu0 0
        %2149 = vmatpush1.bf16.msra.mxu0 0
        %2150 = vmatprep.subr.bf16.mxu0 0
        %2151 = vmatpush1.bf16.msra.mxu0 0
        %2152 = vmatprep.subr.bf16.mxu0 0
        %2153 = vmatpush1.bf16.msra.mxu0 0
        %2154 = vmatprep.subr.bf16.mxu0 0
        %2155 = vmatpush1.bf16.msra.mxu0 0
        %2156 = vmatprep.subr.bf16.mxu0 0
        %2157 = vmatpush1.bf16.msra.mxu0 0
        %2158 = vmatprep.subr.bf16.mxu0 0
        %2159 = vmatpush1.bf16.msra.mxu0 0
        %2160 = vmatprep.mubr.bf16.mxu0 0
        %2161 = vmatmul.mubr.bf16.gmra.mrb[0].mxu0 %v1195
        %v2162 = vpop.f32.mrb[0].mxu0
        %v2163 = vadd.f32 %v2078, %v2162
        %v2164 = vpop.f32.mrb[0].mxu0
        %v2165 = vpop.f32.mrb[0].mxu0
        %v2166 = vpop.f32.mrb[0].mxu0
        %2167 = vdwg.mxu0
        %v2169 = vlaneseq
        %v2170 = vshrl.u32 %v2169, 7
        %v2171 = vsub.s32 0, %v2170
        %v2172 = vrot.slane %v1398, %v2171
        %v2190 = vunpack.c.l.b16 %v1356
        %v2191 = vunpack.c.l.b16 %v1357
        %v2192 = vunpack.c.l.b16 %v1358
        %v2193 = vunpack.c.l.b16 %v1359
        %v2194 = vunpack.c.l.b16 %v1360
        %v2195 = vunpack.c.l.b16 %v1361
        %v2196 = vunpack.c.l.b16 %v1362
        %v2197 = vunpack.c.l.b16 %v1363
        %v2198 = vunpack.c.l.b16 %v1364
        %v2199 = vunpack.c.l.b16 %v1365
        %v2200 = vunpack.c.l.b16 %v1366
        %v2201 = vunpack.c.l.b16 %v1367
        %v2202 = vunpack.c.l.b16 %v1368
        %v2203 = vunpack.c.l.b16 %v1369
        %v2204 = vunpack.c.l.b16 %v1370
        %v2205 = vunpack.c.l.b16 %v1371
        %v2206 = vpack.c.b16 %v2191, %v2190
        %v2207 = vpack.c.b16 %v2193, %v2192
        %v2208 = vpack.c.b16 %v2195, %v2194
        %v2209 = vpack.c.b16 %v2197, %v2196
        %v2210 = vpack.c.b16 %v2199, %v2198
        %v2211 = vpack.c.b16 %v2201, %v2200
        %v2212 = vpack.c.b16 %v2203, %v2202
        %v2213 = vpack.c.b16 %v2205, %v2204
        %2222 = vmatprep.subr.bf16.mxu0 0
        %2223 = vmatpush1.bf16.msra.mxu0 %v2206
        %2224 = vmatprep.subr.bf16.mxu0 0
        %2225 = vmatpush1.bf16.msra.mxu0 %v2207
        %2226 = vmatprep.subr.bf16.mxu0 0
        %2227 = vmatpush1.bf16.msra.mxu0 %v2208
        %2228 = vmatprep.subr.bf16.mxu0 0
        %2229 = vmatpush1.bf16.msra.mxu0 %v2209
        %2230 = vmatprep.subr.bf16.mxu0 0
        %2231 = vmatpush1.bf16.msra.mxu0 %v2210
        %2232 = vmatprep.subr.bf16.mxu0 0
        %2233 = vmatpush1.bf16.msra.mxu0 %v2211
        %2234 = vmatprep.subr.bf16.mxu0 0
        %2235 = vmatpush1.bf16.msra.mxu0 %v2212
        %2236 = vmatprep.subr.bf16.mxu0 0
        %2237 = vmatpush1.bf16.msra.mxu0 %v2213
        %2238 = vmatprep.subr.bf16.mxu0 0
        %2239 = vmatpush1.bf16.msra.mxu0 0
        %2240 = vmatprep.subr.bf16.mxu0 0
        %2241 = vmatpush1.bf16.msra.mxu0 0
        %2242 = vmatprep.subr.bf16.mxu0 0
        %2243 = vmatpush1.bf16.msra.mxu0 0
        %2244 = vmatprep.subr.bf16.mxu0 0
        %2245 = vmatpush1.bf16.msra.mxu0 0
        %2246 = vmatprep.subr.bf16.mxu0 0
        %2247 = vmatpush1.bf16.msra.mxu0 0
        %2248 = vmatprep.subr.bf16.mxu0 0
        %2249 = vmatpush1.bf16.msra.mxu0 0
        %2250 = vmatprep.subr.bf16.mxu0 0
        %2251 = vmatpush1.bf16.msra.mxu0 0
        %2252 = vmatprep.subr.bf16.mxu0 0
        %2253 = vmatpush1.bf16.msra.mxu0 0
        %2254 = vmatprep.mubr.bf16.mxu0 0
        %2255 = vmatmul.mubr.bf16.gmra.mrb[0].mxu0 %v1195
        %v2256 = vpop.f32.mrb[0].mxu0
        %v2257 = vadd.f32 %v2172, %v2256
        %v2258 = vpop.f32.mrb[0].mxu0
        %v2259 = vpop.f32.mrb[0].mxu0
        %v2260 = vpop.f32.mrb[0].mxu0
        %2261 = vdwg.mxu0
        %v2263 = vlaneseq
        %v2264 = vshrl.u32 %v2263, 7
        %v2265 = vsub.s32 0, %v2264
        %v2266 = vrot.slane %v1391, %v2265
        %v2284 = vunpack.c.l.b16 %v1244
        %v2285 = vunpack.c.l.b16 %v1245
        %v2286 = vunpack.c.l.b16 %v1246
        %v2287 = vunpack.c.l.b16 %v1247
        %v2288 = vunpack.c.l.b16 %v1248
        %v2289 = vunpack.c.l.b16 %v1249
        %v2290 = vunpack.c.l.b16 %v1250
        %v2291 = vunpack.c.l.b16 %v1251
        %v2292 = vunpack.c.l.b16 %v1252
        %v2293 = vunpack.c.l.b16 %v1253
        %v2294 = vunpack.c.l.b16 %v1254
        %v2295 = vunpack.c.l.b16 %v1255
        %v2296 = vunpack.c.l.b16 %v1256
        %v2297 = vunpack.c.l.b16 %v1257
        %v2298 = vunpack.c.l.b16 %v1258
        %v2299 = vunpack.c.l.b16 %v1259
        %v2300 = vpack.c.b16 %v2285, %v2284
        %v2301 = vpack.c.b16 %v2287, %v2286
        %v2302 = vpack.c.b16 %v2289, %v2288
        %v2303 = vpack.c.b16 %v2291, %v2290
        %v2304 = vpack.c.b16 %v2293, %v2292
        %v2305 = vpack.c.b16 %v2295, %v2294
        %v2306 = vpack.c.b16 %v2297, %v2296
        %v2307 = vpack.c.b16 %v2299, %v2298
        %2316 = vmatprep.subr.bf16.mxu0 0
        %2317 = vmatpush1.bf16.msra.mxu0 %v2300
        %2318 = vmatprep.subr.bf16.mxu0 0
        %2319 = vmatpush1.bf16.msra.mxu0 %v2301
        %2320 = vmatprep.subr.bf16.mxu0 0
        %2321 = vmatpush1.bf16.msra.mxu0 %v2302
        %2322 = vmatprep.subr.bf16.mxu0 0
        %2323 = vmatpush1.bf16.msra.mxu0 %v2303
        %2324 = vmatprep.subr.bf16.mxu0 0
        %2325 = vmatpush1.bf16.msra.mxu0 %v2304
        %2326 = vmatprep.subr.bf16.mxu0 0
        %2327 = vmatpush1.bf16.msra.mxu0 %v2305
        %2328 = vmatprep.subr.bf16.mxu0 0
        %2329 = vmatpush1.bf16.msra.mxu0 %v2306
        %2330 = vmatprep.subr.bf16.mxu0 0
        %2331 = vmatpush1.bf16.msra.mxu0 %v2307
        %2332 = vmatprep.subr.bf16.mxu0 0
        %2333 = vmatpush1.bf16.msra.mxu0 0
        %2334 = vmatprep.subr.bf16.mxu0 0
        %2335 = vmatpush1.bf16.msra.mxu0 0
        %2336 = vmatprep.subr.bf16.mxu0 0
        %2337 = vmatpush1.bf16.msra.mxu0 0
        %2338 = vmatprep.subr.bf16.mxu0 0
        %2339 = vmatpush1.bf16.msra.mxu0 0
        %2340 = vmatprep.subr.bf16.mxu0 0
        %2341 = vmatpush1.bf16.msra.mxu0 0
        %2342 = vmatprep.subr.bf16.mxu0 0
        %2343 = vmatpush1.bf16.msra.mxu0 0
        %2344 = vmatprep.subr.bf16.mxu0 0
        %2345 = vmatpush1.bf16.msra.mxu0 0
        %2346 = vmatprep.subr.bf16.mxu0 0
        %2347 = vmatpush1.bf16.msra.mxu0 0
        %2348 = vmatprep.mubr.bf16.mxu0 0
        %2349 = vmatmul.mubr.bf16.gmra.mrb[0].mxu0 %v1195
        %v2350 = vpop.f32.mrb[0].mxu0
        %v2351 = vadd.f32 %v2266, %v2350
        %v2352 = vpop.f32.mrb[0].mxu0
        %v2353 = vpop.f32.mrb[0].mxu0
        %v2354 = vpop.f32.mrb[0].mxu0
        %2355 = vdwg.mxu0
        %v2357 = vlaneseq
        %v2358 = vshrl.u32 %v2357, 7
        %v2359 = vsub.s32 0, %v2358
        %v2360 = vrot.slane %v1395, %v2359
        %v2378 = vunpack.c.l.b16 %v1308
        %v2379 = vunpack.c.l.b16 %v1309
        %v2380 = vunpack.c.l.b16 %v1310
        %v2381 = vunpack.c.l.b16 %v1311
        %v2382 = vunpack.c.l.b16 %v1312
        %v2383 = vunpack.c.l.b16 %v1313
        %v2384 = vunpack.c.l.b16 %v1314
        %v2385 = vunpack.c.l.b16 %v1315
        %v2386 = vunpack.c.l.b16 %v1316
        %v2387 = vunpack.c.l.b16 %v1317
        %v2388 = vunpack.c.l.b16 %v1318
        %v2389 = vunpack.c.l.b16 %v1319
        %v2390 = vunpack.c.l.b16 %v1320
        %v2391 = vunpack.c.l.b16 %v1321
        %v2392 = vunpack.c.l.b16 %v1322
        %v2393 = vunpack.c.l.b16 %v1323
        %v2394 = vpack.c.b16 %v2379, %v2378
        %v2395 = vpack.c.b16 %v2381, %v2380
        %v2396 = vpack.c.b16 %v2383, %v2382
        %v2397 = vpack.c.b16 %v2385, %v2384
        %v2398 = vpack.c.b16 %v2387, %v2386
        %v2399 = vpack.c.b16 %v2389, %v2388
        %v2400 = vpack.c.b16 %v2391, %v2390
        %v2401 = vpack.c.b16 %v2393, %v2392
        %2410 = vmatprep.subr.bf16.mxu0 0
        %2411 = vmatpush1.bf16.msra.mxu0 %v2394
        %2412 = vmatprep.subr.bf16.mxu0 0
        %2413 = vmatpush1.bf16.msra.mxu0 %v2395
        %2414 = vmatprep.subr.bf16.mxu0 0
        %2415 = vmatpush1.bf16.msra.mxu0 %v2396
        %2416 = vmatprep.subr.bf16.mxu0 0
        %2417 = vmatpush1.bf16.msra.mxu0 %v2397
        %2418 = vmatprep.subr.bf16.mxu0 0
        %2419 = vmatpush1.bf16.msra.mxu0 %v2398
        %2420 = vmatprep.subr.bf16.mxu0 0
        %2421 = vmatpush1.bf16.msra.mxu0 %v2399
        %2422 = vmatprep.subr.bf16.mxu0 0
        %2423 = vmatpush1.bf16.msra.mxu0 %v2400
        %2424 = vmatprep.subr.bf16.mxu0 0
        %2425 = vmatpush1.bf16.msra.mxu0 %v2401
        %2426 = vmatprep.subr.bf16.mxu0 0
        %2427 = vmatpush1.bf16.msra.mxu0 0
        %2428 = vmatprep.subr.bf16.mxu0 0
        %2429 = vmatpush1.bf16.msra.mxu0 0
        %2430 = vmatprep.subr.bf16.mxu0 0
        %2431 = vmatpush1.bf16.msra.mxu0 0
        %2432 = vmatprep.subr.bf16.mxu0 0
        %2433 = vmatpush1.bf16.msra.mxu0 0
        %2434 = vmatprep.subr.bf16.mxu0 0
        %2435 = vmatpush1.bf16.msra.mxu0 0
        %2436 = vmatprep.subr.bf16.mxu0 0
        %2437 = vmatpush1.bf16.msra.mxu0 0
        %2438 = vmatprep.subr.bf16.mxu0 0
        %2439 = vmatpush1.bf16.msra.mxu0 0
        %2440 = vmatprep.subr.bf16.mxu0 0
        %2441 = vmatpush1.bf16.msra.mxu0 0
        %2442 = vmatprep.mubr.bf16.mxu0 0
        %2443 = vmatmul.mubr.bf16.gmra.mrb[0].mxu0 %v1195
        %v2444 = vpop.f32.mrb[0].mxu0
        %v2445 = vadd.f32 %v2360, %v2444
        %v2446 = vpop.f32.mrb[0].mxu0
        %v2447 = vpop.f32.mrb[0].mxu0
        %v2448 = vpop.f32.mrb[0].mxu0
        %2449 = vdwg.mxu0
        %v2451 = vlaneseq
        %v2452 = vshrl.u32 %v2451, 7
        %v2453 = vsub.s32 0, %v2452
        %v2454 = vrot.slane %v1399, %v2453
        %v2472 = vunpack.c.l.b16 %v1372
        %v2473 = vunpack.c.l.b16 %v1373
        %v2474 = vunpack.c.l.b16 %v1374
        %v2475 = vunpack.c.l.b16 %v1375
        %v2476 = vunpack.c.l.b16 %v1376
        %v2477 = vunpack.c.l.b16 %v1377
        %v2478 = vunpack.c.l.b16 %v1378
        %v2479 = vunpack.c.l.b16 %v1379
        %v2480 = vunpack.c.l.b16 %v1380
        %v2481 = vunpack.c.l.b16 %v1381
        %v2482 = vunpack.c.l.b16 %v1382
        %v2483 = vunpack.c.l.b16 %v1383
        %v2484 = vunpack.c.l.b16 %v1384
        %v2485 = vunpack.c.l.b16 %v1385
        %v2486 = vunpack.c.l.b16 %v1386
        %v2487 = vunpack.c.l.b16 %v1387
        %v2488 = vpack.c.b16 %v2473, %v2472
        %v2489 = vpack.c.b16 %v2475, %v2474
        %v2490 = vpack.c.b16 %v2477, %v2476
        %v2491 = vpack.c.b16 %v2479, %v2478
        %v2492 = vpack.c.b16 %v2481, %v2480
        %v2493 = vpack.c.b16 %v2483, %v2482
        %v2494 = vpack.c.b16 %v2485, %v2484
        %v2495 = vpack.c.b16 %v2487, %v2486
        %2504 = vmatprep.subr.bf16.mxu0 0
        %2505 = vmatpush1.bf16.msra.mxu0 %v2488
        %2506 = vmatprep.subr.bf16.mxu0 0
        %2507 = vmatpush1.bf16.msra.mxu0 %v2489
        %2508 = vmatprep.subr.bf16.mxu0 0
        %2509 = vmatpush1.bf16.msra.mxu0 %v2490
        %2510 = vmatprep.subr.bf16.mxu0 0
        %2511 = vmatpush1.bf16.msra.mxu0 %v2491
        %2512 = vmatprep.subr.bf16.mxu0 0
        %2513 = vmatpush1.bf16.msra.mxu0 %v2492
        %2514 = vmatprep.subr.bf16.mxu0 0
        %2515 = vmatpush1.bf16.msra.mxu0 %v2493
        %2516 = vmatprep.subr.bf16.mxu0 0
        %2517 = vmatpush1.bf16.msra.mxu0 %v2494
        %2518 = vmatprep.subr.bf16.mxu0 0
        %2519 = vmatpush1.bf16.msra.mxu0 %v2495
        %2520 = vmatprep.subr.bf16.mxu0 0
        %2521 = vmatpush1.bf16.msra.mxu0 0
        %2522 = vmatprep.subr.bf16.mxu0 0
        %2523 = vmatpush1.bf16.msra.mxu0 0
        %2524 = vmatprep.subr.bf16.mxu0 0
        %2525 = vmatpush1.bf16.msra.mxu0 0
        %2526 = vmatprep.subr.bf16.mxu0 0
        %2527 = vmatpush1.bf16.msra.mxu0 0
        %2528 = vmatprep.subr.bf16.mxu0 0
        %2529 = vmatpush1.bf16.msra.mxu0 0
        %2530 = vmatprep.subr.bf16.mxu0 0
        %2531 = vmatpush1.bf16.msra.mxu0 0
        %2532 = vmatprep.subr.bf16.mxu0 0
        %2533 = vmatpush1.bf16.msra.mxu0 0
        %2534 = vmatprep.subr.bf16.mxu0 0
        %2535 = vmatpush1.bf16.msra.mxu0 0
        %2536 = vmatprep.mubr.bf16.mxu0 0
        %2537 = vmatmul.mubr.bf16.gmra.mrb[0].mxu0 %v1195
        %v2538 = vpop.f32.mrb[0].mxu0
        %v2539 = vadd.f32 %v2454, %v2538
        %v2540 = vpop.f32.mrb[0].mxu0
        %v2541 = vpop.f32.mrb[0].mxu0
        %v2542 = vpop.f32.mrb[0].mxu0
        %2543 = vdwg.mxu0
        %v2544 = vpack.c.bf16 %v1505, %v1505
        %v2545 = vpack.c.bf16 %v1787, %v1787
        %v2546 = vpack.c.bf16 %v2069, %v2069
        %v2547 = vpack.c.bf16 %v2351, %v2351
        %v2548 = vpack.c.bf16 %v1599, %v1599
        %v2549 = vpack.c.bf16 %v1881, %v1881
        %v2550 = vpack.c.bf16 %v2163, %v2163
        %v2551 = vpack.c.bf16 %v2445, %v2445
        %v2552 = vpack.c.bf16 %v1693, %v1693
        %v2553 = vpack.c.bf16 %v1975, %v1975
        %v2554 = vpack.c.bf16 %v2257, %v2257
        %v2555 = vpack.c.bf16 %v2539, %v2539
        %v2557 = vlaneseq
        %v2558 = vshrl.u32 %v2557, 7
        %v2559 = vsub.s32 0, %v2558
        %v2560 = vrot.slane %v1194, %v2559
        %vm2562 = vcmask 261120
        %v2564 = vsel %vm2562, %v2544, 0
        %v2567 = vsel %vm2562, %v2548, 0
        %2569 = vmatprep.subr.bf16.mxu0 0
        %2570 = vmatpush1.bf16.xpose.msra.mxu0 %v2567
        %2571 = vmatprep.subr.bf16.mxu0 0
        %2572 = vmatpush1.bf16.xpose.msra.mxu0 0
        %2573 = vmatprep.subr.bf16.mxu0 0
        %2574 = vmatpush1.bf16.xpose.msra.mxu0 0
        %2575 = vmatprep.subr.bf16.mxu0 0
        %2576 = vmatpush1.bf16.xpose.msra.mxu0 0
        %2577 = vmatprep.subr.bf16.mxu0 0
        %2578 = vmatpush1.bf16.xpose.msra.mxu0 0
        %2579 = vmatprep.subr.bf16.mxu0 0
        %2580 = vmatpush1.bf16.xpose.msra.mxu0 0
        %2581 = vmatprep.subr.bf16.mxu0 0
        %2582 = vmatpush1.bf16.xpose.msra.mxu0 0
        %2583 = vmatprep.subr.bf16.mxu0 0
        %2584 = vmatpush1.bf16.xpose.msra.mxu0 0
        %2585 = vmatprep.subr.bf16.mxu0 0
        %2586 = vmatpush1.bf16.xpose.msra.mxu0 0
        %2587 = vmatprep.subr.bf16.mxu0 0
        %2588 = vmatpush1.bf16.xpose.msra.mxu0 0
        %2589 = vmatprep.subr.bf16.mxu0 0
        %2590 = vmatpush1.bf16.xpose.msra.mxu0 0
        %2591 = vmatprep.subr.bf16.mxu0 0
        %2592 = vmatpush1.bf16.xpose.msra.mxu0 0
        %2593 = vmatprep.subr.bf16.mxu0 0
        %2594 = vmatpush1.bf16.xpose.msra.mxu0 0
        %2595 = vmatprep.subr.bf16.mxu0 0
        %2596 = vmatpush1.bf16.xpose.msra.mxu0 0
        %2597 = vmatprep.subr.bf16.mxu0 0
        %2598 = vmatpush1.bf16.xpose.msra.mxu0 0
        %2599 = vmatprep.subr.bf16.mxu0 0
        %2600 = vmatpush1.bf16.xpose.msra.mxu0 0
        %2601 = vmatprep.mubr.bf16.mxu0 0
        %2602 = vmatmul.mubr.bf16.gmra.mrb[0].mxu0 %v2564
        %v2603 = vpop.f32.mrb[0].mxu0
        %v2604 = vadd.f32 %v2560, %v2603
        %v2605 = vpop.f32.mrb[0].mxu0
        %v2606 = vpop.f32.mrb[0].mxu0
        %v2607 = vpop.f32.mrb[0].mxu0
        %2608 = vdwg.mxu0
        %v2610 = vsel %vm2562, %v2545, 0
        %v2613 = vsel %vm2562, %v2549, 0
        %2615 = vmatprep.subr.bf16.mxu0 0
        %2616 = vmatpush1.bf16.xpose.msra.mxu0 %v2613
        %2617 = vmatprep.subr.bf16.mxu0 0
        %2618 = vmatpush1.bf16.xpose.msra.mxu0 0
        %2619 = vmatprep.subr.bf16.mxu0 0
        %2620 = vmatpush1.bf16.xpose.msra.mxu0 0
        %2621 = vmatprep.subr.bf16.mxu0 0
        %2622 = vmatpush1.bf16.xpose.msra.mxu0 0
        %2623 = vmatprep.subr.bf16.mxu0 0
        %2624 = vmatpush1.bf16.xpose.msra.mxu0 0
        %2625 = vmatprep.subr.bf16.mxu0 0
        %2626 = vmatpush1.bf16.xpose.msra.mxu0 0
        %2627 = vmatprep.subr.bf16.mxu0 0
        %2628 = vmatpush1.bf16.xpose.msra.mxu0 0
        %2629 = vmatprep.subr.bf16.mxu0 0
        %2630 = vmatpush1.bf16.xpose.msra.mxu0 0
        %2631 = vmatprep.subr.bf16.mxu0 0
        %2632 = vmatpush1.bf16.xpose.msra.mxu0 0
        %2633 = vmatprep.subr.bf16.mxu0 0
        %2634 = vmatpush1.bf16.xpose.msra.mxu0 0
        %2635 = vmatprep.subr.bf16.mxu0 0
        %2636 = vmatpush1.bf16.xpose.msra.mxu0 0
        %2637 = vmatprep.subr.bf16.mxu0 0
        %2638 = vmatpush1.bf16.xpose.msra.mxu0 0
        %2639 = vmatprep.subr.bf16.mxu0 0
        %2640 = vmatpush1.bf16.xpose.msra.mxu0 0
        %2641 = vmatprep.subr.bf16.mxu0 0
        %2642 = vmatpush1.bf16.xpose.msra.mxu0 0
        %2643 = vmatprep.subr.bf16.mxu0 0
        %2644 = vmatpush1.bf16.xpose.msra.mxu0 0
        %2645 = vmatprep.subr.bf16.mxu0 0
        %2646 = vmatpush1.bf16.xpose.msra.mxu0 0
        %2647 = vmatprep.mubr.bf16.mxu0 0
        %2648 = vmatmul.mubr.bf16.gmra.mrb[0].mxu0 %v2610
        %v2649 = vpop.f32.mrb[0].mxu0
        %v2650 = vadd.f32 %v2560, %v2649
        %v2651 = vpop.f32.mrb[0].mxu0
        %v2652 = vpop.f32.mrb[0].mxu0
        %v2653 = vpop.f32.mrb[0].mxu0
        %2654 = vdwg.mxu0
        %v2656 = vsel %vm2562, %v2546, 0
        %v2659 = vsel %vm2562, %v2550, 0
        %2661 = vmatprep.subr.bf16.mxu0 0
        %2662 = vmatpush1.bf16.xpose.msra.mxu0 %v2659
        %2663 = vmatprep.subr.bf16.mxu0 0
        %2664 = vmatpush1.bf16.xpose.msra.mxu0 0
        %2665 = vmatprep.subr.bf16.mxu0 0
        %2666 = vmatpush1.bf16.xpose.msra.mxu0 0
        %2667 = vmatprep.subr.bf16.mxu0 0
        %2668 = vmatpush1.bf16.xpose.msra.mxu0 0
        %2669 = vmatprep.subr.bf16.mxu0 0
        %2670 = vmatpush1.bf16.xpose.msra.mxu0 0
        %2671 = vmatprep.subr.bf16.mxu0 0
        %2672 = vmatpush1.bf16.xpose.msra.mxu0 0
        %2673 = vmatprep.subr.bf16.mxu0 0
        %2674 = vmatpush1.bf16.xpose.msra.mxu0 0
        %2675 = vmatprep.subr.bf16.mxu0 0
        %2676 = vmatpush1.bf16.xpose.msra.mxu0 0
        %2677 = vmatprep.subr.bf16.mxu0 0
        %2678 = vmatpush1.bf16.xpose.msra.mxu0 0
        %2679 = vmatprep.subr.bf16.mxu0 0
        %2680 = vmatpush1.bf16.xpose.msra.mxu0 0
        %2681 = vmatprep.subr.bf16.mxu0 0
        %2682 = vmatpush1.bf16.xpose.msra.mxu0 0
        %2683 = vmatprep.subr.bf16.mxu0 0
        %2684 = vmatpush1.bf16.xpose.msra.mxu0 0
        %2685 = vmatprep.subr.bf16.mxu0 0
        %2686 = vmatpush1.bf16.xpose.msra.mxu0 0
        %2687 = vmatprep.subr.bf16.mxu0 0
        %2688 = vmatpush1.bf16.xpose.msra.mxu0 0
        %2689 = vmatprep.subr.bf16.mxu0 0
        %2690 = vmatpush1.bf16.xpose.msra.mxu0 0
        %2691 = vmatprep.subr.bf16.mxu0 0
        %2692 = vmatpush1.bf16.xpose.msra.mxu0 0
        %2693 = vmatprep.mubr.bf16.mxu0 0
        %2694 = vmatmul.mubr.bf16.gmra.mrb[0].mxu0 %v2656
        %v2695 = vpop.f32.mrb[0].mxu0
        %v2696 = vadd.f32 %v2560, %v2695
        %v2697 = vpop.f32.mrb[0].mxu0
        %v2698 = vpop.f32.mrb[0].mxu0
        %v2699 = vpop.f32.mrb[0].mxu0
        %2700 = vdwg.mxu0
        %v2702 = vsel %vm2562, %v2547, 0
        %v2705 = vsel %vm2562, %v2551, 0
        %2707 = vmatprep.subr.bf16.mxu0 0
        %2708 = vmatpush1.bf16.xpose.msra.mxu0 %v2705
        %2709 = vmatprep.subr.bf16.mxu0 0
        %2710 = vmatpush1.bf16.xpose.msra.mxu0 0
        %2711 = vmatprep.subr.bf16.mxu0 0
        %2712 = vmatpush1.bf16.xpose.msra.mxu0 0
        %2713 = vmatprep.subr.bf16.mxu0 0
        %2714 = vmatpush1.bf16.xpose.msra.mxu0 0
        %2715 = vmatprep.subr.bf16.mxu0 0
        %2716 = vmatpush1.bf16.xpose.msra.mxu0 0
        %2717 = vmatprep.subr.bf16.mxu0 0
        %2718 = vmatpush1.bf16.xpose.msra.mxu0 0
        %2719 = vmatprep.subr.bf16.mxu0 0
        %2720 = vmatpush1.bf16.xpose.msra.mxu0 0
        %2721 = vmatprep.subr.bf16.mxu0 0
        %2722 = vmatpush1.bf16.xpose.msra.mxu0 0
        %2723 = vmatprep.subr.bf16.mxu0 0
        %2724 = vmatpush1.bf16.xpose.msra.mxu0 0
        %2725 = vmatprep.subr.bf16.mxu0 0
        %2726 = vmatpush1.bf16.xpose.msra.mxu0 0
        %2727 = vmatprep.subr.bf16.mxu0 0
        %2728 = vmatpush1.bf16.xpose.msra.mxu0 0
        %2729 = vmatprep.subr.bf16.mxu0 0
        %2730 = vmatpush1.bf16.xpose.msra.mxu0 0
        %2731 = vmatprep.subr.bf16.mxu0 0
        %2732 = vmatpush1.bf16.xpose.msra.mxu0 0
        %2733 = vmatprep.subr.bf16.mxu0 0
        %2734 = vmatpush1.bf16.xpose.msra.mxu0 0
        %2735 = vmatprep.subr.bf16.mxu0 0
        %2736 = vmatpush1.bf16.xpose.msra.mxu0 0
        %2737 = vmatprep.subr.bf16.mxu0 0
        %2738 = vmatpush1.bf16.xpose.msra.mxu0 0
        %2739 = vmatprep.mubr.bf16.mxu0 0
        %2740 = vmatmul.mubr.bf16.gmra.mrb[0].mxu0 %v2702
        %v2741 = vpop.f32.mrb[0].mxu0
        %v2742 = vadd.f32 %v2560, %v2741
        %v2743 = vpop.f32.mrb[0].mxu0
        %v2744 = vpop.f32.mrb[0].mxu0
        %v2745 = vpop.f32.mrb[0].mxu0
        %2746 = vdwg.mxu0
        %vm2747 = vcmask 64512
        %v2748 = vsel %vm2747, %v2604, -inf
        %2749 = vmax.xlane.f32.xlu0 %v2748
        %v2750 = vpop.xlane.xlu0 %2749
        %v2751 = vsel %vm2747, %v2650, -inf
        %2752 = vmax.xlane.f32.xlu0 %v2751
        %v2753 = vpop.xlane.xlu0 %2752
        %v2754 = vsel %vm2747, %v2696, -inf
        %2755 = vmax.xlane.f32.xlu0 %v2754
        %v2756 = vpop.xlane.xlu0 %2755
        %v2757 = vsel %vm2747, %v2742, -inf
        %2758 = vmax.xlane.f32.xlu0 %v2757
        %v2759 = vpop.xlane.xlu0 %2758
        %v2760 = vsub.f32 %v2604, %v2750
        %v2761 = vsub.f32 %v2650, %v2753
        %v2762 = vsub.f32 %v2696, %v2756
        %v2763 = vsub.f32 %v2742, %v2759
        %v2764 = vmul.f32 %v2760, 1.442695
        %v2765 = vpow.pop %v2764
        %v2766 = vmul.f32 %v2761, 1.442695
        %v2767 = vpow.pop %v2766
        %v2768 = vmul.f32 %v2762, 1.442695
        %v2769 = vpow.pop %v2768
        %v2770 = vmul.f32 %v2763, 1.442695
        %v2771 = vpow.pop %v2770
        %v2772 = vsel %vm2747, %v2765, 0.0
        %2773 = vadd.xlane.f32.xlu0 %v2772
        %v2774 = vpop.xlane.xlu0 %2773
        %v2775 = vsel %vm2747, %v2767, 0.0
        %2776 = vadd.xlane.f32.xlu0 %v2775
        %v2777 = vpop.xlane.xlu0 %2776
        %v2778 = vsel %vm2747, %v2769, 0.0
        %2779 = vadd.xlane.f32.xlu0 %v2778
        %v2780 = vpop.xlane.xlu0 %2779
        %v2781 = vsel %vm2747, %v2771, 0.0
        %2782 = vadd.xlane.f32.xlu0 %v2781
        %v2783 = vpop.xlane.xlu0 %2782
        %v2784 = vrcp.pop %v2774
        %v2785 = vrcp.pop %v2777
        %v2786 = vrcp.pop %v2780
        %v2787 = vrcp.pop %v2783
        %v2788 = vmul.f32 %v2765, %v2784
        %v2789 = vmul.f32 %v2767, %v2785
        %v2790 = vmul.f32 %v2769, %v2786
        %v2791 = vmul.f32 %v2771, %v2787
        %v2792 = vpack.c.bf16 %v2788, %v2788
        %v2793 = vpack.c.bf16 %v2789, %v2789
        %v2794 = vpack.c.bf16 %v2790, %v2790
        %v2795 = vpack.c.bf16 %v2791, %v2791
        %v2797 = vsel %vm2747, %v2792, 0
        %vm2799 = vcmask 1043456
        %v2801 = vsel %vm2799, %v2552, 0
        %2803 = vmatprep.subr.bf16.mxu0 0
        %2804 = vmatpush1.bf16.msra.mxu0 %v2801
        %2805 = vmatprep.subr.bf16.mxu0 0
        %2806 = vmatpush1.bf16.msra.mxu0 0
        %2807 = vmatprep.subr.bf16.mxu0 0
        %2808 = vmatpush1.bf16.msra.mxu0 0
        %2809 = vmatprep.subr.bf16.mxu0 0
        %2810 = vmatpush1.bf16.msra.mxu0 0
        %2811 = vmatprep.subr.bf16.mxu0 0
        %2812 = vmatpush1.bf16.msra.mxu0 0
        %2813 = vmatprep.subr.bf16.mxu0 0
        %2814 = vmatpush1.bf16.msra.mxu0 0
        %2815 = vmatprep.subr.bf16.mxu0 0
        %2816 = vmatpush1.bf16.msra.mxu0 0
        %2817 = vmatprep.subr.bf16.mxu0 0
        %2818 = vmatpush1.bf16.msra.mxu0 0
        %2819 = vmatprep.subr.bf16.mxu0 0
        %2820 = vmatpush1.bf16.msra.mxu0 0
        %2821 = vmatprep.subr.bf16.mxu0 0
        %2822 = vmatpush1.bf16.msra.mxu0 0
        %2823 = vmatprep.subr.bf16.mxu0 0
        %2824 = vmatpush1.bf16.msra.mxu0 0
        %2825 = vmatprep.subr.bf16.mxu0 0
        %2826 = vmatpush1.bf16.msra.mxu0 0
        %2827 = vmatprep.subr.bf16.mxu0 0
        %2828 = vmatpush1.bf16.msra.mxu0 0
        %2829 = vmatprep.subr.bf16.mxu0 0
        %2830 = vmatpush1.bf16.msra.mxu0 0
        %2831 = vmatprep.subr.bf16.mxu0 0
        %2832 = vmatpush1.bf16.msra.mxu0 0
        %2833 = vmatprep.subr.bf16.mxu0 0
        %2834 = vmatpush1.bf16.msra.mxu0 0
        %2835 = vmatprep.mubr.bf16.mxu0 0
        %2836 = vmatmul.mubr.bf16.gmra.mrb[0].mxu0 %v2797
        %v2837 = vpop.f32.mrb[0].mxu0
        %v2838 = vadd.f32 0.0, %v2837
        %v2839 = vpop.f32.mrb[0].mxu0
        %v2840 = vpop.f32.mrb[0].mxu0
        %v2841 = vpop.f32.mrb[0].mxu0
        %2842 = vdwg.mxu0
        %v2844 = vsel %vm2747, %v2793, 0
        %v2847 = vsel %vm2799, %v2553, 0
        %2849 = vmatprep.subr.bf16.mxu0 0
        %2850 = vmatpush1.bf16.msra.mxu0 %v2847
        %2851 = vmatprep.subr.bf16.mxu0 0
        %2852 = vmatpush1.bf16.msra.mxu0 0
        %2853 = vmatprep.subr.bf16.mxu0 0
        %2854 = vmatpush1.bf16.msra.mxu0 0
        %2855 = vmatprep.subr.bf16.mxu0 0
        %2856 = vmatpush1.bf16.msra.mxu0 0
        %2857 = vmatprep.subr.bf16.mxu0 0
        %2858 = vmatpush1.bf16.msra.mxu0 0
        %2859 = vmatprep.subr.bf16.mxu0 0
        %2860 = vmatpush1.bf16.msra.mxu0 0
        %2861 = vmatprep.subr.bf16.mxu0 0
        %2862 = vmatpush1.bf16.msra.mxu0 0
        %2863 = vmatprep.subr.bf16.mxu0 0
        %2864 = vmatpush1.bf16.msra.mxu0 0
        %2865 = vmatprep.subr.bf16.mxu0 0
        %2866 = vmatpush1.bf16.msra.mxu0 0
        %2867 = vmatprep.subr.bf16.mxu0 0
        %2868 = vmatpush1.bf16.msra.mxu0 0
        %2869 = vmatprep.subr.bf16.mxu0 0
        %2870 = vmatpush1.bf16.msra.mxu0 0
        %2871 = vmatprep.subr.bf16.mxu0 0
        %2872 = vmatpush1.bf16.msra.mxu0 0
        %2873 = vmatprep.subr.bf16.mxu0 0
        %2874 = vmatpush1.bf16.msra.mxu0 0
        %2875 = vmatprep.subr.bf16.mxu0 0
        %2876 = vmatpush1.bf16.msra.mxu0 0
        %2877 = vmatprep.subr.bf16.mxu0 0
        %2878 = vmatpush1.bf16.msra.mxu0 0
        %2879 = vmatprep.subr.bf16.mxu0 0
        %2880 = vmatpush1.bf16.msra.mxu0 0
        %2881 = vmatprep.mubr.bf16.mxu0 0
        %2882 = vmatmul.mubr.bf16.gmra.mrb[0].mxu0 %v2844
        %v2883 = vpop.f32.mrb[0].mxu0
        %v2884 = vadd.f32 0.0, %v2883
        %v2885 = vpop.f32.mrb[0].mxu0
        %v2886 = vpop.f32.mrb[0].mxu0
        %v2887 = vpop.f32.mrb[0].mxu0
        %2888 = vdwg.mxu0
        %v2890 = vsel %vm2747, %v2794, 0
        %v2893 = vsel %vm2799, %v2554, 0
        %2895 = vmatprep.subr.bf16.mxu0 0
        %2896 = vmatpush1.bf16.msra.mxu0 %v2893
        %2897 = vmatprep.subr.bf16.mxu0 0
        %2898 = vmatpush1.bf16.msra.mxu0 0
        %2899 = vmatprep.subr.bf16.mxu0 0
        %2900 = vmatpush1.bf16.msra.mxu0 0
        %2901 = vmatprep.subr.bf16.mxu0 0
        %2902 = vmatpush1.bf16.msra.mxu0 0
        %2903 = vmatprep.subr.bf16.mxu0 0
        %2904 = vmatpush1.bf16.msra.mxu0 0
        %2905 = vmatprep.subr.bf16.mxu0 0
        %2906 = vmatpush1.bf16.msra.mxu0 0
        %2907 = vmatprep.subr.bf16.mxu0 0
        %2908 = vmatpush1.bf16.msra.mxu0 0
        %2909 = vmatprep.subr.bf16.mxu0 0
        %2910 = vmatpush1.bf16.msra.mxu0 0
        %2911 = vmatprep.subr.bf16.mxu0 0
        %2912 = vmatpush1.bf16.msra.mxu0 0
        %2913 = vmatprep.subr.bf16.mxu0 0
        %2914 = vmatpush1.bf16.msra.mxu0 0
        %2915 = vmatprep.subr.bf16.mxu0 0
        %2916 = vmatpush1.bf16.msra.mxu0 0
        %2917 = vmatprep.subr.bf16.mxu0 0
        %2918 = vmatpush1.bf16.msra.mxu0 0
        %2919 = vmatprep.subr.bf16.mxu0 0
        %2920 = vmatpush1.bf16.msra.mxu0 0
        %2921 = vmatprep.subr.bf16.mxu0 0
        %2922 = vmatpush1.bf16.msra.mxu0 0
        %2923 = vmatprep.subr.bf16.mxu0 0
        %2924 = vmatpush1.bf16.msra.mxu0 0
        %2925 = vmatprep.subr.bf16.mxu0 0
        %2926 = vmatpush1.bf16.msra.mxu0 0
        %2927 = vmatprep.mubr.bf16.mxu0 0
        %2928 = vmatmul.mubr.bf16.gmra.mrb[0].mxu0 %v2890
        %v2929 = vpop.f32.mrb[0].mxu0
        %v2930 = vadd.f32 0.0, %v2929
        %v2931 = vpop.f32.mrb[0].mxu0
        %v2932 = vpop.f32.mrb[0].mxu0
        %v2933 = vpop.f32.mrb[0].mxu0
        %2934 = vdwg.mxu0
        %v2936 = vsel %vm2747, %v2795, 0
        %v2939 = vsel %vm2799, %v2555, 0
        %2941 = vmatprep.subr.bf16.mxu0 0
        %2942 = vmatpush1.bf16.msra.mxu0 %v2939
        %2943 = vmatprep.subr.bf16.mxu0 0
        %2944 = vmatpush1.bf16.msra.mxu0 0
        %2945 = vmatprep.subr.bf16.mxu0 0
        %2946 = vmatpush1.bf16.msra.mxu0 0
        %2947 = vmatprep.subr.bf16.mxu0 0
        %2948 = vmatpush1.bf16.msra.mxu0 0
        %2949 = vmatprep.subr.bf16.mxu0 0
        %2950 = vmatpush1.bf16.msra.mxu0 0
        %2951 = vmatprep.subr.bf16.mxu0 0
        %2952 = vmatpush1.bf16.msra.mxu0 0
        %2953 = vmatprep.subr.bf16.mxu0 0
        %2954 = vmatpush1.bf16.msra.mxu0 0
        %2955 = vmatprep.subr.bf16.mxu0 0
        %2956 = vmatpush1.bf16.msra.mxu0 0
        %2957 = vmatprep.subr.bf16.mxu0 0
        %2958 = vmatpush1.bf16.msra.mxu0 0
        %2959 = vmatprep.subr.bf16.mxu0 0
        %2960 = vmatpush1.bf16.msra.mxu0 0
        %2961 = vmatprep.subr.bf16.mxu0 0
        %2962 = vmatpush1.bf16.msra.mxu0 0
        %2963 = vmatprep.subr.bf16.mxu0 0
        %2964 = vmatpush1.bf16.msra.mxu0 0
        %2965 = vmatprep.subr.bf16.mxu0 0
        %2966 = vmatpush1.bf16.msra.mxu0 0
        %2967 = vmatprep.subr.bf16.mxu0 0
        %2968 = vmatpush1.bf16.msra.mxu0 0
        %2969 = vmatprep.subr.bf16.mxu0 0
        %2970 = vmatpush1.bf16.msra.mxu0 0
        %2971 = vmatprep.subr.bf16.mxu0 0
        %2972 = vmatpush1.bf16.msra.mxu0 0
        %2973 = vmatprep.mubr.bf16.mxu0 0
        %2974 = vmatmul.mubr.bf16.gmra.mrb[0].mxu0 %v2936
        %v2975 = vpop.f32.mrb[0].mxu0
        %v2976 = vadd.f32 0.0, %v2975
        %v2977 = vpop.f32.mrb[0].mxu0
        %v2978 = vpop.f32.mrb[0].mxu0
        %v2979 = vpop.f32.mrb[0].mxu0
        %2980 = vdwg.mxu0
        %v2981 = vld [vmem:[#allocation22] sm:$0x1]
        %v2982 = vpack.c.bf16 %v2838, %v2838
        %v2987 = vunpack.c.l.b16 %v1400
        %v2988 = vunpack.c.l.b16 %v1401
        %v2989 = vunpack.c.l.b16 %v1402
        %v2990 = vunpack.c.l.b16 %v1403
        %v2991 = vpack.c.b16 %v2988, %v2987
        %v2992 = vpack.c.b16 %v2990, %v2989
        %v2996 = vsel %vm2562, %v2982, 0
        %2998 = vmatprep.subr.bf16.mxu0 0
        %2999 = vmatpush1.bf16.msra.mxu0 %v2991
        %3000 = vmatprep.subr.bf16.mxu0 0
        %3001 = vmatpush1.bf16.msra.mxu0 %v2992
        %3002 = vmatprep.subr.bf16.mxu0 0
        %3003 = vmatpush1.bf16.msra.mxu0 0
        %3004 = vmatprep.subr.bf16.mxu0 0
        %3005 = vmatpush1.bf16.msra.mxu0 0
        %3006 = vmatprep.subr.bf16.mxu0 0
        %3007 = vmatpush1.bf16.msra.mxu0 0
        %3008 = vmatprep.subr.bf16.mxu0 0
        %3009 = vmatpush1.bf16.msra.mxu0 0
        %3010 = vmatprep.subr.bf16.mxu0 0
        %3011 = vmatpush1.bf16.msra.mxu0 0
        %3012 = vmatprep.subr.bf16.mxu0 0
        %3013 = vmatpush1.bf16.msra.mxu0 0
        %3014 = vmatprep.subr.bf16.mxu0 0
        %3015 = vmatpush1.bf16.msra.mxu0 0
        %3016 = vmatprep.subr.bf16.mxu0 0
        %3017 = vmatpush1.bf16.msra.mxu0 0
        %3018 = vmatprep.subr.bf16.mxu0 0
        %3019 = vmatpush1.bf16.msra.mxu0 0
        %3020 = vmatprep.subr.bf16.mxu0 0
        %3021 = vmatpush1.bf16.msra.mxu0 0
        %3022 = vmatprep.subr.bf16.mxu0 0
        %3023 = vmatpush1.bf16.msra.mxu0 0
        %3024 = vmatprep.subr.bf16.mxu0 0
        %3025 = vmatpush1.bf16.msra.mxu0 0
        %3026 = vmatprep.subr.bf16.mxu0 0
        %3027 = vmatpush1.bf16.msra.mxu0 0
        %3028 = vmatprep.subr.bf16.mxu0 0
        %3029 = vmatpush1.bf16.msra.mxu0 0
        %3030 = vmatprep.mubr.bf16.mxu0 0
        %3031 = vmatmul.mubr.bf16.gmra.mrb[0].mxu0 %v2996
        %v3032 = vpop.f32.mrb[0].mxu0
        %v3033 = vadd.f32 0.0, %v3032
        %v3034 = vpop.f32.mrb[0].mxu0
        %v3035 = vpop.f32.mrb[0].mxu0
        %v3036 = vpop.f32.mrb[0].mxu0
        %3037 = vdwg.mxu0
        %v3039 = vlaneseq
        %v3040 = vshrl.u32 %v3039, 7
        %v3041 = vsub.s32 0, %v3040
        %v3042 = vrot.slane %v2981, %v3041
        %v3044 = vadd.f32 %v3042, %v3033
        %v3045 = vpack.c.bf16 %v2884, %v2884
        %v3050 = vunpack.c.l.b16 %v1404
        %v3051 = vunpack.c.l.b16 %v1405
        %v3052 = vunpack.c.l.b16 %v1406
        %v3053 = vunpack.c.l.b16 %v1407
        %v3054 = vpack.c.b16 %v3051, %v3050
        %v3055 = vpack.c.b16 %v3053, %v3052
        %v3059 = vsel %vm2562, %v3045, 0
        %3061 = vmatprep.subr.bf16.mxu0 0
        %3062 = vmatpush1.bf16.msra.mxu0 %v3054
        %3063 = vmatprep.subr.bf16.mxu0 0
        %3064 = vmatpush1.bf16.msra.mxu0 %v3055
        %3065 = vmatprep.subr.bf16.mxu0 0
        %3066 = vmatpush1.bf16.msra.mxu0 0
        %3067 = vmatprep.subr.bf16.mxu0 0
        %3068 = vmatpush1.bf16.msra.mxu0 0
        %3069 = vmatprep.subr.bf16.mxu0 0
        %3070 = vmatpush1.bf16.msra.mxu0 0
        %3071 = vmatprep.subr.bf16.mxu0 0
        %3072 = vmatpush1.bf16.msra.mxu0 0
        %3073 = vmatprep.subr.bf16.mxu0 0
        %3074 = vmatpush1.bf16.msra.mxu0 0
        %3075 = vmatprep.subr.bf16.mxu0 0
        %3076 = vmatpush1.bf16.msra.mxu0 0
        %3077 = vmatprep.subr.bf16.mxu0 0
        %3078 = vmatpush1.bf16.msra.mxu0 0
        %3079 = vmatprep.subr.bf16.mxu0 0
        %3080 = vmatpush1.bf16.msra.mxu0 0
        %3081 = vmatprep.subr.bf16.mxu0 0
        %3082 = vmatpush1.bf16.msra.mxu0 0
        %3083 = vmatprep.subr.bf16.mxu0 0
        %3084 = vmatpush1.bf16.msra.mxu0 0
        %3085 = vmatprep.subr.bf16.mxu0 0
        %3086 = vmatpush1.bf16.msra.mxu0 0
        %3087 = vmatprep.subr.bf16.mxu0 0
        %3088 = vmatpush1.bf16.msra.mxu0 0
        %3089 = vmatprep.subr.bf16.mxu0 0
        %3090 = vmatpush1.bf16.msra.mxu0 0
        %3091 = vmatprep.subr.bf16.mxu0 0
        %3092 = vmatpush1.bf16.msra.mxu0 0
        %3093 = vmatprep.mubr.bf16.mxu0 0
        %3094 = vmatmul.mubr.bf16.gmra.mrb[0].mxu0 %v3059
        %v3095 = vpop.f32.mrb[0].mxu0
        %v3096 = vadd.f32 0.0, %v3095
        %v3097 = vpop.f32.mrb[0].mxu0
        %v3098 = vpop.f32.mrb[0].mxu0
        %v3099 = vpop.f32.mrb[0].mxu0
        %3100 = vdwg.mxu0
        %v3101 = vadd.f32 %v3044, %v3096
        %v3102 = vpack.c.bf16 %v2930, %v2930
        %v3107 = vunpack.c.l.b16 %v1408
        %v3108 = vunpack.c.l.b16 %v1409
        %v3109 = vunpack.c.l.b16 %v1410
        %v3110 = vunpack.c.l.b16 %v1411
        %v3111 = vpack.c.b16 %v3108, %v3107
        %v3112 = vpack.c.b16 %v3110, %v3109
        %v3116 = vsel %vm2562, %v3102, 0
        %3118 = vmatprep.subr.bf16.mxu0 0
        %3119 = vmatpush1.bf16.msra.mxu0 %v3111
        %3120 = vmatprep.subr.bf16.mxu0 0
        %3121 = vmatpush1.bf16.msra.mxu0 %v3112
        %3122 = vmatprep.subr.bf16.mxu0 0
        %3123 = vmatpush1.bf16.msra.mxu0 0
        %3124 = vmatprep.subr.bf16.mxu0 0
        %3125 = vmatpush1.bf16.msra.mxu0 0
        %3126 = vmatprep.subr.bf16.mxu0 0
        %3127 = vmatpush1.bf16.msra.mxu0 0
        %3128 = vmatprep.subr.bf16.mxu0 0
        %3129 = vmatpush1.bf16.msra.mxu0 0
        %3130 = vmatprep.subr.bf16.mxu0 0
        %3131 = vmatpush1.bf16.msra.mxu0 0
        %3132 = vmatprep.subr.bf16.mxu0 0
        %3133 = vmatpush1.bf16.msra.mxu0 0
        %3134 = vmatprep.subr.bf16.mxu0 0
        %3135 = vmatpush1.bf16.msra.mxu0 0
        %3136 = vmatprep.subr.bf16.mxu0 0
        %3137 = vmatpush1.bf16.msra.mxu0 0
        %3138 = vmatprep.subr.bf16.mxu0 0
        %3139 = vmatpush1.bf16.msra.mxu0 0
        %3140 = vmatprep.subr.bf16.mxu0 0
        %3141 = vmatpush1.bf16.msra.mxu0 0
        %3142 = vmatprep.subr.bf16.mxu0 0
        %3143 = vmatpush1.bf16.msra.mxu0 0
        %3144 = vmatprep.subr.bf16.mxu0 0
        %3145 = vmatpush1.bf16.msra.mxu0 0
        %3146 = vmatprep.subr.bf16.mxu0 0
        %3147 = vmatpush1.bf16.msra.mxu0 0
        %3148 = vmatprep.subr.bf16.mxu0 0
        %3149 = vmatpush1.bf16.msra.mxu0 0
        %3150 = vmatprep.mubr.bf16.mxu0 0
        %3151 = vmatmul.mubr.bf16.gmra.mrb[0].mxu0 %v3116
        %v3152 = vpop.f32.mrb[0].mxu0
        %v3153 = vadd.f32 0.0, %v3152
        %v3154 = vpop.f32.mrb[0].mxu0
        %v3155 = vpop.f32.mrb[0].mxu0
        %v3156 = vpop.f32.mrb[0].mxu0
        %3157 = vdwg.mxu0
        %v3158 = vadd.f32 %v3101, %v3153
        %v3159 = vpack.c.bf16 %v2976, %v2976
        %v3164 = vunpack.c.l.b16 %v1412
        %v3165 = vunpack.c.l.b16 %v1413
        %v3166 = vunpack.c.l.b16 %v1414
        %v3167 = vunpack.c.l.b16 %v1415
        %v3168 = vpack.c.b16 %v3165, %v3164
        %v3169 = vpack.c.b16 %v3167, %v3166
        %v3173 = vsel %vm2562, %v3159, 0
        %3175 = vmatprep.subr.bf16.mxu0 0
        %3176 = vmatpush1.bf16.msra.mxu0 %v3168
        %3177 = vmatprep.subr.bf16.mxu0 0
        %3178 = vmatpush1.bf16.msra.mxu0 %v3169
        %3179 = vmatprep.subr.bf16.mxu0 0
        %3180 = vmatpush1.bf16.msra.mxu0 0
        %3181 = vmatprep.subr.bf16.mxu0 0
        %3182 = vmatpush1.bf16.msra.mxu0 0
        %3183 = vmatprep.subr.bf16.mxu0 0
        %3184 = vmatpush1.bf16.msra.mxu0 0
        %3185 = vmatprep.subr.bf16.mxu0 0
        %3186 = vmatpush1.bf16.msra.mxu0 0
        %3187 = vmatprep.subr.bf16.mxu0 0
        %3188 = vmatpush1.bf16.msra.mxu0 0
        %3189 = vmatprep.subr.bf16.mxu0 0
        %3190 = vmatpush1.bf16.msra.mxu0 0
        %3191 = vmatprep.subr.bf16.mxu0 0
        %3192 = vmatpush1.bf16.msra.mxu0 0
        %3193 = vmatprep.subr.bf16.mxu0 0
        %3194 = vmatpush1.bf16.msra.mxu0 0
        %3195 = vmatprep.subr.bf16.mxu0 0
        %3196 = vmatpush1.bf16.msra.mxu0 0
        %3197 = vmatprep.subr.bf16.mxu0 0
        %3198 = vmatpush1.bf16.msra.mxu0 0
        %3199 = vmatprep.subr.bf16.mxu0 0
        %3200 = vmatpush1.bf16.msra.mxu0 0
        %3201 = vmatprep.subr.bf16.mxu0 0
        %3202 = vmatpush1.bf16.msra.mxu0 0
        %3203 = vmatprep.subr.bf16.mxu0 0
        %3204 = vmatpush1.bf16.msra.mxu0 0
        %3205 = vmatprep.subr.bf16.mxu0 0
        %3206 = vmatpush1.bf16.msra.mxu0 0
        %3207 = vmatprep.mubr.bf16.mxu0 0
        %3208 = vmatmul.mubr.bf16.gmra.mrb[0].mxu0 %v3173
        %v3209 = vpop.f32.mrb[0].mxu0
        %v3210 = vadd.f32 0.0, %v3209
        %v3211 = vpop.f32.mrb[0].mxu0
        %v3212 = vpop.f32.mrb[0].mxu0
        %v3213 = vpop.f32.mrb[0].mxu0
        %3214 = vdwg.mxu0
        %v3215 = vadd.f32 %v3158, %v3210
        %v3216 = vadd.f32 %v1192, %v3215
        %v3217 = vld [vmem:[#allocation23] sm:$0x1]
        %v3218 = vld [vmem:[#allocation25] sm:$0x1]
        %3219 = vadd.xlane.f32.xlu0 %v3216
        %v3220 = vpop.xlane.xlu0 %3219
        %v3221 = vmul.f32 %v3220, %v1159
        %v3222 = vmul.f32 %v3216, %v3216
        %3223 = vadd.xlane.f32.xlu0 %v3222
        %v3224 = vpop.xlane.xlu0 %3223
        %v3225 = vmul.f32 %v3224, %v1159
        %v3226 = vmul.f32 %v3221, %v3221
        %v3227 = vsub.f32 %v3225, %v3226
        %v3228 = vsub.f32 %v3216, %v3221
        %v3229 = vadd.f32 %v3227, 1e-07
        %v3230 = vrsqrt.pop %v3229
        %v3231 = vmul.f32 %v3228, %v3230
        %v3233 = vlaneseq
        %v3234 = vshrl.u32 %v3233, 7
        %v3235 = vsub.s32 0, %v3234
        %v3236 = vrot.slane %v3217, %v3235
        %v3238 = vmul.f32 %v3231, %v3236
        %v3240 = vlaneseq
        %v3241 = vshrl.u32 %v3240, 7
        %v3242 = vsub.s32 0, %v3241
        %v3243 = vrot.slane %v3218, %v3242
        %v3245 = vadd.f32 %v3238, %v3243
        %v3246 = vpack.c.bf16 %v3245, %v3245
        %v3247 = vld [vmem:[#allocation26] sm:$0xff]
        %v3248 = vld [vmem:[#allocation26 + $0x8] sm:$0xff]
        %v3249 = vld [vmem:[#allocation26 + $0x10] sm:$0xff]
        %v3250 = vld [vmem:[#allocation26 + $0x18] sm:$0xff]
        %v3251 = vld [vmem:[#allocation26 + $0x20] sm:$0xff]
        %v3252 = vld [vmem:[#allocation26 + $0x28] sm:$0xff]
        %v3253 = vld [vmem:[#allocation26 + $0x30] sm:$0xff]
        %v3254 = vld [vmem:[#allocation26 + $0x38] sm:$0xff]
        %v3255 = vld [vmem:[#allocation26 + $0x40] sm:$0xff]
        %v3256 = vld [vmem:[#allocation26 + $0x48] sm:$0xff]
        %v3257 = vld [vmem:[#allocation26 + $0x50] sm:$0xff]
        %v3258 = vld [vmem:[#allocation26 + $0x58] sm:$0xff]
        %v3259 = vld [vmem:[#allocation26 + $0x60] sm:$0xff]
        %v3260 = vld [vmem:[#allocation26 + $0x68] sm:$0xff]
        %v3261 = vld [vmem:[#allocation26 + $0x70] sm:$0xff]
        %v3262 = vld [vmem:[#allocation26 + $0x78] sm:$0xff]
        %v3263 = vld [vmem:[#allocation28] sm:$0x3]
        %v3265 = vlaneseq
        %v3266 = vshrl.u32 %v3265, 7
        %v3267 = vsub.s32 0, %v3266
        %v3268 = vrot.slane %v3263, %v3267
        %v3269 = vlaneseq
        %v3270 = vshrl.u32 %v3269, 7
        %v3271 = vsub.s32 1, %v3270
        %v3272 = vrot.slane %v3263, %v3271
        %v3291 = vunpack.c.l.b16 %v3247
        %v3292 = vunpack.c.h.b16 %v3247
        %v3293 = vunpack.c.l.b16 %v3248
        %v3294 = vunpack.c.h.b16 %v3248
        %v3295 = vunpack.c.l.b16 %v3249
        %v3296 = vunpack.c.h.b16 %v3249
        %v3297 = vunpack.c.l.b16 %v3250
        %v3298 = vunpack.c.h.b16 %v3250
        %v3299 = vunpack.c.l.b16 %v3251
        %v3300 = vunpack.c.h.b16 %v3251
        %v3301 = vunpack.c.l.b16 %v3252
        %v3302 = vunpack.c.h.b16 %v3252
        %v3303 = vunpack.c.l.b16 %v3253
        %v3304 = vunpack.c.h.b16 %v3253
        %v3305 = vunpack.c.l.b16 %v3254
        %v3306 = vunpack.c.h.b16 %v3254
        %v3307 = vunpack.c.l.b16 %v3255
        %v3308 = vunpack.c.h.b16 %v3255
        %v3309 = vunpack.c.l.b16 %v3256
        %v3310 = vunpack.c.h.b16 %v3256
        %v3311 = vunpack.c.l.b16 %v3257
        %v3312 = vunpack.c.h.b16 %v3257
        %v3313 = vunpack.c.l.b16 %v3258
        %v3314 = vunpack.c.h.b16 %v3258
        %v3315 = vunpack.c.l.b16 %v3259
        %v3316 = vunpack.c.h.b16 %v3259
        %v3317 = vunpack.c.l.b16 %v3260
        %v3318 = vunpack.c.h.b16 %v3260
        %v3319 = vunpack.c.l.b16 %v3261
        %v3320 = vunpack.c.h.b16 %v3261
        %v3321 = vunpack.c.l.b16 %v3262
        %v3322 = vunpack.c.h.b16 %v3262
        %v3323 = vpack.c.b16 %v3293, %v3291
        %v3324 = vpack.c.b16 %v3294, %v3292
        %v3325 = vpack.c.b16 %v3297, %v3295
        %v3326 = vpack.c.b16 %v3298, %v3296
        %v3327 = vpack.c.b16 %v3301, %v3299
        %v3328 = vpack.c.b16 %v3302, %v3300
        %v3329 = vpack.c.b16 %v3305, %v3303
        %v3330 = vpack.c.b16 %v3306, %v3304
        %v3331 = vpack.c.b16 %v3309, %v3307
        %v3332 = vpack.c.b16 %v3310, %v3308
        %v3333 = vpack.c.b16 %v3313, %v3311
        %v3334 = vpack.c.b16 %v3314, %v3312
        %v3335 = vpack.c.b16 %v3317, %v3315
        %v3336 = vpack.c.b16 %v3318, %v3316
        %v3337 = vpack.c.b16 %v3321, %v3319
        %v3338 = vpack.c.b16 %v3322, %v3320
        %3355 = vmatprep.subr.bf16.mxu0 %v3324
        %3356 = vmatpush1.bf16.msra.mxu0 %v3323
        %3357 = vmatprep.subr.bf16.mxu0 %v3326
        %3358 = vmatpush1.bf16.msra.mxu0 %v3325
        %3359 = vmatprep.subr.bf16.mxu0 %v3328
        %3360 = vmatpush1.bf16.msra.mxu0 %v3327
        %3361 = vmatprep.subr.bf16.mxu0 %v3330
        %3362 = vmatpush1.bf16.msra.mxu0 %v3329
        %3363 = vmatprep.subr.bf16.mxu0 %v3332
        %3364 = vmatpush1.bf16.msra.mxu0 %v3331
        %3365 = vmatprep.subr.bf16.mxu0 %v3334
        %3366 = vmatpush1.bf16.msra.mxu0 %v3333
        %3367 = vmatprep.subr.bf16.mxu0 %v3336
        %3368 = vmatpush1.bf16.msra.mxu0 %v3335
        %3369 = vmatprep.subr.bf16.mxu0 %v3338
        %3370 = vmatpush1.bf16.msra.mxu0 %v3337
        %3371 = vmatprep.subr.bf16.mxu0 0
        %3372 = vmatpush1.bf16.msra.mxu0 0
        %3373 = vmatprep.subr.bf16.mxu0 0
        %3374 = vmatpush1.bf16.msra.mxu0 0
        %3375 = vmatprep.subr.bf16.mxu0 0
        %3376 = vmatpush1.bf16.msra.mxu0 0
        %3377 = vmatprep.subr.bf16.mxu0 0
        %3378 = vmatpush1.bf16.msra.mxu0 0
        %3379 = vmatprep.subr.bf16.mxu0 0
        %3380 = vmatpush1.bf16.msra.mxu0 0
        %3381 = vmatprep.subr.bf16.mxu0 0
        %3382 = vmatpush1.bf16.msra.mxu0 0
        %3383 = vmatprep.subr.bf16.mxu0 0
        %3384 = vmatpush1.bf16.msra.mxu0 0
        %3385 = vmatprep.subr.bf16.mxu0 0
        %3386 = vmatpush1.bf16.msra.mxu0 0
        %3387 = vmatprep.mubr.bf16.mxu0 0
        %3388 = vmatmul.mubr.bf16.gmra.mrb[0].mxu0 %v3246
        %v3389 = vpop.f32.mrb[0].mxu0
        %v3390 = vadd.f32 %v3268, %v3389
        %v3391 = vpop.f32.mrb[0].mxu0
        %v3392 = vadd.f32 %v3272, %v3391
        %v3393 = vpop.f32.mrb[0].mxu0
        %v3394 = vpop.f32.mrb[0].mxu0
        %3395 = vdwg.mxu0
        %v3396 = vmul.f32 %v3390, %v3390
        %v3397 = vmul.f32 %v3392, %v3392
        %v3398 = vmul.f32 %v3390, %v3396
        %v3399 = vmul.f32 %v3392, %v3397
        %v3400 = vmul.f32 %v3398, 0.044715
        %v3401 = vmul.f32 %v3399, 0.044715
        %v3402 = vadd.f32 %v3390, %v3400
        %v3403 = vadd.f32 %v3392, %v3401
        %v3404 = vmul.f32 %v3402, 0.7978846
        %v3405 = vmul.f32 %v3403, 0.7978846
        %v3406 = vtanh.pop %v3404
        %v3407 = vtanh.pop %v3405
        %v3408 = vadd.f32 %v3406, 1.0
        %v3409 = vadd.f32 %v3407, 1.0
        %v3410 = vmul.f32 %v3408, 0.5
        %v3411 = vmul.f32 %v3409, 0.5
        %v3412 = vmul.f32 %v3390, %v3410
        %v3413 = vmul.f32 %v3392, %v3411
        %v3414 = vpack.c.bf16 %v3412, %v3412
        %v3415 = vpack.c.bf16 %v3413, %v3413
        %v3416 = vld [vmem:[#allocation29] sm:$0xf]
        %v3417 = vld [vmem:[#allocation29 + $0x4] sm:$0xf]
        %v3418 = vld [vmem:[#allocation29 + $0x8] sm:$0xf]
        %v3419 = vld [vmem:[#allocation29 + $0xc] sm:$0xf]
        %v3420 = vld [vmem:[#allocation29 + $0x10] sm:$0xf]
        %v3421 = vld [vmem:[#allocation29 + $0x14] sm:$0xf]
        %v3422 = vld [vmem:[#allocation29 + $0x18] sm:$0xf]
        %v3423 = vld [vmem:[#allocation29 + $0x1c] sm:$0xf]
        %v3424 = vld [vmem:[#allocation29 + $0x20] sm:$0xf]
        %v3425 = vld [vmem:[#allocation29 + $0x24] sm:$0xf]
        %v3426 = vld [vmem:[#allocation29 + $0x28] sm:$0xf]
        %v3427 = vld [vmem:[#allocation29 + $0x2c] sm:$0xf]
        %v3428 = vld [vmem:[#allocation29 + $0x30] sm:$0xf]
        %v3429 = vld [vmem:[#allocation29 + $0x34] sm:$0xf]
        %v3430 = vld [vmem:[#allocation29 + $0x38] sm:$0xf]
        %v3431 = vld [vmem:[#allocation29 + $0x3c] sm:$0xf]
        %v3432 = vld [vmem:[#allocation29 + $0x40] sm:$0xf]
        %v3433 = vld [vmem:[#allocation29 + $0x44] sm:$0xf]
        %v3434 = vld [vmem:[#allocation29 + $0x48] sm:$0xf]
        %v3435 = vld [vmem:[#allocation29 + $0x4c] sm:$0xf]
        %v3436 = vld [vmem:[#allocation29 + $0x50] sm:$0xf]
        %v3437 = vld [vmem:[#allocation29 + $0x54] sm:$0xf]
        %v3438 = vld [vmem:[#allocation29 + $0x58] sm:$0xf]
        %v3439 = vld [vmem:[#allocation29 + $0x5c] sm:$0xf]
        %v3440 = vld [vmem:[#allocation29 + $0x60] sm:$0xf]
        %v3441 = vld [vmem:[#allocation29 + $0x64] sm:$0xf]
        %v3442 = vld [vmem:[#allocation29 + $0x68] sm:$0xf]
        %v3443 = vld [vmem:[#allocation29 + $0x6c] sm:$0xf]
        %v3444 = vld [vmem:[#allocation29 + $0x70] sm:$0xf]
        %v3445 = vld [vmem:[#allocation29 + $0x74] sm:$0xf]
        %v3446 = vld [vmem:[#allocation29 + $0x78] sm:$0xf]
        %v3447 = vld [vmem:[#allocation29 + $0x7c] sm:$0xf]
        %v3448 = vld [vmem:[#allocation31] sm:$0x1]
        %v3450 = vlaneseq
        %v3451 = vshrl.u32 %v3450, 7
        %v3452 = vsub.s32 0, %v3451
        %v3453 = vrot.slane %v3448, %v3452
        %v3487 = vunpack.c.l.b16 %v3416
        %v3488 = vunpack.c.l.b16 %v3417
        %v3489 = vunpack.c.l.b16 %v3418
        %v3490 = vunpack.c.l.b16 %v3419
        %v3491 = vunpack.c.l.b16 %v3420
        %v3492 = vunpack.c.l.b16 %v3421
        %v3493 = vunpack.c.l.b16 %v3422
        %v3494 = vunpack.c.l.b16 %v3423
        %v3495 = vunpack.c.l.b16 %v3424
        %v3496 = vunpack.c.l.b16 %v3425
        %v3497 = vunpack.c.l.b16 %v3426
        %v3498 = vunpack.c.l.b16 %v3427
        %v3499 = vunpack.c.l.b16 %v3428
        %v3500 = vunpack.c.l.b16 %v3429
        %v3501 = vunpack.c.l.b16 %v3430
        %v3502 = vunpack.c.l.b16 %v3431
        %v3503 = vunpack.c.l.b16 %v3432
        %v3504 = vunpack.c.l.b16 %v3433
        %v3505 = vunpack.c.l.b16 %v3434
        %v3506 = vunpack.c.l.b16 %v3435
        %v3507 = vunpack.c.l.b16 %v3436
        %v3508 = vunpack.c.l.b16 %v3437
        %v3509 = vunpack.c.l.b16 %v3438
        %v3510 = vunpack.c.l.b16 %v3439
        %v3511 = vunpack.c.l.b16 %v3440
        %v3512 = vunpack.c.l.b16 %v3441
        %v3513 = vunpack.c.l.b16 %v3442
        %v3514 = vunpack.c.l.b16 %v3443
        %v3515 = vunpack.c.l.b16 %v3444
        %v3516 = vunpack.c.l.b16 %v3445
        %v3517 = vunpack.c.l.b16 %v3446
        %v3518 = vunpack.c.l.b16 %v3447
        %v3519 = vpack.c.b16 %v3488, %v3487
        %v3520 = vpack.c.b16 %v3490, %v3489
        %v3521 = vpack.c.b16 %v3492, %v3491
        %v3522 = vpack.c.b16 %v3494, %v3493
        %v3523 = vpack.c.b16 %v3496, %v3495
        %v3524 = vpack.c.b16 %v3498, %v3497
        %v3525 = vpack.c.b16 %v3500, %v3499
        %v3526 = vpack.c.b16 %v3502, %v3501
        %v3527 = vpack.c.b16 %v3504, %v3503
        %v3528 = vpack.c.b16 %v3506, %v3505
        %v3529 = vpack.c.b16 %v3508, %v3507
        %v3530 = vpack.c.b16 %v3510, %v3509
        %v3531 = vpack.c.b16 %v3512, %v3511
        %v3532 = vpack.c.b16 %v3514, %v3513
        %v3533 = vpack.c.b16 %v3516, %v3515
        %v3534 = vpack.c.b16 %v3518, %v3517
        %3551 = vmatprep.subr.bf16.mxu0 0
        %3552 = vmatpush1.bf16.msra.mxu0 %v3519
        %3553 = vmatprep.subr.bf16.mxu0 0
        %3554 = vmatpush1.bf16.msra.mxu0 %v3520
        %3555 = vmatprep.subr.bf16.mxu0 0
        %3556 = vmatpush1.bf16.msra.mxu0 %v3521
        %3557 = vmatprep.subr.bf16.mxu0 0
        %3558 = vmatpush1.bf16.msra.mxu0 %v3522
        %3559 = vmatprep.subr.bf16.mxu0 0
        %3560 = vmatpush1.bf16.msra.mxu0 %v3523
        %3561 = vmatprep.subr.bf16.mxu0 0
        %3562 = vmatpush1.bf16.msra.mxu0 %v3524
        %3563 = vmatprep.subr.bf16.mxu0 0
        %3564 = vmatpush1.bf16.msra.mxu0 %v3525
        %3565 = vmatprep.subr.bf16.mxu0 0
        %3566 = vmatpush1.bf16.msra.mxu0 %v3526
        %3567 = vmatprep.subr.bf16.mxu0 0
        %3568 = vmatpush1.bf16.msra.mxu0 %v3527
        %3569 = vmatprep.subr.bf16.mxu0 0
        %3570 = vmatpush1.bf16.msra.mxu0 %v3528
        %3571 = vmatprep.subr.bf16.mxu0 0
        %3572 = vmatpush1.bf16.msra.mxu0 %v3529
        %3573 = vmatprep.subr.bf16.mxu0 0
        %3574 = vmatpush1.bf16.msra.mxu0 %v3530
        %3575 = vmatprep.subr.bf16.mxu0 0
        %3576 = vmatpush1.bf16.msra.mxu0 %v3531
        %3577 = vmatprep.subr.bf16.mxu0 0
        %3578 = vmatpush1.bf16.msra.mxu0 %v3532
        %3579 = vmatprep.subr.bf16.mxu0 0
        %3580 = vmatpush1.bf16.msra.mxu0 %v3533
        %3581 = vmatprep.subr.bf16.mxu0 0
        %3582 = vmatpush1.bf16.msra.mxu0 %v3534
        %3583 = vmatprep.mubr.bf16.mxu0 %v3415
        %3584 = vmatmul.mubr.bf16.gmra.mrb[0].mxu0 %v3414
        %v3585 = vpop.f32.mrb[0].mxu0
        %v3586 = vadd.f32 %v3453, %v3585
        %v3587 = vpop.f32.mrb[0].mxu0
        %v3588 = vpop.f32.mrb[0].mxu0
        %v3589 = vpop.f32.mrb[0].mxu0
        %3590 = vdwg.mxu0
        %v3591 = vadd.f32 %v3245, %v3586
        %v3592 = vld [vmem:[#allocation32] sm:$0x1]
        %v3593 = vld [vmem:[#allocation34] sm:$0x1]
        %3594 = vadd.xlane.f32.xlu0 %v3591
        %v3595 = vpop.xlane.xlu0 %3594
        %v3596 = vmul.f32 %v3595, %v1159
        %v3597 = vmul.f32 %v3591, %v3591
        %3598 = vadd.xlane.f32.xlu0 %v3597
        %v3599 = vpop.xlane.xlu0 %3598
        %v3600 = vmul.f32 %v3599, %v1159
        %v3601 = vmul.f32 %v3596, %v3596
        %v3602 = vsub.f32 %v3600, %v3601
        %v3603 = vsub.f32 %v3591, %v3596
        %v3604 = vadd.f32 %v3602, 1e-07
        %v3605 = vrsqrt.pop %v3604
        %v3606 = vmul.f32 %v3603, %v3605
        %v3608 = vlaneseq
        %v3609 = vshrl.u32 %v3608, 7
        %v3610 = vsub.s32 0, %v3609
        %v3611 = vrot.slane %v3592, %v3610
        %v3613 = vmul.f32 %v3606, %v3611
        %v3615 = vlaneseq
        %v3616 = vshrl.u32 %v3615, 7
        %v3617 = vsub.s32 0, %v3616
        %v3618 = vrot.slane %v3593, %v3617
        %v3620 = vadd.f32 %v3613, %v3618
        %v3621 = vpack.c.bf16 %v3620, %v3620
        %s3622 = scalar_lea.vmem [#allocation11], 256
        %v3623 = vld [vmem:[%s3622] sm:$0xf]
        %v3624 = vld [vmem:[%s3622 + $0x4] sm:$0xf]
        %v3625 = vld [vmem:[%s3622 + $0x8] sm:$0xf]
        %v3626 = vld [vmem:[%s3622 + $0xc] sm:$0xf]
        %v3627 = vld [vmem:[%s3622 + $0x10] sm:$0xf]
        %v3628 = vld [vmem:[%s3622 + $0x14] sm:$0xf]
        %v3629 = vld [vmem:[%s3622 + $0x18] sm:$0xf]
        %v3630 = vld [vmem:[%s3622 + $0x1c] sm:$0xf]
        %v3631 = vld [vmem:[%s3622 + $0x20] sm:$0xf]
        %v3632 = vld [vmem:[%s3622 + $0x24] sm:$0xf]
        %v3633 = vld [vmem:[%s3622 + $0x28] sm:$0xf]
        %v3634 = vld [vmem:[%s3622 + $0x2c] sm:$0xf]
        %v3635 = vld [vmem:[%s3622 + $0x30] sm:$0xf]
        %v3636 = vld [vmem:[%s3622 + $0x34] sm:$0xf]
        %v3637 = vld [vmem:[%s3622 + $0x38] sm:$0xf]
        %v3638 = vld [vmem:[%s3622 + $0x3c] sm:$0xf]
        %v3639 = vld [vmem:[%s3622 + $0x40] sm:$0xf]
        %v3640 = vld [vmem:[%s3622 + $0x44] sm:$0xf]
        %v3641 = vld [vmem:[%s3622 + $0x48] sm:$0xf]
        %v3642 = vld [vmem:[%s3622 + $0x4c] sm:$0xf]
        %v3643 = vld [vmem:[%s3622 + $0x50] sm:$0xf]
        %v3644 = vld [vmem:[%s3622 + $0x54] sm:$0xf]
        %v3645 = vld [vmem:[%s3622 + $0x58] sm:$0xf]
        %v3646 = vld [vmem:[%s3622 + $0x5c] sm:$0xf]
        %v3647 = vld [vmem:[%s3622 + $0x60] sm:$0xf]
        %v3648 = vld [vmem:[%s3622 + $0x64] sm:$0xf]
        %v3649 = vld [vmem:[%s3622 + $0x68] sm:$0xf]
        %v3650 = vld [vmem:[%s3622 + $0x6c] sm:$0xf]
        %v3651 = vld [vmem:[%s3622 + $0x70] sm:$0xf]
        %v3652 = vld [vmem:[%s3622 + $0x74] sm:$0xf]
        %v3653 = vld [vmem:[%s3622 + $0x78] sm:$0xf]
        %v3654 = vld [vmem:[%s3622 + $0x7c] sm:$0xf]
        %v3655 = vld [vmem:[%s3622 + $0x80] sm:$0xf]
        %v3656 = vld [vmem:[%s3622 + $0x84] sm:$0xf]
        %v3657 = vld [vmem:[%s3622 + $0x88] sm:$0xf]
        %v3658 = vld [vmem:[%s3622 + $0x8c] sm:$0xf]
        %v3659 = vld [vmem:[%s3622 + $0x90] sm:$0xf]
        %v3660 = vld [vmem:[%s3622 + $0x94] sm:$0xf]
        %v3661 = vld [vmem:[%s3622 + $0x98] sm:$0xf]
        %v3662 = vld [vmem:[%s3622 + $0x9c] sm:$0xf]
        %v3663 = vld [vmem:[%s3622 + $0xa0] sm:$0xf]
        %v3664 = vld [vmem:[%s3622 + $0xa4] sm:$0xf]
        %v3665 = vld [vmem:[%s3622 + $0xa8] sm:$0xf]
        %v3666 = vld [vmem:[%s3622 + $0xac] sm:$0xf]
        %v3667 = vld [vmem:[%s3622 + $0xb0] sm:$0xf]
        %v3668 = vld [vmem:[%s3622 + $0xb4] sm:$0xf]
        %v3669 = vld [vmem:[%s3622 + $0xb8] sm:$0xf]
        %v3670 = vld [vmem:[%s3622 + $0xbc] sm:$0xf]
        %v3671 = vld [vmem:[%s3622 + $0xc0] sm:$0xf]
        %v3672 = vld [vmem:[%s3622 + $0xc4] sm:$0xf]
        %v3673 = vld [vmem:[%s3622 + $0xc8] sm:$0xf]
        %v3674 = vld [vmem:[%s3622 + $0xcc] sm:$0xf]
        %v3675 = vld [vmem:[%s3622 + $0xd0] sm:$0xf]
        %v3676 = vld [vmem:[%s3622 + $0xd4] sm:$0xf]
        %v3677 = vld [vmem:[%s3622 + $0xd8] sm:$0xf]
        %v3678 = vld [vmem:[%s3622 + $0xdc] sm:$0xf]
        %v3679 = vld [vmem:[%s3622 + $0xe0] sm:$0xf]
        %v3680 = vld [vmem:[%s3622 + $0xe4] sm:$0xf]
        %v3681 = vld [vmem:[%s3622 + $0xe8] sm:$0xf]
        %v3682 = vld [vmem:[%s3622 + $0xec] sm:$0xf]
        %v3683 = vld [vmem:[%s3622 + $0xf0] sm:$0xf]
        %v3684 = vld [vmem:[%s3622 + $0xf4] sm:$0xf]
        %v3685 = vld [vmem:[%s3622 + $0xf8] sm:$0xf]
        %v3686 = vld [vmem:[%s3622 + $0xfc] sm:$0xf]
        %s3687 = scalar_lea.vmem [#allocation14], 256
        %v3688 = vld [vmem:[%s3687] sm:$0xf]
        %v3689 = vld [vmem:[%s3687 + $0x4] sm:$0xf]
        %v3690 = vld [vmem:[%s3687 + $0x8] sm:$0xf]
        %v3691 = vld [vmem:[%s3687 + $0xc] sm:$0xf]
        %v3692 = vld [vmem:[%s3687 + $0x10] sm:$0xf]
        %v3693 = vld [vmem:[%s3687 + $0x14] sm:$0xf]
        %v3694 = vld [vmem:[%s3687 + $0x18] sm:$0xf]
        %v3695 = vld [vmem:[%s3687 + $0x1c] sm:$0xf]
        %v3696 = vld [vmem:[%s3687 + $0x20] sm:$0xf]
        %v3697 = vld [vmem:[%s3687 + $0x24] sm:$0xf]
        %v3698 = vld [vmem:[%s3687 + $0x28] sm:$0xf]
        %v3699 = vld [vmem:[%s3687 + $0x2c] sm:$0xf]
        %v3700 = vld [vmem:[%s3687 + $0x30] sm:$0xf]
        %v3701 = vld [vmem:[%s3687 + $0x34] sm:$0xf]
        %v3702 = vld [vmem:[%s3687 + $0x38] sm:$0xf]
        %v3703 = vld [vmem:[%s3687 + $0x3c] sm:$0xf]
        %v3704 = vld [vmem:[%s3687 + $0x40] sm:$0xf]
        %v3705 = vld [vmem:[%s3687 + $0x44] sm:$0xf]
        %v3706 = vld [vmem:[%s3687 + $0x48] sm:$0xf]
        %v3707 = vld [vmem:[%s3687 + $0x4c] sm:$0xf]
        %v3708 = vld [vmem:[%s3687 + $0x50] sm:$0xf]
        %v3709 = vld [vmem:[%s3687 + $0x54] sm:$0xf]
        %v3710 = vld [vmem:[%s3687 + $0x58] sm:$0xf]
        %v3711 = vld [vmem:[%s3687 + $0x5c] sm:$0xf]
        %v3712 = vld [vmem:[%s3687 + $0x60] sm:$0xf]
        %v3713 = vld [vmem:[%s3687 + $0x64] sm:$0xf]
        %v3714 = vld [vmem:[%s3687 + $0x68] sm:$0xf]
        %v3715 = vld [vmem:[%s3687 + $0x6c] sm:$0xf]
        %v3716 = vld [vmem:[%s3687 + $0x70] sm:$0xf]
        %v3717 = vld [vmem:[%s3687 + $0x74] sm:$0xf]
        %v3718 = vld [vmem:[%s3687 + $0x78] sm:$0xf]
        %v3719 = vld [vmem:[%s3687 + $0x7c] sm:$0xf]
        %v3720 = vld [vmem:[%s3687 + $0x80] sm:$0xf]
        %v3721 = vld [vmem:[%s3687 + $0x84] sm:$0xf]
        %v3722 = vld [vmem:[%s3687 + $0x88] sm:$0xf]
        %v3723 = vld [vmem:[%s3687 + $0x8c] sm:$0xf]
        %v3724 = vld [vmem:[%s3687 + $0x90] sm:$0xf]
        %v3725 = vld [vmem:[%s3687 + $0x94] sm:$0xf]
        %v3726 = vld [vmem:[%s3687 + $0x98] sm:$0xf]
        %v3727 = vld [vmem:[%s3687 + $0x9c] sm:$0xf]
        %v3728 = vld [vmem:[%s3687 + $0xa0] sm:$0xf]
        %v3729 = vld [vmem:[%s3687 + $0xa4] sm:$0xf]
        %v3730 = vld [vmem:[%s3687 + $0xa8] sm:$0xf]
        %v3731 = vld [vmem:[%s3687 + $0xac] sm:$0xf]
        %v3732 = vld [vmem:[%s3687 + $0xb0] sm:$0xf]
        %v3733 = vld [vmem:[%s3687 + $0xb4] sm:$0xf]
        %v3734 = vld [vmem:[%s3687 + $0xb8] sm:$0xf]
        %v3735 = vld [vmem:[%s3687 + $0xbc] sm:$0xf]
        %v3736 = vld [vmem:[%s3687 + $0xc0] sm:$0xf]
        %v3737 = vld [vmem:[%s3687 + $0xc4] sm:$0xf]
        %v3738 = vld [vmem:[%s3687 + $0xc8] sm:$0xf]
        %v3739 = vld [vmem:[%s3687 + $0xcc] sm:$0xf]
        %v3740 = vld [vmem:[%s3687 + $0xd0] sm:$0xf]
        %v3741 = vld [vmem:[%s3687 + $0xd4] sm:$0xf]
        %v3742 = vld [vmem:[%s3687 + $0xd8] sm:$0xf]
        %v3743 = vld [vmem:[%s3687 + $0xdc] sm:$0xf]
        %v3744 = vld [vmem:[%s3687 + $0xe0] sm:$0xf]
        %v3745 = vld [vmem:[%s3687 + $0xe4] sm:$0xf]
        %v3746 = vld [vmem:[%s3687 + $0xe8] sm:$0xf]
        %v3747 = vld [vmem:[%s3687 + $0xec] sm:$0xf]
        %v3748 = vld [vmem:[%s3687 + $0xf0] sm:$0xf]
        %v3749 = vld [vmem:[%s3687 + $0xf4] sm:$0xf]
        %v3750 = vld [vmem:[%s3687 + $0xf8] sm:$0xf]
        %v3751 = vld [vmem:[%s3687 + $0xfc] sm:$0xf]
        %s3752 = scalar_lea.vmem [#allocation17], 256
        %v3753 = vld [vmem:[%s3752] sm:$0xf]
        %v3754 = vld [vmem:[%s3752 + $0x4] sm:$0xf]
        %v3755 = vld [vmem:[%s3752 + $0x8] sm:$0xf]
        %v3756 = vld [vmem:[%s3752 + $0xc] sm:$0xf]
        %v3757 = vld [vmem:[%s3752 + $0x10] sm:$0xf]
        %v3758 = vld [vmem:[%s3752 + $0x14] sm:$0xf]
        %v3759 = vld [vmem:[%s3752 + $0x18] sm:$0xf]
        %v3760 = vld [vmem:[%s3752 + $0x1c] sm:$0xf]
        %v3761 = vld [vmem:[%s3752 + $0x20] sm:$0xf]
        %v3762 = vld [vmem:[%s3752 + $0x24] sm:$0xf]
        %v3763 = vld [vmem:[%s3752 + $0x28] sm:$0xf]
        %v3764 = vld [vmem:[%s3752 + $0x2c] sm:$0xf]
        %v3765 = vld [vmem:[%s3752 + $0x30] sm:$0xf]
        %v3766 = vld [vmem:[%s3752 + $0x34] sm:$0xf]
        %v3767 = vld [vmem:[%s3752 + $0x38] sm:$0xf]
        %v3768 = vld [vmem:[%s3752 + $0x3c] sm:$0xf]
        %v3769 = vld [vmem:[%s3752 + $0x40] sm:$0xf]
        %v3770 = vld [vmem:[%s3752 + $0x44] sm:$0xf]
        %v3771 = vld [vmem:[%s3752 + $0x48] sm:$0xf]
        %v3772 = vld [vmem:[%s3752 + $0x4c] sm:$0xf]
        %v3773 = vld [vmem:[%s3752 + $0x50] sm:$0xf]
        %v3774 = vld [vmem:[%s3752 + $0x54] sm:$0xf]
        %v3775 = vld [vmem:[%s3752 + $0x58] sm:$0xf]
        %v3776 = vld [vmem:[%s3752 + $0x5c] sm:$0xf]
        %v3777 = vld [vmem:[%s3752 + $0x60] sm:$0xf]
        %v3778 = vld [vmem:[%s3752 + $0x64] sm:$0xf]
        %v3779 = vld [vmem:[%s3752 + $0x68] sm:$0xf]
        %v3780 = vld [vmem:[%s3752 + $0x6c] sm:$0xf]
        %v3781 = vld [vmem:[%s3752 + $0x70] sm:$0xf]
        %v3782 = vld [vmem:[%s3752 + $0x74] sm:$0xf]
        %v3783 = vld [vmem:[%s3752 + $0x78] sm:$0xf]
        %v3784 = vld [vmem:[%s3752 + $0x7c] sm:$0xf]
        %v3785 = vld [vmem:[%s3752 + $0x80] sm:$0xf]
        %v3786 = vld [vmem:[%s3752 + $0x84] sm:$0xf]
        %v3787 = vld [vmem:[%s3752 + $0x88] sm:$0xf]
        %v3788 = vld [vmem:[%s3752 + $0x8c] sm:$0xf]
        %v3789 = vld [vmem:[%s3752 + $0x90] sm:$0xf]
        %v3790 = vld [vmem:[%s3752 + $0x94] sm:$0xf]
        %v3791 = vld [vmem:[%s3752 + $0x98] sm:$0xf]
        %v3792 = vld [vmem:[%s3752 + $0x9c] sm:$0xf]
        %v3793 = vld [vmem:[%s3752 + $0xa0] sm:$0xf]
        %v3794 = vld [vmem:[%s3752 + $0xa4] sm:$0xf]
        %v3795 = vld [vmem:[%s3752 + $0xa8] sm:$0xf]
        %v3796 = vld [vmem:[%s3752 + $0xac] sm:$0xf]
        %v3797 = vld [vmem:[%s3752 + $0xb0] sm:$0xf]
        %v3798 = vld [vmem:[%s3752 + $0xb4] sm:$0xf]
        %v3799 = vld [vmem:[%s3752 + $0xb8] sm:$0xf]
        %v3800 = vld [vmem:[%s3752 + $0xbc] sm:$0xf]
        %v3801 = vld [vmem:[%s3752 + $0xc0] sm:$0xf]
        %v3802 = vld [vmem:[%s3752 + $0xc4] sm:$0xf]
        %v3803 = vld [vmem:[%s3752 + $0xc8] sm:$0xf]
        %v3804 = vld [vmem:[%s3752 + $0xcc] sm:$0xf]
        %v3805 = vld [vmem:[%s3752 + $0xd0] sm:$0xf]
        %v3806 = vld [vmem:[%s3752 + $0xd4] sm:$0xf]
        %v3807 = vld [vmem:[%s3752 + $0xd8] sm:$0xf]
        %v3808 = vld [vmem:[%s3752 + $0xdc] sm:$0xf]
        %v3809 = vld [vmem:[%s3752 + $0xe0] sm:$0xf]
        %v3810 = vld [vmem:[%s3752 + $0xe4] sm:$0xf]
        %v3811 = vld [vmem:[%s3752 + $0xe8] sm:$0xf]
        %v3812 = vld [vmem:[%s3752 + $0xec] sm:$0xf]
        %v3813 = vld [vmem:[%s3752 + $0xf0] sm:$0xf]
        %v3814 = vld [vmem:[%s3752 + $0xf4] sm:$0xf]
        %v3815 = vld [vmem:[%s3752 + $0xf8] sm:$0xf]
        %v3816 = vld [vmem:[%s3752 + $0xfc] sm:$0xf]
        %s3817 = scalar_lea.vmem [#allocation13], 4
        %v3818 = vld [vmem:[%s3817] sm:$0x1]
        %v3819 = vld [vmem:[%s3817 + $0x1] sm:$0x1]
        %v3820 = vld [vmem:[%s3817 + $0x2] sm:$0x1]
        %v3821 = vld [vmem:[%s3817 + $0x3] sm:$0x1]
        %s3822 = scalar_lea.vmem [#allocation16], 4
        %v3823 = vld [vmem:[%s3822] sm:$0x1]
        %v3824 = vld [vmem:[%s3822 + $0x1] sm:$0x1]
        %v3825 = vld [vmem:[%s3822 + $0x2] sm:$0x1]
        %v3826 = vld [vmem:[%s3822 + $0x3] sm:$0x1]
        %s3827 = scalar_lea.vmem [#allocation19], 4
        %v3828 = vld [vmem:[%s3827] sm:$0x1]
        %v3829 = vld [vmem:[%s3827 + $0x1] sm:$0x1]
        %v3830 = vld [vmem:[%s3827 + $0x2] sm:$0x1]
        %v3831 = vld [vmem:[%s3827 + $0x3] sm:$0x1]
        %s3832 = scalar_lea.vmem [#allocation20], 64
        %v3833 = vld [vmem:[%s3832] sm:$0xf]
        %v3834 = vld [vmem:[%s3832 + $0x4] sm:$0xf]
        %v3835 = vld [vmem:[%s3832 + $0x8] sm:$0xf]
        %v3836 = vld [vmem:[%s3832 + $0xc] sm:$0xf]
        %v3837 = vld [vmem:[%s3832 + $0x10] sm:$0xf]
        %v3838 = vld [vmem:[%s3832 + $0x14] sm:$0xf]
        %v3839 = vld [vmem:[%s3832 + $0x18] sm:$0xf]
        %v3840 = vld [vmem:[%s3832 + $0x1c] sm:$0xf]
        %v3841 = vld [vmem:[%s3832 + $0x20] sm:$0xf]
        %v3842 = vld [vmem:[%s3832 + $0x24] sm:$0xf]
        %v3843 = vld [vmem:[%s3832 + $0x28] sm:$0xf]
        %v3844 = vld [vmem:[%s3832 + $0x2c] sm:$0xf]
        %v3845 = vld [vmem:[%s3832 + $0x30] sm:$0xf]
        %v3846 = vld [vmem:[%s3832 + $0x34] sm:$0xf]
        %v3847 = vld [vmem:[%s3832 + $0x38] sm:$0xf]
        %v3848 = vld [vmem:[%s3832 + $0x3c] sm:$0xf]
        %v3850 = vlaneseq
        %v3851 = vshrl.u32 %v3850, 7
        %v3852 = vsub.s32 0, %v3851
        %v3853 = vrot.slane %v3818, %v3852
        %v3871 = vunpack.c.l.b16 %v3623
        %v3872 = vunpack.c.l.b16 %v3624
        %v3873 = vunpack.c.l.b16 %v3625
        %v3874 = vunpack.c.l.b16 %v3626
        %v3875 = vunpack.c.l.b16 %v3627
        %v3876 = vunpack.c.l.b16 %v3628
        %v3877 = vunpack.c.l.b16 %v3629
        %v3878 = vunpack.c.l.b16 %v3630
        %v3879 = vunpack.c.l.b16 %v3631
        %v3880 = vunpack.c.l.b16 %v3632
        %v3881 = vunpack.c.l.b16 %v3633
        %v3882 = vunpack.c.l.b16 %v3634
        %v3883 = vunpack.c.l.b16 %v3635
        %v3884 = vunpack.c.l.b16 %v3636
        %v3885 = vunpack.c.l.b16 %v3637
        %v3886 = vunpack.c.l.b16 %v3638
        %v3887 = vpack.c.b16 %v3872, %v3871
        %v3888 = vpack.c.b16 %v3874, %v3873
        %v3889 = vpack.c.b16 %v3876, %v3875
        %v3890 = vpack.c.b16 %v3878, %v3877
        %v3891 = vpack.c.b16 %v3880, %v3879
        %v3892 = vpack.c.b16 %v3882, %v3881
        %v3893 = vpack.c.b16 %v3884, %v3883
        %v3894 = vpack.c.b16 %v3886, %v3885
        %3903 = vmatprep.subr.bf16.mxu0 0
        %3904 = vmatpush1.bf16.msra.mxu0 %v3887
        %3905 = vmatprep.subr.bf16.mxu0 0
        %3906 = vmatpush1.bf16.msra.mxu0 %v3888
        %3907 = vmatprep.subr.bf16.mxu0 0
        %3908 = vmatpush1.bf16.msra.mxu0 %v3889
        %3909 = vmatprep.subr.bf16.mxu0 0
        %3910 = vmatpush1.bf16.msra.mxu0 %v3890
        %3911 = vmatprep.subr.bf16.mxu0 0
        %3912 = vmatpush1.bf16.msra.mxu0 %v3891
        %3913 = vmatprep.subr.bf16.mxu0 0
        %3914 = vmatpush1.bf16.msra.mxu0 %v3892
        %3915 = vmatprep.subr.bf16.mxu0 0
        %3916 = vmatpush1.bf16.msra.mxu0 %v3893
        %3917 = vmatprep.subr.bf16.mxu0 0
        %3918 = vmatpush1.bf16.msra.mxu0 %v3894
        %3919 = vmatprep.subr.bf16.mxu0 0
        %3920 = vmatpush1.bf16.msra.mxu0 0
        %3921 = vmatprep.subr.bf16.mxu0 0
        %3922 = vmatpush1.bf16.msra.mxu0 0
        %3923 = vmatprep.subr.bf16.mxu0 0
        %3924 = vmatpush1.bf16.msra.mxu0 0
        %3925 = vmatprep.subr.bf16.mxu0 0
        %3926 = vmatpush1.bf16.msra.mxu0 0
        %3927 = vmatprep.subr.bf16.mxu0 0
        %3928 = vmatpush1.bf16.msra.mxu0 0
        %3929 = vmatprep.subr.bf16.mxu0 0
        %3930 = vmatpush1.bf16.msra.mxu0 0
        %3931 = vmatprep.subr.bf16.mxu0 0
        %3932 = vmatpush1.bf16.msra.mxu0 0
        %3933 = vmatprep.subr.bf16.mxu0 0
        %3934 = vmatpush1.bf16.msra.mxu0 0
        %3935 = vmatprep.mubr.bf16.mxu0 0
        %3936 = vmatmul.mubr.bf16.gmra.mrb[0].mxu0 %v3621
        %v3937 = vpop.f32.mrb[0].mxu0
        %v3938 = vadd.f32 %v3853, %v3937
        %v3939 = vpop.f32.mrb[0].mxu0
        %v3940 = vpop.f32.mrb[0].mxu0
        %v3941 = vpop.f32.mrb[0].mxu0
        %3942 = vdwg.mxu0
        %v3944 = vlaneseq
        %v3945 = vshrl.u32 %v3944, 7
        %v3946 = vsub.s32 0, %v3945
        %v3947 = vrot.slane %v3823, %v3946
        %v3965 = vunpack.c.l.b16 %v3688
        %v3966 = vunpack.c.l.b16 %v3689
        %v3967 = vunpack.c.l.b16 %v3690
        %v3968 = vunpack.c.l.b16 %v3691
        %v3969 = vunpack.c.l.b16 %v3692
        %v3970 = vunpack.c.l.b16 %v3693
        %v3971 = vunpack.c.l.b16 %v3694
        %v3972 = vunpack.c.l.b16 %v3695
        %v3973 = vunpack.c.l.b16 %v3696
        %v3974 = vunpack.c.l.b16 %v3697
        %v3975 = vunpack.c.l.b16 %v3698
        %v3976 = vunpack.c.l.b16 %v3699
        %v3977 = vunpack.c.l.b16 %v3700
        %v3978 = vunpack.c.l.b16 %v3701
        %v3979 = vunpack.c.l.b16 %v3702
        %v3980 = vunpack.c.l.b16 %v3703
        %v3981 = vpack.c.b16 %v3966, %v3965
        %v3982 = vpack.c.b16 %v3968, %v3967
        %v3983 = vpack.c.b16 %v3970, %v3969
        %v3984 = vpack.c.b16 %v3972, %v3971
        %v3985 = vpack.c.b16 %v3974, %v3973
        %v3986 = vpack.c.b16 %v3976, %v3975
        %v3987 = vpack.c.b16 %v3978, %v3977
        %v3988 = vpack.c.b16 %v3980, %v3979
        %3997 = vmatprep.subr.bf16.mxu0 0
        %3998 = vmatpush1.bf16.msra.mxu0 %v3981
        %3999 = vmatprep.subr.bf16.mxu0 0
        %4000 = vmatpush1.bf16.msra.mxu0 %v3982
        %4001 = vmatprep.subr.bf16.mxu0 0
        %4002 = vmatpush1.bf16.msra.mxu0 %v3983
        %4003 = vmatprep.subr.bf16.mxu0 0
        %4004 = vmatpush1.bf16.msra.mxu0 %v3984
        %4005 = vmatprep.subr.bf16.mxu0 0
        %4006 = vmatpush1.bf16.msra.mxu0 %v3985
        %4007 = vmatprep.subr.bf16.mxu0 0
        %4008 = vmatpush1.bf16.msra.mxu0 %v3986
        %4009 = vmatprep.subr.bf16.mxu0 0
        %4010 = vmatpush1.bf16.msra.mxu0 %v3987
        %4011 = vmatprep.subr.bf16.mxu0 0
        %4012 = vmatpush1.bf16.msra.mxu0 %v3988
        %4013 = vmatprep.subr.bf16.mxu0 0
        %4014 = vmatpush1.bf16.msra.mxu0 0
        %4015 = vmatprep.subr.bf16.mxu0 0
        %4016 = vmatpush1.bf16.msra.mxu0 0
        %4017 = vmatprep.subr.bf16.mxu0 0
        %4018 = vmatpush1.bf16.msra.mxu0 0
        %4019 = vmatprep.subr.bf16.mxu0 0
        %4020 = vmatpush1.bf16.msra.mxu0 0
        %4021 = vmatprep.subr.bf16.mxu0 0
        %4022 = vmatpush1.bf16.msra.mxu0 0
        %4023 = vmatprep.subr.bf16.mxu0 0
        %4024 = vmatpush1.bf16.msra.mxu0 0
        %4025 = vmatprep.subr.bf16.mxu0 0
        %4026 = vmatpush1.bf16.msra.mxu0 0
        %4027 = vmatprep.subr.bf16.mxu0 0
        %4028 = vmatpush1.bf16.msra.mxu0 0
        %4029 = vmatprep.mubr.bf16.mxu0 0
        %4030 = vmatmul.mubr.bf16.gmra.mrb[0].mxu0 %v3621
        %v4031 = vpop.f32.mrb[0].mxu0
        %v4032 = vadd.f32 %v3947, %v4031
        %v4033 = vpop.f32.mrb[0].mxu0
        %v4034 = vpop.f32.mrb[0].mxu0
        %v4035 = vpop.f32.mrb[0].mxu0
        %4036 = vdwg.mxu0
        %v4038 = vlaneseq
        %v4039 = vshrl.u32 %v4038, 7
        %v4040 = vsub.s32 0, %v4039
        %v4041 = vrot.slane %v3828, %v4040
        %v4059 = vunpack.c.l.b16 %v3753
        %v4060 = vunpack.c.l.b16 %v3754
        %v4061 = vunpack.c.l.b16 %v3755
        %v4062 = vunpack.c.l.b16 %v3756
        %v4063 = vunpack.c.l.b16 %v3757
        %v4064 = vunpack.c.l.b16 %v3758
        %v4065 = vunpack.c.l.b16 %v3759
        %v4066 = vunpack.c.l.b16 %v3760
        %v4067 = vunpack.c.l.b16 %v3761
        %v4068 = vunpack.c.l.b16 %v3762
        %v4069 = vunpack.c.l.b16 %v3763
        %v4070 = vunpack.c.l.b16 %v3764
        %v4071 = vunpack.c.l.b16 %v3765
        %v4072 = vunpack.c.l.b16 %v3766
        %v4073 = vunpack.c.l.b16 %v3767
        %v4074 = vunpack.c.l.b16 %v3768
        %v4075 = vpack.c.b16 %v4060, %v4059
        %v4076 = vpack.c.b16 %v4062, %v4061
        %v4077 = vpack.c.b16 %v4064, %v4063
        %v4078 = vpack.c.b16 %v4066, %v4065
        %v4079 = vpack.c.b16 %v4068, %v4067
        %v4080 = vpack.c.b16 %v4070, %v4069
        %v4081 = vpack.c.b16 %v4072, %v4071
        %v4082 = vpack.c.b16 %v4074, %v4073
        %4091 = vmatprep.subr.bf16.mxu0 0
        %4092 = vmatpush1.bf16.msra.mxu0 %v4075
        %4093 = vmatprep.subr.bf16.mxu0 0
        %4094 = vmatpush1.bf16.msra.mxu0 %v4076
        %4095 = vmatprep.subr.bf16.mxu0 0
        %4096 = vmatpush1.bf16.msra.mxu0 %v4077
        %4097 = vmatprep.subr.bf16.mxu0 0
        %4098 = vmatpush1.bf16.msra.mxu0 %v4078
        %4099 = vmatprep.subr.bf16.mxu0 0
        %4100 = vmatpush1.bf16.msra.mxu0 %v4079
        %4101 = vmatprep.subr.bf16.mxu0 0
        %4102 = vmatpush1.bf16.msra.mxu0 %v4080
        %4103 = vmatprep.subr.bf16.mxu0 0
        %4104 = vmatpush1.bf16.msra.mxu0 %v4081
        %4105 = vmatprep.subr.bf16.mxu0 0
        %4106 = vmatpush1.bf16.msra.mxu0 %v4082
        %4107 = vmatprep.subr.bf16.mxu0 0
        %4108 = vmatpush1.bf16.msra.mxu0 0
        %4109 = vmatprep.subr.bf16.mxu0 0
        %4110 = vmatpush1.bf16.msra.mxu0 0
        %4111 = vmatprep.subr.bf16.mxu0 0
        %4112 = vmatpush1.bf16.msra.mxu0 0
        %4113 = vmatprep.subr.bf16.mxu0 0
        %4114 = vmatpush1.bf16.msra.mxu0 0
        %4115 = vmatprep.subr.bf16.mxu0 0
        %4116 = vmatpush1.bf16.msra.mxu0 0
        %4117 = vmatprep.subr.bf16.mxu0 0
        %4118 = vmatpush1.bf16.msra.mxu0 0
        %4119 = vmatprep.subr.bf16.mxu0 0
        %4120 = vmatpush1.bf16.msra.mxu0 0
        %4121 = vmatprep.subr.bf16.mxu0 0
        %4122 = vmatpush1.bf16.msra.mxu0 0
        %4123 = vmatprep.mubr.bf16.mxu0 0
        %4124 = vmatmul.mubr.bf16.gmra.mrb[0].mxu0 %v3621
        %v4125 = vpop.f32.mrb[0].mxu0
        %v4126 = vadd.f32 %v4041, %v4125
        %v4127 = vpop.f32.mrb[0].mxu0
        %v4128 = vpop.f32.mrb[0].mxu0
        %v4129 = vpop.f32.mrb[0].mxu0
        %4130 = vdwg.mxu0
        %v4132 = vlaneseq
        %v4133 = vshrl.u32 %v4132, 7
        %v4134 = vsub.s32 0, %v4133
        %v4135 = vrot.slane %v3819, %v4134
        %v4153 = vunpack.c.l.b16 %v3639
        %v4154 = vunpack.c.l.b16 %v3640
        %v4155 = vunpack.c.l.b16 %v3641
        %v4156 = vunpack.c.l.b16 %v3642
        %v4157 = vunpack.c.l.b16 %v3643
        %v4158 = vunpack.c.l.b16 %v3644
        %v4159 = vunpack.c.l.b16 %v3645
        %v4160 = vunpack.c.l.b16 %v3646
        %v4161 = vunpack.c.l.b16 %v3647
        %v4162 = vunpack.c.l.b16 %v3648
        %v4163 = vunpack.c.l.b16 %v3649
        %v4164 = vunpack.c.l.b16 %v3650
        %v4165 = vunpack.c.l.b16 %v3651
        %v4166 = vunpack.c.l.b16 %v3652
        %v4167 = vunpack.c.l.b16 %v3653
        %v4168 = vunpack.c.l.b16 %v3654
        %v4169 = vpack.c.b16 %v4154, %v4153
        %v4170 = vpack.c.b16 %v4156, %v4155
        %v4171 = vpack.c.b16 %v4158, %v4157
        %v4172 = vpack.c.b16 %v4160, %v4159
        %v4173 = vpack.c.b16 %v4162, %v4161
        %v4174 = vpack.c.b16 %v4164, %v4163
        %v4175 = vpack.c.b16 %v4166, %v4165
        %v4176 = vpack.c.b16 %v4168, %v4167
        %4185 = vmatprep.subr.bf16.mxu0 0
        %4186 = vmatpush1.bf16.msra.mxu0 %v4169
        %4187 = vmatprep.subr.bf16.mxu0 0
        %4188 = vmatpush1.bf16.msra.mxu0 %v4170
        %4189 = vmatprep.subr.bf16.mxu0 0
        %4190 = vmatpush1.bf16.msra.mxu0 %v4171
        %4191 = vmatprep.subr.bf16.mxu0 0
        %4192 = vmatpush1.bf16.msra.mxu0 %v4172
        %4193 = vmatprep.subr.bf16.mxu0 0
        %4194 = vmatpush1.bf16.msra.mxu0 %v4173
        %4195 = vmatprep.subr.bf16.mxu0 0
        %4196 = vmatpush1.bf16.msra.mxu0 %v4174
        %4197 = vmatprep.subr.bf16.mxu0 0
        %4198 = vmatpush1.bf16.msra.mxu0 %v4175
        %4199 = vmatprep.subr.bf16.mxu0 0
        %4200 = vmatpush1.bf16.msra.mxu0 %v4176
        %4201 = vmatprep.subr.bf16.mxu0 0
        %4202 = vmatpush1.bf16.msra.mxu0 0
        %4203 = vmatprep.subr.bf16.mxu0 0
        %4204 = vmatpush1.bf16.msra.mxu0 0
        %4205 = vmatprep.subr.bf16.mxu0 0
        %4206 = vmatpush1.bf16.msra.mxu0 0
        %4207 = vmatprep.subr.bf16.mxu0 0
        %4208 = vmatpush1.bf16.msra.mxu0 0
        %4209 = vmatprep.subr.bf16.mxu0 0
        %4210 = vmatpush1.bf16.msra.mxu0 0
        %4211 = vmatprep.subr.bf16.mxu0 0
        %4212 = vmatpush1.bf16.msra.mxu0 0
        %4213 = vmatprep.subr.bf16.mxu0 0
        %4214 = vmatpush1.bf16.msra.mxu0 0
        %4215 = vmatprep.subr.bf16.mxu0 0
        %4216 = vmatpush1.bf16.msra.mxu0 0
        %4217 = vmatprep.mubr.bf16.mxu0 0
        %4218 = vmatmul.mubr.bf16.gmra.mrb[0].mxu0 %v3621
        %v4219 = vpop.f32.mrb[0].mxu0
        %v4220 = vadd.f32 %v4135, %v4219
        %v4221 = vpop.f32.mrb[0].mxu0
        %v4222 = vpop.f32.mrb[0].mxu0
        %v4223 = vpop.f32.mrb[0].mxu0
        %4224 = vdwg.mxu0
        %v4226 = vlaneseq
        %v4227 = vshrl.u32 %v4226, 7
        %v4228 = vsub.s32 0, %v4227
        %v4229 = vrot.slane %v3824, %v4228
        %v4247 = vunpack.c.l.b16 %v3704
        %v4248 = vunpack.c.l.b16 %v3705
        %v4249 = vunpack.c.l.b16 %v3706
        %v4250 = vunpack.c.l.b16 %v3707
        %v4251 = vunpack.c.l.b16 %v3708
        %v4252 = vunpack.c.l.b16 %v3709
        %v4253 = vunpack.c.l.b16 %v3710
        %v4254 = vunpack.c.l.b16 %v3711
        %v4255 = vunpack.c.l.b16 %v3712
        %v4256 = vunpack.c.l.b16 %v3713
        %v4257 = vunpack.c.l.b16 %v3714
        %v4258 = vunpack.c.l.b16 %v3715
        %v4259 = vunpack.c.l.b16 %v3716
        %v4260 = vunpack.c.l.b16 %v3717
        %v4261 = vunpack.c.l.b16 %v3718
        %v4262 = vunpack.c.l.b16 %v3719
        %v4263 = vpack.c.b16 %v4248, %v4247
        %v4264 = vpack.c.b16 %v4250, %v4249
        %v4265 = vpack.c.b16 %v4252, %v4251
        %v4266 = vpack.c.b16 %v4254, %v4253
        %v4267 = vpack.c.b16 %v4256, %v4255
        %v4268 = vpack.c.b16 %v4258, %v4257
        %v4269 = vpack.c.b16 %v4260, %v4259
        %v4270 = vpack.c.b16 %v4262, %v4261
        %4279 = vmatprep.subr.bf16.mxu0 0
        %4280 = vmatpush1.bf16.msra.mxu0 %v4263
        %4281 = vmatprep.subr.bf16.mxu0 0
        %4282 = vmatpush1.bf16.msra.mxu0 %v4264
        %4283 = vmatprep.subr.bf16.mxu0 0
        %4284 = vmatpush1.bf16.msra.mxu0 %v4265
        %4285 = vmatprep.subr.bf16.mxu0 0
        %4286 = vmatpush1.bf16.msra.mxu0 %v4266
        %4287 = vmatprep.subr.bf16.mxu0 0
        %4288 = vmatpush1.bf16.msra.mxu0 %v4267
        %4289 = vmatprep.subr.bf16.mxu0 0
        %4290 = vmatpush1.bf16.msra.mxu0 %v4268
        %4291 = vmatprep.subr.bf16.mxu0 0
        %4292 = vmatpush1.bf16.msra.mxu0 %v4269
        %4293 = vmatprep.subr.bf16.mxu0 0
        %4294 = vmatpush1.bf16.msra.mxu0 %v4270
        %4295 = vmatprep.subr.bf16.mxu0 0
        %4296 = vmatpush1.bf16.msra.mxu0 0
        %4297 = vmatprep.subr.bf16.mxu0 0
        %4298 = vmatpush1.bf16.msra.mxu0 0
        %4299 = vmatprep.subr.bf16.mxu0 0
        %4300 = vmatpush1.bf16.msra.mxu0 0
        %4301 = vmatprep.subr.bf16.mxu0 0
        %4302 = vmatpush1.bf16.msra.mxu0 0
        %4303 = vmatprep.subr.bf16.mxu0 0
        %4304 = vmatpush1.bf16.msra.mxu0 0
        %4305 = vmatprep.subr.bf16.mxu0 0
        %4306 = vmatpush1.bf16.msra.mxu0 0
        %4307 = vmatprep.subr.bf16.mxu0 0
        %4308 = vmatpush1.bf16.msra.mxu0 0
        %4309 = vmatprep.subr.bf16.mxu0 0
        %4310 = vmatpush1.bf16.msra.mxu0 0
        %4311 = vmatprep.mubr.bf16.mxu0 0
        %4312 = vmatmul.mubr.bf16.gmra.mrb[0].mxu0 %v3621
        %v4313 = vpop.f32.mrb[0].mxu0
        %v4314 = vadd.f32 %v4229, %v4313
        %v4315 = vpop.f32.mrb[0].mxu0
        %v4316 = vpop.f32.mrb[0].mxu0
        %v4317 = vpop.f32.mrb[0].mxu0
        %4318 = vdwg.mxu0
        %v4320 = vlaneseq
        %v4321 = vshrl.u32 %v4320, 7
        %v4322 = vsub.s32 0, %v4321
        %v4323 = vrot.slane %v3829, %v4322
        %v4341 = vunpack.c.l.b16 %v3769
        %v4342 = vunpack.c.l.b16 %v3770
        %v4343 = vunpack.c.l.b16 %v3771
        %v4344 = vunpack.c.l.b16 %v3772
        %v4345 = vunpack.c.l.b16 %v3773
        %v4346 = vunpack.c.l.b16 %v3774
        %v4347 = vunpack.c.l.b16 %v3775
        %v4348 = vunpack.c.l.b16 %v3776
        %v4349 = vunpack.c.l.b16 %v3777
        %v4350 = vunpack.c.l.b16 %v3778
        %v4351 = vunpack.c.l.b16 %v3779
        %v4352 = vunpack.c.l.b16 %v3780
        %v4353 = vunpack.c.l.b16 %v3781
        %v4354 = vunpack.c.l.b16 %v3782
        %v4355 = vunpack.c.l.b16 %v3783
        %v4356 = vunpack.c.l.b16 %v3784
        %v4357 = vpack.c.b16 %v4342, %v4341
        %v4358 = vpack.c.b16 %v4344, %v4343
        %v4359 = vpack.c.b16 %v4346, %v4345
        %v4360 = vpack.c.b16 %v4348, %v4347
        %v4361 = vpack.c.b16 %v4350, %v4349
        %v4362 = vpack.c.b16 %v4352, %v4351
        %v4363 = vpack.c.b16 %v4354, %v4353
        %v4364 = vpack.c.b16 %v4356, %v4355
        %4373 = vmatprep.subr.bf16.mxu0 0
        %4374 = vmatpush1.bf16.msra.mxu0 %v4357
        %4375 = vmatprep.subr.bf16.mxu0 0
        %4376 = vmatpush1.bf16.msra.mxu0 %v4358
        %4377 = vmatprep.subr.bf16.mxu0 0
        %4378 = vmatpush1.bf16.msra.mxu0 %v4359
        %4379 = vmatprep.subr.bf16.mxu0 0
        %4380 = vmatpush1.bf16.msra.mxu0 %v4360
        %4381 = vmatprep.subr.bf16.mxu0 0
        %4382 = vmatpush1.bf16.msra.mxu0 %v4361
        %4383 = vmatprep.subr.bf16.mxu0 0
        %4384 = vmatpush1.bf16.msra.mxu0 %v4362
        %4385 = vmatprep.subr.bf16.mxu0 0
        %4386 = vmatpush1.bf16.msra.mxu0 %v4363
        %4387 = vmatprep.subr.bf16.mxu0 0
        %4388 = vmatpush1.bf16.msra.mxu0 %v4364
        %4389 = vmatprep.subr.bf16.mxu0 0
        %4390 = vmatpush1.bf16.msra.mxu0 0
        %4391 = vmatprep.subr.bf16.mxu0 0
        %4392 = vmatpush1.bf16.msra.mxu0 0
        %4393 = vmatprep.subr.bf16.mxu0 0
        %4394 = vmatpush1.bf16.msra.mxu0 0
        %4395 = vmatprep.subr.bf16.mxu0 0
        %4396 = vmatpush1.bf16.msra.mxu0 0
        %4397 = vmatprep.subr.bf16.mxu0 0
        %4398 = vmatpush1.bf16.msra.mxu0 0
        %4399 = vmatprep.subr.bf16.mxu0 0
        %4400 = vmatpush1.bf16.msra.mxu0 0
        %4401 = vmatprep.subr.bf16.mxu0 0
        %4402 = vmatpush1.bf16.msra.mxu0 0
        %4403 = vmatprep.subr.bf16.mxu0 0
        %4404 = vmatpush1.bf16.msra.mxu0 0
        %4405 = vmatprep.mubr.bf16.mxu0 0
        %4406 = vmatmul.mubr.bf16.gmra.mrb[0].mxu0 %v3621
        %v4407 = vpop.f32.mrb[0].mxu0
        %v4408 = vadd.f32 %v4323, %v4407
        %v4409 = vpop.f32.mrb[0].mxu0
        %v4410 = vpop.f32.mrb[0].mxu0
        %v4411 = vpop.f32.mrb[0].mxu0
        %4412 = vdwg.mxu0
        %v4414 = vlaneseq
        %v4415 = vshrl.u32 %v4414, 7
        %v4416 = vsub.s32 0, %v4415
        %v4417 = vrot.slane %v3820, %v4416
        %v4435 = vunpack.c.l.b16 %v3655
        %v4436 = vunpack.c.l.b16 %v3656
        %v4437 = vunpack.c.l.b16 %v3657
        %v4438 = vunpack.c.l.b16 %v3658
        %v4439 = vunpack.c.l.b16 %v3659
        %v4440 = vunpack.c.l.b16 %v3660
        %v4441 = vunpack.c.l.b16 %v3661
        %v4442 = vunpack.c.l.b16 %v3662
        %v4443 = vunpack.c.l.b16 %v3663
        %v4444 = vunpack.c.l.b16 %v3664
        %v4445 = vunpack.c.l.b16 %v3665
        %v4446 = vunpack.c.l.b16 %v3666
        %v4447 = vunpack.c.l.b16 %v3667
        %v4448 = vunpack.c.l.b16 %v3668
        %v4449 = vunpack.c.l.b16 %v3669
        %v4450 = vunpack.c.l.b16 %v3670
        %v4451 = vpack.c.b16 %v4436, %v4435
        %v4452 = vpack.c.b16 %v4438, %v4437
        %v4453 = vpack.c.b16 %v4440, %v4439
        %v4454 = vpack.c.b16 %v4442, %v4441
        %v4455 = vpack.c.b16 %v4444, %v4443
        %v4456 = vpack.c.b16 %v4446, %v4445
        %v4457 = vpack.c.b16 %v4448, %v4447
        %v4458 = vpack.c.b16 %v4450, %v4449
        %4467 = vmatprep.subr.bf16.mxu0 0
        %4468 = vmatpush1.bf16.msra.mxu0 %v4451
        %4469 = vmatprep.subr.bf16.mxu0 0
        %4470 = vmatpush1.bf16.msra.mxu0 %v4452
        %4471 = vmatprep.subr.bf16.mxu0 0
        %4472 = vmatpush1.bf16.msra.mxu0 %v4453
        %4473 = vmatprep.subr.bf16.mxu0 0
        %4474 = vmatpush1.bf16.msra.mxu0 %v4454
        %4475 = vmatprep.subr.bf16.mxu0 0
        %4476 = vmatpush1.bf16.msra.mxu0 %v4455
        %4477 = vmatprep.subr.bf16.mxu0 0
        %4478 = vmatpush1.bf16.msra.mxu0 %v4456
        %4479 = vmatprep.subr.bf16.mxu0 0
        %4480 = vmatpush1.bf16.msra.mxu0 %v4457
        %4481 = vmatprep.subr.bf16.mxu0 0
        %4482 = vmatpush1.bf16.msra.mxu0 %v4458
        %4483 = vmatprep.subr.bf16.mxu0 0
        %4484 = vmatpush1.bf16.msra.mxu0 0
        %4485 = vmatprep.subr.bf16.mxu0 0
        %4486 = vmatpush1.bf16.msra.mxu0 0
        %4487 = vmatprep.subr.bf16.mxu0 0
        %4488 = vmatpush1.bf16.msra.mxu0 0
        %4489 = vmatprep.subr.bf16.mxu0 0
        %4490 = vmatpush1.bf16.msra.mxu0 0
        %4491 = vmatprep.subr.bf16.mxu0 0
        %4492 = vmatpush1.bf16.msra.mxu0 0
        %4493 = vmatprep.subr.bf16.mxu0 0
        %4494 = vmatpush1.bf16.msra.mxu0 0
        %4495 = vmatprep.subr.bf16.mxu0 0
        %4496 = vmatpush1.bf16.msra.mxu0 0
        %4497 = vmatprep.subr.bf16.mxu0 0
        %4498 = vmatpush1.bf16.msra.mxu0 0
        %4499 = vmatprep.mubr.bf16.mxu0 0
        %4500 = vmatmul.mubr.bf16.gmra.mrb[0].mxu0 %v3621
        %v4501 = vpop.f32.mrb[0].mxu0
        %v4502 = vadd.f32 %v4417, %v4501
        %v4503 = vpop.f32.mrb[0].mxu0
        %v4504 = vpop.f32.mrb[0].mxu0
        %v4505 = vpop.f32.mrb[0].mxu0
        %4506 = vdwg.mxu0
        %v4508 = vlaneseq
        %v4509 = vshrl.u32 %v4508, 7
        %v4510 = vsub.s32 0, %v4509
        %v4511 = vrot.slane %v3825, %v4510
        %v4529 = vunpack.c.l.b16 %v3720
        %v4530 = vunpack.c.l.b16 %v3721
        %v4531 = vunpack.c.l.b16 %v3722
        %v4532 = vunpack.c.l.b16 %v3723
        %v4533 = vunpack.c.l.b16 %v3724
        %v4534 = vunpack.c.l.b16 %v3725
        %v4535 = vunpack.c.l.b16 %v3726
        %v4536 = vunpack.c.l.b16 %v3727
        %v4537 = vunpack.c.l.b16 %v3728
        %v4538 = vunpack.c.l.b16 %v3729
        %v4539 = vunpack.c.l.b16 %v3730
        %v4540 = vunpack.c.l.b16 %v3731
        %v4541 = vunpack.c.l.b16 %v3732
        %v4542 = vunpack.c.l.b16 %v3733
        %v4543 = vunpack.c.l.b16 %v3734
        %v4544 = vunpack.c.l.b16 %v3735
        %v4545 = vpack.c.b16 %v4530, %v4529
        %v4546 = vpack.c.b16 %v4532, %v4531
        %v4547 = vpack.c.b16 %v4534, %v4533
        %v4548 = vpack.c.b16 %v4536, %v4535
        %v4549 = vpack.c.b16 %v4538, %v4537
        %v4550 = vpack.c.b16 %v4540, %v4539
        %v4551 = vpack.c.b16 %v4542, %v4541
        %v4552 = vpack.c.b16 %v4544, %v4543
        %4561 = vmatprep.subr.bf16.mxu0 0
        %4562 = vmatpush1.bf16.msra.mxu0 %v4545
        %4563 = vmatprep.subr.bf16.mxu0 0
        %4564 = vmatpush1.bf16.msra.mxu0 %v4546
        %4565 = vmatprep.subr.bf16.mxu0 0
        %4566 = vmatpush1.bf16.msra.mxu0 %v4547
        %4567 = vmatprep.subr.bf16.mxu0 0
        %4568 = vmatpush1.bf16.msra.mxu0 %v4548
        %4569 = vmatprep.subr.bf16.mxu0 0
        %4570 = vmatpush1.bf16.msra.mxu0 %v4549
        %4571 = vmatprep.subr.bf16.mxu0 0
        %4572 = vmatpush1.bf16.msra.mxu0 %v4550
        %4573 = vmatprep.subr.bf16.mxu0 0
        %4574 = vmatpush1.bf16.msra.mxu0 %v4551
        %4575 = vmatprep.subr.bf16.mxu0 0
        %4576 = vmatpush1.bf16.msra.mxu0 %v4552
        %4577 = vmatprep.subr.bf16.mxu0 0
        %4578 = vmatpush1.bf16.msra.mxu0 0
        %4579 = vmatprep.subr.bf16.mxu0 0
        %4580 = vmatpush1.bf16.msra.mxu0 0
        %4581 = vmatprep.subr.bf16.mxu0 0
        %4582 = vmatpush1.bf16.msra.mxu0 0
        %4583 = vmatprep.subr.bf16.mxu0 0
        %4584 = vmatpush1.bf16.msra.mxu0 0
        %4585 = vmatprep.subr.bf16.mxu0 0
        %4586 = vmatpush1.bf16.msra.mxu0 0
        %4587 = vmatprep.subr.bf16.mxu0 0
        %4588 = vmatpush1.bf16.msra.mxu0 0
        %4589 = vmatprep.subr.bf16.mxu0 0
        %4590 = vmatpush1.bf16.msra.mxu0 0
        %4591 = vmatprep.subr.bf16.mxu0 0
        %4592 = vmatpush1.bf16.msra.mxu0 0
        %4593 = vmatprep.mubr.bf16.mxu0 0
        %4594 = vmatmul.mubr.bf16.gmra.mrb[0].mxu0 %v3621
        %v4595 = vpop.f32.mrb[0].mxu0
        %v4596 = vadd.f32 %v4511, %v4595
        %v4597 = vpop.f32.mrb[0].mxu0
        %v4598 = vpop.f32.mrb[0].mxu0
        %v4599 = vpop.f32.mrb[0].mxu0
        %4600 = vdwg.mxu0
        %v4602 = vlaneseq
        %v4603 = vshrl.u32 %v4602, 7
        %v4604 = vsub.s32 0, %v4603
        %v4605 = vrot.slane %v3830, %v4604
        %v4623 = vunpack.c.l.b16 %v3785
        %v4624 = vunpack.c.l.b16 %v3786
        %v4625 = vunpack.c.l.b16 %v3787
        %v4626 = vunpack.c.l.b16 %v3788
        %v4627 = vunpack.c.l.b16 %v3789
        %v4628 = vunpack.c.l.b16 %v3790
        %v4629 = vunpack.c.l.b16 %v3791
        %v4630 = vunpack.c.l.b16 %v3792
        %v4631 = vunpack.c.l.b16 %v3793
        %v4632 = vunpack.c.l.b16 %v3794
        %v4633 = vunpack.c.l.b16 %v3795
        %v4634 = vunpack.c.l.b16 %v3796
        %v4635 = vunpack.c.l.b16 %v3797
        %v4636 = vunpack.c.l.b16 %v3798
        %v4637 = vunpack.c.l.b16 %v3799
        %v4638 = vunpack.c.l.b16 %v3800
        %v4639 = vpack.c.b16 %v4624, %v4623
        %v4640 = vpack.c.b16 %v4626, %v4625
        %v4641 = vpack.c.b16 %v4628, %v4627
        %v4642 = vpack.c.b16 %v4630, %v4629
        %v4643 = vpack.c.b16 %v4632, %v4631
        %v4644 = vpack.c.b16 %v4634, %v4633
        %v4645 = vpack.c.b16 %v4636, %v4635
        %v4646 = vpack.c.b16 %v4638, %v4637
        %4655 = vmatprep.subr.bf16.mxu0 0
        %4656 = vmatpush1.bf16.msra.mxu0 %v4639
        %4657 = vmatprep.subr.bf16.mxu0 0
        %4658 = vmatpush1.bf16.msra.mxu0 %v4640
        %4659 = vmatprep.subr.bf16.mxu0 0
        %4660 = vmatpush1.bf16.msra.mxu0 %v4641
        %4661 = vmatprep.subr.bf16.mxu0 0
        %4662 = vmatpush1.bf16.msra.mxu0 %v4642
        %4663 = vmatprep.subr.bf16.mxu0 0
        %4664 = vmatpush1.bf16.msra.mxu0 %v4643
        %4665 = vmatprep.subr.bf16.mxu0 0
        %4666 = vmatpush1.bf16.msra.mxu0 %v4644
        %4667 = vmatprep.subr.bf16.mxu0 0
        %4668 = vmatpush1.bf16.msra.mxu0 %v4645
        %4669 = vmatprep.subr.bf16.mxu0 0
        %4670 = vmatpush1.bf16.msra.mxu0 %v4646
        %4671 = vmatprep.subr.bf16.mxu0 0
        %4672 = vmatpush1.bf16.msra.mxu0 0
        %4673 = vmatprep.subr.bf16.mxu0 0
        %4674 = vmatpush1.bf16.msra.mxu0 0
        %4675 = vmatprep.subr.bf16.mxu0 0
        %4676 = vmatpush1.bf16.msra.mxu0 0
        %4677 = vmatprep.subr.bf16.mxu0 0
        %4678 = vmatpush1.bf16.msra.mxu0 0
        %4679 = vmatprep.subr.bf16.mxu0 0
        %4680 = vmatpush1.bf16.msra.mxu0 0
        %4681 = vmatprep.subr.bf16.mxu0 0
        %4682 = vmatpush1.bf16.msra.mxu0 0
        %4683 = vmatprep.subr.bf16.mxu0 0
        %4684 = vmatpush1.bf16.msra.mxu0 0
        %4685 = vmatprep.subr.bf16.mxu0 0
        %4686 = vmatpush1.bf16.msra.mxu0 0
        %4687 = vmatprep.mubr.bf16.mxu0 0
        %4688 = vmatmul.mubr.bf16.gmra.mrb[0].mxu0 %v3621
        %v4689 = vpop.f32.mrb[0].mxu0
        %v4690 = vadd.f32 %v4605, %v4689
        %v4691 = vpop.f32.mrb[0].mxu0
        %v4692 = vpop.f32.mrb[0].mxu0
        %v4693 = vpop.f32.mrb[0].mxu0
        %4694 = vdwg.mxu0
        %v4696 = vlaneseq
        %v4697 = vshrl.u32 %v4696, 7
        %v4698 = vsub.s32 0, %v4697
        %v4699 = vrot.slane %v3821, %v4698
        %v4717 = vunpack.c.l.b16 %v3671
        %v4718 = vunpack.c.l.b16 %v3672
        %v4719 = vunpack.c.l.b16 %v3673
        %v4720 = vunpack.c.l.b16 %v3674
        %v4721 = vunpack.c.l.b16 %v3675
        %v4722 = vunpack.c.l.b16 %v3676
        %v4723 = vunpack.c.l.b16 %v3677
        %v4724 = vunpack.c.l.b16 %v3678
        %v4725 = vunpack.c.l.b16 %v3679
        %v4726 = vunpack.c.l.b16 %v3680
        %v4727 = vunpack.c.l.b16 %v3681
        %v4728 = vunpack.c.l.b16 %v3682
        %v4729 = vunpack.c.l.b16 %v3683
        %v4730 = vunpack.c.l.b16 %v3684
        %v4731 = vunpack.c.l.b16 %v3685
        %v4732 = vunpack.c.l.b16 %v3686
        %v4733 = vpack.c.b16 %v4718, %v4717
        %v4734 = vpack.c.b16 %v4720, %v4719
        %v4735 = vpack.c.b16 %v4722, %v4721
        %v4736 = vpack.c.b16 %v4724, %v4723
        %v4737 = vpack.c.b16 %v4726, %v4725
        %v4738 = vpack.c.b16 %v4728, %v4727
        %v4739 = vpack.c.b16 %v4730, %v4729
        %v4740 = vpack.c.b16 %v4732, %v4731
        %4749 = vmatprep.subr.bf16.mxu0 0
        %4750 = vmatpush1.bf16.msra.mxu0 %v4733
        %4751 = vmatprep.subr.bf16.mxu0 0
        %4752 = vmatpush1.bf16.msra.mxu0 %v4734
        %4753 = vmatprep.subr.bf16.mxu0 0
        %4754 = vmatpush1.bf16.msra.mxu0 %v4735
        %4755 = vmatprep.subr.bf16.mxu0 0
        %4756 = vmatpush1.bf16.msra.mxu0 %v4736
        %4757 = vmatprep.subr.bf16.mxu0 0
        %4758 = vmatpush1.bf16.msra.mxu0 %v4737
        %4759 = vmatprep.subr.bf16.mxu0 0
        %4760 = vmatpush1.bf16.msra.mxu0 %v4738
        %4761 = vmatprep.subr.bf16.mxu0 0
        %4762 = vmatpush1.bf16.msra.mxu0 %v4739
        %4763 = vmatprep.subr.bf16.mxu0 0
        %4764 = vmatpush1.bf16.msra.mxu0 %v4740
        %4765 = vmatprep.subr.bf16.mxu0 0
        %4766 = vmatpush1.bf16.msra.mxu0 0
        %4767 = vmatprep.subr.bf16.mxu0 0
        %4768 = vmatpush1.bf16.msra.mxu0 0
        %4769 = vmatprep.subr.bf16.mxu0 0
        %4770 = vmatpush1.bf16.msra.mxu0 0
        %4771 = vmatprep.subr.bf16.mxu0 0
        %4772 = vmatpush1.bf16.msra.mxu0 0
        %4773 = vmatprep.subr.bf16.mxu0 0
        %4774 = vmatpush1.bf16.msra.mxu0 0
        %4775 = vmatprep.subr.bf16.mxu0 0
        %4776 = vmatpush1.bf16.msra.mxu0 0
        %4777 = vmatprep.subr.bf16.mxu0 0
        %4778 = vmatpush1.bf16.msra.mxu0 0
        %4779 = vmatprep.subr.bf16.mxu0 0
        %4780 = vmatpush1.bf16.msra.mxu0 0
        %4781 = vmatprep.mubr.bf16.mxu0 0
        %4782 = vmatmul.mubr.bf16.gmra.mrb[0].mxu0 %v3621
        %v4783 = vpop.f32.mrb[0].mxu0
        %v4784 = vadd.f32 %v4699, %v4783
        %v4785 = vpop.f32.mrb[0].mxu0
        %v4786 = vpop.f32.mrb[0].mxu0
        %v4787 = vpop.f32.mrb[0].mxu0
        %4788 = vdwg.mxu0
        %v4790 = vlaneseq
        %v4791 = vshrl.u32 %v4790, 7
        %v4792 = vsub.s32 0, %v4791
        %v4793 = vrot.slane %v3826, %v4792
        %v4811 = vunpack.c.l.b16 %v3736
        %v4812 = vunpack.c.l.b16 %v3737
        %v4813 = vunpack.c.l.b16 %v3738
        %v4814 = vunpack.c.l.b16 %v3739
        %v4815 = vunpack.c.l.b16 %v3740
        %v4816 = vunpack.c.l.b16 %v3741
        %v4817 = vunpack.c.l.b16 %v3742
        %v4818 = vunpack.c.l.b16 %v3743
        %v4819 = vunpack.c.l.b16 %v3744
        %v4820 = vunpack.c.l.b16 %v3745
        %v4821 = vunpack.c.l.b16 %v3746
        %v4822 = vunpack.c.l.b16 %v3747
        %v4823 = vunpack.c.l.b16 %v3748
        %v4824 = vunpack.c.l.b16 %v3749
        %v4825 = vunpack.c.l.b16 %v3750
        %v4826 = vunpack.c.l.b16 %v3751
        %v4827 = vpack.c.b16 %v4812, %v4811
        %v4828 = vpack.c.b16 %v4814, %v4813
        %v4829 = vpack.c.b16 %v4816, %v4815
        %v4830 = vpack.c.b16 %v4818, %v4817
        %v4831 = vpack.c.b16 %v4820, %v4819
        %v4832 = vpack.c.b16 %v4822, %v4821
        %v4833 = vpack.c.b16 %v4824, %v4823
        %v4834 = vpack.c.b16 %v4826, %v4825
        %4843 = vmatprep.subr.bf16.mxu0 0
        %4844 = vmatpush1.bf16.msra.mxu0 %v4827
        %4845 = vmatprep.subr.bf16.mxu0 0
        %4846 = vmatpush1.bf16.msra.mxu0 %v4828
        %4847 = vmatprep.subr.bf16.mxu0 0
        %4848 = vmatpush1.bf16.msra.mxu0 %v4829
        %4849 = vmatprep.subr.bf16.mxu0 0
        %4850 = vmatpush1.bf16.msra.mxu0 %v4830
        %4851 = vmatprep.subr.bf16.mxu0 0
        %4852 = vmatpush1.bf16.msra.mxu0 %v4831
        %4853 = vmatprep.subr.bf16.mxu0 0
        %4854 = vmatpush1.bf16.msra.mxu0 %v4832
        %4855 = vmatprep.subr.bf16.mxu0 0
        %4856 = vmatpush1.bf16.msra.mxu0 %v4833
        %4857 = vmatprep.subr.bf16.mxu0 0
        %4858 = vmatpush1.bf16.msra.mxu0 %v4834
        %4859 = vmatprep.subr.bf16.mxu0 0
        %4860 = vmatpush1.bf16.msra.mxu0 0
        %4861 = vmatprep.subr.bf16.mxu0 0
        %4862 = vmatpush1.bf16.msra.mxu0 0
        %4863 = vmatprep.subr.bf16.mxu0 0
        %4864 = vmatpush1.bf16.msra.mxu0 0
        %4865 = vmatprep.subr.bf16.mxu0 0
        %4866 = vmatpush1.bf16.msra.mxu0 0
        %4867 = vmatprep.subr.bf16.mxu0 0
        %4868 = vmatpush1.bf16.msra.mxu0 0
        %4869 = vmatprep.subr.bf16.mxu0 0
        %4870 = vmatpush1.bf16.msra.mxu0 0
        %4871 = vmatprep.subr.bf16.mxu0 0
        %4872 = vmatpush1.bf16.msra.mxu0 0
        %4873 = vmatprep.subr.bf16.mxu0 0
        %4874 = vmatpush1.bf16.msra.mxu0 0
        %4875 = vmatprep.mubr.bf16.mxu0 0
        %4876 = vmatmul.mubr.bf16.gmra.mrb[0].mxu0 %v3621
        %v4877 = vpop.f32.mrb[0].mxu0
        %v4878 = vadd.f32 %v4793, %v4877
        %v4879 = vpop.f32.mrb[0].mxu0
        %v4880 = vpop.f32.mrb[0].mxu0
        %v4881 = vpop.f32.mrb[0].mxu0
        %4882 = vdwg.mxu0
        %v4884 = vlaneseq
        %v4885 = vshrl.u32 %v4884, 7
        %v4886 = vsub.s32 0, %v4885
        %v4887 = vrot.slane %v3831, %v4886
        %v4905 = vunpack.c.l.b16 %v3801
        %v4906 = vunpack.c.l.b16 %v3802
        %v4907 = vunpack.c.l.b16 %v3803
        %v4908 = vunpack.c.l.b16 %v3804
        %v4909 = vunpack.c.l.b16 %v3805
        %v4910 = vunpack.c.l.b16 %v3806
        %v4911 = vunpack.c.l.b16 %v3807
        %v4912 = vunpack.c.l.b16 %v3808
        %v4913 = vunpack.c.l.b16 %v3809
        %v4914 = vunpack.c.l.b16 %v3810
        %v4915 = vunpack.c.l.b16 %v3811
        %v4916 = vunpack.c.l.b16 %v3812
        %v4917 = vunpack.c.l.b16 %v3813
        %v4918 = vunpack.c.l.b16 %v3814
        %v4919 = vunpack.c.l.b16 %v3815
        %v4920 = vunpack.c.l.b16 %v3816
        %v4921 = vpack.c.b16 %v4906, %v4905
        %v4922 = vpack.c.b16 %v4908, %v4907
        %v4923 = vpack.c.b16 %v4910, %v4909
        %v4924 = vpack.c.b16 %v4912, %v4911
        %v4925 = vpack.c.b16 %v4914, %v4913
        %v4926 = vpack.c.b16 %v4916, %v4915
        %v4927 = vpack.c.b16 %v4918, %v4917
        %v4928 = vpack.c.b16 %v4920, %v4919
        %4937 = vmatprep.subr.bf16.mxu0 0
        %4938 = vmatpush1.bf16.msra.mxu0 %v4921
        %4939 = vmatprep.subr.bf16.mxu0 0
        %4940 = vmatpush1.bf16.msra.mxu0 %v4922
        %4941 = vmatprep.subr.bf16.mxu0 0
        %4942 = vmatpush1.bf16.msra.mxu0 %v4923
        %4943 = vmatprep.subr.bf16.mxu0 0
        %4944 = vmatpush1.bf16.msra.mxu0 %v4924
        %4945 = vmatprep.subr.bf16.mxu0 0
        %4946 = vmatpush1.bf16.msra.mxu0 %v4925
        %4947 = vmatprep.subr.bf16.mxu0 0
        %4948 = vmatpush1.bf16.msra.mxu0 %v4926
        %4949 = vmatprep.subr.bf16.mxu0 0
        %4950 = vmatpush1.bf16.msra.mxu0 %v4927
        %4951 = vmatprep.subr.bf16.mxu0 0
        %4952 = vmatpush1.bf16.msra.mxu0 %v4928
        %4953 = vmatprep.subr.bf16.mxu0 0
        %4954 = vmatpush1.bf16.msra.mxu0 0
        %4955 = vmatprep.subr.bf16.mxu0 0
        %4956 = vmatpush1.bf16.msra.mxu0 0
        %4957 = vmatprep.subr.bf16.mxu0 0
        %4958 = vmatpush1.bf16.msra.mxu0 0
        %4959 = vmatprep.subr.bf16.mxu0 0
        %4960 = vmatpush1.bf16.msra.mxu0 0
        %4961 = vmatprep.subr.bf16.mxu0 0
        %4962 = vmatpush1.bf16.msra.mxu0 0
        %4963 = vmatprep.subr.bf16.mxu0 0
        %4964 = vmatpush1.bf16.msra.mxu0 0
        %4965 = vmatprep.subr.bf16.mxu0 0
        %4966 = vmatpush1.bf16.msra.mxu0 0
        %4967 = vmatprep.subr.bf16.mxu0 0
        %4968 = vmatpush1.bf16.msra.mxu0 0
        %4969 = vmatprep.mubr.bf16.mxu0 0
        %4970 = vmatmul.mubr.bf16.gmra.mrb[0].mxu0 %v3621
        %v4971 = vpop.f32.mrb[0].mxu0
        %v4972 = vadd.f32 %v4887, %v4971
        %v4973 = vpop.f32.mrb[0].mxu0
        %v4974 = vpop.f32.mrb[0].mxu0
        %v4975 = vpop.f32.mrb[0].mxu0
        %4976 = vdwg.mxu0
        %v4977 = vpack.c.bf16 %v3938, %v3938
        %v4978 = vpack.c.bf16 %v4220, %v4220
        %v4979 = vpack.c.bf16 %v4502, %v4502
        %v4980 = vpack.c.bf16 %v4784, %v4784
        %v4981 = vpack.c.bf16 %v4032, %v4032
        %v4982 = vpack.c.bf16 %v4314, %v4314
        %v4983 = vpack.c.bf16 %v4596, %v4596
        %v4984 = vpack.c.bf16 %v4878, %v4878
        %v4985 = vpack.c.bf16 %v4126, %v4126
        %v4986 = vpack.c.bf16 %v4408, %v4408
        %v4987 = vpack.c.bf16 %v4690, %v4690
        %v4988 = vpack.c.bf16 %v4972, %v4972
        %v4990 = vsel %vm2562, %v4977, 0
        %v4993 = vsel %vm2562, %v4981, 0
        %4995 = vmatprep.subr.bf16.mxu0 0
        %4996 = vmatpush1.bf16.xpose.msra.mxu0 %v4993
        %4997 = vmatprep.subr.bf16.mxu0 0
        %4998 = vmatpush1.bf16.xpose.msra.mxu0 0
        %4999 = vmatprep.subr.bf16.mxu0 0
        %5000 = vmatpush1.bf16.xpose.msra.mxu0 0
        %5001 = vmatprep.subr.bf16.mxu0 0
        %5002 = vmatpush1.bf16.xpose.msra.mxu0 0
        %5003 = vmatprep.subr.bf16.mxu0 0
        %5004 = vmatpush1.bf16.xpose.msra.mxu0 0
        %5005 = vmatprep.subr.bf16.mxu0 0
        %5006 = vmatpush1.bf16.xpose.msra.mxu0 0
        %5007 = vmatprep.subr.bf16.mxu0 0
        %5008 = vmatpush1.bf16.xpose.msra.mxu0 0
        %5009 = vmatprep.subr.bf16.mxu0 0
        %5010 = vmatpush1.bf16.xpose.msra.mxu0 0
        %5011 = vmatprep.subr.bf16.mxu0 0
        %5012 = vmatpush1.bf16.xpose.msra.mxu0 0
        %5013 = vmatprep.subr.bf16.mxu0 0
        %5014 = vmatpush1.bf16.xpose.msra.mxu0 0
        %5015 = vmatprep.subr.bf16.mxu0 0
        %5016 = vmatpush1.bf16.xpose.msra.mxu0 0
        %5017 = vmatprep.subr.bf16.mxu0 0
        %5018 = vmatpush1.bf16.xpose.msra.mxu0 0
        %5019 = vmatprep.subr.bf16.mxu0 0
        %5020 = vmatpush1.bf16.xpose.msra.mxu0 0
        %5021 = vmatprep.subr.bf16.mxu0 0
        %5022 = vmatpush1.bf16.xpose.msra.mxu0 0
        %5023 = vmatprep.subr.bf16.mxu0 0
        %5024 = vmatpush1.bf16.xpose.msra.mxu0 0
        %5025 = vmatprep.subr.bf16.mxu0 0
        %5026 = vmatpush1.bf16.xpose.msra.mxu0 0
        %5027 = vmatprep.mubr.bf16.mxu0 0
        %5028 = vmatmul.mubr.bf16.gmra.mrb[0].mxu0 %v4990
        %v5029 = vpop.f32.mrb[0].mxu0
        %v5030 = vadd.f32 %v2560, %v5029
        %v5031 = vpop.f32.mrb[0].mxu0
        %v5032 = vpop.f32.mrb[0].mxu0
        %v5033 = vpop.f32.mrb[0].mxu0
        %5034 = vdwg.mxu0
        %v5036 = vsel %vm2562, %v4978, 0
        %v5039 = vsel %vm2562, %v4982, 0
        %5041 = vmatprep.subr.bf16.mxu0 0
        %5042 = vmatpush1.bf16.xpose.msra.mxu0 %v5039
        %5043 = vmatprep.subr.bf16.mxu0 0
        %5044 = vmatpush1.bf16.xpose.msra.mxu0 0
        %5045 = vmatprep.subr.bf16.mxu0 0
        %5046 = vmatpush1.bf16.xpose.msra.mxu0 0
        %5047 = vmatprep.subr.bf16.mxu0 0
        %5048 = vmatpush1.bf16.xpose.msra.mxu0 0
        %5049 = vmatprep.subr.bf16.mxu0 0
        %5050 = vmatpush1.bf16.xpose.msra.mxu0 0
        %5051 = vmatprep.subr.bf16.mxu0 0
        %5052 = vmatpush1.bf16.xpose.msra.mxu0 0
        %5053 = vmatprep.subr.bf16.mxu0 0
        %5054 = vmatpush1.bf16.xpose.msra.mxu0 0
        %5055 = vmatprep.subr.bf16.mxu0 0
        %5056 = vmatpush1.bf16.xpose.msra.mxu0 0
        %5057 = vmatprep.subr.bf16.mxu0 0
        %5058 = vmatpush1.bf16.xpose.msra.mxu0 0
        %5059 = vmatprep.subr.bf16.mxu0 0
        %5060 = vmatpush1.bf16.xpose.msra.mxu0 0
        %5061 = vmatprep.subr.bf16.mxu0 0
        %5062 = vmatpush1.bf16.xpose.msra.mxu0 0
        %5063 = vmatprep.subr.bf16.mxu0 0
        %5064 = vmatpush1.bf16.xpose.msra.mxu0 0
        %5065 = vmatprep.subr.bf16.mxu0 0
        %5066 = vmatpush1.bf16.xpose.msra.mxu0 0
        %5067 = vmatprep.subr.bf16.mxu0 0
        %5068 = vmatpush1.bf16.xpose.msra.mxu0 0
        %5069 = vmatprep.subr.bf16.mxu0 0
        %5070 = vmatpush1.bf16.xpose.msra.mxu0 0
        %5071 = vmatprep.subr.bf16.mxu0 0
        %5072 = vmatpush1.bf16.xpose.msra.mxu0 0
        %5073 = vmatprep.mubr.bf16.mxu0 0
        %5074 = vmatmul.mubr.bf16.gmra.mrb[0].mxu0 %v5036
        %v5075 = vpop.f32.mrb[0].mxu0
        %v5076 = vadd.f32 %v2560, %v5075
        %v5077 = vpop.f32.mrb[0].mxu0
        %v5078 = vpop.f32.mrb[0].mxu0
        %v5079 = vpop.f32.mrb[0].mxu0
        %5080 = vdwg.mxu0
        %v5082 = vsel %vm2562, %v4979, 0
        %v5085 = vsel %vm2562, %v4983, 0
        %5087 = vmatprep.subr.bf16.mxu0 0
        %5088 = vmatpush1.bf16.xpose.msra.mxu0 %v5085
        %5089 = vmatprep.subr.bf16.mxu0 0
        %5090 = vmatpush1.bf16.xpose.msra.mxu0 0
        %5091 = vmatprep.subr.bf16.mxu0 0
        %5092 = vmatpush1.bf16.xpose.msra.mxu0 0
        %5093 = vmatprep.subr.bf16.mxu0 0
        %5094 = vmatpush1.bf16.xpose.msra.mxu0 0
        %5095 = vmatprep.subr.bf16.mxu0 0
        %5096 = vmatpush1.bf16.xpose.msra.mxu0 0
        %5097 = vmatprep.subr.bf16.mxu0 0
        %5098 = vmatpush1.bf16.xpose.msra.mxu0 0
        %5099 = vmatprep.subr.bf16.mxu0 0
        %5100 = vmatpush1.bf16.xpose.msra.mxu0 0
        %5101 = vmatprep.subr.bf16.mxu0 0
        %5102 = vmatpush1.bf16.xpose.msra.mxu0 0
        %5103 = vmatprep.subr.bf16.mxu0 0
        %5104 = vmatpush1.bf16.xpose.msra.mxu0 0
        %5105 = vmatprep.subr.bf16.mxu0 0
        %5106 = vmatpush1.bf16.xpose.msra.mxu0 0
        %5107 = vmatprep.subr.bf16.mxu0 0
        %5108 = vmatpush1.bf16.xpose.msra.mxu0 0
        %5109 = vmatprep.subr.bf16.mxu0 0
        %5110 = vmatpush1.bf16.xpose.msra.mxu0 0
        %5111 = vmatprep.subr.bf16.mxu0 0
        %5112 = vmatpush1.bf16.xpose.msra.mxu0 0
        %5113 = vmatprep.subr.bf16.mxu0 0
        %5114 = vmatpush1.bf16.xpose.msra.mxu0 0
        %5115 = vmatprep.subr.bf16.mxu0 0
        %5116 = vmatpush1.bf16.xpose.msra.mxu0 0
        %5117 = vmatprep.subr.bf16.mxu0 0
        %5118 = vmatpush1.bf16.xpose.msra.mxu0 0
        %5119 = vmatprep.mubr.bf16.mxu0 0
        %5120 = vmatmul.mubr.bf16.gmra.mrb[0].mxu0 %v5082
        %v5121 = vpop.f32.mrb[0].mxu0
        %v5122 = vadd.f32 %v2560, %v5121
        %v5123 = vpop.f32.mrb[0].mxu0
        %v5124 = vpop.f32.mrb[0].mxu0
        %v5125 = vpop.f32.mrb[0].mxu0
        %5126 = vdwg.mxu0
        %v5128 = vsel %vm2562, %v4980, 0
        %v5131 = vsel %vm2562, %v4984, 0
        %5133 = vmatprep.subr.bf16.mxu0 0
        %5134 = vmatpush1.bf16.xpose.msra.mxu0 %v5131
        %5135 = vmatprep.subr.bf16.mxu0 0
        %5136 = vmatpush1.bf16.xpose.msra.mxu0 0
        %5137 = vmatprep.subr.bf16.mxu0 0
        %5138 = vmatpush1.bf16.xpose.msra.mxu0 0
        %5139 = vmatprep.subr.bf16.mxu0 0
        %5140 = vmatpush1.bf16.xpose.msra.mxu0 0
        %5141 = vmatprep.subr.bf16.mxu0 0
        %5142 = vmatpush1.bf16.xpose.msra.mxu0 0
        %5143 = vmatprep.subr.bf16.mxu0 0
        %5144 = vmatpush1.bf16.xpose.msra.mxu0 0
        %5145 = vmatprep.subr.bf16.mxu0 0
        %5146 = vmatpush1.bf16.xpose.msra.mxu0 0
        %5147 = vmatprep.subr.bf16.mxu0 0
        %5148 = vmatpush1.bf16.xpose.msra.mxu0 0
        %5149 = vmatprep.subr.bf16.mxu0 0
        %5150 = vmatpush1.bf16.xpose.msra.mxu0 0
        %5151 = vmatprep.subr.bf16.mxu0 0
        %5152 = vmatpush1.bf16.xpose.msra.mxu0 0
        %5153 = vmatprep.subr.bf16.mxu0 0
        %5154 = vmatpush1.bf16.xpose.msra.mxu0 0
        %5155 = vmatprep.subr.bf16.mxu0 0
        %5156 = vmatpush1.bf16.xpose.msra.mxu0 0
        %5157 = vmatprep.subr.bf16.mxu0 0
        %5158 = vmatpush1.bf16.xpose.msra.mxu0 0
        %5159 = vmatprep.subr.bf16.mxu0 0
        %5160 = vmatpush1.bf16.xpose.msra.mxu0 0
        %5161 = vmatprep.subr.bf16.mxu0 0
        %5162 = vmatpush1.bf16.xpose.msra.mxu0 0
        %5163 = vmatprep.subr.bf16.mxu0 0
        %5164 = vmatpush1.bf16.xpose.msra.mxu0 0
        %5165 = vmatprep.mubr.bf16.mxu0 0
        %5166 = vmatmul.mubr.bf16.gmra.mrb[0].mxu0 %v5128
        %v5167 = vpop.f32.mrb[0].mxu0
        %v5168 = vadd.f32 %v2560, %v5167
        %v5169 = vpop.f32.mrb[0].mxu0
        %v5170 = vpop.f32.mrb[0].mxu0
        %v5171 = vpop.f32.mrb[0].mxu0
        %5172 = vdwg.mxu0
        %v5173 = vsel %vm2747, %v5030, -inf
        %5174 = vmax.xlane.f32.xlu0 %v5173
        %v5175 = vpop.xlane.xlu0 %5174
        %v5176 = vsel %vm2747, %v5076, -inf
        %5177 = vmax.xlane.f32.xlu0 %v5176
        %v5178 = vpop.xlane.xlu0 %5177
        %v5179 = vsel %vm2747, %v5122, -inf
        %5180 = vmax.xlane.f32.xlu0 %v5179
        %v5181 = vpop.xlane.xlu0 %5180
        %v5182 = vsel %vm2747, %v5168, -inf
        %5183 = vmax.xlane.f32.xlu0 %v5182
        %v5184 = vpop.xlane.xlu0 %5183
        %v5185 = vsub.f32 %v5030, %v5175
        %v5186 = vsub.f32 %v5076, %v5178
        %v5187 = vsub.f32 %v5122, %v5181
        %v5188 = vsub.f32 %v5168, %v5184
        %v5189 = vmul.f32 %v5185, 1.442695
        %v5190 = vpow.pop %v5189
        %v5191 = vmul.f32 %v5186, 1.442695
        %v5192 = vpow.pop %v5191
        %v5193 = vmul.f32 %v5187, 1.442695
        %v5194 = vpow.pop %v5193
        %v5195 = vmul.f32 %v5188, 1.442695
        %v5196 = vpow.pop %v5195
        %v5197 = vsel %vm2747, %v5190, 0.0
        %5198 = vadd.xlane.f32.xlu0 %v5197
        %v5199 = vpop.xlane.xlu0 %5198
        %v5200 = vsel %vm2747, %v5192, 0.0
        %5201 = vadd.xlane.f32.xlu0 %v5200
        %v5202 = vpop.xlane.xlu0 %5201
        %v5203 = vsel %vm2747, %v5194, 0.0
        %5204 = vadd.xlane.f32.xlu0 %v5203
        %v5205 = vpop.xlane.xlu0 %5204
        %v5206 = vsel %vm2747, %v5196, 0.0
        %5207 = vadd.xlane.f32.xlu0 %v5206
        %v5208 = vpop.xlane.xlu0 %5207
        %v5209 = vrcp.pop %v5199
        %v5210 = vrcp.pop %v5202
        %v5211 = vrcp.pop %v5205
        %v5212 = vrcp.pop %v5208
        %v5213 = vmul.f32 %v5190, %v5209
        %v5214 = vmul.f32 %v5192, %v5210
        %v5215 = vmul.f32 %v5194, %v5211
        %v5216 = vmul.f32 %v5196, %v5212
        %v5217 = vpack.c.bf16 %v5213, %v5213
        %v5218 = vpack.c.bf16 %v5214, %v5214
        %v5219 = vpack.c.bf16 %v5215, %v5215
        %v5220 = vpack.c.bf16 %v5216, %v5216
        %v5222 = vsel %vm2747, %v5217, 0
        %v5225 = vsel %vm2799, %v4985, 0
        %5227 = vmatprep.subr.bf16.mxu0 0
        %5228 = vmatpush1.bf16.msra.mxu0 %v5225
        %5229 = vmatprep.subr.bf16.mxu0 0
        %5230 = vmatpush1.bf16.msra.mxu0 0
        %5231 = vmatprep.subr.bf16.mxu0 0
        %5232 = vmatpush1.bf16.msra.mxu0 0
        %5233 = vmatprep.subr.bf16.mxu0 0
        %5234 = vmatpush1.bf16.msra.mxu0 0
        %5235 = vmatprep.subr.bf16.mxu0 0
        %5236 = vmatpush1.bf16.msra.mxu0 0
        %5237 = vmatprep.subr.bf16.mxu0 0
        %5238 = vmatpush1.bf16.msra.mxu0 0
        %5239 = vmatprep.subr.bf16.mxu0 0
        %5240 = vmatpush1.bf16.msra.mxu0 0
        %5241 = vmatprep.subr.bf16.mxu0 0
        %5242 = vmatpush1.bf16.msra.mxu0 0
        %5243 = vmatprep.subr.bf16.mxu0 0
        %5244 = vmatpush1.bf16.msra.mxu0 0
        %5245 = vmatprep.subr.bf16.mxu0 0
        %5246 = vmatpush1.bf16.msra.mxu0 0
        %5247 = vmatprep.subr.bf16.mxu0 0
        %5248 = vmatpush1.bf16.msra.mxu0 0
        %5249 = vmatprep.subr.bf16.mxu0 0
        %5250 = vmatpush1.bf16.msra.mxu0 0
        %5251 = vmatprep.subr.bf16.mxu0 0
        %5252 = vmatpush1.bf16.msra.mxu0 0
        %5253 = vmatprep.subr.bf16.mxu0 0
        %5254 = vmatpush1.bf16.msra.mxu0 0
        %5255 = vmatprep.subr.bf16.mxu0 0
        %5256 = vmatpush1.bf16.msra.mxu0 0
        %5257 = vmatprep.subr.bf16.mxu0 0
        %5258 = vmatpush1.bf16.msra.mxu0 0
        %5259 = vmatprep.mubr.bf16.mxu0 0
        %5260 = vmatmul.mubr.bf16.gmra.mrb[0].mxu0 %v5222
        %v5261 = vpop.f32.mrb[0].mxu0
        %v5262 = vadd.f32 0.0, %v5261
        %v5263 = vpop.f32.mrb[0].mxu0
        %v5264 = vpop.f32.mrb[0].mxu0
        %v5265 = vpop.f32.mrb[0].mxu0
        %5266 = vdwg.mxu0
        %v5268 = vsel %vm2747, %v5218, 0
        %v5271 = vsel %vm2799, %v4986, 0
        %5273 = vmatprep.subr.bf16.mxu0 0
        %5274 = vmatpush1.bf16.msra.mxu0 %v5271
        %5275 = vmatprep.subr.bf16.mxu0 0
        %5276 = vmatpush1.bf16.msra.mxu0 0
        %5277 = vmatprep.subr.bf16.mxu0 0
        %5278 = vmatpush1.bf16.msra.mxu0 0
        %5279 = vmatprep.subr.bf16.mxu0 0
        %5280 = vmatpush1.bf16.msra.mxu0 0
        %5281 = vmatprep.subr.bf16.mxu0 0
        %5282 = vmatpush1.bf16.msra.mxu0 0
        %5283 = vmatprep.subr.bf16.mxu0 0
        %5284 = vmatpush1.bf16.msra.mxu0 0
        %5285 = vmatprep.subr.bf16.mxu0 0
        %5286 = vmatpush1.bf16.msra.mxu0 0
        %5287 = vmatprep.subr.bf16.mxu0 0
        %5288 = vmatpush1.bf16.msra.mxu0 0
        %5289 = vmatprep.subr.bf16.mxu0 0
        %5290 = vmatpush1.bf16.msra.mxu0 0
        %5291 = vmatprep.subr.bf16.mxu0 0
        %5292 = vmatpush1.bf16.msra.mxu0 0
        %5293 = vmatprep.subr.bf16.mxu0 0
        %5294 = vmatpush1.bf16.msra.mxu0 0
        %5295 = vmatprep.subr.bf16.mxu0 0
        %5296 = vmatpush1.bf16.msra.mxu0 0
        %5297 = vmatprep.subr.bf16.mxu0 0
        %5298 = vmatpush1.bf16.msra.mxu0 0
        %5299 = vmatprep.subr.bf16.mxu0 0
        %5300 = vmatpush1.bf16.msra.mxu0 0
        %5301 = vmatprep.subr.bf16.mxu0 0
        %5302 = vmatpush1.bf16.msra.mxu0 0
        %5303 = vmatprep.subr.bf16.mxu0 0
        %5304 = vmatpush1.bf16.msra.mxu0 0
        %5305 = vmatprep.mubr.bf16.mxu0 0
        %5306 = vmatmul.mubr.bf16.gmra.mrb[0].mxu0 %v5268
        %v5307 = vpop.f32.mrb[0].mxu0
        %v5308 = vadd.f32 0.0, %v5307
        %v5309 = vpop.f32.mrb[0].mxu0
        %v5310 = vpop.f32.mrb[0].mxu0
        %v5311 = vpop.f32.mrb[0].mxu0
        %5312 = vdwg.mxu0
        %v5314 = vsel %vm2747, %v5219, 0
        %v5317 = vsel %vm2799, %v4987, 0
        %5319 = vmatprep.subr.bf16.mxu0 0
        %5320 = vmatpush1.bf16.msra.mxu0 %v5317
        %5321 = vmatprep.subr.bf16.mxu0 0
        %5322 = vmatpush1.bf16.msra.mxu0 0
        %5323 = vmatprep.subr.bf16.mxu0 0
        %5324 = vmatpush1.bf16.msra.mxu0 0
        %5325 = vmatprep.subr.bf16.mxu0 0
        %5326 = vmatpush1.bf16.msra.mxu0 0
        %5327 = vmatprep.subr.bf16.mxu0 0
        %5328 = vmatpush1.bf16.msra.mxu0 0
        %5329 = vmatprep.subr.bf16.mxu0 0
        %5330 = vmatpush1.bf16.msra.mxu0 0
        %5331 = vmatprep.subr.bf16.mxu0 0
        %5332 = vmatpush1.bf16.msra.mxu0 0
        %5333 = vmatprep.subr.bf16.mxu0 0
        %5334 = vmatpush1.bf16.msra.mxu0 0
        %5335 = vmatprep.subr.bf16.mxu0 0
        %5336 = vmatpush1.bf16.msra.mxu0 0
        %5337 = vmatprep.subr.bf16.mxu0 0
        %5338 = vmatpush1.bf16.msra.mxu0 0
        %5339 = vmatprep.subr.bf16.mxu0 0
        %5340 = vmatpush1.bf16.msra.mxu0 0
        %5341 = vmatprep.subr.bf16.mxu0 0
        %5342 = vmatpush1.bf16.msra.mxu0 0
        %5343 = vmatprep.subr.bf16.mxu0 0
        %5344 = vmatpush1.bf16.msra.mxu0 0
        %5345 = vmatprep.subr.bf16.mxu0 0
        %5346 = vmatpush1.bf16.msra.mxu0 0
        %5347 = vmatprep.subr.bf16.mxu0 0
        %5348 = vmatpush1.bf16.msra.mxu0 0
        %5349 = vmatprep.subr.bf16.mxu0 0
        %5350 = vmatpush1.bf16.msra.mxu0 0
        %5351 = vmatprep.mubr.bf16.mxu0 0
        %5352 = vmatmul.mubr.bf16.gmra.mrb[0].mxu0 %v5314
        %v5353 = vpop.f32.mrb[0].mxu0
        %v5354 = vadd.f32 0.0, %v5353
        %v5355 = vpop.f32.mrb[0].mxu0
        %v5356 = vpop.f32.mrb[0].mxu0
        %v5357 = vpop.f32.mrb[0].mxu0
        %5358 = vdwg.mxu0
        %v5360 = vsel %vm2747, %v5220, 0
        %v5363 = vsel %vm2799, %v4988, 0
        %5365 = vmatprep.subr.bf16.mxu0 0
        %5366 = vmatpush1.bf16.msra.mxu0 %v5363
        %5367 = vmatprep.subr.bf16.mxu0 0
        %5368 = vmatpush1.bf16.msra.mxu0 0
        %5369 = vmatprep.subr.bf16.mxu0 0
        %5370 = vmatpush1.bf16.msra.mxu0 0
        %5371 = vmatprep.subr.bf16.mxu0 0
        %5372 = vmatpush1.bf16.msra.mxu0 0
        %5373 = vmatprep.subr.bf16.mxu0 0
        %5374 = vmatpush1.bf16.msra.mxu0 0
        %5375 = vmatprep.subr.bf16.mxu0 0
        %5376 = vmatpush1.bf16.msra.mxu0 0
        %5377 = vmatprep.subr.bf16.mxu0 0
        %5378 = vmatpush1.bf16.msra.mxu0 0
        %5379 = vmatprep.subr.bf16.mxu0 0
        %5380 = vmatpush1.bf16.msra.mxu0 0
        %5381 = vmatprep.subr.bf16.mxu0 0
        %5382 = vmatpush1.bf16.msra.mxu0 0
        %5383 = vmatprep.subr.bf16.mxu0 0
        %5384 = vmatpush1.bf16.msra.mxu0 0
        %5385 = vmatprep.subr.bf16.mxu0 0
        %5386 = vmatpush1.bf16.msra.mxu0 0
        %5387 = vmatprep.subr.bf16.mxu0 0
        %5388 = vmatpush1.bf16.msra.mxu0 0
        %5389 = vmatprep.subr.bf16.mxu0 0
        %5390 = vmatpush1.bf16.msra.mxu0 0
        %5391 = vmatprep.subr.bf16.mxu0 0
        %5392 = vmatpush1.bf16.msra.mxu0 0
        %5393 = vmatprep.subr.bf16.mxu0 0
        %5394 = vmatpush1.bf16.msra.mxu0 0
        %5395 = vmatprep.subr.bf16.mxu0 0
        %5396 = vmatpush1.bf16.msra.mxu0 0
        %5397 = vmatprep.mubr.bf16.mxu0 0
        %5398 = vmatmul.mubr.bf16.gmra.mrb[0].mxu0 %v5360
        %v5399 = vpop.f32.mrb[0].mxu0
        %v5400 = vadd.f32 0.0, %v5399
        %v5401 = vpop.f32.mrb[0].mxu0
        %v5402 = vpop.f32.mrb[0].mxu0
        %v5403 = vpop.f32.mrb[0].mxu0
        %5404 = vdwg.mxu0
        %s5405 = scalar_lea.vmem [#allocation22], 1
        %v5406 = vld [vmem:[%s5405] sm:$0x1]
        %v5407 = vpack.c.bf16 %v5262, %v5262
        %v5412 = vunpack.c.l.b16 %v3833
        %v5413 = vunpack.c.l.b16 %v3834
        %v5414 = vunpack.c.l.b16 %v3835
        %v5415 = vunpack.c.l.b16 %v3836
        %v5416 = vpack.c.b16 %v5413, %v5412
        %v5417 = vpack.c.b16 %v5415, %v5414
        %v5421 = vsel %vm2562, %v5407, 0
        %5423 = vmatprep.subr.bf16.mxu0 0
        %5424 = vmatpush1.bf16.msra.mxu0 %v5416
        %5425 = vmatprep.subr.bf16.mxu0 0
        %5426 = vmatpush1.bf16.msra.mxu0 %v5417
        %5427 = vmatprep.subr.bf16.mxu0 0
        %5428 = vmatpush1.bf16.msra.mxu0 0
        %5429 = vmatprep.subr.bf16.mxu0 0
        %5430 = vmatpush1.bf16.msra.mxu0 0
        %5431 = vmatprep.subr.bf16.mxu0 0
        %5432 = vmatpush1.bf16.msra.mxu0 0
        %5433 = vmatprep.subr.bf16.mxu0 0
        %5434 = vmatpush1.bf16.msra.mxu0 0
        %5435 = vmatprep.subr.bf16.mxu0 0
        %5436 = vmatpush1.bf16.msra.mxu0 0
        %5437 = vmatprep.subr.bf16.mxu0 0
        %5438 = vmatpush1.bf16.msra.mxu0 0
        %5439 = vmatprep.subr.bf16.mxu0 0
        %5440 = vmatpush1.bf16.msra.mxu0 0
        %5441 = vmatprep.subr.bf16.mxu0 0
        %5442 = vmatpush1.bf16.msra.mxu0 0
        %5443 = vmatprep.subr.bf16.mxu0 0
        %5444 = vmatpush1.bf16.msra.mxu0 0
        %5445 = vmatprep.subr.bf16.mxu0 0
        %5446 = vmatpush1.bf16.msra.mxu0 0
        %5447 = vmatprep.subr.bf16.mxu0 0
        %5448 = vmatpush1.bf16.msra.mxu0 0
        %5449 = vmatprep.subr.bf16.mxu0 0
        %5450 = vmatpush1.bf16.msra.mxu0 0
        %5451 = vmatprep.subr.bf16.mxu0 0
        %5452 = vmatpush1.bf16.msra.mxu0 0
        %5453 = vmatprep.subr.bf16.mxu0 0
        %5454 = vmatpush1.bf16.msra.mxu0 0
        %5455 = vmatprep.mubr.bf16.mxu0 0
        %5456 = vmatmul.mubr.bf16.gmra.mrb[0].mxu0 %v5421
        %v5457 = vpop.f32.mrb[0].mxu0
        %v5458 = vadd.f32 0.0, %v5457
        %v5459 = vpop.f32.mrb[0].mxu0
        %v5460 = vpop.f32.mrb[0].mxu0
        %v5461 = vpop.f32.mrb[0].mxu0
        %5462 = vdwg.mxu0
        %v5464 = vlaneseq
        %v5465 = vshrl.u32 %v5464, 7
        %v5466 = vsub.s32 0, %v5465
        %v5467 = vrot.slane %v5406, %v5466
        %v5469 = vadd.f32 %v5467, %v5458
        %v5470 = vpack.c.bf16 %v5308, %v5308
        %v5475 = vunpack.c.l.b16 %v3837
        %v5476 = vunpack.c.l.b16 %v3838
        %v5477 = vunpack.c.l.b16 %v3839
        %v5478 = vunpack.c.l.b16 %v3840
        %v5479 = vpack.c.b16 %v5476, %v5475
        %v5480 = vpack.c.b16 %v5478, %v5477
        %v5484 = vsel %vm2562, %v5470, 0
        %5486 = vmatprep.subr.bf16.mxu0 0
        %5487 = vmatpush1.bf16.msra.mxu0 %v5479
        %5488 = vmatprep.subr.bf16.mxu0 0
        %5489 = vmatpush1.bf16.msra.mxu0 %v5480
        %5490 = vmatprep.subr.bf16.mxu0 0
        %5491 = vmatpush1.bf16.msra.mxu0 0
        %5492 = vmatprep.subr.bf16.mxu0 0
        %5493 = vmatpush1.bf16.msra.mxu0 0
        %5494 = vmatprep.subr.bf16.mxu0 0
        %5495 = vmatpush1.bf16.msra.mxu0 0
        %5496 = vmatprep.subr.bf16.mxu0 0
        %5497 = vmatpush1.bf16.msra.mxu0 0
        %5498 = vmatprep.subr.bf16.mxu0 0
        %5499 = vmatpush1.bf16.msra.mxu0 0
        %5500 = vmatprep.subr.bf16.mxu0 0
        %5501 = vmatpush1.bf16.msra.mxu0 0
        %5502 = vmatprep.subr.bf16.mxu0 0
        %5503 = vmatpush1.bf16.msra.mxu0 0
        %5504 = vmatprep.subr.bf16.mxu0 0
        %5505 = vmatpush1.bf16.msra.mxu0 0
        %5506 = vmatprep.subr.bf16.mxu0 0
        %5507 = vmatpush1.bf16.msra.mxu0 0
        %5508 = vmatprep.subr.bf16.mxu0 0
        %5509 = vmatpush1.bf16.msra.mxu0 0
        %5510 = vmatprep.subr.bf16.mxu0 0
        %5511 = vmatpush1.bf16.msra.mxu0 0
        %5512 = vmatprep.subr.bf16.mxu0 0
        %5513 = vmatpush1.bf16.msra.mxu0 0
        %5514 = vmatprep.subr.bf16.mxu0 0
        %5515 = vmatpush1.bf16.msra.mxu0 0
        %5516 = vmatprep.subr.bf16.mxu0 0
        %5517 = vmatpush1.bf16.msra.mxu0 0
        %5518 = vmatprep.mubr.bf16.mxu0 0
        %5519 = vmatmul.mubr.bf16.gmra.mrb[0].mxu0 %v5484
        %v5520 = vpop.f32.mrb[0].mxu0
        %v5521 = vadd.f32 0.0, %v5520
        %v5522 = vpop.f32.mrb[0].mxu0
        %v5523 = vpop.f32.mrb[0].mxu0
        %v5524 = vpop.f32.mrb[0].mxu0
        %5525 = vdwg.mxu0
        %v5526 = vadd.f32 %v5469, %v5521
        %v5527 = vpack.c.bf16 %v5354, %v5354
        %v5532 = vunpack.c.l.b16 %v3841
        %v5533 = vunpack.c.l.b16 %v3842
        %v5534 = vunpack.c.l.b16 %v3843
        %v5535 = vunpack.c.l.b16 %v3844
        %v5536 = vpack.c.b16 %v5533, %v5532
        %v5537 = vpack.c.b16 %v5535, %v5534
        %v5541 = vsel %vm2562, %v5527, 0
        %5543 = vmatprep.subr.bf16.mxu0 0
        %5544 = vmatpush1.bf16.msra.mxu0 %v5536
        %5545 = vmatprep.subr.bf16.mxu0 0
        %5546 = vmatpush1.bf16.msra.mxu0 %v5537
        %5547 = vmatprep.subr.bf16.mxu0 0
        %5548 = vmatpush1.bf16.msra.mxu0 0
        %5549 = vmatprep.subr.bf16.mxu0 0
        %5550 = vmatpush1.bf16.msra.mxu0 0
        %5551 = vmatprep.subr.bf16.mxu0 0
        %5552 = vmatpush1.bf16.msra.mxu0 0
        %5553 = vmatprep.subr.bf16.mxu0 0
        %5554 = vmatpush1.bf16.msra.mxu0 0
        %5555 = vmatprep.subr.bf16.mxu0 0
        %5556 = vmatpush1.bf16.msra.mxu0 0
        %5557 = vmatprep.subr.bf16.mxu0 0
        %5558 = vmatpush1.bf16.msra.mxu0 0
        %5559 = vmatprep.subr.bf16.mxu0 0
        %5560 = vmatpush1.bf16.msra.mxu0 0
        %5561 = vmatprep.subr.bf16.mxu0 0
        %5562 = vmatpush1.bf16.msra.mxu0 0
        %5563 = vmatprep.subr.bf16.mxu0 0
        %5564 = vmatpush1.bf16.msra.mxu0 0
        %5565 = vmatprep.subr.bf16.mxu0 0
        %5566 = vmatpush1.bf16.msra.mxu0 0
        %5567 = vmatprep.subr.bf16.mxu0 0
        %5568 = vmatpush1.bf16.msra.mxu0 0
        %5569 = vmatprep.subr.bf16.mxu0 0
        %5570 = vmatpush1.bf16.msra.mxu0 0
        %5571 = vmatprep.subr.bf16.mxu0 0
        %5572 = vmatpush1.bf16.msra.mxu0 0
        %5573 = vmatprep.subr.bf16.mxu0 0
        %5574 = vmatpush1.bf16.msra.mxu0 0
        %5575 = vmatprep.mubr.bf16.mxu0 0
        %5576 = vmatmul.mubr.bf16.gmra.mrb[0].mxu0 %v5541
        %v5577 = vpop.f32.mrb[0].mxu0
        %v5578 = vadd.f32 0.0, %v5577
        %v5579 = vpop.f32.mrb[0].mxu0
        %v5580 = vpop.f32.mrb[0].mxu0
        %v5581 = vpop.f32.mrb[0].mxu0
        %5582 = vdwg.mxu0
        %v5583 = vadd.f32 %v5526, %v5578
        %v5584 = vpack.c.bf16 %v5400, %v5400
        %v5589 = vunpack.c.l.b16 %v3845
        %v5590 = vunpack.c.l.b16 %v3846
        %v5591 = vunpack.c.l.b16 %v3847
        %v5592 = vunpack.c.l.b16 %v3848
        %v5593 = vpack.c.b16 %v5590, %v5589
        %v5594 = vpack.c.b16 %v5592, %v5591
        %v5598 = vsel %vm2562, %v5584, 0
        %5600 = vmatprep.subr.bf16.mxu0 0
        %5601 = vmatpush1.bf16.msra.mxu0 %v5593
        %5602 = vmatprep.subr.bf16.mxu0 0
        %5603 = vmatpush1.bf16.msra.mxu0 %v5594
        %5604 = vmatprep.subr.bf16.mxu0 0
        %5605 = vmatpush1.bf16.msra.mxu0 0
        %5606 = vmatprep.subr.bf16.mxu0 0
        %5607 = vmatpush1.bf16.msra.mxu0 0
        %5608 = vmatprep.subr.bf16.mxu0 0
        %5609 = vmatpush1.bf16.msra.mxu0 0
        %5610 = vmatprep.subr.bf16.mxu0 0
        %5611 = vmatpush1.bf16.msra.mxu0 0
        %5612 = vmatprep.subr.bf16.mxu0 0
        %5613 = vmatpush1.bf16.msra.mxu0 0
        %5614 = vmatprep.subr.bf16.mxu0 0
        %5615 = vmatpush1.bf16.msra.mxu0 0
        %5616 = vmatprep.subr.bf16.mxu0 0
        %5617 = vmatpush1.bf16.msra.mxu0 0
        %5618 = vmatprep.subr.bf16.mxu0 0
        %5619 = vmatpush1.bf16.msra.mxu0 0
        %5620 = vmatprep.subr.bf16.mxu0 0
        %5621 = vmatpush1.bf16.msra.mxu0 0
        %5622 = vmatprep.subr.bf16.mxu0 0
        %5623 = vmatpush1.bf16.msra.mxu0 0
        %5624 = vmatprep.subr.bf16.mxu0 0
        %5625 = vmatpush1.bf16.msra.mxu0 0
        %5626 = vmatprep.subr.bf16.mxu0 0
        %5627 = vmatpush1.bf16.msra.mxu0 0
        %5628 = vmatprep.subr.bf16.mxu0 0
        %5629 = vmatpush1.bf16.msra.mxu0 0
        %5630 = vmatprep.subr.bf16.mxu0 0
        %5631 = vmatpush1.bf16.msra.mxu0 0
        %5632 = vmatprep.mubr.bf16.mxu0 0
        %5633 = vmatmul.mubr.bf16.gmra.mrb[0].mxu0 %v5598
        %v5634 = vpop.f32.mrb[0].mxu0
        %v5635 = vadd.f32 0.0, %v5634
        %v5636 = vpop.f32.mrb[0].mxu0
        %v5637 = vpop.f32.mrb[0].mxu0
        %v5638 = vpop.f32.mrb[0].mxu0
        %5639 = vdwg.mxu0
        %v5640 = vadd.f32 %v5583, %v5635
        %v5641 = vadd.f32 %v3620, %v5640
        %s5642 = scalar_lea.vmem [#allocation23], 1
        %v5643 = vld [vmem:[%s5642] sm:$0x1]
        %s5644 = scalar_lea.vmem [#allocation25], 1
        %v5645 = vld [vmem:[%s5644] sm:$0x1]
        %5646 = vadd.xlane.f32.xlu0 %v5641
        %v5647 = vpop.xlane.xlu0 %5646
        %v5648 = vmul.f32 %v5647, %v1159
        %v5649 = vmul.f32 %v5641, %v5641
        %5650 = vadd.xlane.f32.xlu0 %v5649
        %v5651 = vpop.xlane.xlu0 %5650
        %v5652 = vmul.f32 %v5651, %v1159
        %v5653 = vmul.f32 %v5648, %v5648
        %v5654 = vsub.f32 %v5652, %v5653
        %v5655 = vsub.f32 %v5641, %v5648
        %v5656 = vadd.f32 %v5654, 1e-07
        %v5657 = vrsqrt.pop %v5656
        %v5658 = vmul.f32 %v5655, %v5657
        %v5660 = vlaneseq
        %v5661 = vshrl.u32 %v5660, 7
        %v5662 = vsub.s32 0, %v5661
        %v5663 = vrot.slane %v5643, %v5662
        %v5665 = vmul.f32 %v5658, %v5663
        %v5667 = vlaneseq
        %v5668 = vshrl.u32 %v5667, 7
        %v5669 = vsub.s32 0, %v5668
        %v5670 = vrot.slane %v5645, %v5669
        %v5672 = vadd.f32 %v5665, %v5670
        %v5673 = vpack.c.bf16 %v5672, %v5672
        %s5674 = scalar_lea.vmem [#allocation26], 128
        %v5675 = vld [vmem:[%s5674] sm:$0xff]
        %v5676 = vld [vmem:[%s5674 + $0x8] sm:$0xff]
        %v5677 = vld [vmem:[%s5674 + $0x10] sm:$0xff]
        %v5678 = vld [vmem:[%s5674 + $0x18] sm:$0xff]
        %v5679 = vld [vmem:[%s5674 + $0x20] sm:$0xff]
        %v5680 = vld [vmem:[%s5674 + $0x28] sm:$0xff]
        %v5681 = vld [vmem:[%s5674 + $0x30] sm:$0xff]
        %v5682 = vld [vmem:[%s5674 + $0x38] sm:$0xff]
        %v5683 = vld [vmem:[%s5674 + $0x40] sm:$0xff]
        %v5684 = vld [vmem:[%s5674 + $0x48] sm:$0xff]
        %v5685 = vld [vmem:[%s5674 + $0x50] sm:$0xff]
        %v5686 = vld [vmem:[%s5674 + $0x58] sm:$0xff]
        %v5687 = vld [vmem:[%s5674 + $0x60] sm:$0xff]
        %v5688 = vld [vmem:[%s5674 + $0x68] sm:$0xff]
        %v5689 = vld [vmem:[%s5674 + $0x70] sm:$0xff]
        %v5690 = vld [vmem:[%s5674 + $0x78] sm:$0xff]
        %s5691 = scalar_lea.vmem [#allocation28], 2
        %v5692 = vld [vmem:[%s5691] sm:$0x3]
        %v5694 = vlaneseq
        %v5695 = vshrl.u32 %v5694, 7
        %v5696 = vsub.s32 0, %v5695
        %v5697 = vrot.slane %v5692, %v5696
        %v5698 = vlaneseq
        %v5699 = vshrl.u32 %v5698, 7
        %v5700 = vsub.s32 1, %v5699
        %v5701 = vrot.slane %v5692, %v5700
        %v5720 = vunpack.c.l.b16 %v5675
        %v5721 = vunpack.c.h.b16 %v5675
        %v5722 = vunpack.c.l.b16 %v5676
        %v5723 = vunpack.c.h.b16 %v5676
        %v5724 = vunpack.c.l.b16 %v5677
        %v5725 = vunpack.c.h.b16 %v5677
        %v5726 = vunpack.c.l.b16 %v5678
        %v5727 = vunpack.c.h.b16 %v5678
        %v5728 = vunpack.c.l.b16 %v5679
        %v5729 = vunpack.c.h.b16 %v5679
        %v5730 = vunpack.c.l.b16 %v5680
        %v5731 = vunpack.c.h.b16 %v5680
        %v5732 = vunpack.c.l.b16 %v5681
        %v5733 = vunpack.c.h.b16 %v5681
        %v5734 = vunpack.c.l.b16 %v5682
        %v5735 = vunpack.c.h.b16 %v5682
        %v5736 = vunpack.c.l.b16 %v5683
        %v5737 = vunpack.c.h.b16 %v5683
        %v5738 = vunpack.c.l.b16 %v5684
        %v5739 = vunpack.c.h.b16 %v5684
        %v5740 = vunpack.c.l.b16 %v5685
        %v5741 = vunpack.c.h.b16 %v5685
        %v5742 = vunpack.c.l.b16 %v5686
        %v5743 = vunpack.c.h.b16 %v5686
        %v5744 = vunpack.c.l.b16 %v5687
        %v5745 = vunpack.c.h.b16 %v5687
        %v5746 = vunpack.c.l.b16 %v5688
        %v5747 = vunpack.c.h.b16 %v5688
        %v5748 = vunpack.c.l.b16 %v5689
        %v5749 = vunpack.c.h.b16 %v5689
        %v5750 = vunpack.c.l.b16 %v5690
        %v5751 = vunpack.c.h.b16 %v5690
        %v5752 = vpack.c.b16 %v5722, %v5720
        %v5753 = vpack.c.b16 %v5723, %v5721
        %v5754 = vpack.c.b16 %v5726, %v5724
        %v5755 = vpack.c.b16 %v5727, %v5725
        %v5756 = vpack.c.b16 %v5730, %v5728
        %v5757 = vpack.c.b16 %v5731, %v5729
        %v5758 = vpack.c.b16 %v5734, %v5732
        %v5759 = vpack.c.b16 %v5735, %v5733
        %v5760 = vpack.c.b16 %v5738, %v5736
        %v5761 = vpack.c.b16 %v5739, %v5737
        %v5762 = vpack.c.b16 %v5742, %v5740
        %v5763 = vpack.c.b16 %v5743, %v5741
        %v5764 = vpack.c.b16 %v5746, %v5744
        %v5765 = vpack.c.b16 %v5747, %v5745
        %v5766 = vpack.c.b16 %v5750, %v5748
        %v5767 = vpack.c.b16 %v5751, %v5749
        %5784 = vmatprep.subr.bf16.mxu0 %v5753
        %5785 = vmatpush1.bf16.msra.mxu0 %v5752
        %5786 = vmatprep.subr.bf16.mxu0 %v5755
        %5787 = vmatpush1.bf16.msra.mxu0 %v5754
        %5788 = vmatprep.subr.bf16.mxu0 %v5757
        %5789 = vmatpush1.bf16.msra.mxu0 %v5756
        %5790 = vmatprep.subr.bf16.mxu0 %v5759
        %5791 = vmatpush1.bf16.msra.mxu0 %v5758
        %5792 = vmatprep.subr.bf16.mxu0 %v5761
        %5793 = vmatpush1.bf16.msra.mxu0 %v5760
        %5794 = vmatprep.subr.bf16.mxu0 %v5763
        %5795 = vmatpush1.bf16.msra.mxu0 %v5762
        %5796 = vmatprep.subr.bf16.mxu0 %v5765
        %5797 = vmatpush1.bf16.msra.mxu0 %v5764
        %5798 = vmatprep.subr.bf16.mxu0 %v5767
        %5799 = vmatpush1.bf16.msra.mxu0 %v5766
        %5800 = vmatprep.subr.bf16.mxu0 0
        %5801 = vmatpush1.bf16.msra.mxu0 0
        %5802 = vmatprep.subr.bf16.mxu0 0
        %5803 = vmatpush1.bf16.msra.mxu0 0
        %5804 = vmatprep.subr.bf16.mxu0 0
        %5805 = vmatpush1.bf16.msra.mxu0 0
        %5806 = vmatprep.subr.bf16.mxu0 0
        %5807 = vmatpush1.bf16.msra.mxu0 0
        %5808 = vmatprep.subr.bf16.mxu0 0
        %5809 = vmatpush1.bf16.msra.mxu0 0
        %5810 = vmatprep.subr.bf16.mxu0 0
        %5811 = vmatpush1.bf16.msra.mxu0 0
        %5812 = vmatprep.subr.bf16.mxu0 0
        %5813 = vmatpush1.bf16.msra.mxu0 0
        %5814 = vmatprep.subr.bf16.mxu0 0
        %5815 = vmatpush1.bf16.msra.mxu0 0
        %5816 = vmatprep.mubr.bf16.mxu0 0
        %5817 = vmatmul.mubr.bf16.gmra.mrb[0].mxu0 %v5673
        %v5818 = vpop.f32.mrb[0].mxu0
        %v5819 = vadd.f32 %v5697, %v5818
        %v5820 = vpop.f32.mrb[0].mxu0
        %v5821 = vadd.f32 %v5701, %v5820
        %v5822 = vpop.f32.mrb[0].mxu0
        %v5823 = vpop.f32.mrb[0].mxu0
        %5824 = vdwg.mxu0
        %v5825 = vmul.f32 %v5819, %v5819
        %v5826 = vmul.f32 %v5821, %v5821
        %v5827 = vmul.f32 %v5819, %v5825
        %v5828 = vmul.f32 %v5821, %v5826
        %v5829 = vmul.f32 %v5827, 0.044715
        %v5830 = vmul.f32 %v5828, 0.044715
        %v5831 = vadd.f32 %v5819, %v5829
        %v5832 = vadd.f32 %v5821, %v5830
        %v5833 = vmul.f32 %v5831, 0.7978846
        %v5834 = vmul.f32 %v5832, 0.7978846
        %v5835 = vtanh.pop %v5833
        %v5836 = vtanh.pop %v5834
        %v5837 = vadd.f32 %v5835, 1.0
        %v5838 = vadd.f32 %v5836, 1.0
        %v5839 = vmul.f32 %v5837, 0.5
        %v5840 = vmul.f32 %v5838, 0.5
        %v5841 = vmul.f32 %v5819, %v5839
        %v5842 = vmul.f32 %v5821, %v5840
        %v5843 = vpack.c.bf16 %v5841, %v5841
        %v5844 = vpack.c.bf16 %v5842, %v5842
        %s5845 = scalar_lea.vmem [#allocation29], 128
        %v5846 = vld [vmem:[%s5845] sm:$0xf]
        %v5847 = vld [vmem:[%s5845 + $0x4] sm:$0xf]
        %v5848 = vld [vmem:[%s5845 + $0x8] sm:$0xf]
        %v5849 = vld [vmem:[%s5845 + $0xc] sm:$0xf]
        %v5850 = vld [vmem:[%s5845 + $0x10] sm:$0xf]
        %v5851 = vld [vmem:[%s5845 + $0x14] sm:$0xf]
        %v5852 = vld [vmem:[%s5845 + $0x18] sm:$0xf]
        %v5853 = vld [vmem:[%s5845 + $0x1c] sm:$0xf]
        %v5854 = vld [vmem:[%s5845 + $0x20] sm:$0xf]
        %v5855 = vld [vmem:[%s5845 + $0x24] sm:$0xf]
        %v5856 = vld [vmem:[%s5845 + $0x28] sm:$0xf]
        %v5857 = vld [vmem:[%s5845 + $0x2c] sm:$0xf]
        %v5858 = vld [vmem:[%s5845 + $0x30] sm:$0xf]
        %v5859 = vld [vmem:[%s5845 + $0x34] sm:$0xf]
        %v5860 = vld [vmem:[%s5845 + $0x38] sm:$0xf]
        %v5861 = vld [vmem:[%s5845 + $0x3c] sm:$0xf]
        %v5862 = vld [vmem:[%s5845 + $0x40] sm:$0xf]
        %v5863 = vld [vmem:[%s5845 + $0x44] sm:$0xf]
        %v5864 = vld [vmem:[%s5845 + $0x48] sm:$0xf]
        %v5865 = vld [vmem:[%s5845 + $0x4c] sm:$0xf]
        %v5866 = vld [vmem:[%s5845 + $0x50] sm:$0xf]
        %v5867 = vld [vmem:[%s5845 + $0x54] sm:$0xf]
        %v5868 = vld [vmem:[%s5845 + $0x58] sm:$0xf]
        %v5869 = vld [vmem:[%s5845 + $0x5c] sm:$0xf]
        %v5870 = vld [vmem:[%s5845 + $0x60] sm:$0xf]
        %v5871 = vld [vmem:[%s5845 + $0x64] sm:$0xf]
        %v5872 = vld [vmem:[%s5845 + $0x68] sm:$0xf]
        %v5873 = vld [vmem:[%s5845 + $0x6c] sm:$0xf]
        %v5874 = vld [vmem:[%s5845 + $0x70] sm:$0xf]
        %v5875 = vld [vmem:[%s5845 + $0x74] sm:$0xf]
        %v5876 = vld [vmem:[%s5845 + $0x78] sm:$0xf]
        %v5877 = vld [vmem:[%s5845 + $0x7c] sm:$0xf]
        %s5878 = scalar_lea.vmem [#allocation31], 1
        %v5879 = vld [vmem:[%s5878] sm:$0x1]
        %v5881 = vlaneseq
        %v5882 = vshrl.u32 %v5881, 7
        %v5883 = vsub.s32 0, %v5882
        %v5884 = vrot.slane %v5879, %v5883
        %v5918 = vunpack.c.l.b16 %v5846
        %v5919 = vunpack.c.l.b16 %v5847
        %v5920 = vunpack.c.l.b16 %v5848
        %v5921 = vunpack.c.l.b16 %v5849
        %v5922 = vunpack.c.l.b16 %v5850
        %v5923 = vunpack.c.l.b16 %v5851
        %v5924 = vunpack.c.l.b16 %v5852
        %v5925 = vunpack.c.l.b16 %v5853
        %v5926 = vunpack.c.l.b16 %v5854
        %v5927 = vunpack.c.l.b16 %v5855
        %v5928 = vunpack.c.l.b16 %v5856
        %v5929 = vunpack.c.l.b16 %v5857
        %v5930 = vunpack.c.l.b16 %v5858
        %v5931 = vunpack.c.l.b16 %v5859
        %v5932 = vunpack.c.l.b16 %v5860
        %v5933 = vunpack.c.l.b16 %v5861
        %v5934 = vunpack.c.l.b16 %v5862
        %v5935 = vunpack.c.l.b16 %v5863
        %v5936 = vunpack.c.l.b16 %v5864
        %v5937 = vunpack.c.l.b16 %v5865
        %v5938 = vunpack.c.l.b16 %v5866
        %v5939 = vunpack.c.l.b16 %v5867
        %v5940 = vunpack.c.l.b16 %v5868
        %v5941 = vunpack.c.l.b16 %v5869
        %v5942 = vunpack.c.l.b16 %v5870
        %v5943 = vunpack.c.l.b16 %v5871
        %v5944 = vunpack.c.l.b16 %v5872
        %v5945 = vunpack.c.l.b16 %v5873
        %v5946 = vunpack.c.l.b16 %v5874
        %v5947 = vunpack.c.l.b16 %v5875
        %v5948 = vunpack.c.l.b16 %v5876
        %v5949 = vunpack.c.l.b16 %v5877
        %v5950 = vpack.c.b16 %v5919, %v5918
        %v5951 = vpack.c.b16 %v5921, %v5920
        %v5952 = vpack.c.b16 %v5923, %v5922
        %v5953 = vpack.c.b16 %v5925, %v5924
        %v5954 = vpack.c.b16 %v5927, %v5926
        %v5955 = vpack.c.b16 %v5929, %v5928
        %v5956 = vpack.c.b16 %v5931, %v5930
        %v5957 = vpack.c.b16 %v5933, %v5932
        %v5958 = vpack.c.b16 %v5935, %v5934
        %v5959 = vpack.c.b16 %v5937, %v5936
        %v5960 = vpack.c.b16 %v5939, %v5938
        %v5961 = vpack.c.b16 %v5941, %v5940
        %v5962 = vpack.c.b16 %v5943, %v5942
        %v5963 = vpack.c.b16 %v5945, %v5944
        %v5964 = vpack.c.b16 %v5947, %v5946
        %v5965 = vpack.c.b16 %v5949, %v5948
        %5982 = vmatprep.subr.bf16.mxu0 0
        %5983 = vmatpush1.bf16.msra.mxu0 %v5950
        %5984 = vmatprep.subr.bf16.mxu0 0
        %5985 = vmatpush1.bf16.msra.mxu0 %v5951
        %5986 = vmatprep.subr.bf16.mxu0 0
        %5987 = vmatpush1.bf16.msra.mxu0 %v5952
        %5988 = vmatprep.subr.bf16.mxu0 0
        %5989 = vmatpush1.bf16.msra.mxu0 %v5953
        %5990 = vmatprep.subr.bf16.mxu0 0
        %5991 = vmatpush1.bf16.msra.mxu0 %v5954
        %5992 = vmatprep.subr.bf16.mxu0 0
        %5993 = vmatpush1.bf16.msra.mxu0 %v5955
        %5994 = vmatprep.subr.bf16.mxu0 0
        %5995 = vmatpush1.bf16.msra.mxu0 %v5956
        %5996 = vmatprep.subr.bf16.mxu0 0
        %5997 = vmatpush1.bf16.msra.mxu0 %v5957
        %5998 = vmatprep.subr.bf16.mxu0 0
        %5999 = vmatpush1.bf16.msra.mxu0 %v5958
        %6000 = vmatprep.subr.bf16.mxu0 0
        %6001 = vmatpush1.bf16.msra.mxu0 %v5959
        %6002 = vmatprep.subr.bf16.mxu0 0
        %6003 = vmatpush1.bf16.msra.mxu0 %v5960
        %6004 = vmatprep.subr.bf16.mxu0 0
        %6005 = vmatpush1.bf16.msra.mxu0 %v5961
        %6006 = vmatprep.subr.bf16.mxu0 0
        %6007 = vmatpush1.bf16.msra.mxu0 %v5962
        %6008 = vmatprep.subr.bf16.mxu0 0
        %6009 = vmatpush1.bf16.msra.mxu0 %v5963
        %6010 = vmatprep.subr.bf16.mxu0 0
        %6011 = vmatpush1.bf16.msra.mxu0 %v5964
        %6012 = vmatprep.subr.bf16.mxu0 0
        %6013 = vmatpush1.bf16.msra.mxu0 %v5965
        %6014 = vmatprep.mubr.bf16.mxu0 %v5844
        %6015 = vmatmul.mubr.bf16.gmra.mrb[0].mxu0 %v5843
        %v6016 = vpop.f32.mrb[0].mxu0
        %v6017 = vadd.f32 %v5884, %v6016
        %v6018 = vpop.f32.mrb[0].mxu0
        %v6019 = vpop.f32.mrb[0].mxu0
        %v6020 = vpop.f32.mrb[0].mxu0
        %6021 = vdwg.mxu0
        %v6022 = vadd.f32 %v5672, %v6017
        %s6023 = scalar_lea.vmem [#allocation32], 1
        %v6024 = vld [vmem:[%s6023] sm:$0x1]
        %s6025 = scalar_lea.vmem [#allocation34], 1
        %v6026 = vld [vmem:[%s6025] sm:$0x1]
        %6027 = vadd.xlane.f32.xlu0 %v6022
        %v6028 = vpop.xlane.xlu0 %6027
        %v6029 = vmul.f32 %v6028, %v1159
        %v6030 = vmul.f32 %v6022, %v6022
        %6031 = vadd.xlane.f32.xlu0 %v6030
        %v6032 = vpop.xlane.xlu0 %6031
        %v6033 = vmul.f32 %v6032, %v1159
        %v6034 = vmul.f32 %v6029, %v6029
        %v6035 = vsub.f32 %v6033, %v6034
        %v6036 = vsub.f32 %v6022, %v6029
        %v6037 = vadd.f32 %v6035, 1e-07
        %v6038 = vrsqrt.pop %v6037
        %v6039 = vmul.f32 %v6036, %v6038
        %v6041 = vlaneseq
        %v6042 = vshrl.u32 %v6041, 7
        %v6043 = vsub.s32 0, %v6042
        %v6044 = vrot.slane %v6024, %v6043
        %v6046 = vmul.f32 %v6039, %v6044
        %v6048 = vlaneseq
        %v6049 = vshrl.u32 %v6048, 7
        %v6050 = vsub.s32 0, %v6049
        %v6051 = vrot.slane %v6026, %v6050
        %v6053 = vadd.f32 %v6046, %v6051
        %v6054 = vpack.c.bf16 %v6053, %v6053
        %v6055 = vld [vmem:[#allocation35] sm:$0xf]
        %v6056 = vld [vmem:[#allocation35 + $0x4] sm:$0xf]
        %v6057 = vld [vmem:[#allocation35 + $0x8] sm:$0xf]
        %v6058 = vld [vmem:[#allocation35 + $0xc] sm:$0xf]
        %v6059 = vld [vmem:[#allocation35 + $0x10] sm:$0xf]
        %v6060 = vld [vmem:[#allocation35 + $0x14] sm:$0xf]
        %v6061 = vld [vmem:[#allocation35 + $0x18] sm:$0xf]
        %v6062 = vld [vmem:[#allocation35 + $0x1c] sm:$0xf]
        %v6063 = vld [vmem:[#allocation35 + $0x20] sm:$0xf]
        %v6064 = vld [vmem:[#allocation35 + $0x24] sm:$0xf]
        %v6065 = vld [vmem:[#allocation35 + $0x28] sm:$0xf]
        %v6066 = vld [vmem:[#allocation35 + $0x2c] sm:$0xf]
        %v6067 = vld [vmem:[#allocation35 + $0x30] sm:$0xf]
        %v6068 = vld [vmem:[#allocation35 + $0x34] sm:$0xf]
        %v6069 = vld [vmem:[#allocation35 + $0x38] sm:$0xf]
        %v6070 = vld [vmem:[#allocation35 + $0x3c] sm:$0xf]
        %v6071 = vld [vmem:[#allocation37] sm:$0x1]
        %v6088 = vunpack.c.l.b16 %v6055
        %v6089 = vunpack.c.l.b16 %v6056
        %v6090 = vunpack.c.l.b16 %v6057
        %v6091 = vunpack.c.l.b16 %v6058
        %v6092 = vunpack.c.l.b16 %v6059
        %v6093 = vunpack.c.l.b16 %v6060
        %v6094 = vunpack.c.l.b16 %v6061
        %v6095 = vunpack.c.l.b16 %v6062
        %v6096 = vunpack.c.l.b16 %v6063
        %v6097 = vunpack.c.l.b16 %v6064
        %v6098 = vunpack.c.l.b16 %v6065
        %v6099 = vunpack.c.l.b16 %v6066
        %v6100 = vunpack.c.l.b16 %v6067
        %v6101 = vunpack.c.l.b16 %v6068
        %v6102 = vunpack.c.l.b16 %v6069
        %v6103 = vunpack.c.l.b16 %v6070
        %v6104 = vpack.c.b16 %v6089, %v6088
        %v6105 = vpack.c.b16 %v6091, %v6090
        %v6106 = vpack.c.b16 %v6093, %v6092
        %v6107 = vpack.c.b16 %v6095, %v6094
        %v6108 = vpack.c.b16 %v6097, %v6096
        %v6109 = vpack.c.b16 %v6099, %v6098
        %v6110 = vpack.c.b16 %v6101, %v6100
        %v6111 = vpack.c.b16 %v6103, %v6102
        %6120 = vmatprep.subr.bf16.mxu0 0
        %6121 = vmatpush1.bf16.msra.mxu0 %v6104
        %6122 = vmatprep.subr.bf16.mxu0 0
        %6123 = vmatpush1.bf16.msra.mxu0 %v6105
        %6124 = vmatprep.subr.bf16.mxu0 0
        %6125 = vmatpush1.bf16.msra.mxu0 %v6106
        %6126 = vmatprep.subr.bf16.mxu0 0
        %6127 = vmatpush1.bf16.msra.mxu0 %v6107
        %6128 = vmatprep.subr.bf16.mxu0 0
        %6129 = vmatpush1.bf16.msra.mxu0 %v6108
        %6130 = vmatprep.subr.bf16.mxu0 0
        %6131 = vmatpush1.bf16.msra.mxu0 %v6109
        %6132 = vmatprep.subr.bf16.mxu0 0
        %6133 = vmatpush1.bf16.msra.mxu0 %v6110
        %6134 = vmatprep.subr.bf16.mxu0 0
        %6135 = vmatpush1.bf16.msra.mxu0 %v6111
        %6136 = vmatprep.subr.bf16.mxu0 0
        %6137 = vmatpush1.bf16.msra.mxu0 0
        %6138 = vmatprep.subr.bf16.mxu0 0
        %6139 = vmatpush1.bf16.msra.mxu0 0
        %6140 = vmatprep.subr.bf16.mxu0 0
        %6141 = vmatpush1.bf16.msra.mxu0 0
        %6142 = vmatprep.subr.bf16.mxu0 0
        %6143 = vmatpush1.bf16.msra.mxu0 0
        %6144 = vmatprep.subr.bf16.mxu0 0
        %6145 = vmatpush1.bf16.msra.mxu0 0
        %6146 = vmatprep.subr.bf16.mxu0 0
        %6147 = vmatpush1.bf16.msra.mxu0 0
        %6148 = vmatprep.subr.bf16.mxu0 0
        %6149 = vmatpush1.bf16.msra.mxu0 0
        %6150 = vmatprep.subr.bf16.mxu0 0
        %6151 = vmatpush1.bf16.msra.mxu0 0
        %6152 = vmatprep.mubr.bf16.mxu0 0
        %6153 = vmatmul.mubr.bf16.gmra.mrb[0].mxu0 %v6054
        %v6154 = vpop.f32.mrb[0].mxu0
        %v6155 = vadd.f32 %v6071, %v6154
        %v6156 = vpop.f32.mrb[0].mxu0
        %v6157 = vpop.f32.mrb[0].mxu0
        %v6158 = vpop.f32.mrb[0].mxu0
        %6159 = vdwg.mxu0
        %6160 = vst [vmem:[%s1053] sm:$0x1] %v6155
        %s6161 = sand.u32 %s554, 1
        %s6162 = scalar_lea.sflag [#allocation4], %s6161
        %s6163 = sand.u32 %s554, 1
        %s6164 = scalar_lea.vmem [#allocation38], %s6163
        // Predicated region
        $region205: #{deberta_multitask_forward.1} parent=111 // pred_check
          %p6165 = pneg %p564
        $region206: #{deberta_multitask_forward.1} parent=111 // pred_check_branch
          %6167 = sbr.rel (%p6165) target = $region208
        $region207: #{deberta_multitask_forward.1} parent=111 // pred_region
          %s6169 = ssub.s32 16, 16
          %6170 = vsyncadd %s6162, %s6169
          %s6171 = smul.addr %s53, 16
          %s6172 = scalar_lea.hbm %s23, %s6171
          %s6174 = sshll.u32 %s6164, 4
          %s6175 = int_to_ptr.vmem [resolvable:$true] %s6174
          %6177 = dma.vmem_to_hbm [thread:$0]  %s6175, 16, %s6172, %s6162
        $region208: #{deberta_multitask_forward.1} parent=111 // pred_fallthru
          _
      $region112: #{deberta_multitask_forward.1} parent=5 // pred_fallthru
        _
      %p6178 = scmp.le.s32.totalorder 2, %s48
      // Predicated region
      $region209: #{deberta_multitask_forward.1} parent=5 // pred_check
        %p6179 = pneg %p6178
      $region210: #{deberta_multitask_forward.1} parent=5 // pred_check_branch
        %6181 = sbr.rel (%p6179) target = $region212
      $region211: #{deberta_multitask_forward.1} parent=5 // pred_region
        %s6182 = ssub.s32 %s48, 2
        // Predicated region
        $region213: #{deberta_multitask_forward.1} parent=211 // pred_check
          %p6183 = pneg %p570
        $region214: #{deberta_multitask_forward.1} parent=211 // pred_check_branch
          %6185 = sbr.rel (%p6183) target = $region216
        $region215: #{deberta_multitask_forward.1} parent=211 // pred_region
          %s6186 = sand.u32 %s555, 1
          %s6187 = scalar_lea.sflag [#allocation4], %s6186
          %s6188 = sand.u32 %s555, 1
          %s6189 = scalar_lea.vmem [#allocation38], %s6188
          %6190 = dma.done %s6187, 16
        $region216: #{deberta_multitask_forward.1} parent=211 // pred_fallthru
          _
      $region212: #{deberta_multitask_forward.1} parent=5 // pred_fallthru
        _
    $region6: #{deberta_multitask_forward.1} parent=1 // loop_footer
      %s52 = sadd.s32 1, %s48
    $region7: #{deberta_multitask_forward.1} parent=1 // loop_footer_branch
      %47 = sbr.rel target = $region3
    $region8: #{deberta_multitask_forward.1} parent=1 // loop_exit
      _
    %6191 = vsyncpa [#allocation3], 1
    %s6192 = scalar_lea.sflag [#allocation3], 1
    %6193 = vsyncpa %s6192, 1
    %6194 = vsyncpa [#allocation6], 1
    %s6195 = scalar_lea.sflag [#allocation6], 1
    %6196 = vsyncpa %s6195, 1
    %6197 = vsyncpa [#allocation9], 1
    %6198 = vsyncpa [#allocation12], 1
    %6199 = vsyncpa [#allocation15], 1
    %6200 = vsyncpa [#allocation18], 1
    %6201 = vsyncpa [#allocation21], 1
    %6202 = vsyncpa [#allocation24], 1
    %6203 = vsyncpa [#allocation27], 1
    %6204 = vsyncpa [#allocation30], 1
    %6205 = vsyncpa [#allocation33], 1
    %6206 = vsyncpa [#allocation36], 1
    %6207 = vsyncpa [#allocation4], 1
    %s6208 = scalar_lea.sflag [#allocation4], 1
    %6209 = vsyncpa %s6208, 1

</llo_original>
